<compile_context>
chip_gen: v7x
topology: tpu7x:2x2x1
jax: 0.10.0
libtpu: 0.0.40
codegen_flags: <defaults>
</compile_context>

<pallas_src>
import math

import jax
import jax.numpy as jnp
from jax import lax
from jax.experimental import pallas as pl
from jax.experimental.pallas import tpu as pltpu

_N_ODE_STEPS = 9                      # torch.linspace(0, 1, 10) -> 9 intervals
_DT = 1.0 / _N_ODE_STEPS


def lstm_ode_kernel(x_ref,            # (T*B, I)  f32 time-major flattened input
                    wih_ref,          # (I, 4H)   bf16 LSTM input weights (transposed)
                    whh_ref,          # (H, 4H)   bf16 LSTM hidden weights (transposed)
                    bl_ref,           # (1, 4H)   f32 combined LSTM bias (b_ih + b_hh)
                    w1_ref, b1_ref,   # (H, 2H) bf16, (1, 2H) f32   ODE func layer 1
                    w2_ref, b2_ref,   # (2H, H) bf16, (1, H) f32    ODE func layer 2
                    wf_ref, bf_ref,   # (F, H) f32, (1, F) f32      final linear
                    out_ref,          # (B, F)    f32
                    xproj_ref):       # (T, B, 4H) f32 VMEM scratch (hoisted x @ W_ih)
    T, B, H4 = xproj_ref.shape
    H = whh_ref.shape[0]
    F = out_ref.shape[1]

    wih = wih_ref[...]                # bf16
    whh = whh_ref[...]                # bf16
    bl = bl_ref[...]                  # f32

    # ----- Hoisted input projection: one (T*B, I) x (I, 4H) matmul, f32 accum -----
    x_bf = x_ref[...].astype(jnp.bfloat16)
    xproj_ref[...] = (jnp.dot(x_bf, wih, preferred_element_type=jnp.float32)
                      + bl).reshape(T, B, H4)

    # Lane mask for the tanh ("g") gate region [2H, 3H) on the full 4H lanes.
    # Hoisted so the broadcast iota is built once, not per time step.
    lane = lax.broadcasted_iota(jnp.int32, (B, H4), 1)
    is_g = jnp.logical_and(lane >= 2 * H, lane < 3 * H)

    # ----- LSTM recurrence (PyTorch gate order i, f, g, o), fully unrolled -----
    def lstm_step(t, carry):
        h, c = carry
        gates = xproj_ref[t] + jnp.dot(h.astype(jnp.bfloat16), whh,
                                       preferred_element_type=jnp.float32)  # (B, 4H)
        # Full-128-lane transcendentals (EUP) + select, then slice the gates.
        act = jnp.where(is_g, jnp.tanh(gates), jax.nn.sigmoid(gates))
        i_g = act[:, 0:H]
        f_g = act[:, H:2 * H]
        g_g = act[:, 2 * H:3 * H]
        o_g = act[:, 3 * H:4 * H]
        c_new = f_g * c + i_g * g_g
        h_new = o_g * jnp.tanh(c_new)
        return (h_new, c_new)

    h0 = jnp.zeros((B, H), jnp.float32)
    c0 = jnp.zeros((B, H), jnp.float32)
    h_last, _ = lax.fori_loop(0, T, lstm_step, (h0, c0), unroll=True)

    # ----- ODE block: dy/dt = W2 @ tanh(W1 @ y + b1) + b2 over [0, 1] -----
    w1 = w1_ref[...]                  # bf16
    b1 = b1_ref[...]                  # f32
    w2 = w2_ref[...]                  # bf16
    b2 = b2_ref[...]                  # f32

    def f_ode(y):
        hmid = jnp.tanh(jnp.dot(y.astype(jnp.bfloat16), w1,
                                preferred_element_type=jnp.float32) + b1)
        return jnp.dot(hmid.astype(jnp.bfloat16), w2,
                       preferred_element_type=jnp.float32) + b2

    # dt folded into the Butcher tableau at trace time (Python floats).
    dt = _DT
    a21 = dt * (1.0 / 5.0)
    a31, a32 = dt * (3.0 / 40.0), dt * (9.0 / 40.0)
    a41, a42, a43 = dt * (44.0 / 45.0), dt * (-56.0 / 15.0), dt * (32.0 / 9.0)
    a51, a52, a53, a54 = (dt * (19372.0 / 6561.0), dt * (-25360.0 / 2187.0),
                          dt * (64448.0 / 6561.0), dt * (-212.0 / 729.0))
    a61, a62, a63, a64, a65 = (dt * (9017.0 / 3168.0), dt * (-355.0 / 33.0),
                               dt * (46732.0 / 5247.0), dt * (49.0 / 176.0),
                               dt * (-5103.0 / 18656.0))
    c1, c3, c4, c5, c6 = (dt * (35.0 / 384.0), dt * (500.0 / 1113.0),
                          dt * (125.0 / 192.0), dt * (-2187.0 / 6784.0),
                          dt * (11.0 / 84.0))

    def dopri5_step(_, y):
        k1 = f_ode(y)
        k2 = f_ode(y + a21 * k1)
        k3 = f_ode(y + a31 * k1 + a32 * k2)
        k4 = f_ode(y + a41 * k1 + a42 * k2 + a43 * k3)
        k5 = f_ode(y + a51 * k1 + a52 * k2 + a53 * k3 + a54 * k4)
        k6 = f_ode(y + a61 * k1 + a62 * k2 + a63 * k3 + a64 * k4 + a65 * k5)
        return y + c1 * k1 + c3 * k3 + c4 * k4 + c5 * k5 + c6 * k6

    y_final = lax.fori_loop(0, _N_ODE_STEPS, dopri5_step, h_last, unroll=True)

    # ----- Final linear head -----
    wf = wf_ref[...]                  # (F, H) f32
    bf = bf_ref[...]                  # (1, F) f32
    if F == 1:
        # VPU multiply + lane reduce; avoids a 1-column MXU matmul + masked store.
        out_ref[...] = jnp.sum(y_final * wf, axis=-1, keepdims=True) + bf
    else:
        out_ref[...] = lax.dot_general(
            y_final, wf, (((1,), (1,)), ((), ())),
            preferred_element_type=jnp.float32) + bf


def xavier_uniform(key, out_features, in_features):
    # Matches torch.nn.init.xavier_uniform_ on a (out, in) weight tensor.
    bound = math.sqrt(6.0 / (in_features + out_features))
    return jax.random.uniform(key, (out_features, in_features), jnp.float32,
                              -bound, bound)


def init_params(key, input_size=6, hidden_size=32, future_steps=1):
    H = hidden_size
    k = jax.random.split(key, 5)
    # LSTM weights (PyTorch shapes); biases filled with 0.01 each (b_ih + b_hh = 0.02).
    w_ih = xavier_uniform(k[0], 4 * H, input_size)       # (4H, I)
    w_hh = xavier_uniform(k[1], 4 * H, H)                # (4H, H)
    b_lstm = jnp.full((1, 4 * H), 0.02, jnp.float32)     # b_ih + b_hh
    # ODEFunc: Linear(H, 2H) -> Tanh -> Linear(2H, H), biases 0.01.
    w1 = xavier_uniform(k[2], 2 * H, H)                  # (2H, H)
    b1 = jnp.full((1, 2 * H), 0.01, jnp.float32)
    w2 = xavier_uniform(k[3], H, 2 * H)                  # (H, 2H)
    b2 = jnp.full((1, H), 0.01, jnp.float32)
    # Final linear head.
    wf = xavier_uniform(k[4], future_steps, H)           # (F, H)
    bf = jnp.full((1, future_steps), 0.01, jnp.float32)
    return dict(w_ih=w_ih, w_hh=w_hh, b_lstm=b_lstm,
                w1=w1, b1=b1, w2=w2, b2=b2, wf=wf, bf=bf)


def prepare_params(params):
    """One-time weight transposes + bf16 casts (MXU operands); biases stay f32."""
    return dict(
        wih_t=jnp.transpose(params["w_ih"]).astype(jnp.bfloat16),   # (I, 4H)
        whh_t=jnp.transpose(params["w_hh"]).astype(jnp.bfloat16),   # (H, 4H)
        b_lstm=params["b_lstm"].astype(jnp.float32),                # (1, 4H)
        w1_t=jnp.transpose(params["w1"]).astype(jnp.bfloat16),      # (H, 2H)
        b1=params["b1"].astype(jnp.float32),                        # (1, 2H)
        w2_t=jnp.transpose(params["w2"]).astype(jnp.bfloat16),      # (2H, H)
        b2=params["b2"].astype(jnp.float32),                        # (1, H)
        wf=params["wf"].astype(jnp.float32),                        # (F, H)
        bf=params["bf"].astype(jnp.float32),                        # (1, F)
    )


@jax.jit
def lstm_ode_forward(x, prep):
    # x: (B, T, I) float32 — batch_first like the PyTorch module.
    B, T, I = x.shape
    H4 = prep["wih_t"].shape[1]
    F = prep["wf"].shape[0]

    # Time-major flatten so the input projection is a single matmul in-kernel.
    x_flat = jnp.transpose(x, (1, 0, 2)).reshape(T * B, I).astype(jnp.float32)

    vmem = pl.BlockSpec(memory_space=pltpu.MemorySpace.VMEM)
    # Everything (inputs, weights, scratch) is < 50 KB: no grid, no tiling,
    # no vmem_limit override needed on any TPU generation.
    out = pl.pallas_call(
        lstm_ode_kernel,
        out_shape=jax.ShapeDtypeStruct((B, F), jnp.float32),
        in_specs=[vmem] * 10,
        out_specs=vmem,
        scratch_shapes=[pltpu.VMEM((T, B, H4), jnp.float32)],
    )(x_flat, prep["wih_t"], prep["whh_t"], prep["b_lstm"],
      prep["w1_t"], prep["b1"], prep["w2_t"], prep["b2"],
      prep["wf"], prep["bf"])
    return out


if __name__ == "__main__":
    key = jax.random.PRNGKey(0)
    k_param, k_x = jax.random.split(key)

    input_size, hidden_size, future_steps = 6, 32, 1
    batch, seq = 2, 8

    params = init_params(k_param, input_size, hidden_size, future_steps)
    prep = prepare_params(params)
    x = jax.random.normal(k_x, (batch, seq, input_size), jnp.float32)

    pred = lstm_ode_forward(x, prep)
    pred = jax.block_until_ready(pred)
    assert pred.shape == (batch, future_steps)
    assert bool(jnp.all(jnp.isfinite(pred)))
    print("KERNEL_OK")
</pallas_src>

<mosaic_0001>
module attributes {stable_mosaic.version = 11 : i64} {
  func.func @lstm_ode_kernel(%arg0: memref<16x6xf32, #tpu.memory_space<vmem>>, %arg1: memref<6x128xbf16, #tpu.memory_space<vmem>>, %arg2: memref<32x128xbf16, #tpu.memory_space<vmem>>, %arg3: memref<1x128xf32, #tpu.memory_space<vmem>>, %arg4: memref<32x64xbf16, #tpu.memory_space<vmem>>, %arg5: memref<1x64xf32, #tpu.memory_space<vmem>>, %arg6: memref<64x32xbf16, #tpu.memory_space<vmem>>, %arg7: memref<1x32xf32, #tpu.memory_space<vmem>>, %arg8: memref<1x32xf32, #tpu.memory_space<vmem>>, %arg9: memref<1x1xf32, #tpu.memory_space<vmem>>, %arg10: memref<2x1xf32, #tpu.memory_space<vmem>>, %arg11: memref<8x2x128xf32, #tpu.memory_space<vmem>>) attributes {dimension_semantics = [], scalar_prefetch = 0 : i64, scratch_operands = 1 : i64, tpu.core_type = #tpu.core_type<tc>} {
    %c0 = arith.constant 0 : index
    %c0_0 = arith.constant 0 : index
    %0 = vector.load %arg1[%c0, %c0_0] : memref<6x128xbf16, #tpu.memory_space<vmem>>, vector<6x128xbf16>
    %c0_1 = arith.constant 0 : index
    %c0_2 = arith.constant 0 : index
    %1 = vector.load %arg2[%c0_1, %c0_2] : memref<32x128xbf16, #tpu.memory_space<vmem>>, vector<32x128xbf16>
    %c0_3 = arith.constant 0 : index
    %c0_4 = arith.constant 0 : index
    %2 = vector.load %arg3[%c0_3, %c0_4] : memref<1x128xf32, #tpu.memory_space<vmem>>, vector<1x128xf32>
    %c0_5 = arith.constant 0 : index
    %c0_6 = arith.constant 0 : index
    %3 = vector.load %arg0[%c0_5, %c0_6] : memref<16x6xf32, #tpu.memory_space<vmem>>, vector<16x6xf32>
    %4 = arith.truncf %3 : vector<16x6xf32> to vector<16x6xbf16>
    %cst = arith.constant dense<0.000000e+00> : vector<16x128xf32>
    %5 = tpu.matmul %4, %0, %cst {dimension_numbers = #tpu.dot_dimension_numbers<[1], [0], [0], [1], [0, 0, 1, 1], [], []>} : vector<16x6xbf16>, vector<6x128xbf16>, vector<16x128xf32> -> vector<16x128xf32>
    %6 = vector.broadcast %2 : vector<1x128xf32> to vector<16x128xf32>
    %7 = arith.addf %5, %6 : vector<16x128xf32>
    %8 = vector.shape_cast %7 : vector<16x128xf32> to vector<8x2x128xf32>
    %c0_7 = arith.constant 0 : index
    %c0_8 = arith.constant 0 : index
    %c0_9 = arith.constant 0 : index
    %9 = vector.load %arg11[%c0_7, %c0_8, %c0_9] : memref<8x2x128xf32, #tpu.memory_space<vmem>>, vector<8x2x128xf32>
    tpu.vector_store %arg11[%c0_7, %c0_8, %c0_9], %8 {strides = array<i32>} : memref<8x2x128xf32, #tpu.memory_space<vmem>>, vector<8x2x128xf32>,
    %10 = tpu.iota {dimensions = array<i32: 1>} : vector<2x128xi32>
    %c64_i32 = arith.constant 64 : i32
    %11 = vector.broadcast %c64_i32 : i32 to vector<2x128xi32>
    %12 = arith.cmpi sge, %10, %11 : vector<2x128xi32>
    %c96_i32 = arith.constant 96 : i32
    %13 = vector.broadcast %c96_i32 : i32 to vector<2x128xi32>
    %14 = arith.cmpi slt, %10, %13 : vector<2x128xi32>
    %15 = arith.andi %12, %14 : vector<2x128xi1>
    %cst_10 = arith.constant 0.000000e+00 : f32
    %16 = vector.broadcast %cst_10 : f32 to vector<2x32xf32>
    %cst_11 = arith.constant 0.000000e+00 : f32
    %17 = vector.broadcast %cst_11 : f32 to vector<2x32xf32>
    %c0_i32 = arith.constant 0 : i32
    %18 = arith.index_cast %c0_i32 : i32 to index
    %c0_12 = arith.constant 0 : index
    %c0_13 = arith.constant 0 : index
    %19 = vector.load %arg11[%18, %c0_12, %c0_13] : memref<8x2x128xf32, #tpu.memory_space<vmem>>, vector<1x2x128xf32>
    %20 = vector.shape_cast %19 : vector<1x2x128xf32> to vector<2x128xf32>
    %21 = arith.truncf %16 : vector<2x32xf32> to vector<2x32xbf16>
    %cst_14 = arith.constant dense<0.000000e+00> : vector<2x128xf32>
    %22 = tpu.matmul %21, %1, %cst_14 {dimension_numbers = #tpu.dot_dimension_numbers<[1], [0], [0], [1], [0, 0, 1, 1], [], []>} : vector<2x32xbf16>, vector<32x128xbf16>, vector<2x128xf32> -> vector<2x128xf32>
    %23 = arith.addf %20, %22 : vector<2x128xf32>
    %24 = math.tanh %23 : vector<2x128xf32>
    %25 = arith.negf %23 : vector<2x128xf32>
    %26 = math.exp %25 : vector<2x128xf32>
    %cst_15 = arith.constant 1.000000e+00 : f32
    %27 = vector.broadcast %cst_15 : f32 to vector<2x128xf32>
    %28 = arith.addf %27, %26 : vector<2x128xf32>
    %29 = arith.divf %27, %28 : vector<2x128xf32>
    %30 = arith.select %15, %24, %29 : vector<2x128xi1>, vector<2x128xf32>
    %31 = vector.extract_strided_slice %30 {offsets = [0, 0], sizes = [2, 32], strides = [1, 1]} : vector<2x128xf32> to vector<2x32xf32>
    %32 = vector.extract_strided_slice %30 {offsets = [0, 32], sizes = [2, 32], strides = [1, 1]} : vector<2x128xf32> to vector<2x32xf32>
    %33 = vector.extract_strided_slice %30 {offsets = [0, 64], sizes = [2, 32], strides = [1, 1]} : vector<2x128xf32> to vector<2x32xf32>
    %34 = vector.extract_strided_slice %30 {offsets = [0, 96], sizes = [2, 32], strides = [1, 1]} : vector<2x128xf32> to vector<2x32xf32>
    %35 = arith.mulf %32, %17 : vector<2x32xf32>
    %36 = arith.mulf %31, %33 : vector<2x32xf32>
    %37 = arith.addf %35, %36 : vector<2x32xf32>
    %38 = math.tanh %37 : vector<2x32xf32>
    %39 = arith.mulf %34, %38 : vector<2x32xf32>
    %c1_i32 = arith.constant 1 : i32
    %40 = arith.index_cast %c1_i32 : i32 to index
    %c0_16 = arith.constant 0 : index
    %c0_17 = arith.constant 0 : index
    %41 = vector.load %arg11[%40, %c0_16, %c0_17] : memref<8x2x128xf32, #tpu.memory_space<vmem>>, vector<1x2x128xf32>
    %42 = vector.shape_cast %41 : vector<1x2x128xf32> to vector<2x128xf32>
    %43 = arith.truncf %39 : vector<2x32xf32> to vector<2x32xbf16>
    %cst_18 = arith.constant dense<0.000000e+00> : vector<2x128xf32>
    %44 = tpu.matmul %43, %1, %cst_18 {dimension_numbers = #tpu.dot_dimension_numbers<[1], [0], [0], [1], [0, 0, 1, 1], [], []>} : vector<2x32xbf16>, vector<32x128xbf16>, vector<2x128xf32> -> vector<2x128xf32>
    %45 = arith.addf %42, %44 : vector<2x128xf32>
    %46 = math.tanh %45 : vector<2x128xf32>
    %47 = arith.negf %45 : vector<2x128xf32>
    %48 = math.exp %47 : vector<2x128xf32>
    %cst_19 = arith.constant 1.000000e+00 : f32
    %49 = vector.broadcast %cst_19 : f32 to vector<2x128xf32>
    %50 = arith.addf %49, %48 : vector<2x128xf32>
    %51 = arith.divf %49, %50 : vector<2x128xf32>
    %52 = arith.select %15, %46, %51 : vector<2x128xi1>, vector<2x128xf32>
    %53 = vector.extract_strided_slice %52 {offsets = [0, 0], sizes = [2, 32], strides = [1, 1]} : vector<2x128xf32> to vector<2x32xf32>
    %54 = vector.extract_strided_slice %52 {offsets = [0, 32], sizes = [2, 32], strides = [1, 1]} : vector<2x128xf32> to vector<2x32xf32>
    %55 = vector.extract_strided_slice %52 {offsets = [0, 64], sizes = [2, 32], strides = [1, 1]} : vector<2x128xf32> to vector<2x32xf32>
    %56 = vector.extract_strided_slice %52 {offsets = [0, 96], sizes = [2, 32], strides = [1, 1]} : vector<2x128xf32> to vector<2x32xf32>
    %57 = arith.mulf %54, %37 : vector<2x32xf32>
    %58 = arith.mulf %53, %55 : vector<2x32xf32>
    %59 = arith.addf %57, %58 : vector<2x32xf32>
    %60 = math.tanh %59 : vector<2x32xf32>
    %61 = arith.mulf %56, %60 : vector<2x32xf32>
    %c2_i32 = arith.constant 2 : i32
    %62 = arith.index_cast %c2_i32 : i32 to index
    %c0_20 = arith.constant 0 : index
    %c0_21 = arith.constant 0 : index
    %63 = vector.load %arg11[%62, %c0_20, %c0_21] : memref<8x2x128xf32, #tpu.memory_space<vmem>>, vector<1x2x128xf32>
    %64 = vector.shape_cast %63 : vector<1x2x128xf32> to vector<2x128xf32>
    %65 = arith.truncf %61 : vector<2x32xf32> to vector<2x32xbf16>
    %cst_22 = arith.constant dense<0.000000e+00> : vector<2x128xf32>
    %66 = tpu.matmul %65, %1, %cst_22 {dimension_numbers = #tpu.dot_dimension_numbers<[1], [0], [0], [1], [0, 0, 1, 1], [], []>} : vector<2x32xbf16>, vector<32x128xbf16>, vector<2x128xf32> -> vector<2x128xf32>
    %67 = arith.addf %64, %66 : vector<2x128xf32>
    %68 = math.tanh %67 : vector<2x128xf32>
    %69 = arith.negf %67 : vector<2x128xf32>
    %70 = math.exp %69 : vector<2x128xf32>
    %cst_23 = arith.constant 1.000000e+00 : f32
    %71 = vector.broadcast %cst_23 : f32 to vector<2x128xf32>
    %72 = arith.addf %71, %70 : vector<2x128xf32>
    %73 = arith.divf %71, %72 : vector<2x128xf32>
    %74 = arith.select %15, %68, %73 : vector<2x128xi1>, vector<2x128xf32>
    %75 = vector.extract_strided_slice %74 {offsets = [0, 0], sizes = [2, 32], strides = [1, 1]} : vector<2x128xf32> to vector<2x32xf32>
    %76 = vector.extract_strided_slice %74 {offsets = [0, 32], sizes = [2, 32], strides = [1, 1]} : vector<2x128xf32> to vector<2x32xf32>
    %77 = vector.extract_strided_slice %74 {offsets = [0, 64], sizes = [2, 32], strides = [1, 1]} : vector<2x128xf32> to vector<2x32xf32>
    %78 = vector.extract_strided_slice %74 {offsets = [0, 96], sizes = [2, 32], strides = [1, 1]} : vector<2x128xf32> to vector<2x32xf32>
    %79 = arith.mulf %76, %59 : vector<2x32xf32>
    %80 = arith.mulf %75, %77 : vector<2x32xf32>
    %81 = arith.addf %79, %80 : vector<2x32xf32>
    %82 = math.tanh %81 : vector<2x32xf32>
    %83 = arith.mulf %78, %82 : vector<2x32xf32>
    %c3_i32 = arith.constant 3 : i32
    %84 = arith.index_cast %c3_i32 : i32 to index
    %c0_24 = arith.constant 0 : index
    %c0_25 = arith.constant 0 : index
    %85 = vector.load %arg11[%84, %c0_24, %c0_25] : memref<8x2x128xf32, #tpu.memory_space<vmem>>, vector<1x2x128xf32>
    %86 = vector.shape_cast %85 : vector<1x2x128xf32> to vector<2x128xf32>
    %87 = arith.truncf %83 : vector<2x32xf32> to vector<2x32xbf16>
    %cst_26 = arith.constant dense<0.000000e+00> : vector<2x128xf32>
    %88 = tpu.matmul %87, %1, %cst_26 {dimension_numbers = #tpu.dot_dimension_numbers<[1], [0], [0], [1], [0, 0, 1, 1], [], []>} : vector<2x32xbf16>, vector<32x128xbf16>, vector<2x128xf32> -> vector<2x128xf32>
    %89 = arith.addf %86, %88 : vector<2x128xf32>
    %90 = math.tanh %89 : vector<2x128xf32>
    %91 = arith.negf %89 : vector<2x128xf32>
    %92 = math.exp %91 : vector<2x128xf32>
    %cst_27 = arith.constant 1.000000e+00 : f32
    %93 = vector.broadcast %cst_27 : f32 to vector<2x128xf32>
    %94 = arith.addf %93, %92 : vector<2x128xf32>
    %95 = arith.divf %93, %94 : vector<2x128xf32>
    %96 = arith.select %15, %90, %95 : vector<2x128xi1>, vector<2x128xf32>
    %97 = vector.extract_strided_slice %96 {offsets = [0, 0], sizes = [2, 32], strides = [1, 1]} : vector<2x128xf32> to vector<2x32xf32>
    %98 = vector.extract_strided_slice %96 {offsets = [0, 32], sizes = [2, 32], strides = [1, 1]} : vector<2x128xf32> to vector<2x32xf32>
    %99 = vector.extract_strided_slice %96 {offsets = [0, 64], sizes = [2, 32], strides = [1, 1]} : vector<2x128xf32> to vector<2x32xf32>
    %100 = vector.extract_strided_slice %96 {offsets = [0, 96], sizes = [2, 32], strides = [1, 1]} : vector<2x128xf32> to vector<2x32xf32>
    %101 = arith.mulf %98, %81 : vector<2x32xf32>
    %102 = arith.mulf %97, %99 : vector<2x32xf32>
    %103 = arith.addf %101, %102 : vector<2x32xf32>
    %104 = math.tanh %103 : vector<2x32xf32>
    %105 = arith.mulf %100, %104 : vector<2x32xf32>
    %c4_i32 = arith.constant 4 : i32
    %106 = arith.index_cast %c4_i32 : i32 to index
    %c0_28 = arith.constant 0 : index
    %c0_29 = arith.constant 0 : index
    %107 = vector.load %arg11[%106, %c0_28, %c0_29] : memref<8x2x128xf32, #tpu.memory_space<vmem>>, vector<1x2x128xf32>
    %108 = vector.shape_cast %107 : vector<1x2x128xf32> to vector<2x128xf32>
    %109 = arith.truncf %105 : vector<2x32xf32> to vector<2x32xbf16>
    %cst_30 = arith.constant dense<0.000000e+00> : vector<2x128xf32>
    %110 = tpu.matmul %109, %1, %cst_30 {dimension_numbers = #tpu.dot_dimension_numbers<[1], [0], [0], [1], [0, 0, 1, 1], [], []>} : vector<2x32xbf16>, vector<32x128xbf16>, vector<2x128xf32> -> vector<2x128xf32>
    %111 = arith.addf %108, %110 : vector<2x128xf32>
    %112 = math.tanh %111 : vector<2x128xf32>
    %113 = arith.negf %111 : vector<2x128xf32>
    %114 = math.exp %113 : vector<2x128xf32>
    %cst_31 = arith.constant 1.000000e+00 : f32
    %115 = vector.broadcast %cst_31 : f32 to vector<2x128xf32>
    %116 = arith.addf %115, %114 : vector<2x128xf32>
    %117 = arith.divf %115, %116 : vector<2x128xf32>
    %118 = arith.select %15, %112, %117 : vector<2x128xi1>, vector<2x128xf32>
    %119 = vector.extract_strided_slice %118 {offsets = [0, 0], sizes = [2, 32], strides = [1, 1]} : vector<2x128xf32> to vector<2x32xf32>
    %120 = vector.extract_strided_slice %118 {offsets = [0, 32], sizes = [2, 32], strides = [1, 1]} : vector<2x128xf32> to vector<2x32xf32>
    %121 = vector.extract_strided_slice %118 {offsets = [0, 64], sizes = [2, 32], strides = [1, 1]} : vector<2x128xf32> to vector<2x32xf32>
    %122 = vector.extract_strided_slice %118 {offsets = [0, 96], sizes = [2, 32], strides = [1, 1]} : vector<2x128xf32> to vector<2x32xf32>
    %123 = arith.mulf %120, %103 : vector<2x32xf32>
    %124 = arith.mulf %119, %121 : vector<2x32xf32>
    %125 = arith.addf %123, %124 : vector<2x32xf32>
    %126 = math.tanh %125 : vector<2x32xf32>
    %127 = arith.mulf %122, %126 : vector<2x32xf32>
    %c5_i32 = arith.constant 5 : i32
    %128 = arith.index_cast %c5_i32 : i32 to index
    %c0_32 = arith.constant 0 : index
    %c0_33 = arith.constant 0 : index
    %129 = vector.load %arg11[%128, %c0_32, %c0_33] : memref<8x2x128xf32, #tpu.memory_space<vmem>>, vector<1x2x128xf32>
    %130 = vector.shape_cast %129 : vector<1x2x128xf32> to vector<2x128xf32>
    %131 = arith.truncf %127 : vector<2x32xf32> to vector<2x32xbf16>
    %cst_34 = arith.constant dense<0.000000e+00> : vector<2x128xf32>
    %132 = tpu.matmul %131, %1, %cst_34 {dimension_numbers = #tpu.dot_dimension_numbers<[1], [0], [0], [1], [0, 0, 1, 1], [], []>} : vector<2x32xbf16>, vector<32x128xbf16>, vector<2x128xf32> -> vector<2x128xf32>
    %133 = arith.addf %130, %132 : vector<2x128xf32>
    %134 = math.tanh %133 : vector<2x128xf32>
    %135 = arith.negf %133 : vector<2x128xf32>
    %136 = math.exp %135 : vector<2x128xf32>
    %cst_35 = arith.constant 1.000000e+00 : f32
    %137 = vector.broadcast %cst_35 : f32 to vector<2x128xf32>
    %138 = arith.addf %137, %136 : vector<2x128xf32>
    %139 = arith.divf %137, %138 : vector<2x128xf32>
    %140 = arith.select %15, %134, %139 : vector<2x128xi1>, vector<2x128xf32>
    %141 = vector.extract_strided_slice %140 {offsets = [0, 0], sizes = [2, 32], strides = [1, 1]} : vector<2x128xf32> to vector<2x32xf32>
    %142 = vector.extract_strided_slice %140 {offsets = [0, 32], sizes = [2, 32], strides = [1, 1]} : vector<2x128xf32> to vector<2x32xf32>
    %143 = vector.extract_strided_slice %140 {offsets = [0, 64], sizes = [2, 32], strides = [1, 1]} : vector<2x128xf32> to vector<2x32xf32>
    %144 = vector.extract_strided_slice %140 {offsets = [0, 96], sizes = [2, 32], strides = [1, 1]} : vector<2x128xf32> to vector<2x32xf32>
    %145 = arith.mulf %142, %125 : vector<2x32xf32>
    %146 = arith.mulf %141, %143 : vector<2x32xf32>
    %147 = arith.addf %145, %146 : vector<2x32xf32>
    %148 = math.tanh %147 : vector<2x32xf32>
    %149 = arith.mulf %144, %148 : vector<2x32xf32>
    %c6_i32 = arith.constant 6 : i32
    %150 = arith.index_cast %c6_i32 : i32 to index
    %c0_36 = arith.constant 0 : index
    %c0_37 = arith.constant 0 : index
    %151 = vector.load %arg11[%150, %c0_36, %c0_37] : memref<8x2x128xf32, #tpu.memory_space<vmem>>, vector<1x2x128xf32>
    %152 = vector.shape_cast %151 : vector<1x2x128xf32> to vector<2x128xf32>
    %153 = arith.truncf %149 : vector<2x32xf32> to vector<2x32xbf16>
    %cst_38 = arith.constant dense<0.000000e+00> : vector<2x128xf32>
    %154 = tpu.matmul %153, %1, %cst_38 {dimension_numbers = #tpu.dot_dimension_numbers<[1], [0], [0], [1], [0, 0, 1, 1], [], []>} : vector<2x32xbf16>, vector<32x128xbf16>, vector<2x128xf32> -> vector<2x128xf32>
    %155 = arith.addf %152, %154 : vector<2x128xf32>
    %156 = math.tanh %155 : vector<2x128xf32>
    %157 = arith.negf %155 : vector<2x128xf32>
    %158 = math.exp %157 : vector<2x128xf32>
    %cst_39 = arith.constant 1.000000e+00 : f32
    %159 = vector.broadcast %cst_39 : f32 to vector<2x128xf32>
    %160 = arith.addf %159, %158 : vector<2x128xf32>
    %161 = arith.divf %159, %160 : vector<2x128xf32>
    %162 = arith.select %15, %156, %161 : vector<2x128xi1>, vector<2x128xf32>
    %163 = vector.extract_strided_slice %162 {offsets = [0, 0], sizes = [2, 32], strides = [1, 1]} : vector<2x128xf32> to vector<2x32xf32>
    %164 = vector.extract_strided_slice %162 {offsets = [0, 32], sizes = [2, 32], strides = [1, 1]} : vector<2x128xf32> to vector<2x32xf32>
    %165 = vector.extract_strided_slice %162 {offsets = [0, 64], sizes = [2, 32], strides = [1, 1]} : vector<2x128xf32> to vector<2x32xf32>
    %166 = vector.extract_strided_slice %162 {offsets = [0, 96], sizes = [2, 32], strides = [1, 1]} : vector<2x128xf32> to vector<2x32xf32>
    %167 = arith.mulf %164, %147 : vector<2x32xf32>
    %168 = arith.mulf %163, %165 : vector<2x32xf32>
    %169 = arith.addf %167, %168 : vector<2x32xf32>
    %170 = math.tanh %169 : vector<2x32xf32>
    %171 = arith.mulf %166, %170 : vector<2x32xf32>
    %c7_i32 = arith.constant 7 : i32
    %172 = arith.index_cast %c7_i32 : i32 to index
    %c0_40 = arith.constant 0 : index
    %c0_41 = arith.constant 0 : index
    %173 = vector.load %arg11[%172, %c0_40, %c0_41] : memref<8x2x128xf32, #tpu.memory_space<vmem>>, vector<1x2x128xf32>
    %174 = vector.shape_cast %173 : vector<1x2x128xf32> to vector<2x128xf32>
    %175 = arith.truncf %171 : vector<2x32xf32> to vector<2x32xbf16>
    %cst_42 = arith.constant dense<0.000000e+00> : vector<2x128xf32>
    %176 = tpu.matmul %175, %1, %cst_42 {dimension_numbers = #tpu.dot_dimension_numbers<[1], [0], [0], [1], [0, 0, 1, 1], [], []>} : vector<2x32xbf16>, vector<32x128xbf16>, vector<2x128xf32> -> vector<2x128xf32>
    %177 = arith.addf %174, %176 : vector<2x128xf32>
    %178 = math.tanh %177 : vector<2x128xf32>
    %179 = arith.negf %177 : vector<2x128xf32>
    %180 = math.exp %179 : vector<2x128xf32>
    %cst_43 = arith.constant 1.000000e+00 : f32
    %181 = vector.broadcast %cst_43 : f32 to vector<2x128xf32>
    %182 = arith.addf %181, %180 : vector<2x128xf32>
    %183 = arith.divf %181, %182 : vector<2x128xf32>
    %184 = arith.select %15, %178, %183 : vector<2x128xi1>, vector<2x128xf32>
    %185 = vector.extract_strided_slice %184 {offsets = [0, 0], sizes = [2, 32], strides = [1, 1]} : vector<2x128xf32> to vector<2x32xf32>
    %186 = vector.extract_strided_slice %184 {offsets = [0, 32], sizes = [2, 32], strides = [1, 1]} : vector<2x128xf32> to vector<2x32xf32>
    %187 = vector.extract_strided_slice %184 {offsets = [0, 64], sizes = [2, 32], strides = [1, 1]} : vector<2x128xf32> to vector<2x32xf32>
    %188 = vector.extract_strided_slice %184 {offsets = [0, 96], sizes = [2, 32], strides = [1, 1]} : vector<2x128xf32> to vector<2x32xf32>
    %189 = arith.mulf %186, %169 : vector<2x32xf32>
    %190 = arith.mulf %185, %187 : vector<2x32xf32>
    %191 = arith.addf %189, %190 : vector<2x32xf32>
    %192 = math.tanh %191 : vector<2x32xf32>
    %193 = arith.mulf %188, %192 : vector<2x32xf32>
    %c8_i32 = arith.constant 8 : i32
    %c0_44 = arith.constant 0 : index
    %c0_45 = arith.constant 0 : index
    %194 = vector.load %arg4[%c0_44, %c0_45] : memref<32x64xbf16, #tpu.memory_space<vmem>>, vector<32x64xbf16>
    %c0_46 = arith.constant 0 : index
    %c0_47 = arith.constant 0 : index
    %195 = vector.load %arg5[%c0_46, %c0_47] : memref<1x64xf32, #tpu.memory_space<vmem>>, vector<1x64xf32>
    %c0_48 = arith.constant 0 : index
    %c0_49 = arith.constant 0 : index
    %196 = vector.load %arg6[%c0_48, %c0_49] : memref<64x32xbf16, #tpu.memory_space<vmem>>, vector<64x32xbf16>
    %c0_50 = arith.constant 0 : index
    %c0_51 = arith.constant 0 : index
    %197 = vector.load %arg7[%c0_50, %c0_51] : memref<1x32xf32, #tpu.memory_space<vmem>>, vector<1x32xf32>
    %c0_i32_52 = arith.constant 0 : i32
    %198 = arith.truncf %193 : vector<2x32xf32> to vector<2x32xbf16>
    %cst_53 = arith.constant dense<0.000000e+00> : vector<2x64xf32>
    %199 = tpu.matmul %198, %194, %cst_53 {dimension_numbers = #tpu.dot_dimension_numbers<[1], [0], [0], [1], [0, 0, 1, 1], [], []>} : vector<2x32xbf16>, vector<32x64xbf16>, vector<2x64xf32> -> vector<2x64xf32>
    %200 = vector.broadcast %195 : vector<1x64xf32> to vector<2x64xf32>
    %201 = arith.addf %199, %200 : vector<2x64xf32>
    %202 = math.tanh %201 : vector<2x64xf32>
    %203 = arith.truncf %202 : vector<2x64xf32> to vector<2x64xbf16>
    %cst_54 = arith.constant dense<0.000000e+00> : vector<2x32xf32>
    %204 = tpu.matmul %203, %196, %cst_54 {dimension_numbers = #tpu.dot_dimension_numbers<[1], [0], [0], [1], [0, 0, 1, 1], [], []>} : vector<2x64xbf16>, vector<64x32xbf16>, vector<2x32xf32> -> vector<2x32xf32>
    %205 = vector.broadcast %197 : vector<1x32xf32> to vector<2x32xf32>
    %206 = arith.addf %204, %205 : vector<2x32xf32>
    %cst_55 = arith.constant 0.0222222228 : f32
    %207 = vector.broadcast %cst_55 : f32 to vector<2x32xf32>
    %208 = arith.mulf %207, %206 : vector<2x32xf32>
    %209 = arith.addf %193, %208 : vector<2x32xf32>
    %210 = arith.truncf %209 : vector<2x32xf32> to vector<2x32xbf16>
    %cst_56 = arith.constant dense<0.000000e+00> : vector<2x64xf32>
    %211 = tpu.matmul %210, %194, %cst_56 {dimension_numbers = #tpu.dot_dimension_numbers<[1], [0], [0], [1], [0, 0, 1, 1], [], []>} : vector<2x32xbf16>, vector<32x64xbf16>, vector<2x64xf32> -> vector<2x64xf32>
    %212 = vector.broadcast %195 : vector<1x64xf32> to vector<2x64xf32>
    %213 = arith.addf %211, %212 : vector<2x64xf32>
    %214 = math.tanh %213 : vector<2x64xf32>
    %215 = arith.truncf %214 : vector<2x64xf32> to vector<2x64xbf16>
    %cst_57 = arith.constant dense<0.000000e+00> : vector<2x32xf32>
    %216 = tpu.matmul %215, %196, %cst_57 {dimension_numbers = #tpu.dot_dimension_numbers<[1], [0], [0], [1], [0, 0, 1, 1], [], []>} : vector<2x64xbf16>, vector<64x32xbf16>, vector<2x32xf32> -> vector<2x32xf32>
    %217 = vector.broadcast %197 : vector<1x32xf32> to vector<2x32xf32>
    %218 = arith.addf %216, %217 : vector<2x32xf32>
    %cst_58 = arith.constant 0.00833333377 : f32
    %219 = vector.broadcast %cst_58 : f32 to vector<2x32xf32>
    %220 = arith.mulf %219, %206 : vector<2x32xf32>
    %221 = arith.addf %193, %220 : vector<2x32xf32>
    %cst_59 = arith.constant 2.500000e-02 : f32
    %222 = vector.broadcast %cst_59 : f32 to vector<2x32xf32>
    %223 = arith.mulf %222, %218 : vector<2x32xf32>
    %224 = arith.addf %221, %223 : vector<2x32xf32>
    %225 = arith.truncf %224 : vector<2x32xf32> to vector<2x32xbf16>
    %cst_60 = arith.constant dense<0.000000e+00> : vector<2x64xf32>
    %226 = tpu.matmul %225, %194, %cst_60 {dimension_numbers = #tpu.dot_dimension_numbers<[1], [0], [0], [1], [0, 0, 1, 1], [], []>} : vector<2x32xbf16>, vector<32x64xbf16>, vector<2x64xf32> -> vector<2x64xf32>
    %227 = vector.broadcast %195 : vector<1x64xf32> to vector<2x64xf32>
    %228 = arith.addf %226, %227 : vector<2x64xf32>
    %229 = math.tanh %228 : vector<2x64xf32>
    %230 = arith.truncf %229 : vector<2x64xf32> to vector<2x64xbf16>
    %cst_61 = arith.constant dense<0.000000e+00> : vector<2x32xf32>
    %231 = tpu.matmul %230, %196, %cst_61 {dimension_numbers = #tpu.dot_dimension_numbers<[1], [0], [0], [1], [0, 0, 1, 1], [], []>} : vector<2x64xbf16>, vector<64x32xbf16>, vector<2x32xf32> -> vector<2x32xf32>
    %232 = vector.broadcast %197 : vector<1x32xf32> to vector<2x32xf32>
    %233 = arith.addf %231, %232 : vector<2x32xf32>
    %cst_62 = arith.constant 0.108641975 : f32
    %234 = vector.broadcast %cst_62 : f32 to vector<2x32xf32>
    %235 = arith.mulf %234, %206 : vector<2x32xf32>
    %236 = arith.addf %193, %235 : vector<2x32xf32>
    %cst_63 = arith.constant -0.4148148 : f32
    %237 = vector.broadcast %cst_63 : f32 to vector<2x32xf32>
    %238 = arith.mulf %237, %218 : vector<2x32xf32>
    %239 = arith.addf %236, %238 : vector<2x32xf32>
    %cst_64 = arith.constant 0.395061731 : f32
    %240 = vector.broadcast %cst_64 : f32 to vector<2x32xf32>
    %241 = arith.mulf %240, %233 : vector<2x32xf32>
    %242 = arith.addf %239, %241 : vector<2x32xf32>
    %243 = arith.truncf %242 : vector<2x32xf32> to vector<2x32xbf16>
    %cst_65 = arith.constant dense<0.000000e+00> : vector<2x64xf32>
    %244 = tpu.matmul %243, %194, %cst_65 {dimension_numbers = #tpu.dot_dimension_numbers<[1], [0], [0], [1], [0, 0, 1, 1], [], []>} : vector<2x32xbf16>, vector<32x64xbf16>, vector<2x64xf32> -> vector<2x64xf32>
    %245 = vector.broadcast %195 : vector<1x64xf32> to vector<2x64xf32>
    %246 = arith.addf %244, %245 : vector<2x64xf32>
    %247 = math.tanh %246 : vector<2x64xf32>
    %248 = arith.truncf %247 : vector<2x64xf32> to vector<2x64xbf16>
    %cst_66 = arith.constant dense<0.000000e+00> : vector<2x32xf32>
    %249 = tpu.matmul %248, %196, %cst_66 {dimension_numbers = #tpu.dot_dimension_numbers<[1], [0], [0], [1], [0, 0, 1, 1], [], []>} : vector<2x64xbf16>, vector<64x32xbf16>, vector<2x32xf32> -> vector<2x32xf32>
    %250 = vector.broadcast %197 : vector<1x32xf32> to vector<2x32xf32>
    %251 = arith.addf %249, %250 : vector<2x32xf32>
    %cst_67 = arith.constant 0.328066528 : f32
    %252 = vector.broadcast %cst_67 : f32 to vector<2x32xf32>
    %253 = arith.mulf %252, %206 : vector<2x32xf32>
    %254 = arith.addf %193, %253 : vector<2x32xf32>
    %cst_68 = arith.constant -1.28842151 : f32
    %255 = vector.broadcast %cst_68 : f32 to vector<2x32xf32>
    %256 = arith.mulf %255, %218 : vector<2x32xf32>
    %257 = arith.addf %254, %256 : vector<2x32xf32>
    %cst_69 = arith.constant 1.09143257 : f32
    %258 = vector.broadcast %cst_69 : f32 to vector<2x32xf32>
    %259 = arith.mulf %258, %233 : vector<2x32xf32>
    %260 = arith.addf %257, %259 : vector<2x32xf32>
    %cst_70 = arith.constant -0.0323121473 : f32
    %261 = vector.broadcast %cst_70 : f32 to vector<2x32xf32>
    %262 = arith.mulf %261, %251 : vector<2x32xf32>
    %263 = arith.addf %260, %262 : vector<2x32xf32>
    %264 = arith.truncf %263 : vector<2x32xf32> to vector<2x32xbf16>
    %cst_71 = arith.constant dense<0.000000e+00> : vector<2x64xf32>
    %265 = tpu.matmul %264, %194, %cst_71 {dimension_numbers = #tpu.dot_dimension_numbers<[1], [0], [0], [1], [0, 0, 1, 1], [], []>} : vector<2x32xbf16>, vector<32x64xbf16>, vector<2x64xf32> -> vector<2x64xf32>
    %266 = vector.broadcast %195 : vector<1x64xf32> to vector<2x64xf32>
    %267 = arith.addf %265, %266 : vector<2x64xf32>
    %268 = math.tanh %267 : vector<2x64xf32>
    %269 = arith.truncf %268 : vector<2x64xf32> to vector<2x64xbf16>
    %cst_72 = arith.constant dense<0.000000e+00> : vector<2x32xf32>
    %270 = tpu.matmul %269, %196, %cst_72 {dimension_numbers = #tpu.dot_dimension_numbers<[1], [0], [0], [1], [0, 0, 1, 1], [], []>} : vector<2x64xbf16>, vector<64x32xbf16>, vector<2x32xf32> -> vector<2x32xf32>
    %271 = vector.broadcast %197 : vector<1x32xf32> to vector<2x32xf32>
    %272 = arith.addf %270, %271 : vector<2x32xf32>
    %cst_73 = arith.constant 0.316252798 : f32
    %273 = vector.broadcast %cst_73 : f32 to vector<2x32xf32>
    %274 = arith.mulf %273, %206 : vector<2x32xf32>
    %275 = arith.addf %193, %274 : vector<2x32xf32>
    %cst_74 = arith.constant -1.19528615 : f32
    %276 = vector.broadcast %cst_74 : f32 to vector<2x32xf32>
    %277 = arith.mulf %276, %218 : vector<2x32xf32>
    %278 = arith.addf %275, %277 : vector<2x32xf32>
    %cst_75 = arith.constant 0.989602506 : f32
    %279 = vector.broadcast %cst_75 : f32 to vector<2x32xf32>
    %280 = arith.mulf %279, %233 : vector<2x32xf32>
    %281 = arith.addf %278, %280 : vector<2x32xf32>
    %cst_76 = arith.constant 0.0309343431 : f32
    %282 = vector.broadcast %cst_76 : f32 to vector<2x32xf32>
    %283 = arith.mulf %282, %251 : vector<2x32xf32>
    %284 = arith.addf %281, %283 : vector<2x32xf32>
    %cst_77 = arith.constant -0.0303923674 : f32
    %285 = vector.broadcast %cst_77 : f32 to vector<2x32xf32>
    %286 = arith.mulf %285, %272 : vector<2x32xf32>
    %287 = arith.addf %284, %286 : vector<2x32xf32>
    %288 = arith.truncf %287 : vector<2x32xf32> to vector<2x32xbf16>
    %cst_78 = arith.constant dense<0.000000e+00> : vector<2x64xf32>
    %289 = tpu.matmul %288, %194, %cst_78 {dimension_numbers = #tpu.dot_dimension_numbers<[1], [0], [0], [1], [0, 0, 1, 1], [], []>} : vector<2x32xbf16>, vector<32x64xbf16>, vector<2x64xf32> -> vector<2x64xf32>
    %290 = vector.broadcast %195 : vector<1x64xf32> to vector<2x64xf32>
    %291 = arith.addf %289, %290 : vector<2x64xf32>
    %292 = math.tanh %291 : vector<2x64xf32>
    %293 = arith.truncf %292 : vector<2x64xf32> to vector<2x64xbf16>
    %cst_79 = arith.constant dense<0.000000e+00> : vector<2x32xf32>
    %294 = tpu.matmul %293, %196, %cst_79 {dimension_numbers = #tpu.dot_dimension_numbers<[1], [0], [0], [1], [0, 0, 1, 1], [], []>} : vector<2x64xbf16>, vector<64x32xbf16>, vector<2x32xf32> -> vector<2x32xf32>
    %295 = vector.broadcast %197 : vector<1x32xf32> to vector<2x32xf32>
    %296 = arith.addf %294, %295 : vector<2x32xf32>
    %cst_80 = arith.constant 0.0101273144 : f32
    %297 = vector.broadcast %cst_80 : f32 to vector<2x32xf32>
    %298 = arith.mulf %297, %206 : vector<2x32xf32>
    %299 = arith.addf %193, %298 : vector<2x32xf32>
    %cst_81 = arith.constant 0.0499151461 : f32
    %300 = vector.broadcast %cst_81 : f32 to vector<2x32xf32>
    %301 = arith.mulf %300, %233 : vector<2x32xf32>
    %302 = arith.addf %299, %301 : vector<2x32xf32>
    %cst_82 = arith.constant 0.0723379627 : f32
    %303 = vector.broadcast %cst_82 : f32 to vector<2x32xf32>
    %304 = arith.mulf %303, %251 : vector<2x32xf32>
    %305 = arith.addf %302, %304 : vector<2x32xf32>
    %cst_83 = arith.constant -0.0358195752 : f32
    %306 = vector.broadcast %cst_83 : f32 to vector<2x32xf32>
    %307 = arith.mulf %306, %272 : vector<2x32xf32>
    %308 = arith.addf %305, %307 : vector<2x32xf32>
    %cst_84 = arith.constant 0.0145502649 : f32
    %309 = vector.broadcast %cst_84 : f32 to vector<2x32xf32>
    %310 = arith.mulf %309, %296 : vector<2x32xf32>
    %311 = arith.addf %308, %310 : vector<2x32xf32>
    %c1_i32_85 = arith.constant 1 : i32
    %312 = arith.truncf %311 : vector<2x32xf32> to vector<2x32xbf16>
    %cst_86 = arith.constant dense<0.000000e+00> : vector<2x64xf32>
    %313 = tpu.matmul %312, %194, %cst_86 {dimension_numbers = #tpu.dot_dimension_numbers<[1], [0], [0], [1], [0, 0, 1, 1], [], []>} : vector<2x32xbf16>, vector<32x64xbf16>, vector<2x64xf32> -> vector<2x64xf32>
    %314 = vector.broadcast %195 : vector<1x64xf32> to vector<2x64xf32>
    %315 = arith.addf %313, %314 : vector<2x64xf32>
    %316 = math.tanh %315 : vector<2x64xf32>
    %317 = arith.truncf %316 : vector<2x64xf32> to vector<2x64xbf16>
    %cst_87 = arith.constant dense<0.000000e+00> : vector<2x32xf32>
    %318 = tpu.matmul %317, %196, %cst_87 {dimension_numbers = #tpu.dot_dimension_numbers<[1], [0], [0], [1], [0, 0, 1, 1], [], []>} : vector<2x64xbf16>, vector<64x32xbf16>, vector<2x32xf32> -> vector<2x32xf32>
    %319 = vector.broadcast %197 : vector<1x32xf32> to vector<2x32xf32>
    %320 = arith.addf %318, %319 : vector<2x32xf32>
    %cst_88 = arith.constant 0.0222222228 : f32
    %321 = vector.broadcast %cst_88 : f32 to vector<2x32xf32>
    %322 = arith.mulf %321, %320 : vector<2x32xf32>
    %323 = arith.addf %311, %322 : vector<2x32xf32>
    %324 = arith.truncf %323 : vector<2x32xf32> to vector<2x32xbf16>
    %cst_89 = arith.constant dense<0.000000e+00> : vector<2x64xf32>
    %325 = tpu.matmul %324, %194, %cst_89 {dimension_numbers = #tpu.dot_dimension_numbers<[1], [0], [0], [1], [0, 0, 1, 1], [], []>} : vector<2x32xbf16>, vector<32x64xbf16>, vector<2x64xf32> -> vector<2x64xf32>
    %326 = vector.broadcast %195 : vector<1x64xf32> to vector<2x64xf32>
    %327 = arith.addf %325, %326 : vector<2x64xf32>
    %328 = math.tanh %327 : vector<2x64xf32>
    %329 = arith.truncf %328 : vector<2x64xf32> to vector<2x64xbf16>
    %cst_90 = arith.constant dense<0.000000e+00> : vector<2x32xf32>
    %330 = tpu.matmul %329, %196, %cst_90 {dimension_numbers = #tpu.dot_dimension_numbers<[1], [0], [0], [1], [0, 0, 1, 1], [], []>} : vector<2x64xbf16>, vector<64x32xbf16>, vector<2x32xf32> -> vector<2x32xf32>
    %331 = vector.broadcast %197 : vector<1x32xf32> to vector<2x32xf32>
    %332 = arith.addf %330, %331 : vector<2x32xf32>
    %cst_91 = arith.constant 0.00833333377 : f32
    %333 = vector.broadcast %cst_91 : f32 to vector<2x32xf32>
    %334 = arith.mulf %333, %320 : vector<2x32xf32>
    %335 = arith.addf %311, %334 : vector<2x32xf32>
    %cst_92 = arith.constant 2.500000e-02 : f32
    %336 = vector.broadcast %cst_92 : f32 to vector<2x32xf32>
    %337 = arith.mulf %336, %332 : vector<2x32xf32>
    %338 = arith.addf %335, %337 : vector<2x32xf32>
    %339 = arith.truncf %338 : vector<2x32xf32> to vector<2x32xbf16>
    %cst_93 = arith.constant dense<0.000000e+00> : vector<2x64xf32>
    %340 = tpu.matmul %339, %194, %cst_93 {dimension_numbers = #tpu.dot_dimension_numbers<[1], [0], [0], [1], [0, 0, 1, 1], [], []>} : vector<2x32xbf16>, vector<32x64xbf16>, vector<2x64xf32> -> vector<2x64xf32>
    %341 = vector.broadcast %195 : vector<1x64xf32> to vector<2x64xf32>
    %342 = arith.addf %340, %341 : vector<2x64xf32>
    %343 = math.tanh %342 : vector<2x64xf32>
    %344 = arith.truncf %343 : vector<2x64xf32> to vector<2x64xbf16>
    %cst_94 = arith.constant dense<0.000000e+00> : vector<2x32xf32>
    %345 = tpu.matmul %344, %196, %cst_94 {dimension_numbers = #tpu.dot_dimension_numbers<[1], [0], [0], [1], [0, 0, 1, 1], [], []>} : vector<2x64xbf16>, vector<64x32xbf16>, vector<2x32xf32> -> vector<2x32xf32>
    %346 = vector.broadcast %197 : vector<1x32xf32> to vector<2x32xf32>
    %347 = arith.addf %345, %346 : vector<2x32xf32>
    %cst_95 = arith.constant 0.108641975 : f32
    %348 = vector.broadcast %cst_95 : f32 to vector<2x32xf32>
    %349 = arith.mulf %348, %320 : vector<2x32xf32>
    %350 = arith.addf %311, %349 : vector<2x32xf32>
    %cst_96 = arith.constant -0.4148148 : f32
    %351 = vector.broadcast %cst_96 : f32 to vector<2x32xf32>
    %352 = arith.mulf %351, %332 : vector<2x32xf32>
    %353 = arith.addf %350, %352 : vector<2x32xf32>
    %cst_97 = arith.constant 0.395061731 : f32
    %354 = vector.broadcast %cst_97 : f32 to vector<2x32xf32>
    %355 = arith.mulf %354, %347 : vector<2x32xf32>
    %356 = arith.addf %353, %355 : vector<2x32xf32>
    %357 = arith.truncf %356 : vector<2x32xf32> to vector<2x32xbf16>
    %cst_98 = arith.constant dense<0.000000e+00> : vector<2x64xf32>
    %358 = tpu.matmul %357, %194, %cst_98 {dimension_numbers = #tpu.dot_dimension_numbers<[1], [0], [0], [1], [0, 0, 1, 1], [], []>} : vector<2x32xbf16>, vector<32x64xbf16>, vector<2x64xf32> -> vector<2x64xf32>
    %359 = vector.broadcast %195 : vector<1x64xf32> to vector<2x64xf32>
    %360 = arith.addf %358, %359 : vector<2x64xf32>
    %361 = math.tanh %360 : vector<2x64xf32>
    %362 = arith.truncf %361 : vector<2x64xf32> to vector<2x64xbf16>
    %cst_99 = arith.constant dense<0.000000e+00> : vector<2x32xf32>
    %363 = tpu.matmul %362, %196, %cst_99 {dimension_numbers = #tpu.dot_dimension_numbers<[1], [0], [0], [1], [0, 0, 1, 1], [], []>} : vector<2x64xbf16>, vector<64x32xbf16>, vector<2x32xf32> -> vector<2x32xf32>
    %364 = vector.broadcast %197 : vector<1x32xf32> to vector<2x32xf32>
    %365 = arith.addf %363, %364 : vector<2x32xf32>
    %cst_100 = arith.constant 0.328066528 : f32
    %366 = vector.broadcast %cst_100 : f32 to vector<2x32xf32>
    %367 = arith.mulf %366, %320 : vector<2x32xf32>
    %368 = arith.addf %311, %367 : vector<2x32xf32>
    %cst_101 = arith.constant -1.28842151 : f32
    %369 = vector.broadcast %cst_101 : f32 to vector<2x32xf32>
    %370 = arith.mulf %369, %332 : vector<2x32xf32>
    %371 = arith.addf %368, %370 : vector<2x32xf32>
    %cst_102 = arith.constant 1.09143257 : f32
    %372 = vector.broadcast %cst_102 : f32 to vector<2x32xf32>
    %373 = arith.mulf %372, %347 : vector<2x32xf32>
    %374 = arith.addf %371, %373 : vector<2x32xf32>
    %cst_103 = arith.constant -0.0323121473 : f32
    %375 = vector.broadcast %cst_103 : f32 to vector<2x32xf32>
    %376 = arith.mulf %375, %365 : vector<2x32xf32>
    %377 = arith.addf %374, %376 : vector<2x32xf32>
    %378 = arith.truncf %377 : vector<2x32xf32> to vector<2x32xbf16>
    %cst_104 = arith.constant dense<0.000000e+00> : vector<2x64xf32>
    %379 = tpu.matmul %378, %194, %cst_104 {dimension_numbers = #tpu.dot_dimension_numbers<[1], [0], [0], [1], [0, 0, 1, 1], [], []>} : vector<2x32xbf16>, vector<32x64xbf16>, vector<2x64xf32> -> vector<2x64xf32>
    %380 = vector.broadcast %195 : vector<1x64xf32> to vector<2x64xf32>
    %381 = arith.addf %379, %380 : vector<2x64xf32>
    %382 = math.tanh %381 : vector<2x64xf32>
    %383 = arith.truncf %382 : vector<2x64xf32> to vector<2x64xbf16>
    %cst_105 = arith.constant dense<0.000000e+00> : vector<2x32xf32>
    %384 = tpu.matmul %383, %196, %cst_105 {dimension_numbers = #tpu.dot_dimension_numbers<[1], [0], [0], [1], [0, 0, 1, 1], [], []>} : vector<2x64xbf16>, vector<64x32xbf16>, vector<2x32xf32> -> vector<2x32xf32>
    %385 = vector.broadcast %197 : vector<1x32xf32> to vector<2x32xf32>
    %386 = arith.addf %384, %385 : vector<2x32xf32>
    %cst_106 = arith.constant 0.316252798 : f32
    %387 = vector.broadcast %cst_106 : f32 to vector<2x32xf32>
    %388 = arith.mulf %387, %320 : vector<2x32xf32>
    %389 = arith.addf %311, %388 : vector<2x32xf32>
    %cst_107 = arith.constant -1.19528615 : f32
    %390 = vector.broadcast %cst_107 : f32 to vector<2x32xf32>
    %391 = arith.mulf %390, %332 : vector<2x32xf32>
    %392 = arith.addf %389, %391 : vector<2x32xf32>
    %cst_108 = arith.constant 0.989602506 : f32
    %393 = vector.broadcast %cst_108 : f32 to vector<2x32xf32>
    %394 = arith.mulf %393, %347 : vector<2x32xf32>
    %395 = arith.addf %392, %394 : vector<2x32xf32>
    %cst_109 = arith.constant 0.0309343431 : f32
    %396 = vector.broadcast %cst_109 : f32 to vector<2x32xf32>
    %397 = arith.mulf %396, %365 : vector<2x32xf32>
    %398 = arith.addf %395, %397 : vector<2x32xf32>
    %cst_110 = arith.constant -0.0303923674 : f32
    %399 = vector.broadcast %cst_110 : f32 to vector<2x32xf32>
    %400 = arith.mulf %399, %386 : vector<2x32xf32>
    %401 = arith.addf %398, %400 : vector<2x32xf32>
    %402 = arith.truncf %401 : vector<2x32xf32> to vector<2x32xbf16>
    %cst_111 = arith.constant dense<0.000000e+00> : vector<2x64xf32>
    %403 = tpu.matmul %402, %194, %cst_111 {dimension_numbers = #tpu.dot_dimension_numbers<[1], [0], [0], [1], [0, 0, 1, 1], [], []>} : vector<2x32xbf16>, vector<32x64xbf16>, vector<2x64xf32> -> vector<2x64xf32>
    %404 = vector.broadcast %195 : vector<1x64xf32> to vector<2x64xf32>
    %405 = arith.addf %403, %404 : vector<2x64xf32>
    %406 = math.tanh %405 : vector<2x64xf32>
    %407 = arith.truncf %406 : vector<2x64xf32> to vector<2x64xbf16>
    %cst_112 = arith.constant dense<0.000000e+00> : vector<2x32xf32>
    %408 = tpu.matmul %407, %196, %cst_112 {dimension_numbers = #tpu.dot_dimension_numbers<[1], [0], [0], [1], [0, 0, 1, 1], [], []>} : vector<2x64xbf16>, vector<64x32xbf16>, vector<2x32xf32> -> vector<2x32xf32>
    %409 = vector.broadcast %197 : vector<1x32xf32> to vector<2x32xf32>
    %410 = arith.addf %408, %409 : vector<2x32xf32>
    %cst_113 = arith.constant 0.0101273144 : f32
    %411 = vector.broadcast %cst_113 : f32 to vector<2x32xf32>
    %412 = arith.mulf %411, %320 : vector<2x32xf32>
    %413 = arith.addf %311, %412 : vector<2x32xf32>
    %cst_114 = arith.constant 0.0499151461 : f32
    %414 = vector.broadcast %cst_114 : f32 to vector<2x32xf32>
    %415 = arith.mulf %414, %347 : vector<2x32xf32>
    %416 = arith.addf %413, %415 : vector<2x32xf32>
    %cst_115 = arith.constant 0.0723379627 : f32
    %417 = vector.broadcast %cst_115 : f32 to vector<2x32xf32>
    %418 = arith.mulf %417, %365 : vector<2x32xf32>
    %419 = arith.addf %416, %418 : vector<2x32xf32>
    %cst_116 = arith.constant -0.0358195752 : f32
    %420 = vector.broadcast %cst_116 : f32 to vector<2x32xf32>
    %421 = arith.mulf %420, %386 : vector<2x32xf32>
    %422 = arith.addf %419, %421 : vector<2x32xf32>
    %cst_117 = arith.constant 0.0145502649 : f32
    %423 = vector.broadcast %cst_117 : f32 to vector<2x32xf32>
    %424 = arith.mulf %423, %410 : vector<2x32xf32>
    %425 = arith.addf %422, %424 : vector<2x32xf32>
    %c2_i32_118 = arith.constant 2 : i32
    %426 = arith.truncf %425 : vector<2x32xf32> to vector<2x32xbf16>
    %cst_119 = arith.constant dense<0.000000e+00> : vector<2x64xf32>
    %427 = tpu.matmul %426, %194, %cst_119 {dimension_numbers = #tpu.dot_dimension_numbers<[1], [0], [0], [1], [0, 0, 1, 1], [], []>} : vector<2x32xbf16>, vector<32x64xbf16>, vector<2x64xf32> -> vector<2x64xf32>
    %428 = vector.broadcast %195 : vector<1x64xf32> to vector<2x64xf32>
    %429 = arith.addf %427, %428 : vector<2x64xf32>
    %430 = math.tanh %429 : vector<2x64xf32>
    %431 = arith.truncf %430 : vector<2x64xf32> to vector<2x64xbf16>
    %cst_120 = arith.constant dense<0.000000e+00> : vector<2x32xf32>
    %432 = tpu.matmul %431, %196, %cst_120 {dimension_numbers = #tpu.dot_dimension_numbers<[1], [0], [0], [1], [0, 0, 1, 1], [], []>} : vector<2x64xbf16>, vector<64x32xbf16>, vector<2x32xf32> -> vector<2x32xf32>
    %433 = vector.broadcast %197 : vector<1x32xf32> to vector<2x32xf32>
    %434 = arith.addf %432, %433 : vector<2x32xf32>
    %cst_121 = arith.constant 0.0222222228 : f32
    %435 = vector.broadcast %cst_121 : f32 to vector<2x32xf32>
    %436 = arith.mulf %435, %434 : vector<2x32xf32>
    %437 = arith.addf %425, %436 : vector<2x32xf32>
    %438 = arith.truncf %437 : vector<2x32xf32> to vector<2x32xbf16>
    %cst_122 = arith.constant dense<0.000000e+00> : vector<2x64xf32>
    %439 = tpu.matmul %438, %194, %cst_122 {dimension_numbers = #tpu.dot_dimension_numbers<[1], [0], [0], [1], [0, 0, 1, 1], [], []>} : vector<2x32xbf16>, vector<32x64xbf16>, vector<2x64xf32> -> vector<2x64xf32>
    %440 = vector.broadcast %195 : vector<1x64xf32> to vector<2x64xf32>
    %441 = arith.addf %439, %440 : vector<2x64xf32>
    %442 = math.tanh %441 : vector<2x64xf32>
    %443 = arith.truncf %442 : vector<2x64xf32> to vector<2x64xbf16>
    %cst_123 = arith.constant dense<0.000000e+00> : vector<2x32xf32>
    %444 = tpu.matmul %443, %196, %cst_123 {dimension_numbers = #tpu.dot_dimension_numbers<[1], [0], [0], [1], [0, 0, 1, 1], [], []>} : vector<2x64xbf16>, vector<64x32xbf16>, vector<2x32xf32> -> vector<2x32xf32>
    %445 = vector.broadcast %197 : vector<1x32xf32> to vector<2x32xf32>
    %446 = arith.addf %444, %445 : vector<2x32xf32>
    %cst_124 = arith.constant 0.00833333377 : f32
    %447 = vector.broadcast %cst_124 : f32 to vector<2x32xf32>
    %448 = arith.mulf %447, %434 : vector<2x32xf32>
    %449 = arith.addf %425, %448 : vector<2x32xf32>
    %cst_125 = arith.constant 2.500000e-02 : f32
    %450 = vector.broadcast %cst_125 : f32 to vector<2x32xf32>
    %451 = arith.mulf %450, %446 : vector<2x32xf32>
    %452 = arith.addf %449, %451 : vector<2x32xf32>
    %453 = arith.truncf %452 : vector<2x32xf32> to vector<2x32xbf16>
    %cst_126 = arith.constant dense<0.000000e+00> : vector<2x64xf32>
    %454 = tpu.matmul %453, %194, %cst_126 {dimension_numbers = #tpu.dot_dimension_numbers<[1], [0], [0], [1], [0, 0, 1, 1], [], []>} : vector<2x32xbf16>, vector<32x64xbf16>, vector<2x64xf32> -> vector<2x64xf32>
    %455 = vector.broadcast %195 : vector<1x64xf32> to vector<2x64xf32>
    %456 = arith.addf %454, %455 : vector<2x64xf32>
    %457 = math.tanh %456 : vector<2x64xf32>
    %458 = arith.truncf %457 : vector<2x64xf32> to vector<2x64xbf16>
    %cst_127 = arith.constant dense<0.000000e+00> : vector<2x32xf32>
    %459 = tpu.matmul %458, %196, %cst_127 {dimension_numbers = #tpu.dot_dimension_numbers<[1], [0], [0], [1], [0, 0, 1, 1], [], []>} : vector<2x64xbf16>, vector<64x32xbf16>, vector<2x32xf32> -> vector<2x32xf32>
    %460 = vector.broadcast %197 : vector<1x32xf32> to vector<2x32xf32>
    %461 = arith.addf %459, %460 : vector<2x32xf32>
    %cst_128 = arith.constant 0.108641975 : f32
    %462 = vector.broadcast %cst_128 : f32 to vector<2x32xf32>
    %463 = arith.mulf %462, %434 : vector<2x32xf32>
    %464 = arith.addf %425, %463 : vector<2x32xf32>
    %cst_129 = arith.constant -0.4148148 : f32
    %465 = vector.broadcast %cst_129 : f32 to vector<2x32xf32>
    %466 = arith.mulf %465, %446 : vector<2x32xf32>
    %467 = arith.addf %464, %466 : vector<2x32xf32>
    %cst_130 = arith.constant 0.395061731 : f32
    %468 = vector.broadcast %cst_130 : f32 to vector<2x32xf32>
    %469 = arith.mulf %468, %461 : vector<2x32xf32>
    %470 = arith.addf %467, %469 : vector<2x32xf32>
    %471 = arith.truncf %470 : vector<2x32xf32> to vector<2x32xbf16>
    %cst_131 = arith.constant dense<0.000000e+00> : vector<2x64xf32>
    %472 = tpu.matmul %471, %194, %cst_131 {dimension_numbers = #tpu.dot_dimension_numbers<[1], [0], [0], [1], [0, 0, 1, 1], [], []>} : vector<2x32xbf16>, vector<32x64xbf16>, vector<2x64xf32> -> vector<2x64xf32>
    %473 = vector.broadcast %195 : vector<1x64xf32> to vector<2x64xf32>
    %474 = arith.addf %472, %473 : vector<2x64xf32>
    %475 = math.tanh %474 : vector<2x64xf32>
    %476 = arith.truncf %475 : vector<2x64xf32> to vector<2x64xbf16>
    %cst_132 = arith.constant dense<0.000000e+00> : vector<2x32xf32>
    %477 = tpu.matmul %476, %196, %cst_132 {dimension_numbers = #tpu.dot_dimension_numbers<[1], [0], [0], [1], [0, 0, 1, 1], [], []>} : vector<2x64xbf16>, vector<64x32xbf16>, vector<2x32xf32> -> vector<2x32xf32>
    %478 = vector.broadcast %197 : vector<1x32xf32> to vector<2x32xf32>
    %479 = arith.addf %477, %478 : vector<2x32xf32>
    %cst_133 = arith.constant 0.328066528 : f32
    %480 = vector.broadcast %cst_133 : f32 to vector<2x32xf32>
    %481 = arith.mulf %480, %434 : vector<2x32xf32>
    %482 = arith.addf %425, %481 : vector<2x32xf32>
    %cst_134 = arith.constant -1.28842151 : f32
    %483 = vector.broadcast %cst_134 : f32 to vector<2x32xf32>
    %484 = arith.mulf %483, %446 : vector<2x32xf32>
    %485 = arith.addf %482, %484 : vector<2x32xf32>
    %cst_135 = arith.constant 1.09143257 : f32
    %486 = vector.broadcast %cst_135 : f32 to vector<2x32xf32>
    %487 = arith.mulf %486, %461 : vector<2x32xf32>
    %488 = arith.addf %485, %487 : vector<2x32xf32>
    %cst_136 = arith.constant -0.0323121473 : f32
    %489 = vector.broadcast %cst_136 : f32 to vector<2x32xf32>
    %490 = arith.mulf %489, %479 : vector<2x32xf32>
    %491 = arith.addf %488, %490 : vector<2x32xf32>
    %492 = arith.truncf %491 : vector<2x32xf32> to vector<2x32xbf16>
    %cst_137 = arith.constant dense<0.000000e+00> : vector<2x64xf32>
    %493 = tpu.matmul %492, %194, %cst_137 {dimension_numbers = #tpu.dot_dimension_numbers<[1], [0], [0], [1], [0, 0, 1, 1], [], []>} : vector<2x32xbf16>, vector<32x64xbf16>, vector<2x64xf32> -> vector<2x64xf32>
    %494 = vector.broadcast %195 : vector<1x64xf32> to vector<2x64xf32>
    %495 = arith.addf %493, %494 : vector<2x64xf32>
    %496 = math.tanh %495 : vector<2x64xf32>
    %497 = arith.truncf %496 : vector<2x64xf32> to vector<2x64xbf16>
    %cst_138 = arith.constant dense<0.000000e+00> : vector<2x32xf32>
    %498 = tpu.matmul %497, %196, %cst_138 {dimension_numbers = #tpu.dot_dimension_numbers<[1], [0], [0], [1], [0, 0, 1, 1], [], []>} : vector<2x64xbf16>, vector<64x32xbf16>, vector<2x32xf32> -> vector<2x32xf32>
    %499 = vector.broadcast %197 : vector<1x32xf32> to vector<2x32xf32>
    %500 = arith.addf %498, %499 : vector<2x32xf32>
    %cst_139 = arith.constant 0.316252798 : f32
    %501 = vector.broadcast %cst_139 : f32 to vector<2x32xf32>
    %502 = arith.mulf %501, %434 : vector<2x32xf32>
    %503 = arith.addf %425, %502 : vector<2x32xf32>
    %cst_140 = arith.constant -1.19528615 : f32
    %504 = vector.broadcast %cst_140 : f32 to vector<2x32xf32>
    %505 = arith.mulf %504, %446 : vector<2x32xf32>
    %506 = arith.addf %503, %505 : vector<2x32xf32>
    %cst_141 = arith.constant 0.989602506 : f32
    %507 = vector.broadcast %cst_141 : f32 to vector<2x32xf32>
    %508 = arith.mulf %507, %461 : vector<2x32xf32>
    %509 = arith.addf %506, %508 : vector<2x32xf32>
    %cst_142 = arith.constant 0.0309343431 : f32
    %510 = vector.broadcast %cst_142 : f32 to vector<2x32xf32>
    %511 = arith.mulf %510, %479 : vector<2x32xf32>
    %512 = arith.addf %509, %511 : vector<2x32xf32>
    %cst_143 = arith.constant -0.0303923674 : f32
    %513 = vector.broadcast %cst_143 : f32 to vector<2x32xf32>
    %514 = arith.mulf %513, %500 : vector<2x32xf32>
    %515 = arith.addf %512, %514 : vector<2x32xf32>
    %516 = arith.truncf %515 : vector<2x32xf32> to vector<2x32xbf16>
    %cst_144 = arith.constant dense<0.000000e+00> : vector<2x64xf32>
    %517 = tpu.matmul %516, %194, %cst_144 {dimension_numbers = #tpu.dot_dimension_numbers<[1], [0], [0], [1], [0, 0, 1, 1], [], []>} : vector<2x32xbf16>, vector<32x64xbf16>, vector<2x64xf32> -> vector<2x64xf32>
    %518 = vector.broadcast %195 : vector<1x64xf32> to vector<2x64xf32>
    %519 = arith.addf %517, %518 : vector<2x64xf32>
    %520 = math.tanh %519 : vector<2x64xf32>
    %521 = arith.truncf %520 : vector<2x64xf32> to vector<2x64xbf16>
    %cst_145 = arith.constant dense<0.000000e+00> : vector<2x32xf32>
    %522 = tpu.matmul %521, %196, %cst_145 {dimension_numbers = #tpu.dot_dimension_numbers<[1], [0], [0], [1], [0, 0, 1, 1], [], []>} : vector<2x64xbf16>, vector<64x32xbf16>, vector<2x32xf32> -> vector<2x32xf32>
    %523 = vector.broadcast %197 : vector<1x32xf32> to vector<2x32xf32>
    %524 = arith.addf %522, %523 : vector<2x32xf32>
    %cst_146 = arith.constant 0.0101273144 : f32
    %525 = vector.broadcast %cst_146 : f32 to vector<2x32xf32>
    %526 = arith.mulf %525, %434 : vector<2x32xf32>
    %527 = arith.addf %425, %526 : vector<2x32xf32>
    %cst_147 = arith.constant 0.0499151461 : f32
    %528 = vector.broadcast %cst_147 : f32 to vector<2x32xf32>
    %529 = arith.mulf %528, %461 : vector<2x32xf32>
    %530 = arith.addf %527, %529 : vector<2x32xf32>
    %cst_148 = arith.constant 0.0723379627 : f32
    %531 = vector.broadcast %cst_148 : f32 to vector<2x32xf32>
    %532 = arith.mulf %531, %479 : vector<2x32xf32>
    %533 = arith.addf %530, %532 : vector<2x32xf32>
    %cst_149 = arith.constant -0.0358195752 : f32
    %534 = vector.broadcast %cst_149 : f32 to vector<2x32xf32>
    %535 = arith.mulf %534, %500 : vector<2x32xf32>
    %536 = arith.addf %533, %535 : vector<2x32xf32>
    %cst_150 = arith.constant 0.0145502649 : f32
    %537 = vector.broadcast %cst_150 : f32 to vector<2x32xf32>
    %538 = arith.mulf %537, %524 : vector<2x32xf32>
    %539 = arith.addf %536, %538 : vector<2x32xf32>
    %c3_i32_151 = arith.constant 3 : i32
    %540 = arith.truncf %539 : vector<2x32xf32> to vector<2x32xbf16>
    %cst_152 = arith.constant dense<0.000000e+00> : vector<2x64xf32>
    %541 = tpu.matmul %540, %194, %cst_152 {dimension_numbers = #tpu.dot_dimension_numbers<[1], [0], [0], [1], [0, 0, 1, 1], [], []>} : vector<2x32xbf16>, vector<32x64xbf16>, vector<2x64xf32> -> vector<2x64xf32>
    %542 = vector.broadcast %195 : vector<1x64xf32> to vector<2x64xf32>
    %543 = arith.addf %541, %542 : vector<2x64xf32>
    %544 = math.tanh %543 : vector<2x64xf32>
    %545 = arith.truncf %544 : vector<2x64xf32> to vector<2x64xbf16>
    %cst_153 = arith.constant dense<0.000000e+00> : vector<2x32xf32>
    %546 = tpu.matmul %545, %196, %cst_153 {dimension_numbers = #tpu.dot_dimension_numbers<[1], [0], [0], [1], [0, 0, 1, 1], [], []>} : vector<2x64xbf16>, vector<64x32xbf16>, vector<2x32xf32> -> vector<2x32xf32>
    %547 = vector.broadcast %197 : vector<1x32xf32> to vector<2x32xf32>
    %548 = arith.addf %546, %547 : vector<2x32xf32>
    %cst_154 = arith.constant 0.0222222228 : f32
    %549 = vector.broadcast %cst_154 : f32 to vector<2x32xf32>
    %550 = arith.mulf %549, %548 : vector<2x32xf32>
    %551 = arith.addf %539, %550 : vector<2x32xf32>
    %552 = arith.truncf %551 : vector<2x32xf32> to vector<2x32xbf16>
    %cst_155 = arith.constant dense<0.000000e+00> : vector<2x64xf32>
    %553 = tpu.matmul %552, %194, %cst_155 {dimension_numbers = #tpu.dot_dimension_numbers<[1], [0], [0], [1], [0, 0, 1, 1], [], []>} : vector<2x32xbf16>, vector<32x64xbf16>, vector<2x64xf32> -> vector<2x64xf32>
    %554 = vector.broadcast %195 : vector<1x64xf32> to vector<2x64xf32>
    %555 = arith.addf %553, %554 : vector<2x64xf32>
    %556 = math.tanh %555 : vector<2x64xf32>
    %557 = arith.truncf %556 : vector<2x64xf32> to vector<2x64xbf16>
    %cst_156 = arith.constant dense<0.000000e+00> : vector<2x32xf32>
    %558 = tpu.matmul %557, %196, %cst_156 {dimension_numbers = #tpu.dot_dimension_numbers<[1], [0], [0], [1], [0, 0, 1, 1], [], []>} : vector<2x64xbf16>, vector<64x32xbf16>, vector<2x32xf32> -> vector<2x32xf32>
    %559 = vector.broadcast %197 : vector<1x32xf32> to vector<2x32xf32>
    %560 = arith.addf %558, %559 : vector<2x32xf32>
    %cst_157 = arith.constant 0.00833333377 : f32
    %561 = vector.broadcast %cst_157 : f32 to vector<2x32xf32>
    %562 = arith.mulf %561, %548 : vector<2x32xf32>
    %563 = arith.addf %539, %562 : vector<2x32xf32>
    %cst_158 = arith.constant 2.500000e-02 : f32
    %564 = vector.broadcast %cst_158 : f32 to vector<2x32xf32>
    %565 = arith.mulf %564, %560 : vector<2x32xf32>
    %566 = arith.addf %563, %565 : vector<2x32xf32>
    %567 = arith.truncf %566 : vector<2x32xf32> to vector<2x32xbf16>
    %cst_159 = arith.constant dense<0.000000e+00> : vector<2x64xf32>
    %568 = tpu.matmul %567, %194, %cst_159 {dimension_numbers = #tpu.dot_dimension_numbers<[1], [0], [0], [1], [0, 0, 1, 1], [], []>} : vector<2x32xbf16>, vector<32x64xbf16>, vector<2x64xf32> -> vector<2x64xf32>
    %569 = vector.broadcast %195 : vector<1x64xf32> to vector<2x64xf32>
    %570 = arith.addf %568, %569 : vector<2x64xf32>
    %571 = math.tanh %570 : vector<2x64xf32>
    %572 = arith.truncf %571 : vector<2x64xf32> to vector<2x64xbf16>
    %cst_160 = arith.constant dense<0.000000e+00> : vector<2x32xf32>
    %573 = tpu.matmul %572, %196, %cst_160 {dimension_numbers = #tpu.dot_dimension_numbers<[1], [0], [0], [1], [0, 0, 1, 1], [], []>} : vector<2x64xbf16>, vector<64x32xbf16>, vector<2x32xf32> -> vector<2x32xf32>
    %574 = vector.broadcast %197 : vector<1x32xf32> to vector<2x32xf32>
    %575 = arith.addf %573, %574 : vector<2x32xf32>
    %cst_161 = arith.constant 0.108641975 : f32
    %576 = vector.broadcast %cst_161 : f32 to vector<2x32xf32>
    %577 = arith.mulf %576, %548 : vector<2x32xf32>
    %578 = arith.addf %539, %577 : vector<2x32xf32>
    %cst_162 = arith.constant -0.4148148 : f32
    %579 = vector.broadcast %cst_162 : f32 to vector<2x32xf32>
    %580 = arith.mulf %579, %560 : vector<2x32xf32>
    %581 = arith.addf %578, %580 : vector<2x32xf32>
    %cst_163 = arith.constant 0.395061731 : f32
    %582 = vector.broadcast %cst_163 : f32 to vector<2x32xf32>
    %583 = arith.mulf %582, %575 : vector<2x32xf32>
    %584 = arith.addf %581, %583 : vector<2x32xf32>
    %585 = arith.truncf %584 : vector<2x32xf32> to vector<2x32xbf16>
    %cst_164 = arith.constant dense<0.000000e+00> : vector<2x64xf32>
    %586 = tpu.matmul %585, %194, %cst_164 {dimension_numbers = #tpu.dot_dimension_numbers<[1], [0], [0], [1], [0, 0, 1, 1], [], []>} : vector<2x32xbf16>, vector<32x64xbf16>, vector<2x64xf32> -> vector<2x64xf32>
    %587 = vector.broadcast %195 : vector<1x64xf32> to vector<2x64xf32>
    %588 = arith.addf %586, %587 : vector<2x64xf32>
    %589 = math.tanh %588 : vector<2x64xf32>
    %590 = arith.truncf %589 : vector<2x64xf32> to vector<2x64xbf16>
    %cst_165 = arith.constant dense<0.000000e+00> : vector<2x32xf32>
    %591 = tpu.matmul %590, %196, %cst_165 {dimension_numbers = #tpu.dot_dimension_numbers<[1], [0], [0], [1], [0, 0, 1, 1], [], []>} : vector<2x64xbf16>, vector<64x32xbf16>, vector<2x32xf32> -> vector<2x32xf32>
    %592 = vector.broadcast %197 : vector<1x32xf32> to vector<2x32xf32>
    %593 = arith.addf %591, %592 : vector<2x32xf32>
    %cst_166 = arith.constant 0.328066528 : f32
    %594 = vector.broadcast %cst_166 : f32 to vector<2x32xf32>
    %595 = arith.mulf %594, %548 : vector<2x32xf32>
    %596 = arith.addf %539, %595 : vector<2x32xf32>
    %cst_167 = arith.constant -1.28842151 : f32
    %597 = vector.broadcast %cst_167 : f32 to vector<2x32xf32>
    %598 = arith.mulf %597, %560 : vector<2x32xf32>
    %599 = arith.addf %596, %598 : vector<2x32xf32>
    %cst_168 = arith.constant 1.09143257 : f32
    %600 = vector.broadcast %cst_168 : f32 to vector<2x32xf32>
    %601 = arith.mulf %600, %575 : vector<2x32xf32>
    %602 = arith.addf %599, %601 : vector<2x32xf32>
    %cst_169 = arith.constant -0.0323121473 : f32
    %603 = vector.broadcast %cst_169 : f32 to vector<2x32xf32>
    %604 = arith.mulf %603, %593 : vector<2x32xf32>
    %605 = arith.addf %602, %604 : vector<2x32xf32>
    %606 = arith.truncf %605 : vector<2x32xf32> to vector<2x32xbf16>
    %cst_170 = arith.constant dense<0.000000e+00> : vector<2x64xf32>
    %607 = tpu.matmul %606, %194, %cst_170 {dimension_numbers = #tpu.dot_dimension_numbers<[1], [0], [0], [1], [0, 0, 1, 1], [], []>} : vector<2x32xbf16>, vector<32x64xbf16>, vector<2x64xf32> -> vector<2x64xf32>
    %608 = vector.broadcast %195 : vector<1x64xf32> to vector<2x64xf32>
    %609 = arith.addf %607, %608 : vector<2x64xf32>
    %610 = math.tanh %609 : vector<2x64xf32>
    %611 = arith.truncf %610 : vector<2x64xf32> to vector<2x64xbf16>
    %cst_171 = arith.constant dense<0.000000e+00> : vector<2x32xf32>
    %612 = tpu.matmul %611, %196, %cst_171 {dimension_numbers = #tpu.dot_dimension_numbers<[1], [0], [0], [1], [0, 0, 1, 1], [], []>} : vector<2x64xbf16>, vector<64x32xbf16>, vector<2x32xf32> -> vector<2x32xf32>
    %613 = vector.broadcast %197 : vector<1x32xf32> to vector<2x32xf32>
    %614 = arith.addf %612, %613 : vector<2x32xf32>
    %cst_172 = arith.constant 0.316252798 : f32
    %615 = vector.broadcast %cst_172 : f32 to vector<2x32xf32>
    %616 = arith.mulf %615, %548 : vector<2x32xf32>
    %617 = arith.addf %539, %616 : vector<2x32xf32>
    %cst_173 = arith.constant -1.19528615 : f32
    %618 = vector.broadcast %cst_173 : f32 to vector<2x32xf32>
    %619 = arith.mulf %618, %560 : vector<2x32xf32>
    %620 = arith.addf %617, %619 : vector<2x32xf32>
    %cst_174 = arith.constant 0.989602506 : f32
    %621 = vector.broadcast %cst_174 : f32 to vector<2x32xf32>
    %622 = arith.mulf %621, %575 : vector<2x32xf32>
    %623 = arith.addf %620, %622 : vector<2x32xf32>
    %cst_175 = arith.constant 0.0309343431 : f32
    %624 = vector.broadcast %cst_175 : f32 to vector<2x32xf32>
    %625 = arith.mulf %624, %593 : vector<2x32xf32>
    %626 = arith.addf %623, %625 : vector<2x32xf32>
    %cst_176 = arith.constant -0.0303923674 : f32
    %627 = vector.broadcast %cst_176 : f32 to vector<2x32xf32>
    %628 = arith.mulf %627, %614 : vector<2x32xf32>
    %629 = arith.addf %626, %628 : vector<2x32xf32>
    %630 = arith.truncf %629 : vector<2x32xf32> to vector<2x32xbf16>
    %cst_177 = arith.constant dense<0.000000e+00> : vector<2x64xf32>
    %631 = tpu.matmul %630, %194, %cst_177 {dimension_numbers = #tpu.dot_dimension_numbers<[1], [0], [0], [1], [0, 0, 1, 1], [], []>} : vector<2x32xbf16>, vector<32x64xbf16>, vector<2x64xf32> -> vector<2x64xf32>
    %632 = vector.broadcast %195 : vector<1x64xf32> to vector<2x64xf32>
    %633 = arith.addf %631, %632 : vector<2x64xf32>
    %634 = math.tanh %633 : vector<2x64xf32>
    %635 = arith.truncf %634 : vector<2x64xf32> to vector<2x64xbf16>
    %cst_178 = arith.constant dense<0.000000e+00> : vector<2x32xf32>
    %636 = tpu.matmul %635, %196, %cst_178 {dimension_numbers = #tpu.dot_dimension_numbers<[1], [0], [0], [1], [0, 0, 1, 1], [], []>} : vector<2x64xbf16>, vector<64x32xbf16>, vector<2x32xf32> -> vector<2x32xf32>
    %637 = vector.broadcast %197 : vector<1x32xf32> to vector<2x32xf32>
    %638 = arith.addf %636, %637 : vector<2x32xf32>
    %cst_179 = arith.constant 0.0101273144 : f32
    %639 = vector.broadcast %cst_179 : f32 to vector<2x32xf32>
    %640 = arith.mulf %639, %548 : vector<2x32xf32>
    %641 = arith.addf %539, %640 : vector<2x32xf32>
    %cst_180 = arith.constant 0.0499151461 : f32
    %642 = vector.broadcast %cst_180 : f32 to vector<2x32xf32>
    %643 = arith.mulf %642, %575 : vector<2x32xf32>
    %644 = arith.addf %641, %643 : vector<2x32xf32>
    %cst_181 = arith.constant 0.0723379627 : f32
    %645 = vector.broadcast %cst_181 : f32 to vector<2x32xf32>
    %646 = arith.mulf %645, %593 : vector<2x32xf32>
    %647 = arith.addf %644, %646 : vector<2x32xf32>
    %cst_182 = arith.constant -0.0358195752 : f32
    %648 = vector.broadcast %cst_182 : f32 to vector<2x32xf32>
    %649 = arith.mulf %648, %614 : vector<2x32xf32>
    %650 = arith.addf %647, %649 : vector<2x32xf32>
    %cst_183 = arith.constant 0.0145502649 : f32
    %651 = vector.broadcast %cst_183 : f32 to vector<2x32xf32>
    %652 = arith.mulf %651, %638 : vector<2x32xf32>
    %653 = arith.addf %650, %652 : vector<2x32xf32>
    %c4_i32_184 = arith.constant 4 : i32
    %654 = arith.truncf %653 : vector<2x32xf32> to vector<2x32xbf16>
    %cst_185 = arith.constant dense<0.000000e+00> : vector<2x64xf32>
    %655 = tpu.matmul %654, %194, %cst_185 {dimension_numbers = #tpu.dot_dimension_numbers<[1], [0], [0], [1], [0, 0, 1, 1], [], []>} : vector<2x32xbf16>, vector<32x64xbf16>, vector<2x64xf32> -> vector<2x64xf32>
    %656 = vector.broadcast %195 : vector<1x64xf32> to vector<2x64xf32>
    %657 = arith.addf %655, %656 : vector<2x64xf32>
    %658 = math.tanh %657 : vector<2x64xf32>
    %659 = arith.truncf %658 : vector<2x64xf32> to vector<2x64xbf16>
    %cst_186 = arith.constant dense<0.000000e+00> : vector<2x32xf32>
    %660 = tpu.matmul %659, %196, %cst_186 {dimension_numbers = #tpu.dot_dimension_numbers<[1], [0], [0], [1], [0, 0, 1, 1], [], []>} : vector<2x64xbf16>, vector<64x32xbf16>, vector<2x32xf32> -> vector<2x32xf32>
    %661 = vector.broadcast %197 : vector<1x32xf32> to vector<2x32xf32>
    %662 = arith.addf %660, %661 : vector<2x32xf32>
    %cst_187 = arith.constant 0.0222222228 : f32
    %663 = vector.broadcast %cst_187 : f32 to vector<2x32xf32>
    %664 = arith.mulf %663, %662 : vector<2x32xf32>
    %665 = arith.addf %653, %664 : vector<2x32xf32>
    %666 = arith.truncf %665 : vector<2x32xf32> to vector<2x32xbf16>
    %cst_188 = arith.constant dense<0.000000e+00> : vector<2x64xf32>
    %667 = tpu.matmul %666, %194, %cst_188 {dimension_numbers = #tpu.dot_dimension_numbers<[1], [0], [0], [1], [0, 0, 1, 1], [], []>} : vector<2x32xbf16>, vector<32x64xbf16>, vector<2x64xf32> -> vector<2x64xf32>
    %668 = vector.broadcast %195 : vector<1x64xf32> to vector<2x64xf32>
    %669 = arith.addf %667, %668 : vector<2x64xf32>
    %670 = math.tanh %669 : vector<2x64xf32>
    %671 = arith.truncf %670 : vector<2x64xf32> to vector<2x64xbf16>
    %cst_189 = arith.constant dense<0.000000e+00> : vector<2x32xf32>
    %672 = tpu.matmul %671, %196, %cst_189 {dimension_numbers = #tpu.dot_dimension_numbers<[1], [0], [0], [1], [0, 0, 1, 1], [], []>} : vector<2x64xbf16>, vector<64x32xbf16>, vector<2x32xf32> -> vector<2x32xf32>
    %673 = vector.broadcast %197 : vector<1x32xf32> to vector<2x32xf32>
    %674 = arith.addf %672, %673 : vector<2x32xf32>
    %cst_190 = arith.constant 0.00833333377 : f32
    %675 = vector.broadcast %cst_190 : f32 to vector<2x32xf32>
    %676 = arith.mulf %675, %662 : vector<2x32xf32>
    %677 = arith.addf %653, %676 : vector<2x32xf32>
    %cst_191 = arith.constant 2.500000e-02 : f32
    %678 = vector.broadcast %cst_191 : f32 to vector<2x32xf32>
    %679 = arith.mulf %678, %674 : vector<2x32xf32>
    %680 = arith.addf %677, %679 : vector<2x32xf32>
    %681 = arith.truncf %680 : vector<2x32xf32> to vector<2x32xbf16>
    %cst_192 = arith.constant dense<0.000000e+00> : vector<2x64xf32>
    %682 = tpu.matmul %681, %194, %cst_192 {dimension_numbers = #tpu.dot_dimension_numbers<[1], [0], [0], [1], [0, 0, 1, 1], [], []>} : vector<2x32xbf16>, vector<32x64xbf16>, vector<2x64xf32> -> vector<2x64xf32>
    %683 = vector.broadcast %195 : vector<1x64xf32> to vector<2x64xf32>
    %684 = arith.addf %682, %683 : vector<2x64xf32>
    %685 = math.tanh %684 : vector<2x64xf32>
    %686 = arith.truncf %685 : vector<2x64xf32> to vector<2x64xbf16>
    %cst_193 = arith.constant dense<0.000000e+00> : vector<2x32xf32>
    %687 = tpu.matmul %686, %196, %cst_193 {dimension_numbers = #tpu.dot_dimension_numbers<[1], [0], [0], [1], [0, 0, 1, 1], [], []>} : vector<2x64xbf16>, vector<64x32xbf16>, vector<2x32xf32> -> vector<2x32xf32>
    %688 = vector.broadcast %197 : vector<1x32xf32> to vector<2x32xf32>
    %689 = arith.addf %687, %688 : vector<2x32xf32>
    %cst_194 = arith.constant 0.108641975 : f32
    %690 = vector.broadcast %cst_194 : f32 to vector<2x32xf32>
    %691 = arith.mulf %690, %662 : vector<2x32xf32>
    %692 = arith.addf %653, %691 : vector<2x32xf32>
    %cst_195 = arith.constant -0.4148148 : f32
    %693 = vector.broadcast %cst_195 : f32 to vector<2x32xf32>
    %694 = arith.mulf %693, %674 : vector<2x32xf32>
    %695 = arith.addf %692, %694 : vector<2x32xf32>
    %cst_196 = arith.constant 0.395061731 : f32
    %696 = vector.broadcast %cst_196 : f32 to vector<2x32xf32>
    %697 = arith.mulf %696, %689 : vector<2x32xf32>
    %698 = arith.addf %695, %697 : vector<2x32xf32>
    %699 = arith.truncf %698 : vector<2x32xf32> to vector<2x32xbf16>
    %cst_197 = arith.constant dense<0.000000e+00> : vector<2x64xf32>
    %700 = tpu.matmul %699, %194, %cst_197 {dimension_numbers = #tpu.dot_dimension_numbers<[1], [0], [0], [1], [0, 0, 1, 1], [], []>} : vector<2x32xbf16>, vector<32x64xbf16>, vector<2x64xf32> -> vector<2x64xf32>
    %701 = vector.broadcast %195 : vector<1x64xf32> to vector<2x64xf32>
    %702 = arith.addf %700, %701 : vector<2x64xf32>
    %703 = math.tanh %702 : vector<2x64xf32>
    %704 = arith.truncf %703 : vector<2x64xf32> to vector<2x64xbf16>
    %cst_198 = arith.constant dense<0.000000e+00> : vector<2x32xf32>
    %705 = tpu.matmul %704, %196, %cst_198 {dimension_numbers = #tpu.dot_dimension_numbers<[1], [0], [0], [1], [0, 0, 1, 1], [], []>} : vector<2x64xbf16>, vector<64x32xbf16>, vector<2x32xf32> -> vector<2x32xf32>
    %706 = vector.broadcast %197 : vector<1x32xf32> to vector<2x32xf32>
    %707 = arith.addf %705, %706 : vector<2x32xf32>
    %cst_199 = arith.constant 0.328066528 : f32
    %708 = vector.broadcast %cst_199 : f32 to vector<2x32xf32>
    %709 = arith.mulf %708, %662 : vector<2x32xf32>
    %710 = arith.addf %653, %709 : vector<2x32xf32>
    %cst_200 = arith.constant -1.28842151 : f32
    %711 = vector.broadcast %cst_200 : f32 to vector<2x32xf32>
    %712 = arith.mulf %711, %674 : vector<2x32xf32>
    %713 = arith.addf %710, %712 : vector<2x32xf32>
    %cst_201 = arith.constant 1.09143257 : f32
    %714 = vector.broadcast %cst_201 : f32 to vector<2x32xf32>
    %715 = arith.mulf %714, %689 : vector<2x32xf32>
    %716 = arith.addf %713, %715 : vector<2x32xf32>
    %cst_202 = arith.constant -0.0323121473 : f32
    %717 = vector.broadcast %cst_202 : f32 to vector<2x32xf32>
    %718 = arith.mulf %717, %707 : vector<2x32xf32>
    %719 = arith.addf %716, %718 : vector<2x32xf32>
    %720 = arith.truncf %719 : vector<2x32xf32> to vector<2x32xbf16>
    %cst_203 = arith.constant dense<0.000000e+00> : vector<2x64xf32>
    %721 = tpu.matmul %720, %194, %cst_203 {dimension_numbers = #tpu.dot_dimension_numbers<[1], [0], [0], [1], [0, 0, 1, 1], [], []>} : vector<2x32xbf16>, vector<32x64xbf16>, vector<2x64xf32> -> vector<2x64xf32>
    %722 = vector.broadcast %195 : vector<1x64xf32> to vector<2x64xf32>
    %723 = arith.addf %721, %722 : vector<2x64xf32>
    %724 = math.tanh %723 : vector<2x64xf32>
    %725 = arith.truncf %724 : vector<2x64xf32> to vector<2x64xbf16>
    %cst_204 = arith.constant dense<0.000000e+00> : vector<2x32xf32>
    %726 = tpu.matmul %725, %196, %cst_204 {dimension_numbers = #tpu.dot_dimension_numbers<[1], [0], [0], [1], [0, 0, 1, 1], [], []>} : vector<2x64xbf16>, vector<64x32xbf16>, vector<2x32xf32> -> vector<2x32xf32>
    %727 = vector.broadcast %197 : vector<1x32xf32> to vector<2x32xf32>
    %728 = arith.addf %726, %727 : vector<2x32xf32>
    %cst_205 = arith.constant 0.316252798 : f32
    %729 = vector.broadcast %cst_205 : f32 to vector<2x32xf32>
    %730 = arith.mulf %729, %662 : vector<2x32xf32>
    %731 = arith.addf %653, %730 : vector<2x32xf32>
    %cst_206 = arith.constant -1.19528615 : f32
    %732 = vector.broadcast %cst_206 : f32 to vector<2x32xf32>
    %733 = arith.mulf %732, %674 : vector<2x32xf32>
    %734 = arith.addf %731, %733 : vector<2x32xf32>
    %cst_207 = arith.constant 0.989602506 : f32
    %735 = vector.broadcast %cst_207 : f32 to vector<2x32xf32>
    %736 = arith.mulf %735, %689 : vector<2x32xf32>
    %737 = arith.addf %734, %736 : vector<2x32xf32>
    %cst_208 = arith.constant 0.0309343431 : f32
    %738 = vector.broadcast %cst_208 : f32 to vector<2x32xf32>
    %739 = arith.mulf %738, %707 : vector<2x32xf32>
    %740 = arith.addf %737, %739 : vector<2x32xf32>
    %cst_209 = arith.constant -0.0303923674 : f32
    %741 = vector.broadcast %cst_209 : f32 to vector<2x32xf32>
    %742 = arith.mulf %741, %728 : vector<2x32xf32>
    %743 = arith.addf %740, %742 : vector<2x32xf32>
    %744 = arith.truncf %743 : vector<2x32xf32> to vector<2x32xbf16>
    %cst_210 = arith.constant dense<0.000000e+00> : vector<2x64xf32>
    %745 = tpu.matmul %744, %194, %cst_210 {dimension_numbers = #tpu.dot_dimension_numbers<[1], [0], [0], [1], [0, 0, 1, 1], [], []>} : vector<2x32xbf16>, vector<32x64xbf16>, vector<2x64xf32> -> vector<2x64xf32>
    %746 = vector.broadcast %195 : vector<1x64xf32> to vector<2x64xf32>
    %747 = arith.addf %745, %746 : vector<2x64xf32>
    %748 = math.tanh %747 : vector<2x64xf32>
    %749 = arith.truncf %748 : vector<2x64xf32> to vector<2x64xbf16>
    %cst_211 = arith.constant dense<0.000000e+00> : vector<2x32xf32>
    %750 = tpu.matmul %749, %196, %cst_211 {dimension_numbers = #tpu.dot_dimension_numbers<[1], [0], [0], [1], [0, 0, 1, 1], [], []>} : vector<2x64xbf16>, vector<64x32xbf16>, vector<2x32xf32> -> vector<2x32xf32>
    %751 = vector.broadcast %197 : vector<1x32xf32> to vector<2x32xf32>
    %752 = arith.addf %750, %751 : vector<2x32xf32>
    %cst_212 = arith.constant 0.0101273144 : f32
    %753 = vector.broadcast %cst_212 : f32 to vector<2x32xf32>
    %754 = arith.mulf %753, %662 : vector<2x32xf32>
    %755 = arith.addf %653, %754 : vector<2x32xf32>
    %cst_213 = arith.constant 0.0499151461 : f32
    %756 = vector.broadcast %cst_213 : f32 to vector<2x32xf32>
    %757 = arith.mulf %756, %689 : vector<2x32xf32>
    %758 = arith.addf %755, %757 : vector<2x32xf32>
    %cst_214 = arith.constant 0.0723379627 : f32
    %759 = vector.broadcast %cst_214 : f32 to vector<2x32xf32>
    %760 = arith.mulf %759, %707 : vector<2x32xf32>
    %761 = arith.addf %758, %760 : vector<2x32xf32>
    %cst_215 = arith.constant -0.0358195752 : f32
    %762 = vector.broadcast %cst_215 : f32 to vector<2x32xf32>
    %763 = arith.mulf %762, %728 : vector<2x32xf32>
    %764 = arith.addf %761, %763 : vector<2x32xf32>
    %cst_216 = arith.constant 0.0145502649 : f32
    %765 = vector.broadcast %cst_216 : f32 to vector<2x32xf32>
    %766 = arith.mulf %765, %752 : vector<2x32xf32>
    %767 = arith.addf %764, %766 : vector<2x32xf32>
    %c5_i32_217 = arith.constant 5 : i32
    %768 = arith.truncf %767 : vector<2x32xf32> to vector<2x32xbf16>
    %cst_218 = arith.constant dense<0.000000e+00> : vector<2x64xf32>
    %769 = tpu.matmul %768, %194, %cst_218 {dimension_numbers = #tpu.dot_dimension_numbers<[1], [0], [0], [1], [0, 0, 1, 1], [], []>} : vector<2x32xbf16>, vector<32x64xbf16>, vector<2x64xf32> -> vector<2x64xf32>
    %770 = vector.broadcast %195 : vector<1x64xf32> to vector<2x64xf32>
    %771 = arith.addf %769, %770 : vector<2x64xf32>
    %772 = math.tanh %771 : vector<2x64xf32>
    %773 = arith.truncf %772 : vector<2x64xf32> to vector<2x64xbf16>
    %cst_219 = arith.constant dense<0.000000e+00> : vector<2x32xf32>
    %774 = tpu.matmul %773, %196, %cst_219 {dimension_numbers = #tpu.dot_dimension_numbers<[1], [0], [0], [1], [0, 0, 1, 1], [], []>} : vector<2x64xbf16>, vector<64x32xbf16>, vector<2x32xf32> -> vector<2x32xf32>
    %775 = vector.broadcast %197 : vector<1x32xf32> to vector<2x32xf32>
    %776 = arith.addf %774, %775 : vector<2x32xf32>
    %cst_220 = arith.constant 0.0222222228 : f32
    %777 = vector.broadcast %cst_220 : f32 to vector<2x32xf32>
    %778 = arith.mulf %777, %776 : vector<2x32xf32>
    %779 = arith.addf %767, %778 : vector<2x32xf32>
    %780 = arith.truncf %779 : vector<2x32xf32> to vector<2x32xbf16>
    %cst_221 = arith.constant dense<0.000000e+00> : vector<2x64xf32>
    %781 = tpu.matmul %780, %194, %cst_221 {dimension_numbers = #tpu.dot_dimension_numbers<[1], [0], [0], [1], [0, 0, 1, 1], [], []>} : vector<2x32xbf16>, vector<32x64xbf16>, vector<2x64xf32> -> vector<2x64xf32>
    %782 = vector.broadcast %195 : vector<1x64xf32> to vector<2x64xf32>
    %783 = arith.addf %781, %782 : vector<2x64xf32>
    %784 = math.tanh %783 : vector<2x64xf32>
    %785 = arith.truncf %784 : vector<2x64xf32> to vector<2x64xbf16>
    %cst_222 = arith.constant dense<0.000000e+00> : vector<2x32xf32>
    %786 = tpu.matmul %785, %196, %cst_222 {dimension_numbers = #tpu.dot_dimension_numbers<[1], [0], [0], [1], [0, 0, 1, 1], [], []>} : vector<2x64xbf16>, vector<64x32xbf16>, vector<2x32xf32> -> vector<2x32xf32>
    %787 = vector.broadcast %197 : vector<1x32xf32> to vector<2x32xf32>
    %788 = arith.addf %786, %787 : vector<2x32xf32>
    %cst_223 = arith.constant 0.00833333377 : f32
    %789 = vector.broadcast %cst_223 : f32 to vector<2x32xf32>
    %790 = arith.mulf %789, %776 : vector<2x32xf32>
    %791 = arith.addf %767, %790 : vector<2x32xf32>
    %cst_224 = arith.constant 2.500000e-02 : f32
    %792 = vector.broadcast %cst_224 : f32 to vector<2x32xf32>
    %793 = arith.mulf %792, %788 : vector<2x32xf32>
    %794 = arith.addf %791, %793 : vector<2x32xf32>
    %795 = arith.truncf %794 : vector<2x32xf32> to vector<2x32xbf16>
    %cst_225 = arith.constant dense<0.000000e+00> : vector<2x64xf32>
    %796 = tpu.matmul %795, %194, %cst_225 {dimension_numbers = #tpu.dot_dimension_numbers<[1], [0], [0], [1], [0, 0, 1, 1], [], []>} : vector<2x32xbf16>, vector<32x64xbf16>, vector<2x64xf32> -> vector<2x64xf32>
    %797 = vector.broadcast %195 : vector<1x64xf32> to vector<2x64xf32>
    %798 = arith.addf %796, %797 : vector<2x64xf32>
    %799 = math.tanh %798 : vector<2x64xf32>
    %800 = arith.truncf %799 : vector<2x64xf32> to vector<2x64xbf16>
    %cst_226 = arith.constant dense<0.000000e+00> : vector<2x32xf32>
    %801 = tpu.matmul %800, %196, %cst_226 {dimension_numbers = #tpu.dot_dimension_numbers<[1], [0], [0], [1], [0, 0, 1, 1], [], []>} : vector<2x64xbf16>, vector<64x32xbf16>, vector<2x32xf32> -> vector<2x32xf32>
    %802 = vector.broadcast %197 : vector<1x32xf32> to vector<2x32xf32>
    %803 = arith.addf %801, %802 : vector<2x32xf32>
    %cst_227 = arith.constant 0.108641975 : f32
    %804 = vector.broadcast %cst_227 : f32 to vector<2x32xf32>
    %805 = arith.mulf %804, %776 : vector<2x32xf32>
    %806 = arith.addf %767, %805 : vector<2x32xf32>
    %cst_228 = arith.constant -0.4148148 : f32
    %807 = vector.broadcast %cst_228 : f32 to vector<2x32xf32>
    %808 = arith.mulf %807, %788 : vector<2x32xf32>
    %809 = arith.addf %806, %808 : vector<2x32xf32>
    %cst_229 = arith.constant 0.395061731 : f32
    %810 = vector.broadcast %cst_229 : f32 to vector<2x32xf32>
    %811 = arith.mulf %810, %803 : vector<2x32xf32>
    %812 = arith.addf %809, %811 : vector<2x32xf32>
    %813 = arith.truncf %812 : vector<2x32xf32> to vector<2x32xbf16>
    %cst_230 = arith.constant dense<0.000000e+00> : vector<2x64xf32>
    %814 = tpu.matmul %813, %194, %cst_230 {dimension_numbers = #tpu.dot_dimension_numbers<[1], [0], [0], [1], [0, 0, 1, 1], [], []>} : vector<2x32xbf16>, vector<32x64xbf16>, vector<2x64xf32> -> vector<2x64xf32>
    %815 = vector.broadcast %195 : vector<1x64xf32> to vector<2x64xf32>
    %816 = arith.addf %814, %815 : vector<2x64xf32>
    %817 = math.tanh %816 : vector<2x64xf32>
    %818 = arith.truncf %817 : vector<2x64xf32> to vector<2x64xbf16>
    %cst_231 = arith.constant dense<0.000000e+00> : vector<2x32xf32>
    %819 = tpu.matmul %818, %196, %cst_231 {dimension_numbers = #tpu.dot_dimension_numbers<[1], [0], [0], [1], [0, 0, 1, 1], [], []>} : vector<2x64xbf16>, vector<64x32xbf16>, vector<2x32xf32> -> vector<2x32xf32>
    %820 = vector.broadcast %197 : vector<1x32xf32> to vector<2x32xf32>
    %821 = arith.addf %819, %820 : vector<2x32xf32>
    %cst_232 = arith.constant 0.328066528 : f32
    %822 = vector.broadcast %cst_232 : f32 to vector<2x32xf32>
    %823 = arith.mulf %822, %776 : vector<2x32xf32>
    %824 = arith.addf %767, %823 : vector<2x32xf32>
    %cst_233 = arith.constant -1.28842151 : f32
    %825 = vector.broadcast %cst_233 : f32 to vector<2x32xf32>
    %826 = arith.mulf %825, %788 : vector<2x32xf32>
    %827 = arith.addf %824, %826 : vector<2x32xf32>
    %cst_234 = arith.constant 1.09143257 : f32
    %828 = vector.broadcast %cst_234 : f32 to vector<2x32xf32>
    %829 = arith.mulf %828, %803 : vector<2x32xf32>
    %830 = arith.addf %827, %829 : vector<2x32xf32>
    %cst_235 = arith.constant -0.0323121473 : f32
    %831 = vector.broadcast %cst_235 : f32 to vector<2x32xf32>
    %832 = arith.mulf %831, %821 : vector<2x32xf32>
    %833 = arith.addf %830, %832 : vector<2x32xf32>
    %834 = arith.truncf %833 : vector<2x32xf32> to vector<2x32xbf16>
    %cst_236 = arith.constant dense<0.000000e+00> : vector<2x64xf32>
    %835 = tpu.matmul %834, %194, %cst_236 {dimension_numbers = #tpu.dot_dimension_numbers<[1], [0], [0], [1], [0, 0, 1, 1], [], []>} : vector<2x32xbf16>, vector<32x64xbf16>, vector<2x64xf32> -> vector<2x64xf32>
    %836 = vector.broadcast %195 : vector<1x64xf32> to vector<2x64xf32>
    %837 = arith.addf %835, %836 : vector<2x64xf32>
    %838 = math.tanh %837 : vector<2x64xf32>
    %839 = arith.truncf %838 : vector<2x64xf32> to vector<2x64xbf16>
    %cst_237 = arith.constant dense<0.000000e+00> : vector<2x32xf32>
    %840 = tpu.matmul %839, %196, %cst_237 {dimension_numbers = #tpu.dot_dimension_numbers<[1], [0], [0], [1], [0, 0, 1, 1], [], []>} : vector<2x64xbf16>, vector<64x32xbf16>, vector<2x32xf32> -> vector<2x32xf32>
    %841 = vector.broadcast %197 : vector<1x32xf32> to vector<2x32xf32>
    %842 = arith.addf %840, %841 : vector<2x32xf32>
    %cst_238 = arith.constant 0.316252798 : f32
    %843 = vector.broadcast %cst_238 : f32 to vector<2x32xf32>
    %844 = arith.mulf %843, %776 : vector<2x32xf32>
    %845 = arith.addf %767, %844 : vector<2x32xf32>
    %cst_239 = arith.constant -1.19528615 : f32
    %846 = vector.broadcast %cst_239 : f32 to vector<2x32xf32>
    %847 = arith.mulf %846, %788 : vector<2x32xf32>
    %848 = arith.addf %845, %847 : vector<2x32xf32>
    %cst_240 = arith.constant 0.989602506 : f32
    %849 = vector.broadcast %cst_240 : f32 to vector<2x32xf32>
    %850 = arith.mulf %849, %803 : vector<2x32xf32>
    %851 = arith.addf %848, %850 : vector<2x32xf32>
    %cst_241 = arith.constant 0.0309343431 : f32
    %852 = vector.broadcast %cst_241 : f32 to vector<2x32xf32>
    %853 = arith.mulf %852, %821 : vector<2x32xf32>
    %854 = arith.addf %851, %853 : vector<2x32xf32>
    %cst_242 = arith.constant -0.0303923674 : f32
    %855 = vector.broadcast %cst_242 : f32 to vector<2x32xf32>
    %856 = arith.mulf %855, %842 : vector<2x32xf32>
    %857 = arith.addf %854, %856 : vector<2x32xf32>
    %858 = arith.truncf %857 : vector<2x32xf32> to vector<2x32xbf16>
    %cst_243 = arith.constant dense<0.000000e+00> : vector<2x64xf32>
    %859 = tpu.matmul %858, %194, %cst_243 {dimension_numbers = #tpu.dot_dimension_numbers<[1], [0], [0], [1], [0, 0, 1, 1], [], []>} : vector<2x32xbf16>, vector<32x64xbf16>, vector<2x64xf32> -> vector<2x64xf32>
    %860 = vector.broadcast %195 : vector<1x64xf32> to vector<2x64xf32>
    %861 = arith.addf %859, %860 : vector<2x64xf32>
    %862 = math.tanh %861 : vector<2x64xf32>
    %863 = arith.truncf %862 : vector<2x64xf32> to vector<2x64xbf16>
    %cst_244 = arith.constant dense<0.000000e+00> : vector<2x32xf32>
    %864 = tpu.matmul %863, %196, %cst_244 {dimension_numbers = #tpu.dot_dimension_numbers<[1], [0], [0], [1], [0, 0, 1, 1], [], []>} : vector<2x64xbf16>, vector<64x32xbf16>, vector<2x32xf32> -> vector<2x32xf32>
    %865 = vector.broadcast %197 : vector<1x32xf32> to vector<2x32xf32>
    %866 = arith.addf %864, %865 : vector<2x32xf32>
    %cst_245 = arith.constant 0.0101273144 : f32
    %867 = vector.broadcast %cst_245 : f32 to vector<2x32xf32>
    %868 = arith.mulf %867, %776 : vector<2x32xf32>
    %869 = arith.addf %767, %868 : vector<2x32xf32>
    %cst_246 = arith.constant 0.0499151461 : f32
    %870 = vector.broadcast %cst_246 : f32 to vector<2x32xf32>
    %871 = arith.mulf %870, %803 : vector<2x32xf32>
    %872 = arith.addf %869, %871 : vector<2x32xf32>
    %cst_247 = arith.constant 0.0723379627 : f32
    %873 = vector.broadcast %cst_247 : f32 to vector<2x32xf32>
    %874 = arith.mulf %873, %821 : vector<2x32xf32>
    %875 = arith.addf %872, %874 : vector<2x32xf32>
    %cst_248 = arith.constant -0.0358195752 : f32
    %876 = vector.broadcast %cst_248 : f32 to vector<2x32xf32>
    %877 = arith.mulf %876, %842 : vector<2x32xf32>
    %878 = arith.addf %875, %877 : vector<2x32xf32>
    %cst_249 = arith.constant 0.0145502649 : f32
    %879 = vector.broadcast %cst_249 : f32 to vector<2x32xf32>
    %880 = arith.mulf %879, %866 : vector<2x32xf32>
    %881 = arith.addf %878, %880 : vector<2x32xf32>
    %c6_i32_250 = arith.constant 6 : i32
    %882 = arith.truncf %881 : vector<2x32xf32> to vector<2x32xbf16>
    %cst_251 = arith.constant dense<0.000000e+00> : vector<2x64xf32>
    %883 = tpu.matmul %882, %194, %cst_251 {dimension_numbers = #tpu.dot_dimension_numbers<[1], [0], [0], [1], [0, 0, 1, 1], [], []>} : vector<2x32xbf16>, vector<32x64xbf16>, vector<2x64xf32> -> vector<2x64xf32>
    %884 = vector.broadcast %195 : vector<1x64xf32> to vector<2x64xf32>
    %885 = arith.addf %883, %884 : vector<2x64xf32>
    %886 = math.tanh %885 : vector<2x64xf32>
    %887 = arith.truncf %886 : vector<2x64xf32> to vector<2x64xbf16>
    %cst_252 = arith.constant dense<0.000000e+00> : vector<2x32xf32>
    %888 = tpu.matmul %887, %196, %cst_252 {dimension_numbers = #tpu.dot_dimension_numbers<[1], [0], [0], [1], [0, 0, 1, 1], [], []>} : vector<2x64xbf16>, vector<64x32xbf16>, vector<2x32xf32> -> vector<2x32xf32>
    %889 = vector.broadcast %197 : vector<1x32xf32> to vector<2x32xf32>
    %890 = arith.addf %888, %889 : vector<2x32xf32>
    %cst_253 = arith.constant 0.0222222228 : f32
    %891 = vector.broadcast %cst_253 : f32 to vector<2x32xf32>
    %892 = arith.mulf %891, %890 : vector<2x32xf32>
    %893 = arith.addf %881, %892 : vector<2x32xf32>
    %894 = arith.truncf %893 : vector<2x32xf32> to vector<2x32xbf16>
    %cst_254 = arith.constant dense<0.000000e+00> : vector<2x64xf32>
    %895 = tpu.matmul %894, %194, %cst_254 {dimension_numbers = #tpu.dot_dimension_numbers<[1], [0], [0], [1], [0, 0, 1, 1], [], []>} : vector<2x32xbf16>, vector<32x64xbf16>, vector<2x64xf32> -> vector<2x64xf32>
    %896 = vector.broadcast %195 : vector<1x64xf32> to vector<2x64xf32>
    %897 = arith.addf %895, %896 : vector<2x64xf32>
    %898 = math.tanh %897 : vector<2x64xf32>
    %899 = arith.truncf %898 : vector<2x64xf32> to vector<2x64xbf16>
    %cst_255 = arith.constant dense<0.000000e+00> : vector<2x32xf32>
    %900 = tpu.matmul %899, %196, %cst_255 {dimension_numbers = #tpu.dot_dimension_numbers<[1], [0], [0], [1], [0, 0, 1, 1], [], []>} : vector<2x64xbf16>, vector<64x32xbf16>, vector<2x32xf32> -> vector<2x32xf32>
    %901 = vector.broadcast %197 : vector<1x32xf32> to vector<2x32xf32>
    %902 = arith.addf %900, %901 : vector<2x32xf32>
    %cst_256 = arith.constant 0.00833333377 : f32
    %903 = vector.broadcast %cst_256 : f32 to vector<2x32xf32>
    %904 = arith.mulf %903, %890 : vector<2x32xf32>
    %905 = arith.addf %881, %904 : vector<2x32xf32>
    %cst_257 = arith.constant 2.500000e-02 : f32
    %906 = vector.broadcast %cst_257 : f32 to vector<2x32xf32>
    %907 = arith.mulf %906, %902 : vector<2x32xf32>
    %908 = arith.addf %905, %907 : vector<2x32xf32>
    %909 = arith.truncf %908 : vector<2x32xf32> to vector<2x32xbf16>
    %cst_258 = arith.constant dense<0.000000e+00> : vector<2x64xf32>
    %910 = tpu.matmul %909, %194, %cst_258 {dimension_numbers = #tpu.dot_dimension_numbers<[1], [0], [0], [1], [0, 0, 1, 1], [], []>} : vector<2x32xbf16>, vector<32x64xbf16>, vector<2x64xf32> -> vector<2x64xf32>
    %911 = vector.broadcast %195 : vector<1x64xf32> to vector<2x64xf32>
    %912 = arith.addf %910, %911 : vector<2x64xf32>
    %913 = math.tanh %912 : vector<2x64xf32>
    %914 = arith.truncf %913 : vector<2x64xf32> to vector<2x64xbf16>
    %cst_259 = arith.constant dense<0.000000e+00> : vector<2x32xf32>
    %915 = tpu.matmul %914, %196, %cst_259 {dimension_numbers = #tpu.dot_dimension_numbers<[1], [0], [0], [1], [0, 0, 1, 1], [], []>} : vector<2x64xbf16>, vector<64x32xbf16>, vector<2x32xf32> -> vector<2x32xf32>
    %916 = vector.broadcast %197 : vector<1x32xf32> to vector<2x32xf32>
    %917 = arith.addf %915, %916 : vector<2x32xf32>
    %cst_260 = arith.constant 0.108641975 : f32
    %918 = vector.broadcast %cst_260 : f32 to vector<2x32xf32>
    %919 = arith.mulf %918, %890 : vector<2x32xf32>
    %920 = arith.addf %881, %919 : vector<2x32xf32>
    %cst_261 = arith.constant -0.4148148 : f32
    %921 = vector.broadcast %cst_261 : f32 to vector<2x32xf32>
    %922 = arith.mulf %921, %902 : vector<2x32xf32>
    %923 = arith.addf %920, %922 : vector<2x32xf32>
    %cst_262 = arith.constant 0.395061731 : f32
    %924 = vector.broadcast %cst_262 : f32 to vector<2x32xf32>
    %925 = arith.mulf %924, %917 : vector<2x32xf32>
    %926 = arith.addf %923, %925 : vector<2x32xf32>
    %927 = arith.truncf %926 : vector<2x32xf32> to vector<2x32xbf16>
    %cst_263 = arith.constant dense<0.000000e+00> : vector<2x64xf32>
    %928 = tpu.matmul %927, %194, %cst_263 {dimension_numbers = #tpu.dot_dimension_numbers<[1], [0], [0], [1], [0, 0, 1, 1], [], []>} : vector<2x32xbf16>, vector<32x64xbf16>, vector<2x64xf32> -> vector<2x64xf32>
    %929 = vector.broadcast %195 : vector<1x64xf32> to vector<2x64xf32>
    %930 = arith.addf %928, %929 : vector<2x64xf32>
    %931 = math.tanh %930 : vector<2x64xf32>
    %932 = arith.truncf %931 : vector<2x64xf32> to vector<2x64xbf16>
    %cst_264 = arith.constant dense<0.000000e+00> : vector<2x32xf32>
    %933 = tpu.matmul %932, %196, %cst_264 {dimension_numbers = #tpu.dot_dimension_numbers<[1], [0], [0], [1], [0, 0, 1, 1], [], []>} : vector<2x64xbf16>, vector<64x32xbf16>, vector<2x32xf32> -> vector<2x32xf32>
    %934 = vector.broadcast %197 : vector<1x32xf32> to vector<2x32xf32>
    %935 = arith.addf %933, %934 : vector<2x32xf32>
    %cst_265 = arith.constant 0.328066528 : f32
    %936 = vector.broadcast %cst_265 : f32 to vector<2x32xf32>
    %937 = arith.mulf %936, %890 : vector<2x32xf32>
    %938 = arith.addf %881, %937 : vector<2x32xf32>
    %cst_266 = arith.constant -1.28842151 : f32
    %939 = vector.broadcast %cst_266 : f32 to vector<2x32xf32>
    %940 = arith.mulf %939, %902 : vector<2x32xf32>
    %941 = arith.addf %938, %940 : vector<2x32xf32>
    %cst_267 = arith.constant 1.09143257 : f32
    %942 = vector.broadcast %cst_267 : f32 to vector<2x32xf32>
    %943 = arith.mulf %942, %917 : vector<2x32xf32>
    %944 = arith.addf %941, %943 : vector<2x32xf32>
    %cst_268 = arith.constant -0.0323121473 : f32
    %945 = vector.broadcast %cst_268 : f32 to vector<2x32xf32>
    %946 = arith.mulf %945, %935 : vector<2x32xf32>
    %947 = arith.addf %944, %946 : vector<2x32xf32>
    %948 = arith.truncf %947 : vector<2x32xf32> to vector<2x32xbf16>
    %cst_269 = arith.constant dense<0.000000e+00> : vector<2x64xf32>
    %949 = tpu.matmul %948, %194, %cst_269 {dimension_numbers = #tpu.dot_dimension_numbers<[1], [0], [0], [1], [0, 0, 1, 1], [], []>} : vector<2x32xbf16>, vector<32x64xbf16>, vector<2x64xf32> -> vector<2x64xf32>
    %950 = vector.broadcast %195 : vector<1x64xf32> to vector<2x64xf32>
    %951 = arith.addf %949, %950 : vector<2x64xf32>
    %952 = math.tanh %951 : vector<2x64xf32>
    %953 = arith.truncf %952 : vector<2x64xf32> to vector<2x64xbf16>
    %cst_270 = arith.constant dense<0.000000e+00> : vector<2x32xf32>
    %954 = tpu.matmul %953, %196, %cst_270 {dimension_numbers = #tpu.dot_dimension_numbers<[1], [0], [0], [1], [0, 0, 1, 1], [], []>} : vector<2x64xbf16>, vector<64x32xbf16>, vector<2x32xf32> -> vector<2x32xf32>
    %955 = vector.broadcast %197 : vector<1x32xf32> to vector<2x32xf32>
    %956 = arith.addf %954, %955 : vector<2x32xf32>
    %cst_271 = arith.constant 0.316252798 : f32
    %957 = vector.broadcast %cst_271 : f32 to vector<2x32xf32>
    %958 = arith.mulf %957, %890 : vector<2x32xf32>
    %959 = arith.addf %881, %958 : vector<2x32xf32>
    %cst_272 = arith.constant -1.19528615 : f32
    %960 = vector.broadcast %cst_272 : f32 to vector<2x32xf32>
    %961 = arith.mulf %960, %902 : vector<2x32xf32>
    %962 = arith.addf %959, %961 : vector<2x32xf32>
    %cst_273 = arith.constant 0.989602506 : f32
    %963 = vector.broadcast %cst_273 : f32 to vector<2x32xf32>
    %964 = arith.mulf %963, %917 : vector<2x32xf32>
    %965 = arith.addf %962, %964 : vector<2x32xf32>
    %cst_274 = arith.constant 0.0309343431 : f32
    %966 = vector.broadcast %cst_274 : f32 to vector<2x32xf32>
    %967 = arith.mulf %966, %935 : vector<2x32xf32>
    %968 = arith.addf %965, %967 : vector<2x32xf32>
    %cst_275 = arith.constant -0.0303923674 : f32
    %969 = vector.broadcast %cst_275 : f32 to vector<2x32xf32>
    %970 = arith.mulf %969, %956 : vector<2x32xf32>
    %971 = arith.addf %968, %970 : vector<2x32xf32>
    %972 = arith.truncf %971 : vector<2x32xf32> to vector<2x32xbf16>
    %cst_276 = arith.constant dense<0.000000e+00> : vector<2x64xf32>
    %973 = tpu.matmul %972, %194, %cst_276 {dimension_numbers = #tpu.dot_dimension_numbers<[1], [0], [0], [1], [0, 0, 1, 1], [], []>} : vector<2x32xbf16>, vector<32x64xbf16>, vector<2x64xf32> -> vector<2x64xf32>
    %974 = vector.broadcast %195 : vector<1x64xf32> to vector<2x64xf32>
    %975 = arith.addf %973, %974 : vector<2x64xf32>
    %976 = math.tanh %975 : vector<2x64xf32>
    %977 = arith.truncf %976 : vector<2x64xf32> to vector<2x64xbf16>
    %cst_277 = arith.constant dense<0.000000e+00> : vector<2x32xf32>
    %978 = tpu.matmul %977, %196, %cst_277 {dimension_numbers = #tpu.dot_dimension_numbers<[1], [0], [0], [1], [0, 0, 1, 1], [], []>} : vector<2x64xbf16>, vector<64x32xbf16>, vector<2x32xf32> -> vector<2x32xf32>
    %979 = vector.broadcast %197 : vector<1x32xf32> to vector<2x32xf32>
    %980 = arith.addf %978, %979 : vector<2x32xf32>
    %cst_278 = arith.constant 0.0101273144 : f32
    %981 = vector.broadcast %cst_278 : f32 to vector<2x32xf32>
    %982 = arith.mulf %981, %890 : vector<2x32xf32>
    %983 = arith.addf %881, %982 : vector<2x32xf32>
    %cst_279 = arith.constant 0.0499151461 : f32
    %984 = vector.broadcast %cst_279 : f32 to vector<2x32xf32>
    %985 = arith.mulf %984, %917 : vector<2x32xf32>
    %986 = arith.addf %983, %985 : vector<2x32xf32>
    %cst_280 = arith.constant 0.0723379627 : f32
    %987 = vector.broadcast %cst_280 : f32 to vector<2x32xf32>
    %988 = arith.mulf %987, %935 : vector<2x32xf32>
    %989 = arith.addf %986, %988 : vector<2x32xf32>
    %cst_281 = arith.constant -0.0358195752 : f32
    %990 = vector.broadcast %cst_281 : f32 to vector<2x32xf32>
    %991 = arith.mulf %990, %956 : vector<2x32xf32>
    %992 = arith.addf %989, %991 : vector<2x32xf32>
    %cst_282 = arith.constant 0.0145502649 : f32
    %993 = vector.broadcast %cst_282 : f32 to vector<2x32xf32>
    %994 = arith.mulf %993, %980 : vector<2x32xf32>
    %995 = arith.addf %992, %994 : vector<2x32xf32>
    %c7_i32_283 = arith.constant 7 : i32
    %996 = arith.truncf %995 : vector<2x32xf32> to vector<2x32xbf16>
    %cst_284 = arith.constant dense<0.000000e+00> : vector<2x64xf32>
    %997 = tpu.matmul %996, %194, %cst_284 {dimension_numbers = #tpu.dot_dimension_numbers<[1], [0], [0], [1], [0, 0, 1, 1], [], []>} : vector<2x32xbf16>, vector<32x64xbf16>, vector<2x64xf32> -> vector<2x64xf32>
    %998 = vector.broadcast %195 : vector<1x64xf32> to vector<2x64xf32>
    %999 = arith.addf %997, %998 : vector<2x64xf32>
    %1000 = math.tanh %999 : vector<2x64xf32>
    %1001 = arith.truncf %1000 : vector<2x64xf32> to vector<2x64xbf16>
    %cst_285 = arith.constant dense<0.000000e+00> : vector<2x32xf32>
    %1002 = tpu.matmul %1001, %196, %cst_285 {dimension_numbers = #tpu.dot_dimension_numbers<[1], [0], [0], [1], [0, 0, 1, 1], [], []>} : vector<2x64xbf16>, vector<64x32xbf16>, vector<2x32xf32> -> vector<2x32xf32>
    %1003 = vector.broadcast %197 : vector<1x32xf32> to vector<2x32xf32>
    %1004 = arith.addf %1002, %1003 : vector<2x32xf32>
    %cst_286 = arith.constant 0.0222222228 : f32
    %1005 = vector.broadcast %cst_286 : f32 to vector<2x32xf32>
    %1006 = arith.mulf %1005, %1004 : vector<2x32xf32>
    %1007 = arith.addf %995, %1006 : vector<2x32xf32>
    %1008 = arith.truncf %1007 : vector<2x32xf32> to vector<2x32xbf16>
    %cst_287 = arith.constant dense<0.000000e+00> : vector<2x64xf32>
    %1009 = tpu.matmul %1008, %194, %cst_287 {dimension_numbers = #tpu.dot_dimension_numbers<[1], [0], [0], [1], [0, 0, 1, 1], [], []>} : vector<2x32xbf16>, vector<32x64xbf16>, vector<2x64xf32> -> vector<2x64xf32>
    %1010 = vector.broadcast %195 : vector<1x64xf32> to vector<2x64xf32>
    %1011 = arith.addf %1009, %1010 : vector<2x64xf32>
    %1012 = math.tanh %1011 : vector<2x64xf32>
    %1013 = arith.truncf %1012 : vector<2x64xf32> to vector<2x64xbf16>
    %cst_288 = arith.constant dense<0.000000e+00> : vector<2x32xf32>
    %1014 = tpu.matmul %1013, %196, %cst_288 {dimension_numbers = #tpu.dot_dimension_numbers<[1], [0], [0], [1], [0, 0, 1, 1], [], []>} : vector<2x64xbf16>, vector<64x32xbf16>, vector<2x32xf32> -> vector<2x32xf32>
    %1015 = vector.broadcast %197 : vector<1x32xf32> to vector<2x32xf32>
    %1016 = arith.addf %1014, %1015 : vector<2x32xf32>
    %cst_289 = arith.constant 0.00833333377 : f32
    %1017 = vector.broadcast %cst_289 : f32 to vector<2x32xf32>
    %1018 = arith.mulf %1017, %1004 : vector<2x32xf32>
    %1019 = arith.addf %995, %1018 : vector<2x32xf32>
    %cst_290 = arith.constant 2.500000e-02 : f32
    %1020 = vector.broadcast %cst_290 : f32 to vector<2x32xf32>
    %1021 = arith.mulf %1020, %1016 : vector<2x32xf32>
    %1022 = arith.addf %1019, %1021 : vector<2x32xf32>
    %1023 = arith.truncf %1022 : vector<2x32xf32> to vector<2x32xbf16>
    %cst_291 = arith.constant dense<0.000000e+00> : vector<2x64xf32>
    %1024 = tpu.matmul %1023, %194, %cst_291 {dimension_numbers = #tpu.dot_dimension_numbers<[1], [0], [0], [1], [0, 0, 1, 1], [], []>} : vector<2x32xbf16>, vector<32x64xbf16>, vector<2x64xf32> -> vector<2x64xf32>
    %1025 = vector.broadcast %195 : vector<1x64xf32> to vector<2x64xf32>
    %1026 = arith.addf %1024, %1025 : vector<2x64xf32>
    %1027 = math.tanh %1026 : vector<2x64xf32>
    %1028 = arith.truncf %1027 : vector<2x64xf32> to vector<2x64xbf16>
    %cst_292 = arith.constant dense<0.000000e+00> : vector<2x32xf32>
    %1029 = tpu.matmul %1028, %196, %cst_292 {dimension_numbers = #tpu.dot_dimension_numbers<[1], [0], [0], [1], [0, 0, 1, 1], [], []>} : vector<2x64xbf16>, vector<64x32xbf16>, vector<2x32xf32> -> vector<2x32xf32>
    %1030 = vector.broadcast %197 : vector<1x32xf32> to vector<2x32xf32>
    %1031 = arith.addf %1029, %1030 : vector<2x32xf32>
    %cst_293 = arith.constant 0.108641975 : f32
    %1032 = vector.broadcast %cst_293 : f32 to vector<2x32xf32>
    %1033 = arith.mulf %1032, %1004 : vector<2x32xf32>
    %1034 = arith.addf %995, %1033 : vector<2x32xf32>
    %cst_294 = arith.constant -0.4148148 : f32
    %1035 = vector.broadcast %cst_294 : f32 to vector<2x32xf32>
    %1036 = arith.mulf %1035, %1016 : vector<2x32xf32>
    %1037 = arith.addf %1034, %1036 : vector<2x32xf32>
    %cst_295 = arith.constant 0.395061731 : f32
    %1038 = vector.broadcast %cst_295 : f32 to vector<2x32xf32>
    %1039 = arith.mulf %1038, %1031 : vector<2x32xf32>
    %1040 = arith.addf %1037, %1039 : vector<2x32xf32>
    %1041 = arith.truncf %1040 : vector<2x32xf32> to vector<2x32xbf16>
    %cst_296 = arith.constant dense<0.000000e+00> : vector<2x64xf32>
    %1042 = tpu.matmul %1041, %194, %cst_296 {dimension_numbers = #tpu.dot_dimension_numbers<[1], [0], [0], [1], [0, 0, 1, 1], [], []>} : vector<2x32xbf16>, vector<32x64xbf16>, vector<2x64xf32> -> vector<2x64xf32>
    %1043 = vector.broadcast %195 : vector<1x64xf32> to vector<2x64xf32>
    %1044 = arith.addf %1042, %1043 : vector<2x64xf32>
    %1045 = math.tanh %1044 : vector<2x64xf32>
    %1046 = arith.truncf %1045 : vector<2x64xf32> to vector<2x64xbf16>
    %cst_297 = arith.constant dense<0.000000e+00> : vector<2x32xf32>
    %1047 = tpu.matmul %1046, %196, %cst_297 {dimension_numbers = #tpu.dot_dimension_numbers<[1], [0], [0], [1], [0, 0, 1, 1], [], []>} : vector<2x64xbf16>, vector<64x32xbf16>, vector<2x32xf32> -> vector<2x32xf32>
    %1048 = vector.broadcast %197 : vector<1x32xf32> to vector<2x32xf32>
    %1049 = arith.addf %1047, %1048 : vector<2x32xf32>
    %cst_298 = arith.constant 0.328066528 : f32
    %1050 = vector.broadcast %cst_298 : f32 to vector<2x32xf32>
    %1051 = arith.mulf %1050, %1004 : vector<2x32xf32>
    %1052 = arith.addf %995, %1051 : vector<2x32xf32>
    %cst_299 = arith.constant -1.28842151 : f32
    %1053 = vector.broadcast %cst_299 : f32 to vector<2x32xf32>
    %1054 = arith.mulf %1053, %1016 : vector<2x32xf32>
    %1055 = arith.addf %1052, %1054 : vector<2x32xf32>
    %cst_300 = arith.constant 1.09143257 : f32
    %1056 = vector.broadcast %cst_300 : f32 to vector<2x32xf32>
    %1057 = arith.mulf %1056, %1031 : vector<2x32xf32>
    %1058 = arith.addf %1055, %1057 : vector<2x32xf32>
    %cst_301 = arith.constant -0.0323121473 : f32
    %1059 = vector.broadcast %cst_301 : f32 to vector<2x32xf32>
    %1060 = arith.mulf %1059, %1049 : vector<2x32xf32>
    %1061 = arith.addf %1058, %1060 : vector<2x32xf32>
    %1062 = arith.truncf %1061 : vector<2x32xf32> to vector<2x32xbf16>
    %cst_302 = arith.constant dense<0.000000e+00> : vector<2x64xf32>
    %1063 = tpu.matmul %1062, %194, %cst_302 {dimension_numbers = #tpu.dot_dimension_numbers<[1], [0], [0], [1], [0, 0, 1, 1], [], []>} : vector<2x32xbf16>, vector<32x64xbf16>, vector<2x64xf32> -> vector<2x64xf32>
    %1064 = vector.broadcast %195 : vector<1x64xf32> to vector<2x64xf32>
    %1065 = arith.addf %1063, %1064 : vector<2x64xf32>
    %1066 = math.tanh %1065 : vector<2x64xf32>
    %1067 = arith.truncf %1066 : vector<2x64xf32> to vector<2x64xbf16>
    %cst_303 = arith.constant dense<0.000000e+00> : vector<2x32xf32>
    %1068 = tpu.matmul %1067, %196, %cst_303 {dimension_numbers = #tpu.dot_dimension_numbers<[1], [0], [0], [1], [0, 0, 1, 1], [], []>} : vector<2x64xbf16>, vector<64x32xbf16>, vector<2x32xf32> -> vector<2x32xf32>
    %1069 = vector.broadcast %197 : vector<1x32xf32> to vector<2x32xf32>
    %1070 = arith.addf %1068, %1069 : vector<2x32xf32>
    %cst_304 = arith.constant 0.316252798 : f32
    %1071 = vector.broadcast %cst_304 : f32 to vector<2x32xf32>
    %1072 = arith.mulf %1071, %1004 : vector<2x32xf32>
    %1073 = arith.addf %995, %1072 : vector<2x32xf32>
    %cst_305 = arith.constant -1.19528615 : f32
    %1074 = vector.broadcast %cst_305 : f32 to vector<2x32xf32>
    %1075 = arith.mulf %1074, %1016 : vector<2x32xf32>
    %1076 = arith.addf %1073, %1075 : vector<2x32xf32>
    %cst_306 = arith.constant 0.989602506 : f32
    %1077 = vector.broadcast %cst_306 : f32 to vector<2x32xf32>
    %1078 = arith.mulf %1077, %1031 : vector<2x32xf32>
    %1079 = arith.addf %1076, %1078 : vector<2x32xf32>
    %cst_307 = arith.constant 0.0309343431 : f32
    %1080 = vector.broadcast %cst_307 : f32 to vector<2x32xf32>
    %1081 = arith.mulf %1080, %1049 : vector<2x32xf32>
    %1082 = arith.addf %1079, %1081 : vector<2x32xf32>
    %cst_308 = arith.constant -0.0303923674 : f32
    %1083 = vector.broadcast %cst_308 : f32 to vector<2x32xf32>
    %1084 = arith.mulf %1083, %1070 : vector<2x32xf32>
    %1085 = arith.addf %1082, %1084 : vector<2x32xf32>
    %1086 = arith.truncf %1085 : vector<2x32xf32> to vector<2x32xbf16>
    %cst_309 = arith.constant dense<0.000000e+00> : vector<2x64xf32>
    %1087 = tpu.matmul %1086, %194, %cst_309 {dimension_numbers = #tpu.dot_dimension_numbers<[1], [0], [0], [1], [0, 0, 1, 1], [], []>} : vector<2x32xbf16>, vector<32x64xbf16>, vector<2x64xf32> -> vector<2x64xf32>
    %1088 = vector.broadcast %195 : vector<1x64xf32> to vector<2x64xf32>
    %1089 = arith.addf %1087, %1088 : vector<2x64xf32>
    %1090 = math.tanh %1089 : vector<2x64xf32>
    %1091 = arith.truncf %1090 : vector<2x64xf32> to vector<2x64xbf16>
    %cst_310 = arith.constant dense<0.000000e+00> : vector<2x32xf32>
    %1092 = tpu.matmul %1091, %196, %cst_310 {dimension_numbers = #tpu.dot_dimension_numbers<[1], [0], [0], [1], [0, 0, 1, 1], [], []>} : vector<2x64xbf16>, vector<64x32xbf16>, vector<2x32xf32> -> vector<2x32xf32>
    %1093 = vector.broadcast %197 : vector<1x32xf32> to vector<2x32xf32>
    %1094 = arith.addf %1092, %1093 : vector<2x32xf32>
    %cst_311 = arith.constant 0.0101273144 : f32
    %1095 = vector.broadcast %cst_311 : f32 to vector<2x32xf32>
    %1096 = arith.mulf %1095, %1004 : vector<2x32xf32>
    %1097 = arith.addf %995, %1096 : vector<2x32xf32>
    %cst_312 = arith.constant 0.0499151461 : f32
    %1098 = vector.broadcast %cst_312 : f32 to vector<2x32xf32>
    %1099 = arith.mulf %1098, %1031 : vector<2x32xf32>
    %1100 = arith.addf %1097, %1099 : vector<2x32xf32>
    %cst_313 = arith.constant 0.0723379627 : f32
    %1101 = vector.broadcast %cst_313 : f32 to vector<2x32xf32>
    %1102 = arith.mulf %1101, %1049 : vector<2x32xf32>
    %1103 = arith.addf %1100, %1102 : vector<2x32xf32>
    %cst_314 = arith.constant -0.0358195752 : f32
    %1104 = vector.broadcast %cst_314 : f32 to vector<2x32xf32>
    %1105 = arith.mulf %1104, %1070 : vector<2x32xf32>
    %1106 = arith.addf %1103, %1105 : vector<2x32xf32>
    %cst_315 = arith.constant 0.0145502649 : f32
    %1107 = vector.broadcast %cst_315 : f32 to vector<2x32xf32>
    %1108 = arith.mulf %1107, %1094 : vector<2x32xf32>
    %1109 = arith.addf %1106, %1108 : vector<2x32xf32>
    %c8_i32_316 = arith.constant 8 : i32
    %1110 = arith.truncf %1109 : vector<2x32xf32> to vector<2x32xbf16>
    %cst_317 = arith.constant dense<0.000000e+00> : vector<2x64xf32>
    %1111 = tpu.matmul %1110, %194, %cst_317 {dimension_numbers = #tpu.dot_dimension_numbers<[1], [0], [0], [1], [0, 0, 1, 1], [], []>} : vector<2x32xbf16>, vector<32x64xbf16>, vector<2x64xf32> -> vector<2x64xf32>
    %1112 = vector.broadcast %195 : vector<1x64xf32> to vector<2x64xf32>
    %1113 = arith.addf %1111, %1112 : vector<2x64xf32>
    %1114 = math.tanh %1113 : vector<2x64xf32>
    %1115 = arith.truncf %1114 : vector<2x64xf32> to vector<2x64xbf16>
    %cst_318 = arith.constant dense<0.000000e+00> : vector<2x32xf32>
    %1116 = tpu.matmul %1115, %196, %cst_318 {dimension_numbers = #tpu.dot_dimension_numbers<[1], [0], [0], [1], [0, 0, 1, 1], [], []>} : vector<2x64xbf16>, vector<64x32xbf16>, vector<2x32xf32> -> vector<2x32xf32>
    %1117 = vector.broadcast %197 : vector<1x32xf32> to vector<2x32xf32>
    %1118 = arith.addf %1116, %1117 : vector<2x32xf32>
    %cst_319 = arith.constant 0.0222222228 : f32
    %1119 = vector.broadcast %cst_319 : f32 to vector<2x32xf32>
    %1120 = arith.mulf %1119, %1118 : vector<2x32xf32>
    %1121 = arith.addf %1109, %1120 : vector<2x32xf32>
    %1122 = arith.truncf %1121 : vector<2x32xf32> to vector<2x32xbf16>
    %cst_320 = arith.constant dense<0.000000e+00> : vector<2x64xf32>
    %1123 = tpu.matmul %1122, %194, %cst_320 {dimension_numbers = #tpu.dot_dimension_numbers<[1], [0], [0], [1], [0, 0, 1, 1], [], []>} : vector<2x32xbf16>, vector<32x64xbf16>, vector<2x64xf32> -> vector<2x64xf32>
    %1124 = vector.broadcast %195 : vector<1x64xf32> to vector<2x64xf32>
    %1125 = arith.addf %1123, %1124 : vector<2x64xf32>
    %1126 = math.tanh %1125 : vector<2x64xf32>
    %1127 = arith.truncf %1126 : vector<2x64xf32> to vector<2x64xbf16>
    %cst_321 = arith.constant dense<0.000000e+00> : vector<2x32xf32>
    %1128 = tpu.matmul %1127, %196, %cst_321 {dimension_numbers = #tpu.dot_dimension_numbers<[1], [0], [0], [1], [0, 0, 1, 1], [], []>} : vector<2x64xbf16>, vector<64x32xbf16>, vector<2x32xf32> -> vector<2x32xf32>
    %1129 = vector.broadcast %197 : vector<1x32xf32> to vector<2x32xf32>
    %1130 = arith.addf %1128, %1129 : vector<2x32xf32>
    %cst_322 = arith.constant 0.00833333377 : f32
    %1131 = vector.broadcast %cst_322 : f32 to vector<2x32xf32>
    %1132 = arith.mulf %1131, %1118 : vector<2x32xf32>
    %1133 = arith.addf %1109, %1132 : vector<2x32xf32>
    %cst_323 = arith.constant 2.500000e-02 : f32
    %1134 = vector.broadcast %cst_323 : f32 to vector<2x32xf32>
    %1135 = arith.mulf %1134, %1130 : vector<2x32xf32>
    %1136 = arith.addf %1133, %1135 : vector<2x32xf32>
    %1137 = arith.truncf %1136 : vector<2x32xf32> to vector<2x32xbf16>
    %cst_324 = arith.constant dense<0.000000e+00> : vector<2x64xf32>
    %1138 = tpu.matmul %1137, %194, %cst_324 {dimension_numbers = #tpu.dot_dimension_numbers<[1], [0], [0], [1], [0, 0, 1, 1], [], []>} : vector<2x32xbf16>, vector<32x64xbf16>, vector<2x64xf32> -> vector<2x64xf32>
    %1139 = vector.broadcast %195 : vector<1x64xf32> to vector<2x64xf32>
    %1140 = arith.addf %1138, %1139 : vector<2x64xf32>
    %1141 = math.tanh %1140 : vector<2x64xf32>
    %1142 = arith.truncf %1141 : vector<2x64xf32> to vector<2x64xbf16>
    %cst_325 = arith.constant dense<0.000000e+00> : vector<2x32xf32>
    %1143 = tpu.matmul %1142, %196, %cst_325 {dimension_numbers = #tpu.dot_dimension_numbers<[1], [0], [0], [1], [0, 0, 1, 1], [], []>} : vector<2x64xbf16>, vector<64x32xbf16>, vector<2x32xf32> -> vector<2x32xf32>
    %1144 = vector.broadcast %197 : vector<1x32xf32> to vector<2x32xf32>
    %1145 = arith.addf %1143, %1144 : vector<2x32xf32>
    %cst_326 = arith.constant 0.108641975 : f32
    %1146 = vector.broadcast %cst_326 : f32 to vector<2x32xf32>
    %1147 = arith.mulf %1146, %1118 : vector<2x32xf32>
    %1148 = arith.addf %1109, %1147 : vector<2x32xf32>
    %cst_327 = arith.constant -0.4148148 : f32
    %1149 = vector.broadcast %cst_327 : f32 to vector<2x32xf32>
    %1150 = arith.mulf %1149, %1130 : vector<2x32xf32>
    %1151 = arith.addf %1148, %1150 : vector<2x32xf32>
    %cst_328 = arith.constant 0.395061731 : f32
    %1152 = vector.broadcast %cst_328 : f32 to vector<2x32xf32>
    %1153 = arith.mulf %1152, %1145 : vector<2x32xf32>
    %1154 = arith.addf %1151, %1153 : vector<2x32xf32>
    %1155 = arith.truncf %1154 : vector<2x32xf32> to vector<2x32xbf16>
    %cst_329 = arith.constant dense<0.000000e+00> : vector<2x64xf32>
    %1156 = tpu.matmul %1155, %194, %cst_329 {dimension_numbers = #tpu.dot_dimension_numbers<[1], [0], [0], [1], [0, 0, 1, 1], [], []>} : vector<2x32xbf16>, vector<32x64xbf16>, vector<2x64xf32> -> vector<2x64xf32>
    %1157 = vector.broadcast %195 : vector<1x64xf32> to vector<2x64xf32>
    %1158 = arith.addf %1156, %1157 : vector<2x64xf32>
    %1159 = math.tanh %1158 : vector<2x64xf32>
    %1160 = arith.truncf %1159 : vector<2x64xf32> to vector<2x64xbf16>
    %cst_330 = arith.constant dense<0.000000e+00> : vector<2x32xf32>
    %1161 = tpu.matmul %1160, %196, %cst_330 {dimension_numbers = #tpu.dot_dimension_numbers<[1], [0], [0], [1], [0, 0, 1, 1], [], []>} : vector<2x64xbf16>, vector<64x32xbf16>, vector<2x32xf32> -> vector<2x32xf32>
    %1162 = vector.broadcast %197 : vector<1x32xf32> to vector<2x32xf32>
    %1163 = arith.addf %1161, %1162 : vector<2x32xf32>
    %cst_331 = arith.constant 0.328066528 : f32
    %1164 = vector.broadcast %cst_331 : f32 to vector<2x32xf32>
    %1165 = arith.mulf %1164, %1118 : vector<2x32xf32>
    %1166 = arith.addf %1109, %1165 : vector<2x32xf32>
    %cst_332 = arith.constant -1.28842151 : f32
    %1167 = vector.broadcast %cst_332 : f32 to vector<2x32xf32>
    %1168 = arith.mulf %1167, %1130 : vector<2x32xf32>
    %1169 = arith.addf %1166, %1168 : vector<2x32xf32>
    %cst_333 = arith.constant 1.09143257 : f32
    %1170 = vector.broadcast %cst_333 : f32 to vector<2x32xf32>
    %1171 = arith.mulf %1170, %1145 : vector<2x32xf32>
    %1172 = arith.addf %1169, %1171 : vector<2x32xf32>
    %cst_334 = arith.constant -0.0323121473 : f32
    %1173 = vector.broadcast %cst_334 : f32 to vector<2x32xf32>
    %1174 = arith.mulf %1173, %1163 : vector<2x32xf32>
    %1175 = arith.addf %1172, %1174 : vector<2x32xf32>
    %1176 = arith.truncf %1175 : vector<2x32xf32> to vector<2x32xbf16>
    %cst_335 = arith.constant dense<0.000000e+00> : vector<2x64xf32>
    %1177 = tpu.matmul %1176, %194, %cst_335 {dimension_numbers = #tpu.dot_dimension_numbers<[1], [0], [0], [1], [0, 0, 1, 1], [], []>} : vector<2x32xbf16>, vector<32x64xbf16>, vector<2x64xf32> -> vector<2x64xf32>
    %1178 = vector.broadcast %195 : vector<1x64xf32> to vector<2x64xf32>
    %1179 = arith.addf %1177, %1178 : vector<2x64xf32>
    %1180 = math.tanh %1179 : vector<2x64xf32>
    %1181 = arith.truncf %1180 : vector<2x64xf32> to vector<2x64xbf16>
    %cst_336 = arith.constant dense<0.000000e+00> : vector<2x32xf32>
    %1182 = tpu.matmul %1181, %196, %cst_336 {dimension_numbers = #tpu.dot_dimension_numbers<[1], [0], [0], [1], [0, 0, 1, 1], [], []>} : vector<2x64xbf16>, vector<64x32xbf16>, vector<2x32xf32> -> vector<2x32xf32>
    %1183 = vector.broadcast %197 : vector<1x32xf32> to vector<2x32xf32>
    %1184 = arith.addf %1182, %1183 : vector<2x32xf32>
    %cst_337 = arith.constant 0.316252798 : f32
    %1185 = vector.broadcast %cst_337 : f32 to vector<2x32xf32>
    %1186 = arith.mulf %1185, %1118 : vector<2x32xf32>
    %1187 = arith.addf %1109, %1186 : vector<2x32xf32>
    %cst_338 = arith.constant -1.19528615 : f32
    %1188 = vector.broadcast %cst_338 : f32 to vector<2x32xf32>
    %1189 = arith.mulf %1188, %1130 : vector<2x32xf32>
    %1190 = arith.addf %1187, %1189 : vector<2x32xf32>
    %cst_339 = arith.constant 0.989602506 : f32
    %1191 = vector.broadcast %cst_339 : f32 to vector<2x32xf32>
    %1192 = arith.mulf %1191, %1145 : vector<2x32xf32>
    %1193 = arith.addf %1190, %1192 : vector<2x32xf32>
    %cst_340 = arith.constant 0.0309343431 : f32
    %1194 = vector.broadcast %cst_340 : f32 to vector<2x32xf32>
    %1195 = arith.mulf %1194, %1163 : vector<2x32xf32>
    %1196 = arith.addf %1193, %1195 : vector<2x32xf32>
    %cst_341 = arith.constant -0.0303923674 : f32
    %1197 = vector.broadcast %cst_341 : f32 to vector<2x32xf32>
    %1198 = arith.mulf %1197, %1184 : vector<2x32xf32>
    %1199 = arith.addf %1196, %1198 : vector<2x32xf32>
    %1200 = arith.truncf %1199 : vector<2x32xf32> to vector<2x32xbf16>
    %cst_342 = arith.constant dense<0.000000e+00> : vector<2x64xf32>
    %1201 = tpu.matmul %1200, %194, %cst_342 {dimension_numbers = #tpu.dot_dimension_numbers<[1], [0], [0], [1], [0, 0, 1, 1], [], []>} : vector<2x32xbf16>, vector<32x64xbf16>, vector<2x64xf32> -> vector<2x64xf32>
    %1202 = vector.broadcast %195 : vector<1x64xf32> to vector<2x64xf32>
    %1203 = arith.addf %1201, %1202 : vector<2x64xf32>
    %1204 = math.tanh %1203 : vector<2x64xf32>
    %1205 = arith.truncf %1204 : vector<2x64xf32> to vector<2x64xbf16>
    %cst_343 = arith.constant dense<0.000000e+00> : vector<2x32xf32>
    %1206 = tpu.matmul %1205, %196, %cst_343 {dimension_numbers = #tpu.dot_dimension_numbers<[1], [0], [0], [1], [0, 0, 1, 1], [], []>} : vector<2x64xbf16>, vector<64x32xbf16>, vector<2x32xf32> -> vector<2x32xf32>
    %1207 = vector.broadcast %197 : vector<1x32xf32> to vector<2x32xf32>
    %1208 = arith.addf %1206, %1207 : vector<2x32xf32>
    %cst_344 = arith.constant 0.0101273144 : f32
    %1209 = vector.broadcast %cst_344 : f32 to vector<2x32xf32>
    %1210 = arith.mulf %1209, %1118 : vector<2x32xf32>
    %1211 = arith.addf %1109, %1210 : vector<2x32xf32>
    %cst_345 = arith.constant 0.0499151461 : f32
    %1212 = vector.broadcast %cst_345 : f32 to vector<2x32xf32>
    %1213 = arith.mulf %1212, %1145 : vector<2x32xf32>
    %1214 = arith.addf %1211, %1213 : vector<2x32xf32>
    %cst_346 = arith.constant 0.0723379627 : f32
    %1215 = vector.broadcast %cst_346 : f32 to vector<2x32xf32>
    %1216 = arith.mulf %1215, %1163 : vector<2x32xf32>
    %1217 = arith.addf %1214, %1216 : vector<2x32xf32>
    %cst_347 = arith.constant -0.0358195752 : f32
    %1218 = vector.broadcast %cst_347 : f32 to vector<2x32xf32>
    %1219 = arith.mulf %1218, %1184 : vector<2x32xf32>
    %1220 = arith.addf %1217, %1219 : vector<2x32xf32>
    %cst_348 = arith.constant 0.0145502649 : f32
    %1221 = vector.broadcast %cst_348 : f32 to vector<2x32xf32>
    %1222 = arith.mulf %1221, %1208 : vector<2x32xf32>
    %1223 = arith.addf %1220, %1222 : vector<2x32xf32>
    %c0_349 = arith.constant 0 : index
    %c0_350 = arith.constant 0 : index
    %1224 = vector.load %arg8[%c0_349, %c0_350] : memref<1x32xf32, #tpu.memory_space<vmem>>, vector<1x32xf32>
    %c0_351 = arith.constant 0 : index
    %c0_352 = arith.constant 0 : index
    %1225 = vector.load %arg9[%c0_351, %c0_352] : memref<1x1xf32, #tpu.memory_space<vmem>>, vector<1x1xf32>
    %1226 = vector.broadcast %1224 : vector<1x32xf32> to vector<2x32xf32>
    %1227 = arith.mulf %1223, %1226 : vector<2x32xf32>
    %cst_353 = arith.constant dense<0.000000e+00> : vector<2xf32>
    %1228 = vector.multi_reduction <add>, %1227, %cst_353 [1] : vector<2x32xf32> to vector<2xf32>
    %1229 = vector.shape_cast %1228 : vector<2xf32> to vector<2x1xf32>
    %1230 = vector.broadcast %1225 : vector<1x1xf32> to vector<2x1xf32>
    %1231 = arith.addf %1229, %1230 : vector<2x1xf32>
    %c0_354 = arith.constant 0 : index
    %c0_355 = arith.constant 0 : index
    %1232 = vector.load %arg10[%c0_354, %c0_355] : memref<2x1xf32, #tpu.memory_space<vmem>>, vector<2x1xf32>
    tpu.vector_store %arg10[%c0_354, %c0_355], %1231 {strides = array<i32>} : memref<2x1xf32, #tpu.memory_space<vmem>>, vector<2x1xf32>,
    return
  }
}

</mosaic_0001>

<llo_original>
// kernel: lstm_ode_forward.1
$region0: #{lstm_ode_forward.1}
  #allocation0 [shape = 'u32[]', space=smem, size = 0x4, offset = 0x4, fixed_abs, tag = 'smem constant byte address 0x4 - core index']
  #allocation1 [shape = 'u32[144,128]{1,0:T(1,128)}', space=vmem, size = 0x12000, scoped, tag = 'internal scratch']
  #allocation2 [shape = 'f32[8,2,128]{2,1,0:T(2,128)}', space=vmem, size = 0x2000, scoped, tag = 'scratch operand']
  #allocation3 [shape = 'f32[1,1]{1,0:T(1,128)S(1)}', space=vmem, size = 0x200, scoped, tag = 'scoped memory for lstm_ode_forward.1']
  %s0 = inlined_call_operand.vmem [shape: f32[16,6], index: 0, kind: input, shape index: {}]
  %s1 = inlined_call_operand.vmem [shape: bf16[6,128], index: 1, kind: input, shape index: {}]
  %s2 = inlined_call_operand.vmem [shape: bf16[32,128], index: 2, kind: input, shape index: {}]
  %s3 = inlined_call_operand.vmem [shape: f32[1,128], index: 3, kind: input, shape index: {}]
  %s4 = inlined_call_operand.vmem [shape: bf16[32,64], index: 4, kind: input, shape index: {}]
  %s5 = inlined_call_operand.vmem [shape: f32[1,64], index: 5, kind: input, shape index: {}]
  %s6 = inlined_call_operand.vmem [shape: bf16[64,32], index: 6, kind: input, shape index: {}]
  %s7 = inlined_call_operand.vmem [shape: f32[1,32], index: 7, kind: input, shape index: {}]
  %s8 = inlined_call_operand.vmem [shape: f32[1,32], index: 8, kind: input, shape index: {}]
  %s9 = inlined_call_operand.<no memory space> [shape: f32[1,1], index: 9, kind: input, shape index: {}]
  %s10 = inlined_call_operand.vmem [shape: f32[2,1], index: 10, kind: output, shape index: {}]
  %s11 = sld [smem:[#allocation0]]
  $region50: #{lstm_ode_forward.1} parent=0
    _
  %s13 = ssub.s32 1, %s11
  %s14 = scalar_select 0, %s13, %s11
  %v15 = vstv %s9
  %16 = vst [vmem:[#allocation3] sm:$0x1] %v15
  // Predicated region
  $region2: #{lstm_ode_forward.1} parent=0 // pred_check
    _
  $region3: #{lstm_ode_forward.1} parent=0 // pred_check_branch
    %18 = sbr.rel (0) target = $region5
  $region4: #{lstm_ode_forward.1} parent=0 // pred_region
    _
  $region5: #{lstm_ode_forward.1} parent=0 // pred_fallthru
    _
  // Predicated region
  $region6: #{lstm_ode_forward.1} parent=0 // pred_check
    _
  $region7: #{lstm_ode_forward.1} parent=0 // pred_check_branch
    %20 = sbr.rel (0) target = $region9
  $region8: #{lstm_ode_forward.1} parent=0 // pred_region
    _
  $region9: #{lstm_ode_forward.1} parent=0 // pred_fallthru
    _
  // Predicated region
  $region10: #{lstm_ode_forward.1} parent=0 // pred_check
    _
  $region11: #{lstm_ode_forward.1} parent=0 // pred_check_branch
    %22 = sbr.rel (0) target = $region13
  $region12: #{lstm_ode_forward.1} parent=0 // pred_region
    _
  $region13: #{lstm_ode_forward.1} parent=0 // pred_fallthru
    _
  // Predicated region
  $region14: #{lstm_ode_forward.1} parent=0 // pred_check
    _
  $region15: #{lstm_ode_forward.1} parent=0 // pred_check_branch
    %24 = sbr.rel (0) target = $region17
  $region16: #{lstm_ode_forward.1} parent=0 // pred_region
    _
  $region17: #{lstm_ode_forward.1} parent=0 // pred_fallthru
    _
  // Predicated region
  $region18: #{lstm_ode_forward.1} parent=0 // pred_check
    _
  $region19: #{lstm_ode_forward.1} parent=0 // pred_check_branch
    %26 = sbr.rel (0) target = $region21
  $region20: #{lstm_ode_forward.1} parent=0 // pred_region
    _
  $region21: #{lstm_ode_forward.1} parent=0 // pred_fallthru
    _
  // Predicated region
  $region22: #{lstm_ode_forward.1} parent=0 // pred_check
    _
  $region23: #{lstm_ode_forward.1} parent=0 // pred_check_branch
    %28 = sbr.rel (0) target = $region25
  $region24: #{lstm_ode_forward.1} parent=0 // pred_region
    _
  $region25: #{lstm_ode_forward.1} parent=0 // pred_fallthru
    _
  // Predicated region
  $region26: #{lstm_ode_forward.1} parent=0 // pred_check
    _
  $region27: #{lstm_ode_forward.1} parent=0 // pred_check_branch
    %30 = sbr.rel (0) target = $region29
  $region28: #{lstm_ode_forward.1} parent=0 // pred_region
    _
  $region29: #{lstm_ode_forward.1} parent=0 // pred_fallthru
    _
  // Predicated region
  $region30: #{lstm_ode_forward.1} parent=0 // pred_check
    _
  $region31: #{lstm_ode_forward.1} parent=0 // pred_check_branch
    %32 = sbr.rel (0) target = $region33
  $region32: #{lstm_ode_forward.1} parent=0 // pred_region
    _
  $region33: #{lstm_ode_forward.1} parent=0 // pred_fallthru
    _
  // Predicated region
  $region34: #{lstm_ode_forward.1} parent=0 // pred_check
    _
  $region35: #{lstm_ode_forward.1} parent=0 // pred_check_branch
    %34 = sbr.rel (0) target = $region37
  $region36: #{lstm_ode_forward.1} parent=0 // pred_region
    _
  $region37: #{lstm_ode_forward.1} parent=0 // pred_fallthru
    _
  // Predicated region
  $region38: #{lstm_ode_forward.1} parent=0 // pred_check
    _
  $region39: #{lstm_ode_forward.1} parent=0 // pred_check_branch
    %36 = sbr.rel (0) target = $region41
  $region40: #{lstm_ode_forward.1} parent=0 // pred_region
    _
  $region41: #{lstm_ode_forward.1} parent=0 // pred_fallthru
    _
  %v38 = vld [vmem:[%s1] sm:$0x7]
  %v39 = vld [vmem:[%s2] sm:$0xf]
  %v40 = vld [vmem:[%s2 + $0x4] sm:$0xf]
  %v41 = vld [vmem:[%s2 + $0x8] sm:$0xf]
  %v42 = vld [vmem:[%s2 + $0xc] sm:$0xf]
  %v43 = vld [vmem:[%s3] sm:$0x1]
  %v44 = vld [vmem:[%s0] sm:$0xff]
  %v45 = vld [vmem:[%s0 + $0x8] sm:$0xff]
  %v46 = vpack.c.bf16 %v45, %v44
  %v48 = vlaneseq
  %v49 = vshrl.u32 %v48, 7
  %v50 = vsub.s32 0, %v49
  %v51 = vrot.slane %v43, %v50
  %vm53 = vcmask 48128
  %v55 = vsel %vm53, %v46, 0
  %vm57 = vcmask 1042432
  %v59 = vsel %vm57, %v38, 0
  %61 = vmatprep.subr.bf16.mxu0 0
  %62 = vmatpush1.bf16.msra.mxu0 %v59
  %63 = vmatprep.subr.bf16.mxu0 0
  %64 = vmatpush1.bf16.msra.mxu0 0
  %65 = vmatprep.subr.bf16.mxu0 0
  %66 = vmatpush1.bf16.msra.mxu0 0
  %67 = vmatprep.subr.bf16.mxu0 0
  %68 = vmatpush1.bf16.msra.mxu0 0
  %69 = vmatprep.subr.bf16.mxu0 0
  %70 = vmatpush1.bf16.msra.mxu0 0
  %71 = vmatprep.subr.bf16.mxu0 0
  %72 = vmatpush1.bf16.msra.mxu0 0
  %73 = vmatprep.subr.bf16.mxu0 0
  %74 = vmatpush1.bf16.msra.mxu0 0
  %75 = vmatprep.subr.bf16.mxu0 0
  %76 = vmatpush1.bf16.msra.mxu0 0
  %77 = vmatprep.subr.bf16.mxu0 0
  %78 = vmatpush1.bf16.msra.mxu0 0
  %79 = vmatprep.subr.bf16.mxu0 0
  %80 = vmatpush1.bf16.msra.mxu0 0
  %81 = vmatprep.subr.bf16.mxu0 0
  %82 = vmatpush1.bf16.msra.mxu0 0
  %83 = vmatprep.subr.bf16.mxu0 0
  %84 = vmatpush1.bf16.msra.mxu0 0
  %85 = vmatprep.subr.bf16.mxu0 0
  %86 = vmatpush1.bf16.msra.mxu0 0
  %87 = vmatprep.subr.bf16.mxu0 0
  %88 = vmatpush1.bf16.msra.mxu0 0
  %89 = vmatprep.subr.bf16.mxu0 0
  %90 = vmatpush1.bf16.msra.mxu0 0
  %91 = vmatprep.subr.bf16.mxu0 0
  %92 = vmatpush1.bf16.msra.mxu0 0
  %93 = vmatprep.mubr.bf16.mxu0 0
  %94 = vmatmul.mubr.bf16.gmra.mrb[0].mxu0 %v55
  %v95 = vpop.f32.mrb[0].mxu0
  %v96 = vadd.f32 %v51, %v95
  %v97 = vpop.f32.mrb[0].mxu0
  %v98 = vpop.f32.mrb[0].mxu0
  %v99 = vadd.f32 %v51, %v98
  %v100 = vpop.f32.mrb[0].mxu0
  %101 = vdwg.mxu0
  %v104 = vcombine.high %v96, %v96
  %v106 = vunpack.c.l.s4 1983009808
  %v107 = vunpack.c.0.s8 %v106
  %v108 = vlaneseq
  %v109 = vshrl.u32 %v108, 7
  %v110 = vsub.s32 %v107, %v109
  %v111 = vrot.slane %v96, %v110
  %v113 = vunpack.c.l.s4 1983009808
  %v114 = vunpack.c.0.s8 %v113
  %v115 = vlaneseq
  %v116 = vshrl.u32 %v115, 7
  %v117 = vsub.s32 %v114, %v116
  %v118 = vrot.slane %v104, %v117
  %v119 = vcombine.high %v111, %v111
  %v120 = vcombine.high %v118, %v118
  %v121 = vcombine.high %v99, %v99
  %v123 = vunpack.c.l.s4 1983009808
  %v124 = vunpack.c.0.s8 %v123
  %v125 = vlaneseq
  %v126 = vshrl.u32 %v125, 7
  %v127 = vsub.s32 %v124, %v126
  %v128 = vrot.slane %v99, %v127
  %v130 = vunpack.c.l.s4 1983009808
  %v131 = vunpack.c.0.s8 %v130
  %v132 = vlaneseq
  %v133 = vshrl.u32 %v132, 7
  %v134 = vsub.s32 %v131, %v133
  %v135 = vrot.slane %v121, %v134
  %v136 = vcombine.high %v128, %v128
  %v137 = vcombine.high %v135, %v135
  %146 = vst [vmem:[#allocation2] sm:$0x3] %v111
  %147 = vst [vmem:[#allocation2 + $0x2] sm:$0x3] %v119
  %148 = vst [vmem:[#allocation2 + $0x4] sm:$0x3] %v118
  %149 = vst [vmem:[#allocation2 + $0x6] sm:$0x3] %v120
  %150 = vst [vmem:[#allocation2 + $0x8] sm:$0x3] %v128
  %151 = vst [vmem:[#allocation2 + $0xa] sm:$0x3] %v136
  %152 = vst [vmem:[#allocation2 + $0xc] sm:$0x3] %v135
  %153 = vst [vmem:[#allocation2 + $0xe] sm:$0x3] %v137
  %v154 = vlaneseq
  %v155 = vand.u32 %v154, 127
  %vm156 = vcmp.ge.s32.totalorder %v155, 64
  %vm157 = vcmp.lt.s32.totalorder %v155, 96
  %vm158 = vmand %vm156, %vm157
  %v159 = vld [vmem:[#allocation2] sm:$0x3]
  %v164 = vunpack.c.l.b16 %v39
  %v165 = vunpack.c.l.b16 %v40
  %v166 = vunpack.c.l.b16 %v41
  %v167 = vunpack.c.l.b16 %v42
  %v168 = vpack.c.b16 %v165, %v164
  %v169 = vpack.c.b16 %v167, %v166
  %vm172 = vcmask 261120
  %v174 = vsel %vm172, 0, 0
  %176 = vmatprep.subr.bf16.mxu0 0
  %177 = vmatpush1.bf16.msra.mxu0 %v168
  %178 = vmatprep.subr.bf16.mxu0 0
  %179 = vmatpush1.bf16.msra.mxu0 %v169
  %180 = vmatprep.subr.bf16.mxu0 0
  %181 = vmatpush1.bf16.msra.mxu0 0
  %182 = vmatprep.subr.bf16.mxu0 0
  %183 = vmatpush1.bf16.msra.mxu0 0
  %184 = vmatprep.subr.bf16.mxu0 0
  %185 = vmatpush1.bf16.msra.mxu0 0
  %186 = vmatprep.subr.bf16.mxu0 0
  %187 = vmatpush1.bf16.msra.mxu0 0
  %188 = vmatprep.subr.bf16.mxu0 0
  %189 = vmatpush1.bf16.msra.mxu0 0
  %190 = vmatprep.subr.bf16.mxu0 0
  %191 = vmatpush1.bf16.msra.mxu0 0
  %192 = vmatprep.subr.bf16.mxu0 0
  %193 = vmatpush1.bf16.msra.mxu0 0
  %194 = vmatprep.subr.bf16.mxu0 0
  %195 = vmatpush1.bf16.msra.mxu0 0
  %196 = vmatprep.subr.bf16.mxu0 0
  %197 = vmatpush1.bf16.msra.mxu0 0
  %198 = vmatprep.subr.bf16.mxu0 0
  %199 = vmatpush1.bf16.msra.mxu0 0
  %200 = vmatprep.subr.bf16.mxu0 0
  %201 = vmatpush1.bf16.msra.mxu0 0
  %202 = vmatprep.subr.bf16.mxu0 0
  %203 = vmatpush1.bf16.msra.mxu0 0
  %204 = vmatprep.subr.bf16.mxu0 0
  %205 = vmatpush1.bf16.msra.mxu0 0
  %206 = vmatprep.subr.bf16.mxu0 0
  %207 = vmatpush1.bf16.msra.mxu0 0
  %208 = vmatprep.mubr.bf16.mxu0 0
  %209 = vmatmul.mubr.bf16.gmra.mrb[0].mxu0 %v174
  %v210 = vpop.f32.mrb[0].mxu0
  %v211 = vadd.f32 0.0, %v210
  %v212 = vpop.f32.mrb[0].mxu0
  %v213 = vpop.f32.mrb[0].mxu0
  %v214 = vpop.f32.mrb[0].mxu0
  %215 = vdwg.mxu0
  %v216 = vadd.f32 %v159, %v211
  %v217 = vtanh.pop %v216
  %v218 = vxor.u32 %v216, 2147483648
  %v219 = vmul.f32 %v218, 1.442695
  %v220 = vpow.pop %v219
  %v221 = vadd.f32 %v220, 1.0
  %v222 = vrcp.pop %v221
  %v223 = vmul.f32 1.0, %v222
  %v224 = vsel %vm158, %v217, %v223
  %v225 = vmul.f32 %v224, 0.0
  %227 = vrot.lane.b32.xlu0 %v224, 64
  %v228 = vpop.permute.xlu0 %227
  %v230 = vmul.f32 %v224, %v228
  %232 = vrot.lane.b32.xlu0 %v230, 32
  %v233 = vpop.permute.xlu0 %232
  %v235 = vadd.f32 %v225, %v233
  %v236 = vtanh.pop %v235
  %238 = vrot.lane.b32.xlu0 %v236, 64
  %v239 = vpop.permute.xlu0 %238
  %v241 = vmul.f32 %v224, %v239
  %s242 = scalar_lea.vmem [#allocation2], 2
  %v243 = vld [vmem:[%s242] sm:$0x3]
  %v244 = vpack.c.bf16 %v241, %v241
  %246 = vrot.lane.b32.xlu0 %v244, 32
  %v247 = vpop.permute.xlu0 %246
  %v249 = vsel %vm172, %v247, 0
  %251 = vmatprep.subr.bf16.mxu0 0
  %252 = vmatpush1.bf16.msra.mxu0 %v168
  %253 = vmatprep.subr.bf16.mxu0 0
  %254 = vmatpush1.bf16.msra.mxu0 %v169
  %255 = vmatprep.subr.bf16.mxu0 0
  %256 = vmatpush1.bf16.msra.mxu0 0
  %257 = vmatprep.subr.bf16.mxu0 0
  %258 = vmatpush1.bf16.msra.mxu0 0
  %259 = vmatprep.subr.bf16.mxu0 0
  %260 = vmatpush1.bf16.msra.mxu0 0
  %261 = vmatprep.subr.bf16.mxu0 0
  %262 = vmatpush1.bf16.msra.mxu0 0
  %263 = vmatprep.subr.bf16.mxu0 0
  %264 = vmatpush1.bf16.msra.mxu0 0
  %265 = vmatprep.subr.bf16.mxu0 0
  %266 = vmatpush1.bf16.msra.mxu0 0
  %267 = vmatprep.subr.bf16.mxu0 0
  %268 = vmatpush1.bf16.msra.mxu0 0
  %269 = vmatprep.subr.bf16.mxu0 0
  %270 = vmatpush1.bf16.msra.mxu0 0
  %271 = vmatprep.subr.bf16.mxu0 0
  %272 = vmatpush1.bf16.msra.mxu0 0
  %273 = vmatprep.subr.bf16.mxu0 0
  %274 = vmatpush1.bf16.msra.mxu0 0
  %275 = vmatprep.subr.bf16.mxu0 0
  %276 = vmatpush1.bf16.msra.mxu0 0
  %277 = vmatprep.subr.bf16.mxu0 0
  %278 = vmatpush1.bf16.msra.mxu0 0
  %279 = vmatprep.subr.bf16.mxu0 0
  %280 = vmatpush1.bf16.msra.mxu0 0
  %281 = vmatprep.subr.bf16.mxu0 0
  %282 = vmatpush1.bf16.msra.mxu0 0
  %283 = vmatprep.mubr.bf16.mxu0 0
  %284 = vmatmul.mubr.bf16.gmra.mrb[0].mxu0 %v249
  %v285 = vpop.f32.mrb[0].mxu0
  %v286 = vadd.f32 0.0, %v285
  %v287 = vpop.f32.mrb[0].mxu0
  %v288 = vpop.f32.mrb[0].mxu0
  %v289 = vpop.f32.mrb[0].mxu0
  %290 = vdwg.mxu0
  %v291 = vadd.f32 %v243, %v286
  %v292 = vtanh.pop %v291
  %v293 = vxor.u32 %v291, 2147483648
  %v294 = vmul.f32 %v293, 1.442695
  %v295 = vpow.pop %v294
  %v296 = vadd.f32 %v295, 1.0
  %v297 = vrcp.pop %v296
  %v298 = vmul.f32 1.0, %v297
  %v299 = vsel %vm158, %v292, %v298
  %v300 = vmul.f32 %v299, %v235
  %302 = vrot.lane.b32.xlu0 %v299, 64
  %v303 = vpop.permute.xlu0 %302
  %v305 = vmul.f32 %v299, %v303
  %307 = vrot.lane.b32.xlu0 %v305, 32
  %v308 = vpop.permute.xlu0 %307
  %v310 = vadd.f32 %v300, %v308
  %v311 = vtanh.pop %v310
  %313 = vrot.lane.b32.xlu0 %v311, 64
  %v314 = vpop.permute.xlu0 %313
  %v316 = vmul.f32 %v299, %v314
  %s317 = scalar_lea.vmem [#allocation2], 4
  %v318 = vld [vmem:[%s317] sm:$0x3]
  %v319 = vpack.c.bf16 %v316, %v316
  %321 = vrot.lane.b32.xlu0 %v319, 32
  %v322 = vpop.permute.xlu0 %321
  %v324 = vsel %vm172, %v322, 0
  %326 = vmatprep.subr.bf16.mxu0 0
  %327 = vmatpush1.bf16.msra.mxu0 %v168
  %328 = vmatprep.subr.bf16.mxu0 0
  %329 = vmatpush1.bf16.msra.mxu0 %v169
  %330 = vmatprep.subr.bf16.mxu0 0
  %331 = vmatpush1.bf16.msra.mxu0 0
  %332 = vmatprep.subr.bf16.mxu0 0
  %333 = vmatpush1.bf16.msra.mxu0 0
  %334 = vmatprep.subr.bf16.mxu0 0
  %335 = vmatpush1.bf16.msra.mxu0 0
  %336 = vmatprep.subr.bf16.mxu0 0
  %337 = vmatpush1.bf16.msra.mxu0 0
  %338 = vmatprep.subr.bf16.mxu0 0
  %339 = vmatpush1.bf16.msra.mxu0 0
  %340 = vmatprep.subr.bf16.mxu0 0
  %341 = vmatpush1.bf16.msra.mxu0 0
  %342 = vmatprep.subr.bf16.mxu0 0
  %343 = vmatpush1.bf16.msra.mxu0 0
  %344 = vmatprep.subr.bf16.mxu0 0
  %345 = vmatpush1.bf16.msra.mxu0 0
  %346 = vmatprep.subr.bf16.mxu0 0
  %347 = vmatpush1.bf16.msra.mxu0 0
  %348 = vmatprep.subr.bf16.mxu0 0
  %349 = vmatpush1.bf16.msra.mxu0 0
  %350 = vmatprep.subr.bf16.mxu0 0
  %351 = vmatpush1.bf16.msra.mxu0 0
  %352 = vmatprep.subr.bf16.mxu0 0
  %353 = vmatpush1.bf16.msra.mxu0 0
  %354 = vmatprep.subr.bf16.mxu0 0
  %355 = vmatpush1.bf16.msra.mxu0 0
  %356 = vmatprep.subr.bf16.mxu0 0
  %357 = vmatpush1.bf16.msra.mxu0 0
  %358 = vmatprep.mubr.bf16.mxu0 0
  %359 = vmatmul.mubr.bf16.gmra.mrb[0].mxu0 %v324
  %v360 = vpop.f32.mrb[0].mxu0
  %v361 = vadd.f32 0.0, %v360
  %v362 = vpop.f32.mrb[0].mxu0
  %v363 = vpop.f32.mrb[0].mxu0
  %v364 = vpop.f32.mrb[0].mxu0
  %365 = vdwg.mxu0
  %v366 = vadd.f32 %v318, %v361
  %v367 = vtanh.pop %v366
  %v368 = vxor.u32 %v366, 2147483648
  %v369 = vmul.f32 %v368, 1.442695
  %v370 = vpow.pop %v369
  %v371 = vadd.f32 %v370, 1.0
  %v372 = vrcp.pop %v371
  %v373 = vmul.f32 1.0, %v372
  %v374 = vsel %vm158, %v367, %v373
  %v375 = vmul.f32 %v374, %v310
  %377 = vrot.lane.b32.xlu0 %v374, 64
  %v378 = vpop.permute.xlu0 %377
  %v380 = vmul.f32 %v374, %v378
  %382 = vrot.lane.b32.xlu0 %v380, 32
  %v383 = vpop.permute.xlu0 %382
  %v385 = vadd.f32 %v375, %v383
  %v386 = vtanh.pop %v385
  %388 = vrot.lane.b32.xlu0 %v386, 64
  %v389 = vpop.permute.xlu0 %388
  %v391 = vmul.f32 %v374, %v389
  %s392 = scalar_lea.vmem [#allocation2], 6
  %v393 = vld [vmem:[%s392] sm:$0x3]
  %v394 = vpack.c.bf16 %v391, %v391
  %396 = vrot.lane.b32.xlu0 %v394, 32
  %v397 = vpop.permute.xlu0 %396
  %v399 = vsel %vm172, %v397, 0
  %401 = vmatprep.subr.bf16.mxu0 0
  %402 = vmatpush1.bf16.msra.mxu0 %v168
  %403 = vmatprep.subr.bf16.mxu0 0
  %404 = vmatpush1.bf16.msra.mxu0 %v169
  %405 = vmatprep.subr.bf16.mxu0 0
  %406 = vmatpush1.bf16.msra.mxu0 0
  %407 = vmatprep.subr.bf16.mxu0 0
  %408 = vmatpush1.bf16.msra.mxu0 0
  %409 = vmatprep.subr.bf16.mxu0 0
  %410 = vmatpush1.bf16.msra.mxu0 0
  %411 = vmatprep.subr.bf16.mxu0 0
  %412 = vmatpush1.bf16.msra.mxu0 0
  %413 = vmatprep.subr.bf16.mxu0 0
  %414 = vmatpush1.bf16.msra.mxu0 0
  %415 = vmatprep.subr.bf16.mxu0 0
  %416 = vmatpush1.bf16.msra.mxu0 0
  %417 = vmatprep.subr.bf16.mxu0 0
  %418 = vmatpush1.bf16.msra.mxu0 0
  %419 = vmatprep.subr.bf16.mxu0 0
  %420 = vmatpush1.bf16.msra.mxu0 0
  %421 = vmatprep.subr.bf16.mxu0 0
  %422 = vmatpush1.bf16.msra.mxu0 0
  %423 = vmatprep.subr.bf16.mxu0 0
  %424 = vmatpush1.bf16.msra.mxu0 0
  %425 = vmatprep.subr.bf16.mxu0 0
  %426 = vmatpush1.bf16.msra.mxu0 0
  %427 = vmatprep.subr.bf16.mxu0 0
  %428 = vmatpush1.bf16.msra.mxu0 0
  %429 = vmatprep.subr.bf16.mxu0 0
  %430 = vmatpush1.bf16.msra.mxu0 0
  %431 = vmatprep.subr.bf16.mxu0 0
  %432 = vmatpush1.bf16.msra.mxu0 0
  %433 = vmatprep.mubr.bf16.mxu0 0
  %434 = vmatmul.mubr.bf16.gmra.mrb[0].mxu0 %v399
  %v435 = vpop.f32.mrb[0].mxu0
  %v436 = vadd.f32 0.0, %v435
  %v437 = vpop.f32.mrb[0].mxu0
  %v438 = vpop.f32.mrb[0].mxu0
  %v439 = vpop.f32.mrb[0].mxu0
  %440 = vdwg.mxu0
  %v441 = vadd.f32 %v393, %v436
  %v442 = vtanh.pop %v441
  %v443 = vxor.u32 %v441, 2147483648
  %v444 = vmul.f32 %v443, 1.442695
  %v445 = vpow.pop %v444
  %v446 = vadd.f32 %v445, 1.0
  %v447 = vrcp.pop %v446
  %v448 = vmul.f32 1.0, %v447
  %v449 = vsel %vm158, %v442, %v448
  %v450 = vmul.f32 %v449, %v385
  %452 = vrot.lane.b32.xlu0 %v449, 64
  %v453 = vpop.permute.xlu0 %452
  %v455 = vmul.f32 %v449, %v453
  %457 = vrot.lane.b32.xlu0 %v455, 32
  %v458 = vpop.permute.xlu0 %457
  %v460 = vadd.f32 %v450, %v458
  %v461 = vtanh.pop %v460
  %463 = vrot.lane.b32.xlu0 %v461, 64
  %v464 = vpop.permute.xlu0 %463
  %v466 = vmul.f32 %v449, %v464
  %s467 = scalar_lea.vmem [#allocation2], 8
  %v468 = vld [vmem:[%s467] sm:$0x3]
  %v469 = vpack.c.bf16 %v466, %v466
  %471 = vrot.lane.b32.xlu0 %v469, 32
  %v472 = vpop.permute.xlu0 %471
  %v474 = vsel %vm172, %v472, 0
  %476 = vmatprep.subr.bf16.mxu0 0
  %477 = vmatpush1.bf16.msra.mxu0 %v168
  %478 = vmatprep.subr.bf16.mxu0 0
  %479 = vmatpush1.bf16.msra.mxu0 %v169
  %480 = vmatprep.subr.bf16.mxu0 0
  %481 = vmatpush1.bf16.msra.mxu0 0
  %482 = vmatprep.subr.bf16.mxu0 0
  %483 = vmatpush1.bf16.msra.mxu0 0
  %484 = vmatprep.subr.bf16.mxu0 0
  %485 = vmatpush1.bf16.msra.mxu0 0
  %486 = vmatprep.subr.bf16.mxu0 0
  %487 = vmatpush1.bf16.msra.mxu0 0
  %488 = vmatprep.subr.bf16.mxu0 0
  %489 = vmatpush1.bf16.msra.mxu0 0
  %490 = vmatprep.subr.bf16.mxu0 0
  %491 = vmatpush1.bf16.msra.mxu0 0
  %492 = vmatprep.subr.bf16.mxu0 0
  %493 = vmatpush1.bf16.msra.mxu0 0
  %494 = vmatprep.subr.bf16.mxu0 0
  %495 = vmatpush1.bf16.msra.mxu0 0
  %496 = vmatprep.subr.bf16.mxu0 0
  %497 = vmatpush1.bf16.msra.mxu0 0
  %498 = vmatprep.subr.bf16.mxu0 0
  %499 = vmatpush1.bf16.msra.mxu0 0
  %500 = vmatprep.subr.bf16.mxu0 0
  %501 = vmatpush1.bf16.msra.mxu0 0
  %502 = vmatprep.subr.bf16.mxu0 0
  %503 = vmatpush1.bf16.msra.mxu0 0
  %504 = vmatprep.subr.bf16.mxu0 0
  %505 = vmatpush1.bf16.msra.mxu0 0
  %506 = vmatprep.subr.bf16.mxu0 0
  %507 = vmatpush1.bf16.msra.mxu0 0
  %508 = vmatprep.mubr.bf16.mxu0 0
  %509 = vmatmul.mubr.bf16.gmra.mrb[0].mxu0 %v474
  %v510 = vpop.f32.mrb[0].mxu0
  %v511 = vadd.f32 0.0, %v510
  %v512 = vpop.f32.mrb[0].mxu0
  %v513 = vpop.f32.mrb[0].mxu0
  %v514 = vpop.f32.mrb[0].mxu0
  %515 = vdwg.mxu0
  %v516 = vadd.f32 %v468, %v511
  %v517 = vtanh.pop %v516
  %v518 = vxor.u32 %v516, 2147483648
  %v519 = vmul.f32 %v518, 1.442695
  %v520 = vpow.pop %v519
  %v521 = vadd.f32 %v520, 1.0
  %v522 = vrcp.pop %v521
  %v523 = vmul.f32 1.0, %v522
  %v524 = vsel %vm158, %v517, %v523
  %v525 = vmul.f32 %v524, %v460
  %527 = vrot.lane.b32.xlu0 %v524, 64
  %v528 = vpop.permute.xlu0 %527
  %v530 = vmul.f32 %v524, %v528
  %532 = vrot.lane.b32.xlu0 %v530, 32
  %v533 = vpop.permute.xlu0 %532
  %v535 = vadd.f32 %v525, %v533
  %v536 = vtanh.pop %v535
  %538 = vrot.lane.b32.xlu0 %v536, 64
  %v539 = vpop.permute.xlu0 %538
  %v541 = vmul.f32 %v524, %v539
  %s542 = scalar_lea.vmem [#allocation2], 10
  %v543 = vld [vmem:[%s542] sm:$0x3]
  %v544 = vpack.c.bf16 %v541, %v541
  %546 = vrot.lane.b32.xlu0 %v544, 32
  %v547 = vpop.permute.xlu0 %546
  %v549 = vsel %vm172, %v547, 0
  %551 = vmatprep.subr.bf16.mxu0 0
  %552 = vmatpush1.bf16.msra.mxu0 %v168
  %553 = vmatprep.subr.bf16.mxu0 0
  %554 = vmatpush1.bf16.msra.mxu0 %v169
  %555 = vmatprep.subr.bf16.mxu0 0
  %556 = vmatpush1.bf16.msra.mxu0 0
  %557 = vmatprep.subr.bf16.mxu0 0
  %558 = vmatpush1.bf16.msra.mxu0 0
  %559 = vmatprep.subr.bf16.mxu0 0
  %560 = vmatpush1.bf16.msra.mxu0 0
  %561 = vmatprep.subr.bf16.mxu0 0
  %562 = vmatpush1.bf16.msra.mxu0 0
  %563 = vmatprep.subr.bf16.mxu0 0
  %564 = vmatpush1.bf16.msra.mxu0 0
  %565 = vmatprep.subr.bf16.mxu0 0
  %566 = vmatpush1.bf16.msra.mxu0 0
  %567 = vmatprep.subr.bf16.mxu0 0
  %568 = vmatpush1.bf16.msra.mxu0 0
  %569 = vmatprep.subr.bf16.mxu0 0
  %570 = vmatpush1.bf16.msra.mxu0 0
  %571 = vmatprep.subr.bf16.mxu0 0
  %572 = vmatpush1.bf16.msra.mxu0 0
  %573 = vmatprep.subr.bf16.mxu0 0
  %574 = vmatpush1.bf16.msra.mxu0 0
  %575 = vmatprep.subr.bf16.mxu0 0
  %576 = vmatpush1.bf16.msra.mxu0 0
  %577 = vmatprep.subr.bf16.mxu0 0
  %578 = vmatpush1.bf16.msra.mxu0 0
  %579 = vmatprep.subr.bf16.mxu0 0
  %580 = vmatpush1.bf16.msra.mxu0 0
  %581 = vmatprep.subr.bf16.mxu0 0
  %582 = vmatpush1.bf16.msra.mxu0 0
  %583 = vmatprep.mubr.bf16.mxu0 0
  %584 = vmatmul.mubr.bf16.gmra.mrb[0].mxu0 %v549
  %v585 = vpop.f32.mrb[0].mxu0
  %v586 = vadd.f32 0.0, %v585
  %v587 = vpop.f32.mrb[0].mxu0
  %v588 = vpop.f32.mrb[0].mxu0
  %v589 = vpop.f32.mrb[0].mxu0
  %590 = vdwg.mxu0
  %v591 = vadd.f32 %v543, %v586
  %v592 = vtanh.pop %v591
  %v593 = vxor.u32 %v591, 2147483648
  %v594 = vmul.f32 %v593, 1.442695
  %v595 = vpow.pop %v594
  %v596 = vadd.f32 %v595, 1.0
  %v597 = vrcp.pop %v596
  %v598 = vmul.f32 1.0, %v597
  %v599 = vsel %vm158, %v592, %v598
  %v600 = vmul.f32 %v599, %v535
  %602 = vrot.lane.b32.xlu0 %v599, 64
  %v603 = vpop.permute.xlu0 %602
  %v605 = vmul.f32 %v599, %v603
  %607 = vrot.lane.b32.xlu0 %v605, 32
  %v608 = vpop.permute.xlu0 %607
  %v610 = vadd.f32 %v600, %v608
  %v611 = vtanh.pop %v610
  %613 = vrot.lane.b32.xlu0 %v611, 64
  %v614 = vpop.permute.xlu0 %613
  %v616 = vmul.f32 %v599, %v614
  %s617 = scalar_lea.vmem [#allocation2], 12
  %v618 = vld [vmem:[%s617] sm:$0x3]
  %v619 = vpack.c.bf16 %v616, %v616
  %621 = vrot.lane.b32.xlu0 %v619, 32
  %v622 = vpop.permute.xlu0 %621
  %v624 = vsel %vm172, %v622, 0
  %626 = vmatprep.subr.bf16.mxu0 0
  %627 = vmatpush1.bf16.msra.mxu0 %v168
  %628 = vmatprep.subr.bf16.mxu0 0
  %629 = vmatpush1.bf16.msra.mxu0 %v169
  %630 = vmatprep.subr.bf16.mxu0 0
  %631 = vmatpush1.bf16.msra.mxu0 0
  %632 = vmatprep.subr.bf16.mxu0 0
  %633 = vmatpush1.bf16.msra.mxu0 0
  %634 = vmatprep.subr.bf16.mxu0 0
  %635 = vmatpush1.bf16.msra.mxu0 0
  %636 = vmatprep.subr.bf16.mxu0 0
  %637 = vmatpush1.bf16.msra.mxu0 0
  %638 = vmatprep.subr.bf16.mxu0 0
  %639 = vmatpush1.bf16.msra.mxu0 0
  %640 = vmatprep.subr.bf16.mxu0 0
  %641 = vmatpush1.bf16.msra.mxu0 0
  %642 = vmatprep.subr.bf16.mxu0 0
  %643 = vmatpush1.bf16.msra.mxu0 0
  %644 = vmatprep.subr.bf16.mxu0 0
  %645 = vmatpush1.bf16.msra.mxu0 0
  %646 = vmatprep.subr.bf16.mxu0 0
  %647 = vmatpush1.bf16.msra.mxu0 0
  %648 = vmatprep.subr.bf16.mxu0 0
  %649 = vmatpush1.bf16.msra.mxu0 0
  %650 = vmatprep.subr.bf16.mxu0 0
  %651 = vmatpush1.bf16.msra.mxu0 0
  %652 = vmatprep.subr.bf16.mxu0 0
  %653 = vmatpush1.bf16.msra.mxu0 0
  %654 = vmatprep.subr.bf16.mxu0 0
  %655 = vmatpush1.bf16.msra.mxu0 0
  %656 = vmatprep.subr.bf16.mxu0 0
  %657 = vmatpush1.bf16.msra.mxu0 0
  %658 = vmatprep.mubr.bf16.mxu0 0
  %659 = vmatmul.mubr.bf16.gmra.mrb[0].mxu0 %v624
  %v660 = vpop.f32.mrb[0].mxu0
  %v661 = vadd.f32 0.0, %v660
  %v662 = vpop.f32.mrb[0].mxu0
  %v663 = vpop.f32.mrb[0].mxu0
  %v664 = vpop.f32.mrb[0].mxu0
  %665 = vdwg.mxu0
  %v666 = vadd.f32 %v618, %v661
  %v667 = vtanh.pop %v666
  %v668 = vxor.u32 %v666, 2147483648
  %v669 = vmul.f32 %v668, 1.442695
  %v670 = vpow.pop %v669
  %v671 = vadd.f32 %v670, 1.0
  %v672 = vrcp.pop %v671
  %v673 = vmul.f32 1.0, %v672
  %v674 = vsel %vm158, %v667, %v673
  %v675 = vmul.f32 %v674, %v610
  %677 = vrot.lane.b32.xlu0 %v674, 64
  %v678 = vpop.permute.xlu0 %677
  %v680 = vmul.f32 %v674, %v678
  %682 = vrot.lane.b32.xlu0 %v680, 32
  %v683 = vpop.permute.xlu0 %682
  %v685 = vadd.f32 %v675, %v683
  %v686 = vtanh.pop %v685
  %688 = vrot.lane.b32.xlu0 %v686, 64
  %v689 = vpop.permute.xlu0 %688
  %v691 = vmul.f32 %v674, %v689
  %s692 = scalar_lea.vmem [#allocation2], 14
  %v693 = vld [vmem:[%s692] sm:$0x3]
  %v694 = vpack.c.bf16 %v691, %v691
  %696 = vrot.lane.b32.xlu0 %v694, 32
  %v697 = vpop.permute.xlu0 %696
  %v699 = vsel %vm172, %v697, 0
  %701 = vmatprep.subr.bf16.mxu0 0
  %702 = vmatpush1.bf16.msra.mxu0 %v168
  %703 = vmatprep.subr.bf16.mxu0 0
  %704 = vmatpush1.bf16.msra.mxu0 %v169
  %705 = vmatprep.subr.bf16.mxu0 0
  %706 = vmatpush1.bf16.msra.mxu0 0
  %707 = vmatprep.subr.bf16.mxu0 0
  %708 = vmatpush1.bf16.msra.mxu0 0
  %709 = vmatprep.subr.bf16.mxu0 0
  %710 = vmatpush1.bf16.msra.mxu0 0
  %711 = vmatprep.subr.bf16.mxu0 0
  %712 = vmatpush1.bf16.msra.mxu0 0
  %713 = vmatprep.subr.bf16.mxu0 0
  %714 = vmatpush1.bf16.msra.mxu0 0
  %715 = vmatprep.subr.bf16.mxu0 0
  %716 = vmatpush1.bf16.msra.mxu0 0
  %717 = vmatprep.subr.bf16.mxu0 0
  %718 = vmatpush1.bf16.msra.mxu0 0
  %719 = vmatprep.subr.bf16.mxu0 0
  %720 = vmatpush1.bf16.msra.mxu0 0
  %721 = vmatprep.subr.bf16.mxu0 0
  %722 = vmatpush1.bf16.msra.mxu0 0
  %723 = vmatprep.subr.bf16.mxu0 0
  %724 = vmatpush1.bf16.msra.mxu0 0
  %725 = vmatprep.subr.bf16.mxu0 0
  %726 = vmatpush1.bf16.msra.mxu0 0
  %727 = vmatprep.subr.bf16.mxu0 0
  %728 = vmatpush1.bf16.msra.mxu0 0
  %729 = vmatprep.subr.bf16.mxu0 0
  %730 = vmatpush1.bf16.msra.mxu0 0
  %731 = vmatprep.subr.bf16.mxu0 0
  %732 = vmatpush1.bf16.msra.mxu0 0
  %733 = vmatprep.mubr.bf16.mxu0 0
  %734 = vmatmul.mubr.bf16.gmra.mrb[0].mxu0 %v699
  %v735 = vpop.f32.mrb[0].mxu0
  %v736 = vadd.f32 0.0, %v735
  %v737 = vpop.f32.mrb[0].mxu0
  %v738 = vpop.f32.mrb[0].mxu0
  %v739 = vpop.f32.mrb[0].mxu0
  %740 = vdwg.mxu0
  %v741 = vadd.f32 %v693, %v736
  %v742 = vtanh.pop %v741
  %v743 = vxor.u32 %v741, 2147483648
  %v744 = vmul.f32 %v743, 1.442695
  %v745 = vpow.pop %v744
  %v746 = vadd.f32 %v745, 1.0
  %v747 = vrcp.pop %v746
  %v748 = vmul.f32 1.0, %v747
  %v749 = vsel %vm158, %v742, %v748
  %v750 = vmul.f32 %v749, %v685
  %752 = vrot.lane.b32.xlu0 %v749, 64
  %v753 = vpop.permute.xlu0 %752
  %v755 = vmul.f32 %v749, %v753
  %757 = vrot.lane.b32.xlu0 %v755, 32
  %v758 = vpop.permute.xlu0 %757
  %v760 = vadd.f32 %v750, %v758
  %v761 = vtanh.pop %v760
  %763 = vrot.lane.b32.xlu0 %v761, 64
  %v764 = vpop.permute.xlu0 %763
  %v766 = vmul.f32 %v749, %v764
  %v767 = vld [vmem:[%s4] sm:$0xf]
  %v768 = vld [vmem:[%s4 + $0x4] sm:$0xf]
  %v769 = vld [vmem:[%s4 + $0x8] sm:$0xf]
  %v770 = vld [vmem:[%s4 + $0xc] sm:$0xf]
  %v771 = vld [vmem:[%s5] sm:$0x1]
  %v772 = vld [vmem:[%s6] sm:$0xf]
  %v773 = vld [vmem:[%s6 + $0x4] sm:$0xf]
  %v774 = vld [vmem:[%s6 + $0x8] sm:$0xf]
  %v775 = vld [vmem:[%s6 + $0xc] sm:$0xf]
  %v776 = vld [vmem:[%s6 + $0x10] sm:$0xf]
  %v777 = vld [vmem:[%s6 + $0x14] sm:$0xf]
  %v778 = vld [vmem:[%s6 + $0x18] sm:$0xf]
  %v779 = vld [vmem:[%s6 + $0x1c] sm:$0xf]
  %v780 = vld [vmem:[%s7] sm:$0x1]
  %v781 = vpack.c.bf16 %v766, %v766
  %v783 = vlaneseq
  %v784 = vshrl.u32 %v783, 7
  %v785 = vsub.s32 0, %v784
  %v786 = vrot.slane %v771, %v785
  %789 = vrot.lane.b32.xlu0 %v781, 32
  %v790 = vpop.permute.xlu0 %789
  %v795 = vunpack.c.l.b16 %v767
  %v796 = vunpack.c.l.b16 %v768
  %v797 = vunpack.c.l.b16 %v769
  %v798 = vunpack.c.l.b16 %v770
  %v799 = vpack.c.b16 %v796, %v795
  %v800 = vpack.c.b16 %v798, %v797
  %v804 = vsel %vm172, %v790, 0
  %806 = vmatprep.subr.bf16.mxu0 0
  %807 = vmatpush1.bf16.msra.mxu0 %v799
  %808 = vmatprep.subr.bf16.mxu0 0
  %809 = vmatpush1.bf16.msra.mxu0 %v800
  %810 = vmatprep.subr.bf16.mxu0 0
  %811 = vmatpush1.bf16.msra.mxu0 0
  %812 = vmatprep.subr.bf16.mxu0 0
  %813 = vmatpush1.bf16.msra.mxu0 0
  %814 = vmatprep.subr.bf16.mxu0 0
  %815 = vmatpush1.bf16.msra.mxu0 0
  %816 = vmatprep.subr.bf16.mxu0 0
  %817 = vmatpush1.bf16.msra.mxu0 0
  %818 = vmatprep.subr.bf16.mxu0 0
  %819 = vmatpush1.bf16.msra.mxu0 0
  %820 = vmatprep.subr.bf16.mxu0 0
  %821 = vmatpush1.bf16.msra.mxu0 0
  %822 = vmatprep.subr.bf16.mxu0 0
  %823 = vmatpush1.bf16.msra.mxu0 0
  %824 = vmatprep.subr.bf16.mxu0 0
  %825 = vmatpush1.bf16.msra.mxu0 0
  %826 = vmatprep.subr.bf16.mxu0 0
  %827 = vmatpush1.bf16.msra.mxu0 0
  %828 = vmatprep.subr.bf16.mxu0 0
  %829 = vmatpush1.bf16.msra.mxu0 0
  %830 = vmatprep.subr.bf16.mxu0 0
  %831 = vmatpush1.bf16.msra.mxu0 0
  %832 = vmatprep.subr.bf16.mxu0 0
  %833 = vmatpush1.bf16.msra.mxu0 0
  %834 = vmatprep.subr.bf16.mxu0 0
  %835 = vmatpush1.bf16.msra.mxu0 0
  %836 = vmatprep.subr.bf16.mxu0 0
  %837 = vmatpush1.bf16.msra.mxu0 0
  %838 = vmatprep.mubr.bf16.mxu0 0
  %839 = vmatmul.mubr.bf16.gmra.mrb[0].mxu0 %v804
  %v840 = vpop.f32.mrb[0].mxu0
  %v841 = vadd.f32 %v786, %v840
  %v842 = vpop.f32.mrb[0].mxu0
  %v843 = vpop.f32.mrb[0].mxu0
  %v844 = vpop.f32.mrb[0].mxu0
  %845 = vdwg.mxu0
  %v846 = vtanh.pop %v841
  %v847 = vpack.c.bf16 %v846, %v846
  %v849 = vlaneseq
  %v850 = vshrl.u32 %v849, 7
  %v851 = vsub.s32 0, %v850
  %v852 = vrot.slane %v780, %v851
  %v862 = vunpack.c.l.b16 %v772
  %v863 = vunpack.c.l.b16 %v773
  %v864 = vunpack.c.l.b16 %v774
  %v865 = vunpack.c.l.b16 %v775
  %v866 = vunpack.c.l.b16 %v776
  %v867 = vunpack.c.l.b16 %v777
  %v868 = vunpack.c.l.b16 %v778
  %v869 = vunpack.c.l.b16 %v779
  %v870 = vpack.c.b16 %v863, %v862
  %v871 = vpack.c.b16 %v865, %v864
  %v872 = vpack.c.b16 %v867, %v866
  %v873 = vpack.c.b16 %v869, %v868
  %vm878 = vcmask 523264
  %v880 = vsel %vm878, %v847, 0
  %882 = vmatprep.subr.bf16.mxu0 0
  %883 = vmatpush1.bf16.msra.mxu0 %v870
  %884 = vmatprep.subr.bf16.mxu0 0
  %885 = vmatpush1.bf16.msra.mxu0 %v871
  %886 = vmatprep.subr.bf16.mxu0 0
  %887 = vmatpush1.bf16.msra.mxu0 %v872
  %888 = vmatprep.subr.bf16.mxu0 0
  %889 = vmatpush1.bf16.msra.mxu0 %v873
  %890 = vmatprep.subr.bf16.mxu0 0
  %891 = vmatpush1.bf16.msra.mxu0 0
  %892 = vmatprep.subr.bf16.mxu0 0
  %893 = vmatpush1.bf16.msra.mxu0 0
  %894 = vmatprep.subr.bf16.mxu0 0
  %895 = vmatpush1.bf16.msra.mxu0 0
  %896 = vmatprep.subr.bf16.mxu0 0
  %897 = vmatpush1.bf16.msra.mxu0 0
  %898 = vmatprep.subr.bf16.mxu0 0
  %899 = vmatpush1.bf16.msra.mxu0 0
  %900 = vmatprep.subr.bf16.mxu0 0
  %901 = vmatpush1.bf16.msra.mxu0 0
  %902 = vmatprep.subr.bf16.mxu0 0
  %903 = vmatpush1.bf16.msra.mxu0 0
  %904 = vmatprep.subr.bf16.mxu0 0
  %905 = vmatpush1.bf16.msra.mxu0 0
  %906 = vmatprep.subr.bf16.mxu0 0
  %907 = vmatpush1.bf16.msra.mxu0 0
  %908 = vmatprep.subr.bf16.mxu0 0
  %909 = vmatpush1.bf16.msra.mxu0 0
  %910 = vmatprep.subr.bf16.mxu0 0
  %911 = vmatpush1.bf16.msra.mxu0 0
  %912 = vmatprep.subr.bf16.mxu0 0
  %913 = vmatpush1.bf16.msra.mxu0 0
  %914 = vmatprep.mubr.bf16.mxu0 0
  %915 = vmatmul.mubr.bf16.gmra.mrb[0].mxu0 %v880
  %v916 = vpop.f32.mrb[0].mxu0
  %v917 = vadd.f32 %v852, %v916
  %v918 = vpop.f32.mrb[0].mxu0
  %v919 = vpop.f32.mrb[0].mxu0
  %v920 = vpop.f32.mrb[0].mxu0
  %921 = vdwg.mxu0
  %v922 = vmul.f32 %v917, 0.022222223
  %924 = vrot.lane.b32.xlu0 %v922, 96
  %v925 = vpop.permute.xlu0 %924
  %v927 = vadd.f32 %v766, %v925
  %v928 = vpack.c.bf16 %v927, %v927
  %930 = vrot.lane.b32.xlu0 %v928, 32
  %v931 = vpop.permute.xlu0 %930
  %v933 = vsel %vm172, %v931, 0
  %935 = vmatprep.subr.bf16.mxu0 0
  %936 = vmatpush1.bf16.msra.mxu0 %v799
  %937 = vmatprep.subr.bf16.mxu0 0
  %938 = vmatpush1.bf16.msra.mxu0 %v800
  %939 = vmatprep.subr.bf16.mxu0 0
  %940 = vmatpush1.bf16.msra.mxu0 0
  %941 = vmatprep.subr.bf16.mxu0 0
  %942 = vmatpush1.bf16.msra.mxu0 0
  %943 = vmatprep.subr.bf16.mxu0 0
  %944 = vmatpush1.bf16.msra.mxu0 0
  %945 = vmatprep.subr.bf16.mxu0 0
  %946 = vmatpush1.bf16.msra.mxu0 0
  %947 = vmatprep.subr.bf16.mxu0 0
  %948 = vmatpush1.bf16.msra.mxu0 0
  %949 = vmatprep.subr.bf16.mxu0 0
  %950 = vmatpush1.bf16.msra.mxu0 0
  %951 = vmatprep.subr.bf16.mxu0 0
  %952 = vmatpush1.bf16.msra.mxu0 0
  %953 = vmatprep.subr.bf16.mxu0 0
  %954 = vmatpush1.bf16.msra.mxu0 0
  %955 = vmatprep.subr.bf16.mxu0 0
  %956 = vmatpush1.bf16.msra.mxu0 0
  %957 = vmatprep.subr.bf16.mxu0 0
  %958 = vmatpush1.bf16.msra.mxu0 0
  %959 = vmatprep.subr.bf16.mxu0 0
  %960 = vmatpush1.bf16.msra.mxu0 0
  %961 = vmatprep.subr.bf16.mxu0 0
  %962 = vmatpush1.bf16.msra.mxu0 0
  %963 = vmatprep.subr.bf16.mxu0 0
  %964 = vmatpush1.bf16.msra.mxu0 0
  %965 = vmatprep.subr.bf16.mxu0 0
  %966 = vmatpush1.bf16.msra.mxu0 0
  %967 = vmatprep.mubr.bf16.mxu0 0
  %968 = vmatmul.mubr.bf16.gmra.mrb[0].mxu0 %v933
  %v969 = vpop.f32.mrb[0].mxu0
  %v970 = vadd.f32 %v786, %v969
  %v971 = vpop.f32.mrb[0].mxu0
  %v972 = vpop.f32.mrb[0].mxu0
  %v973 = vpop.f32.mrb[0].mxu0
  %974 = vdwg.mxu0
  %v975 = vtanh.pop %v970
  %v976 = vpack.c.bf16 %v975, %v975
  %v978 = vsel %vm878, %v976, 0
  %980 = vmatprep.subr.bf16.mxu0 0
  %981 = vmatpush1.bf16.msra.mxu0 %v870
  %982 = vmatprep.subr.bf16.mxu0 0
  %983 = vmatpush1.bf16.msra.mxu0 %v871
  %984 = vmatprep.subr.bf16.mxu0 0
  %985 = vmatpush1.bf16.msra.mxu0 %v872
  %986 = vmatprep.subr.bf16.mxu0 0
  %987 = vmatpush1.bf16.msra.mxu0 %v873
  %988 = vmatprep.subr.bf16.mxu0 0
  %989 = vmatpush1.bf16.msra.mxu0 0
  %990 = vmatprep.subr.bf16.mxu0 0
  %991 = vmatpush1.bf16.msra.mxu0 0
  %992 = vmatprep.subr.bf16.mxu0 0
  %993 = vmatpush1.bf16.msra.mxu0 0
  %994 = vmatprep.subr.bf16.mxu0 0
  %995 = vmatpush1.bf16.msra.mxu0 0
  %996 = vmatprep.subr.bf16.mxu0 0
  %997 = vmatpush1.bf16.msra.mxu0 0
  %998 = vmatprep.subr.bf16.mxu0 0
  %999 = vmatpush1.bf16.msra.mxu0 0
  %1000 = vmatprep.subr.bf16.mxu0 0
  %1001 = vmatpush1.bf16.msra.mxu0 0
  %1002 = vmatprep.subr.bf16.mxu0 0
  %1003 = vmatpush1.bf16.msra.mxu0 0
  %1004 = vmatprep.subr.bf16.mxu0 0
  %1005 = vmatpush1.bf16.msra.mxu0 0
  %1006 = vmatprep.subr.bf16.mxu0 0
  %1007 = vmatpush1.bf16.msra.mxu0 0
  %1008 = vmatprep.subr.bf16.mxu0 0
  %1009 = vmatpush1.bf16.msra.mxu0 0
  %1010 = vmatprep.subr.bf16.mxu0 0
  %1011 = vmatpush1.bf16.msra.mxu0 0
  %1012 = vmatprep.mubr.bf16.mxu0 0
  %1013 = vmatmul.mubr.bf16.gmra.mrb[0].mxu0 %v978
  %v1014 = vpop.f32.mrb[0].mxu0
  %v1015 = vadd.f32 %v852, %v1014
  %v1016 = vpop.f32.mrb[0].mxu0
  %v1017 = vpop.f32.mrb[0].mxu0
  %v1018 = vpop.f32.mrb[0].mxu0
  %1019 = vdwg.mxu0
  %v1020 = vmul.f32 %v917, 0.008333334
  %1022 = vrot.lane.b32.xlu0 %v1020, 96
  %v1023 = vpop.permute.xlu0 %1022
  %v1025 = vadd.f32 %v766, %v1023
  %v1026 = vmul.f32 %v1015, 0.025
  %1028 = vrot.lane.b32.xlu0 %v1026, 96
  %v1029 = vpop.permute.xlu0 %1028
  %v1031 = vadd.f32 %v1025, %v1029
  %v1032 = vpack.c.bf16 %v1031, %v1031
  %1034 = vrot.lane.b32.xlu0 %v1032, 32
  %v1035 = vpop.permute.xlu0 %1034
  %v1037 = vsel %vm172, %v1035, 0
  %1039 = vmatprep.subr.bf16.mxu0 0
  %1040 = vmatpush1.bf16.msra.mxu0 %v799
  %1041 = vmatprep.subr.bf16.mxu0 0
  %1042 = vmatpush1.bf16.msra.mxu0 %v800
  %1043 = vmatprep.subr.bf16.mxu0 0
  %1044 = vmatpush1.bf16.msra.mxu0 0
  %1045 = vmatprep.subr.bf16.mxu0 0
  %1046 = vmatpush1.bf16.msra.mxu0 0
  %1047 = vmatprep.subr.bf16.mxu0 0
  %1048 = vmatpush1.bf16.msra.mxu0 0
  %1049 = vmatprep.subr.bf16.mxu0 0
  %1050 = vmatpush1.bf16.msra.mxu0 0
  %1051 = vmatprep.subr.bf16.mxu0 0
  %1052 = vmatpush1.bf16.msra.mxu0 0
  %1053 = vmatprep.subr.bf16.mxu0 0
  %1054 = vmatpush1.bf16.msra.mxu0 0
  %1055 = vmatprep.subr.bf16.mxu0 0
  %1056 = vmatpush1.bf16.msra.mxu0 0
  %1057 = vmatprep.subr.bf16.mxu0 0
  %1058 = vmatpush1.bf16.msra.mxu0 0
  %1059 = vmatprep.subr.bf16.mxu0 0
  %1060 = vmatpush1.bf16.msra.mxu0 0
  %1061 = vmatprep.subr.bf16.mxu0 0
  %1062 = vmatpush1.bf16.msra.mxu0 0
  %1063 = vmatprep.subr.bf16.mxu0 0
  %1064 = vmatpush1.bf16.msra.mxu0 0
  %1065 = vmatprep.subr.bf16.mxu0 0
  %1066 = vmatpush1.bf16.msra.mxu0 0
  %1067 = vmatprep.subr.bf16.mxu0 0
  %1068 = vmatpush1.bf16.msra.mxu0 0
  %1069 = vmatprep.subr.bf16.mxu0 0
  %1070 = vmatpush1.bf16.msra.mxu0 0
  %1071 = vmatprep.mubr.bf16.mxu0 0
  %1072 = vmatmul.mubr.bf16.gmra.mrb[0].mxu0 %v1037
  %v1073 = vpop.f32.mrb[0].mxu0
  %v1074 = vadd.f32 %v786, %v1073
  %v1075 = vpop.f32.mrb[0].mxu0
  %v1076 = vpop.f32.mrb[0].mxu0
  %v1077 = vpop.f32.mrb[0].mxu0
  %1078 = vdwg.mxu0
  %v1079 = vtanh.pop %v1074
  %v1080 = vpack.c.bf16 %v1079, %v1079
  %v1082 = vsel %vm878, %v1080, 0
  %1084 = vmatprep.subr.bf16.mxu0 0
  %1085 = vmatpush1.bf16.msra.mxu0 %v870
  %1086 = vmatprep.subr.bf16.mxu0 0
  %1087 = vmatpush1.bf16.msra.mxu0 %v871
  %1088 = vmatprep.subr.bf16.mxu0 0
  %1089 = vmatpush1.bf16.msra.mxu0 %v872
  %1090 = vmatprep.subr.bf16.mxu0 0
  %1091 = vmatpush1.bf16.msra.mxu0 %v873
  %1092 = vmatprep.subr.bf16.mxu0 0
  %1093 = vmatpush1.bf16.msra.mxu0 0
  %1094 = vmatprep.subr.bf16.mxu0 0
  %1095 = vmatpush1.bf16.msra.mxu0 0
  %1096 = vmatprep.subr.bf16.mxu0 0
  %1097 = vmatpush1.bf16.msra.mxu0 0
  %1098 = vmatprep.subr.bf16.mxu0 0
  %1099 = vmatpush1.bf16.msra.mxu0 0
  %1100 = vmatprep.subr.bf16.mxu0 0
  %1101 = vmatpush1.bf16.msra.mxu0 0
  %1102 = vmatprep.subr.bf16.mxu0 0
  %1103 = vmatpush1.bf16.msra.mxu0 0
  %1104 = vmatprep.subr.bf16.mxu0 0
  %1105 = vmatpush1.bf16.msra.mxu0 0
  %1106 = vmatprep.subr.bf16.mxu0 0
  %1107 = vmatpush1.bf16.msra.mxu0 0
  %1108 = vmatprep.subr.bf16.mxu0 0
  %1109 = vmatpush1.bf16.msra.mxu0 0
  %1110 = vmatprep.subr.bf16.mxu0 0
  %1111 = vmatpush1.bf16.msra.mxu0 0
  %1112 = vmatprep.subr.bf16.mxu0 0
  %1113 = vmatpush1.bf16.msra.mxu0 0
  %1114 = vmatprep.subr.bf16.mxu0 0
  %1115 = vmatpush1.bf16.msra.mxu0 0
  %1116 = vmatprep.mubr.bf16.mxu0 0
  %1117 = vmatmul.mubr.bf16.gmra.mrb[0].mxu0 %v1082
  %v1118 = vpop.f32.mrb[0].mxu0
  %v1119 = vadd.f32 %v852, %v1118
  %v1120 = vpop.f32.mrb[0].mxu0
  %v1121 = vpop.f32.mrb[0].mxu0
  %v1122 = vpop.f32.mrb[0].mxu0
  %1123 = vdwg.mxu0
  %v1124 = vmul.f32 %v917, 0.108641975
  %1126 = vrot.lane.b32.xlu0 %v1124, 96
  %v1127 = vpop.permute.xlu0 %1126
  %v1129 = vadd.f32 %v766, %v1127
  %v1130 = vmul.f32 %v1015, -0.4148148
  %1132 = vrot.lane.b32.xlu0 %v1130, 96
  %v1133 = vpop.permute.xlu0 %1132
  %v1135 = vadd.f32 %v1129, %v1133
  %v1136 = vmul.f32 %v1119, 0.39506173
  %1138 = vrot.lane.b32.xlu0 %v1136, 96
  %v1139 = vpop.permute.xlu0 %1138
  %v1141 = vadd.f32 %v1135, %v1139
  %v1142 = vpack.c.bf16 %v1141, %v1141
  %1144 = vrot.lane.b32.xlu0 %v1142, 32
  %v1145 = vpop.permute.xlu0 %1144
  %v1147 = vsel %vm172, %v1145, 0
  %1149 = vmatprep.subr.bf16.mxu0 0
  %1150 = vmatpush1.bf16.msra.mxu0 %v799
  %1151 = vmatprep.subr.bf16.mxu0 0
  %1152 = vmatpush1.bf16.msra.mxu0 %v800
  %1153 = vmatprep.subr.bf16.mxu0 0
  %1154 = vmatpush1.bf16.msra.mxu0 0
  %1155 = vmatprep.subr.bf16.mxu0 0
  %1156 = vmatpush1.bf16.msra.mxu0 0
  %1157 = vmatprep.subr.bf16.mxu0 0
  %1158 = vmatpush1.bf16.msra.mxu0 0
  %1159 = vmatprep.subr.bf16.mxu0 0
  %1160 = vmatpush1.bf16.msra.mxu0 0
  %1161 = vmatprep.subr.bf16.mxu0 0
  %1162 = vmatpush1.bf16.msra.mxu0 0
  %1163 = vmatprep.subr.bf16.mxu0 0
  %1164 = vmatpush1.bf16.msra.mxu0 0
  %1165 = vmatprep.subr.bf16.mxu0 0
  %1166 = vmatpush1.bf16.msra.mxu0 0
  %1167 = vmatprep.subr.bf16.mxu0 0
  %1168 = vmatpush1.bf16.msra.mxu0 0
  %1169 = vmatprep.subr.bf16.mxu0 0
  %1170 = vmatpush1.bf16.msra.mxu0 0
  %1171 = vmatprep.subr.bf16.mxu0 0
  %1172 = vmatpush1.bf16.msra.mxu0 0
  %1173 = vmatprep.subr.bf16.mxu0 0
  %1174 = vmatpush1.bf16.msra.mxu0 0
  %1175 = vmatprep.subr.bf16.mxu0 0
  %1176 = vmatpush1.bf16.msra.mxu0 0
  %1177 = vmatprep.subr.bf16.mxu0 0
  %1178 = vmatpush1.bf16.msra.mxu0 0
  %1179 = vmatprep.subr.bf16.mxu0 0
  %1180 = vmatpush1.bf16.msra.mxu0 0
  %1181 = vmatprep.mubr.bf16.mxu0 0
  %1182 = vmatmul.mubr.bf16.gmra.mrb[0].mxu0 %v1147
  %v1183 = vpop.f32.mrb[0].mxu0
  %v1184 = vadd.f32 %v786, %v1183
  %v1185 = vpop.f32.mrb[0].mxu0
  %v1186 = vpop.f32.mrb[0].mxu0
  %v1187 = vpop.f32.mrb[0].mxu0
  %1188 = vdwg.mxu0
  %v1189 = vtanh.pop %v1184
  %v1190 = vpack.c.bf16 %v1189, %v1189
  %v1192 = vsel %vm878, %v1190, 0
  %1194 = vmatprep.subr.bf16.mxu0 0
  %1195 = vmatpush1.bf16.msra.mxu0 %v870
  %1196 = vmatprep.subr.bf16.mxu0 0
  %1197 = vmatpush1.bf16.msra.mxu0 %v871
  %1198 = vmatprep.subr.bf16.mxu0 0
  %1199 = vmatpush1.bf16.msra.mxu0 %v872
  %1200 = vmatprep.subr.bf16.mxu0 0
  %1201 = vmatpush1.bf16.msra.mxu0 %v873
  %1202 = vmatprep.subr.bf16.mxu0 0
  %1203 = vmatpush1.bf16.msra.mxu0 0
  %1204 = vmatprep.subr.bf16.mxu0 0
  %1205 = vmatpush1.bf16.msra.mxu0 0
  %1206 = vmatprep.subr.bf16.mxu0 0
  %1207 = vmatpush1.bf16.msra.mxu0 0
  %1208 = vmatprep.subr.bf16.mxu0 0
  %1209 = vmatpush1.bf16.msra.mxu0 0
  %1210 = vmatprep.subr.bf16.mxu0 0
  %1211 = vmatpush1.bf16.msra.mxu0 0
  %1212 = vmatprep.subr.bf16.mxu0 0
  %1213 = vmatpush1.bf16.msra.mxu0 0
  %1214 = vmatprep.subr.bf16.mxu0 0
  %1215 = vmatpush1.bf16.msra.mxu0 0
  %1216 = vmatprep.subr.bf16.mxu0 0
  %1217 = vmatpush1.bf16.msra.mxu0 0
  %1218 = vmatprep.subr.bf16.mxu0 0
  %1219 = vmatpush1.bf16.msra.mxu0 0
  %1220 = vmatprep.subr.bf16.mxu0 0
  %1221 = vmatpush1.bf16.msra.mxu0 0
  %1222 = vmatprep.subr.bf16.mxu0 0
  %1223 = vmatpush1.bf16.msra.mxu0 0
  %1224 = vmatprep.subr.bf16.mxu0 0
  %1225 = vmatpush1.bf16.msra.mxu0 0
  %1226 = vmatprep.mubr.bf16.mxu0 0
  %1227 = vmatmul.mubr.bf16.gmra.mrb[0].mxu0 %v1192
  %v1228 = vpop.f32.mrb[0].mxu0
  %v1229 = vadd.f32 %v852, %v1228
  %v1230 = vpop.f32.mrb[0].mxu0
  %v1231 = vpop.f32.mrb[0].mxu0
  %v1232 = vpop.f32.mrb[0].mxu0
  %1233 = vdwg.mxu0
  %v1234 = vmul.f32 %v917, 0.32806653
  %1236 = vrot.lane.b32.xlu0 %v1234, 96
  %v1237 = vpop.permute.xlu0 %1236
  %v1239 = vadd.f32 %v766, %v1237
  %v1240 = vmul.f32 %v1015, -1.2884215
  %1242 = vrot.lane.b32.xlu0 %v1240, 96
  %v1243 = vpop.permute.xlu0 %1242
  %v1245 = vadd.f32 %v1239, %v1243
  %v1246 = vmul.f32 %v1119, 1.0914326
  %1248 = vrot.lane.b32.xlu0 %v1246, 96
  %v1249 = vpop.permute.xlu0 %1248
  %v1251 = vadd.f32 %v1245, %v1249
  %v1252 = vmul.f32 %v1229, -0.032312147
  %1254 = vrot.lane.b32.xlu0 %v1252, 96
  %v1255 = vpop.permute.xlu0 %1254
  %v1257 = vadd.f32 %v1251, %v1255
  %v1258 = vpack.c.bf16 %v1257, %v1257
  %1260 = vrot.lane.b32.xlu0 %v1258, 32
  %v1261 = vpop.permute.xlu0 %1260
  %v1263 = vsel %vm172, %v1261, 0
  %1265 = vmatprep.subr.bf16.mxu0 0
  %1266 = vmatpush1.bf16.msra.mxu0 %v799
  %1267 = vmatprep.subr.bf16.mxu0 0
  %1268 = vmatpush1.bf16.msra.mxu0 %v800
  %1269 = vmatprep.subr.bf16.mxu0 0
  %1270 = vmatpush1.bf16.msra.mxu0 0
  %1271 = vmatprep.subr.bf16.mxu0 0
  %1272 = vmatpush1.bf16.msra.mxu0 0
  %1273 = vmatprep.subr.bf16.mxu0 0
  %1274 = vmatpush1.bf16.msra.mxu0 0
  %1275 = vmatprep.subr.bf16.mxu0 0
  %1276 = vmatpush1.bf16.msra.mxu0 0
  %1277 = vmatprep.subr.bf16.mxu0 0
  %1278 = vmatpush1.bf16.msra.mxu0 0
  %1279 = vmatprep.subr.bf16.mxu0 0
  %1280 = vmatpush1.bf16.msra.mxu0 0
  %1281 = vmatprep.subr.bf16.mxu0 0
  %1282 = vmatpush1.bf16.msra.mxu0 0
  %1283 = vmatprep.subr.bf16.mxu0 0
  %1284 = vmatpush1.bf16.msra.mxu0 0
  %1285 = vmatprep.subr.bf16.mxu0 0
  %1286 = vmatpush1.bf16.msra.mxu0 0
  %1287 = vmatprep.subr.bf16.mxu0 0
  %1288 = vmatpush1.bf16.msra.mxu0 0
  %1289 = vmatprep.subr.bf16.mxu0 0
  %1290 = vmatpush1.bf16.msra.mxu0 0
  %1291 = vmatprep.subr.bf16.mxu0 0
  %1292 = vmatpush1.bf16.msra.mxu0 0
  %1293 = vmatprep.subr.bf16.mxu0 0
  %1294 = vmatpush1.bf16.msra.mxu0 0
  %1295 = vmatprep.subr.bf16.mxu0 0
  %1296 = vmatpush1.bf16.msra.mxu0 0
  %1297 = vmatprep.mubr.bf16.mxu0 0
  %1298 = vmatmul.mubr.bf16.gmra.mrb[0].mxu0 %v1263
  %v1299 = vpop.f32.mrb[0].mxu0
  %v1300 = vadd.f32 %v786, %v1299
  %v1301 = vpop.f32.mrb[0].mxu0
  %v1302 = vpop.f32.mrb[0].mxu0
  %v1303 = vpop.f32.mrb[0].mxu0
  %1304 = vdwg.mxu0
  %v1305 = vtanh.pop %v1300
  %v1306 = vpack.c.bf16 %v1305, %v1305
  %v1308 = vsel %vm878, %v1306, 0
  %1310 = vmatprep.subr.bf16.mxu0 0
  %1311 = vmatpush1.bf16.msra.mxu0 %v870
  %1312 = vmatprep.subr.bf16.mxu0 0
  %1313 = vmatpush1.bf16.msra.mxu0 %v871
  %1314 = vmatprep.subr.bf16.mxu0 0
  %1315 = vmatpush1.bf16.msra.mxu0 %v872
  %1316 = vmatprep.subr.bf16.mxu0 0
  %1317 = vmatpush1.bf16.msra.mxu0 %v873
  %1318 = vmatprep.subr.bf16.mxu0 0
  %1319 = vmatpush1.bf16.msra.mxu0 0
  %1320 = vmatprep.subr.bf16.mxu0 0
  %1321 = vmatpush1.bf16.msra.mxu0 0
  %1322 = vmatprep.subr.bf16.mxu0 0
  %1323 = vmatpush1.bf16.msra.mxu0 0
  %1324 = vmatprep.subr.bf16.mxu0 0
  %1325 = vmatpush1.bf16.msra.mxu0 0
  %1326 = vmatprep.subr.bf16.mxu0 0
  %1327 = vmatpush1.bf16.msra.mxu0 0
  %1328 = vmatprep.subr.bf16.mxu0 0
  %1329 = vmatpush1.bf16.msra.mxu0 0
  %1330 = vmatprep.subr.bf16.mxu0 0
  %1331 = vmatpush1.bf16.msra.mxu0 0
  %1332 = vmatprep.subr.bf16.mxu0 0
  %1333 = vmatpush1.bf16.msra.mxu0 0
  %1334 = vmatprep.subr.bf16.mxu0 0
  %1335 = vmatpush1.bf16.msra.mxu0 0
  %1336 = vmatprep.subr.bf16.mxu0 0
  %1337 = vmatpush1.bf16.msra.mxu0 0
  %1338 = vmatprep.subr.bf16.mxu0 0
  %1339 = vmatpush1.bf16.msra.mxu0 0
  %1340 = vmatprep.subr.bf16.mxu0 0
  %1341 = vmatpush1.bf16.msra.mxu0 0
  %1342 = vmatprep.mubr.bf16.mxu0 0
  %1343 = vmatmul.mubr.bf16.gmra.mrb[0].mxu0 %v1308
  %v1344 = vpop.f32.mrb[0].mxu0
  %v1345 = vadd.f32 %v852, %v1344
  %v1346 = vpop.f32.mrb[0].mxu0
  %v1347 = vpop.f32.mrb[0].mxu0
  %v1348 = vpop.f32.mrb[0].mxu0
  %1349 = vdwg.mxu0
  %v1350 = vmul.f32 %v917, 0.3162528
  %1352 = vrot.lane.b32.xlu0 %v1350, 96
  %v1353 = vpop.permute.xlu0 %1352
  %v1355 = vadd.f32 %v766, %v1353
  %v1356 = vmul.f32 %v1015, -1.1952862
  %1358 = vrot.lane.b32.xlu0 %v1356, 96
  %v1359 = vpop.permute.xlu0 %1358
  %v1361 = vadd.f32 %v1355, %v1359
  %v1362 = vmul.f32 %v1119, 0.9896025
  %1364 = vrot.lane.b32.xlu0 %v1362, 96
  %v1365 = vpop.permute.xlu0 %1364
  %v1367 = vadd.f32 %v1361, %v1365
  %v1368 = vmul.f32 %v1229, 0.030934343
  %1370 = vrot.lane.b32.xlu0 %v1368, 96
  %v1371 = vpop.permute.xlu0 %1370
  %v1373 = vadd.f32 %v1367, %v1371
  %v1374 = vmul.f32 %v1345, -0.030392367
  %1376 = vrot.lane.b32.xlu0 %v1374, 96
  %v1377 = vpop.permute.xlu0 %1376
  %v1379 = vadd.f32 %v1373, %v1377
  %v1380 = vpack.c.bf16 %v1379, %v1379
  %1382 = vrot.lane.b32.xlu0 %v1380, 32
  %v1383 = vpop.permute.xlu0 %1382
  %v1385 = vsel %vm172, %v1383, 0
  %1387 = vmatprep.subr.bf16.mxu0 0
  %1388 = vmatpush1.bf16.msra.mxu0 %v799
  %1389 = vmatprep.subr.bf16.mxu0 0
  %1390 = vmatpush1.bf16.msra.mxu0 %v800
  %1391 = vmatprep.subr.bf16.mxu0 0
  %1392 = vmatpush1.bf16.msra.mxu0 0
  %1393 = vmatprep.subr.bf16.mxu0 0
  %1394 = vmatpush1.bf16.msra.mxu0 0
  %1395 = vmatprep.subr.bf16.mxu0 0
  %1396 = vmatpush1.bf16.msra.mxu0 0
  %1397 = vmatprep.subr.bf16.mxu0 0
  %1398 = vmatpush1.bf16.msra.mxu0 0
  %1399 = vmatprep.subr.bf16.mxu0 0
  %1400 = vmatpush1.bf16.msra.mxu0 0
  %1401 = vmatprep.subr.bf16.mxu0 0
  %1402 = vmatpush1.bf16.msra.mxu0 0
  %1403 = vmatprep.subr.bf16.mxu0 0
  %1404 = vmatpush1.bf16.msra.mxu0 0
  %1405 = vmatprep.subr.bf16.mxu0 0
  %1406 = vmatpush1.bf16.msra.mxu0 0
  %1407 = vmatprep.subr.bf16.mxu0 0
  %1408 = vmatpush1.bf16.msra.mxu0 0
  %1409 = vmatprep.subr.bf16.mxu0 0
  %1410 = vmatpush1.bf16.msra.mxu0 0
  %1411 = vmatprep.subr.bf16.mxu0 0
  %1412 = vmatpush1.bf16.msra.mxu0 0
  %1413 = vmatprep.subr.bf16.mxu0 0
  %1414 = vmatpush1.bf16.msra.mxu0 0
  %1415 = vmatprep.subr.bf16.mxu0 0
  %1416 = vmatpush1.bf16.msra.mxu0 0
  %1417 = vmatprep.subr.bf16.mxu0 0
  %1418 = vmatpush1.bf16.msra.mxu0 0
  %1419 = vmatprep.mubr.bf16.mxu0 0
  %1420 = vmatmul.mubr.bf16.gmra.mrb[0].mxu0 %v1385
  %v1421 = vpop.f32.mrb[0].mxu0
  %v1422 = vadd.f32 %v786, %v1421
  %v1423 = vpop.f32.mrb[0].mxu0
  %v1424 = vpop.f32.mrb[0].mxu0
  %v1425 = vpop.f32.mrb[0].mxu0
  %1426 = vdwg.mxu0
  %v1427 = vtanh.pop %v1422
  %v1428 = vpack.c.bf16 %v1427, %v1427
  %v1430 = vsel %vm878, %v1428, 0
  %1432 = vmatprep.subr.bf16.mxu0 0
  %1433 = vmatpush1.bf16.msra.mxu0 %v870
  %1434 = vmatprep.subr.bf16.mxu0 0
  %1435 = vmatpush1.bf16.msra.mxu0 %v871
  %1436 = vmatprep.subr.bf16.mxu0 0
  %1437 = vmatpush1.bf16.msra.mxu0 %v872
  %1438 = vmatprep.subr.bf16.mxu0 0
  %1439 = vmatpush1.bf16.msra.mxu0 %v873
  %1440 = vmatprep.subr.bf16.mxu0 0
  %1441 = vmatpush1.bf16.msra.mxu0 0
  %1442 = vmatprep.subr.bf16.mxu0 0
  %1443 = vmatpush1.bf16.msra.mxu0 0
  %1444 = vmatprep.subr.bf16.mxu0 0
  %1445 = vmatpush1.bf16.msra.mxu0 0
  %1446 = vmatprep.subr.bf16.mxu0 0
  %1447 = vmatpush1.bf16.msra.mxu0 0
  %1448 = vmatprep.subr.bf16.mxu0 0
  %1449 = vmatpush1.bf16.msra.mxu0 0
  %1450 = vmatprep.subr.bf16.mxu0 0
  %1451 = vmatpush1.bf16.msra.mxu0 0
  %1452 = vmatprep.subr.bf16.mxu0 0
  %1453 = vmatpush1.bf16.msra.mxu0 0
  %1454 = vmatprep.subr.bf16.mxu0 0
  %1455 = vmatpush1.bf16.msra.mxu0 0
  %1456 = vmatprep.subr.bf16.mxu0 0
  %1457 = vmatpush1.bf16.msra.mxu0 0
  %1458 = vmatprep.subr.bf16.mxu0 0
  %1459 = vmatpush1.bf16.msra.mxu0 0
  %1460 = vmatprep.subr.bf16.mxu0 0
  %1461 = vmatpush1.bf16.msra.mxu0 0
  %1462 = vmatprep.subr.bf16.mxu0 0
  %1463 = vmatpush1.bf16.msra.mxu0 0
  %1464 = vmatprep.mubr.bf16.mxu0 0
  %1465 = vmatmul.mubr.bf16.gmra.mrb[0].mxu0 %v1430
  %v1466 = vpop.f32.mrb[0].mxu0
  %v1467 = vadd.f32 %v852, %v1466
  %v1468 = vpop.f32.mrb[0].mxu0
  %v1469 = vpop.f32.mrb[0].mxu0
  %v1470 = vpop.f32.mrb[0].mxu0
  %1471 = vdwg.mxu0
  %v1472 = vmul.f32 %v917, 0.010127314
  %1474 = vrot.lane.b32.xlu0 %v1472, 96
  %v1475 = vpop.permute.xlu0 %1474
  %v1477 = vadd.f32 %v766, %v1475
  %v1478 = vmul.f32 %v1119, 0.049915146
  %1480 = vrot.lane.b32.xlu0 %v1478, 96
  %v1481 = vpop.permute.xlu0 %1480
  %v1483 = vadd.f32 %v1477, %v1481
  %v1484 = vmul.f32 %v1229, 0.07233796
  %1486 = vrot.lane.b32.xlu0 %v1484, 96
  %v1487 = vpop.permute.xlu0 %1486
  %v1489 = vadd.f32 %v1483, %v1487
  %v1490 = vmul.f32 %v1345, -0.035819575
  %1492 = vrot.lane.b32.xlu0 %v1490, 96
  %v1493 = vpop.permute.xlu0 %1492
  %v1495 = vadd.f32 %v1489, %v1493
  %v1496 = vmul.f32 %v1467, 0.014550265
  %1498 = vrot.lane.b32.xlu0 %v1496, 96
  %v1499 = vpop.permute.xlu0 %1498
  %v1501 = vadd.f32 %v1495, %v1499
  %v1502 = vpack.c.bf16 %v1501, %v1501
  %1504 = vrot.lane.b32.xlu0 %v1502, 32
  %v1505 = vpop.permute.xlu0 %1504
  %v1507 = vsel %vm172, %v1505, 0
  %1509 = vmatprep.subr.bf16.mxu0 0
  %1510 = vmatpush1.bf16.msra.mxu0 %v799
  %1511 = vmatprep.subr.bf16.mxu0 0
  %1512 = vmatpush1.bf16.msra.mxu0 %v800
  %1513 = vmatprep.subr.bf16.mxu0 0
  %1514 = vmatpush1.bf16.msra.mxu0 0
  %1515 = vmatprep.subr.bf16.mxu0 0
  %1516 = vmatpush1.bf16.msra.mxu0 0
  %1517 = vmatprep.subr.bf16.mxu0 0
  %1518 = vmatpush1.bf16.msra.mxu0 0
  %1519 = vmatprep.subr.bf16.mxu0 0
  %1520 = vmatpush1.bf16.msra.mxu0 0
  %1521 = vmatprep.subr.bf16.mxu0 0
  %1522 = vmatpush1.bf16.msra.mxu0 0
  %1523 = vmatprep.subr.bf16.mxu0 0
  %1524 = vmatpush1.bf16.msra.mxu0 0
  %1525 = vmatprep.subr.bf16.mxu0 0
  %1526 = vmatpush1.bf16.msra.mxu0 0
  %1527 = vmatprep.subr.bf16.mxu0 0
  %1528 = vmatpush1.bf16.msra.mxu0 0
  %1529 = vmatprep.subr.bf16.mxu0 0
  %1530 = vmatpush1.bf16.msra.mxu0 0
  %1531 = vmatprep.subr.bf16.mxu0 0
  %1532 = vmatpush1.bf16.msra.mxu0 0
  %1533 = vmatprep.subr.bf16.mxu0 0
  %1534 = vmatpush1.bf16.msra.mxu0 0
  %1535 = vmatprep.subr.bf16.mxu0 0
  %1536 = vmatpush1.bf16.msra.mxu0 0
  %1537 = vmatprep.subr.bf16.mxu0 0
  %1538 = vmatpush1.bf16.msra.mxu0 0
  %1539 = vmatprep.subr.bf16.mxu0 0
  %1540 = vmatpush1.bf16.msra.mxu0 0
  %1541 = vmatprep.mubr.bf16.mxu0 0
  %1542 = vmatmul.mubr.bf16.gmra.mrb[0].mxu0 %v1507
  %v1543 = vpop.f32.mrb[0].mxu0
  %v1544 = vadd.f32 %v786, %v1543
  %v1545 = vpop.f32.mrb[0].mxu0
  %v1546 = vpop.f32.mrb[0].mxu0
  %v1547 = vpop.f32.mrb[0].mxu0
  %1548 = vdwg.mxu0
  %v1549 = vtanh.pop %v1544
  %v1550 = vpack.c.bf16 %v1549, %v1549
  %v1552 = vsel %vm878, %v1550, 0
  %1554 = vmatprep.subr.bf16.mxu0 0
  %1555 = vmatpush1.bf16.msra.mxu0 %v870
  %1556 = vmatprep.subr.bf16.mxu0 0
  %1557 = vmatpush1.bf16.msra.mxu0 %v871
  %1558 = vmatprep.subr.bf16.mxu0 0
  %1559 = vmatpush1.bf16.msra.mxu0 %v872
  %1560 = vmatprep.subr.bf16.mxu0 0
  %1561 = vmatpush1.bf16.msra.mxu0 %v873
  %1562 = vmatprep.subr.bf16.mxu0 0
  %1563 = vmatpush1.bf16.msra.mxu0 0
  %1564 = vmatprep.subr.bf16.mxu0 0
  %1565 = vmatpush1.bf16.msra.mxu0 0
  %1566 = vmatprep.subr.bf16.mxu0 0
  %1567 = vmatpush1.bf16.msra.mxu0 0
  %1568 = vmatprep.subr.bf16.mxu0 0
  %1569 = vmatpush1.bf16.msra.mxu0 0
  %1570 = vmatprep.subr.bf16.mxu0 0
  %1571 = vmatpush1.bf16.msra.mxu0 0
  %1572 = vmatprep.subr.bf16.mxu0 0
  %1573 = vmatpush1.bf16.msra.mxu0 0
  %1574 = vmatprep.subr.bf16.mxu0 0
  %1575 = vmatpush1.bf16.msra.mxu0 0
  %1576 = vmatprep.subr.bf16.mxu0 0
  %1577 = vmatpush1.bf16.msra.mxu0 0
  %1578 = vmatprep.subr.bf16.mxu0 0
  %1579 = vmatpush1.bf16.msra.mxu0 0
  %1580 = vmatprep.subr.bf16.mxu0 0
  %1581 = vmatpush1.bf16.msra.mxu0 0
  %1582 = vmatprep.subr.bf16.mxu0 0
  %1583 = vmatpush1.bf16.msra.mxu0 0
  %1584 = vmatprep.subr.bf16.mxu0 0
  %1585 = vmatpush1.bf16.msra.mxu0 0
  %1586 = vmatprep.mubr.bf16.mxu0 0
  %1587 = vmatmul.mubr.bf16.gmra.mrb[0].mxu0 %v1552
  %v1588 = vpop.f32.mrb[0].mxu0
  %v1589 = vadd.f32 %v852, %v1588
  %v1590 = vpop.f32.mrb[0].mxu0
  %v1591 = vpop.f32.mrb[0].mxu0
  %v1592 = vpop.f32.mrb[0].mxu0
  %1593 = vdwg.mxu0
  %v1594 = vmul.f32 %v1589, 0.022222223
  %1596 = vrot.lane.b32.xlu0 %v1594, 96
  %v1597 = vpop.permute.xlu0 %1596
  %v1599 = vadd.f32 %v1501, %v1597
  %v1600 = vpack.c.bf16 %v1599, %v1599
  %1602 = vrot.lane.b32.xlu0 %v1600, 32
  %v1603 = vpop.permute.xlu0 %1602
  %v1605 = vsel %vm172, %v1603, 0
  %1607 = vmatprep.subr.bf16.mxu0 0
  %1608 = vmatpush1.bf16.msra.mxu0 %v799
  %1609 = vmatprep.subr.bf16.mxu0 0
  %1610 = vmatpush1.bf16.msra.mxu0 %v800
  %1611 = vmatprep.subr.bf16.mxu0 0
  %1612 = vmatpush1.bf16.msra.mxu0 0
  %1613 = vmatprep.subr.bf16.mxu0 0
  %1614 = vmatpush1.bf16.msra.mxu0 0
  %1615 = vmatprep.subr.bf16.mxu0 0
  %1616 = vmatpush1.bf16.msra.mxu0 0
  %1617 = vmatprep.subr.bf16.mxu0 0
  %1618 = vmatpush1.bf16.msra.mxu0 0
  %1619 = vmatprep.subr.bf16.mxu0 0
  %1620 = vmatpush1.bf16.msra.mxu0 0
  %1621 = vmatprep.subr.bf16.mxu0 0
  %1622 = vmatpush1.bf16.msra.mxu0 0
  %1623 = vmatprep.subr.bf16.mxu0 0
  %1624 = vmatpush1.bf16.msra.mxu0 0
  %1625 = vmatprep.subr.bf16.mxu0 0
  %1626 = vmatpush1.bf16.msra.mxu0 0
  %1627 = vmatprep.subr.bf16.mxu0 0
  %1628 = vmatpush1.bf16.msra.mxu0 0
  %1629 = vmatprep.subr.bf16.mxu0 0
  %1630 = vmatpush1.bf16.msra.mxu0 0
  %1631 = vmatprep.subr.bf16.mxu0 0
  %1632 = vmatpush1.bf16.msra.mxu0 0
  %1633 = vmatprep.subr.bf16.mxu0 0
  %1634 = vmatpush1.bf16.msra.mxu0 0
  %1635 = vmatprep.subr.bf16.mxu0 0
  %1636 = vmatpush1.bf16.msra.mxu0 0
  %1637 = vmatprep.subr.bf16.mxu0 0
  %1638 = vmatpush1.bf16.msra.mxu0 0
  %1639 = vmatprep.mubr.bf16.mxu0 0
  %1640 = vmatmul.mubr.bf16.gmra.mrb[0].mxu0 %v1605
  %v1641 = vpop.f32.mrb[0].mxu0
  %v1642 = vadd.f32 %v786, %v1641
  %v1643 = vpop.f32.mrb[0].mxu0
  %v1644 = vpop.f32.mrb[0].mxu0
  %v1645 = vpop.f32.mrb[0].mxu0
  %1646 = vdwg.mxu0
  %v1647 = vtanh.pop %v1642
  %v1648 = vpack.c.bf16 %v1647, %v1647
  %v1650 = vsel %vm878, %v1648, 0
  %1652 = vmatprep.subr.bf16.mxu0 0
  %1653 = vmatpush1.bf16.msra.mxu0 %v870
  %1654 = vmatprep.subr.bf16.mxu0 0
  %1655 = vmatpush1.bf16.msra.mxu0 %v871
  %1656 = vmatprep.subr.bf16.mxu0 0
  %1657 = vmatpush1.bf16.msra.mxu0 %v872
  %1658 = vmatprep.subr.bf16.mxu0 0
  %1659 = vmatpush1.bf16.msra.mxu0 %v873
  %1660 = vmatprep.subr.bf16.mxu0 0
  %1661 = vmatpush1.bf16.msra.mxu0 0
  %1662 = vmatprep.subr.bf16.mxu0 0
  %1663 = vmatpush1.bf16.msra.mxu0 0
  %1664 = vmatprep.subr.bf16.mxu0 0
  %1665 = vmatpush1.bf16.msra.mxu0 0
  %1666 = vmatprep.subr.bf16.mxu0 0
  %1667 = vmatpush1.bf16.msra.mxu0 0
  %1668 = vmatprep.subr.bf16.mxu0 0
  %1669 = vmatpush1.bf16.msra.mxu0 0
  %1670 = vmatprep.subr.bf16.mxu0 0
  %1671 = vmatpush1.bf16.msra.mxu0 0
  %1672 = vmatprep.subr.bf16.mxu0 0
  %1673 = vmatpush1.bf16.msra.mxu0 0
  %1674 = vmatprep.subr.bf16.mxu0 0
  %1675 = vmatpush1.bf16.msra.mxu0 0
  %1676 = vmatprep.subr.bf16.mxu0 0
  %1677 = vmatpush1.bf16.msra.mxu0 0
  %1678 = vmatprep.subr.bf16.mxu0 0
  %1679 = vmatpush1.bf16.msra.mxu0 0
  %1680 = vmatprep.subr.bf16.mxu0 0
  %1681 = vmatpush1.bf16.msra.mxu0 0
  %1682 = vmatprep.subr.bf16.mxu0 0
  %1683 = vmatpush1.bf16.msra.mxu0 0
  %1684 = vmatprep.mubr.bf16.mxu0 0
  %1685 = vmatmul.mubr.bf16.gmra.mrb[0].mxu0 %v1650
  %v1686 = vpop.f32.mrb[0].mxu0
  %v1687 = vadd.f32 %v852, %v1686
  %v1688 = vpop.f32.mrb[0].mxu0
  %v1689 = vpop.f32.mrb[0].mxu0
  %v1690 = vpop.f32.mrb[0].mxu0
  %1691 = vdwg.mxu0
  %v1692 = vmul.f32 %v1589, 0.008333334
  %1694 = vrot.lane.b32.xlu0 %v1692, 96
  %v1695 = vpop.permute.xlu0 %1694
  %v1697 = vadd.f32 %v1501, %v1695
  %v1698 = vmul.f32 %v1687, 0.025
  %1700 = vrot.lane.b32.xlu0 %v1698, 96
  %v1701 = vpop.permute.xlu0 %1700
  %v1703 = vadd.f32 %v1697, %v1701
  %v1704 = vpack.c.bf16 %v1703, %v1703
  %1706 = vrot.lane.b32.xlu0 %v1704, 32
  %v1707 = vpop.permute.xlu0 %1706
  %v1709 = vsel %vm172, %v1707, 0
  %1711 = vmatprep.subr.bf16.mxu0 0
  %1712 = vmatpush1.bf16.msra.mxu0 %v799
  %1713 = vmatprep.subr.bf16.mxu0 0
  %1714 = vmatpush1.bf16.msra.mxu0 %v800
  %1715 = vmatprep.subr.bf16.mxu0 0
  %1716 = vmatpush1.bf16.msra.mxu0 0
  %1717 = vmatprep.subr.bf16.mxu0 0
  %1718 = vmatpush1.bf16.msra.mxu0 0
  %1719 = vmatprep.subr.bf16.mxu0 0
  %1720 = vmatpush1.bf16.msra.mxu0 0
  %1721 = vmatprep.subr.bf16.mxu0 0
  %1722 = vmatpush1.bf16.msra.mxu0 0
  %1723 = vmatprep.subr.bf16.mxu0 0
  %1724 = vmatpush1.bf16.msra.mxu0 0
  %1725 = vmatprep.subr.bf16.mxu0 0
  %1726 = vmatpush1.bf16.msra.mxu0 0
  %1727 = vmatprep.subr.bf16.mxu0 0
  %1728 = vmatpush1.bf16.msra.mxu0 0
  %1729 = vmatprep.subr.bf16.mxu0 0
  %1730 = vmatpush1.bf16.msra.mxu0 0
  %1731 = vmatprep.subr.bf16.mxu0 0
  %1732 = vmatpush1.bf16.msra.mxu0 0
  %1733 = vmatprep.subr.bf16.mxu0 0
  %1734 = vmatpush1.bf16.msra.mxu0 0
  %1735 = vmatprep.subr.bf16.mxu0 0
  %1736 = vmatpush1.bf16.msra.mxu0 0
  %1737 = vmatprep.subr.bf16.mxu0 0
  %1738 = vmatpush1.bf16.msra.mxu0 0
  %1739 = vmatprep.subr.bf16.mxu0 0
  %1740 = vmatpush1.bf16.msra.mxu0 0
  %1741 = vmatprep.subr.bf16.mxu0 0
  %1742 = vmatpush1.bf16.msra.mxu0 0
  %1743 = vmatprep.mubr.bf16.mxu0 0
  %1744 = vmatmul.mubr.bf16.gmra.mrb[0].mxu0 %v1709
  %v1745 = vpop.f32.mrb[0].mxu0
  %v1746 = vadd.f32 %v786, %v1745
  %v1747 = vpop.f32.mrb[0].mxu0
  %v1748 = vpop.f32.mrb[0].mxu0
  %v1749 = vpop.f32.mrb[0].mxu0
  %1750 = vdwg.mxu0
  %v1751 = vtanh.pop %v1746
  %v1752 = vpack.c.bf16 %v1751, %v1751
  %v1754 = vsel %vm878, %v1752, 0
  %1756 = vmatprep.subr.bf16.mxu0 0
  %1757 = vmatpush1.bf16.msra.mxu0 %v870
  %1758 = vmatprep.subr.bf16.mxu0 0
  %1759 = vmatpush1.bf16.msra.mxu0 %v871
  %1760 = vmatprep.subr.bf16.mxu0 0
  %1761 = vmatpush1.bf16.msra.mxu0 %v872
  %1762 = vmatprep.subr.bf16.mxu0 0
  %1763 = vmatpush1.bf16.msra.mxu0 %v873
  %1764 = vmatprep.subr.bf16.mxu0 0
  %1765 = vmatpush1.bf16.msra.mxu0 0
  %1766 = vmatprep.subr.bf16.mxu0 0
  %1767 = vmatpush1.bf16.msra.mxu0 0
  %1768 = vmatprep.subr.bf16.mxu0 0
  %1769 = vmatpush1.bf16.msra.mxu0 0
  %1770 = vmatprep.subr.bf16.mxu0 0
  %1771 = vmatpush1.bf16.msra.mxu0 0
  %1772 = vmatprep.subr.bf16.mxu0 0
  %1773 = vmatpush1.bf16.msra.mxu0 0
  %1774 = vmatprep.subr.bf16.mxu0 0
  %1775 = vmatpush1.bf16.msra.mxu0 0
  %1776 = vmatprep.subr.bf16.mxu0 0
  %1777 = vmatpush1.bf16.msra.mxu0 0
  %1778 = vmatprep.subr.bf16.mxu0 0
  %1779 = vmatpush1.bf16.msra.mxu0 0
  %1780 = vmatprep.subr.bf16.mxu0 0
  %1781 = vmatpush1.bf16.msra.mxu0 0
  %1782 = vmatprep.subr.bf16.mxu0 0
  %1783 = vmatpush1.bf16.msra.mxu0 0
  %1784 = vmatprep.subr.bf16.mxu0 0
  %1785 = vmatpush1.bf16.msra.mxu0 0
  %1786 = vmatprep.subr.bf16.mxu0 0
  %1787 = vmatpush1.bf16.msra.mxu0 0
  %1788 = vmatprep.mubr.bf16.mxu0 0
  %1789 = vmatmul.mubr.bf16.gmra.mrb[0].mxu0 %v1754
  %v1790 = vpop.f32.mrb[0].mxu0
  %v1791 = vadd.f32 %v852, %v1790
  %v1792 = vpop.f32.mrb[0].mxu0
  %v1793 = vpop.f32.mrb[0].mxu0
  %v1794 = vpop.f32.mrb[0].mxu0
  %1795 = vdwg.mxu0
  %v1796 = vmul.f32 %v1589, 0.108641975
  %1798 = vrot.lane.b32.xlu0 %v1796, 96
  %v1799 = vpop.permute.xlu0 %1798
  %v1801 = vadd.f32 %v1501, %v1799
  %v1802 = vmul.f32 %v1687, -0.4148148
  %1804 = vrot.lane.b32.xlu0 %v1802, 96
  %v1805 = vpop.permute.xlu0 %1804
  %v1807 = vadd.f32 %v1801, %v1805
  %v1808 = vmul.f32 %v1791, 0.39506173
  %1810 = vrot.lane.b32.xlu0 %v1808, 96
  %v1811 = vpop.permute.xlu0 %1810
  %v1813 = vadd.f32 %v1807, %v1811
  %v1814 = vpack.c.bf16 %v1813, %v1813
  %1816 = vrot.lane.b32.xlu0 %v1814, 32
  %v1817 = vpop.permute.xlu0 %1816
  %v1819 = vsel %vm172, %v1817, 0
  %1821 = vmatprep.subr.bf16.mxu0 0
  %1822 = vmatpush1.bf16.msra.mxu0 %v799
  %1823 = vmatprep.subr.bf16.mxu0 0
  %1824 = vmatpush1.bf16.msra.mxu0 %v800
  %1825 = vmatprep.subr.bf16.mxu0 0
  %1826 = vmatpush1.bf16.msra.mxu0 0
  %1827 = vmatprep.subr.bf16.mxu0 0
  %1828 = vmatpush1.bf16.msra.mxu0 0
  %1829 = vmatprep.subr.bf16.mxu0 0
  %1830 = vmatpush1.bf16.msra.mxu0 0
  %1831 = vmatprep.subr.bf16.mxu0 0
  %1832 = vmatpush1.bf16.msra.mxu0 0
  %1833 = vmatprep.subr.bf16.mxu0 0
  %1834 = vmatpush1.bf16.msra.mxu0 0
  %1835 = vmatprep.subr.bf16.mxu0 0
  %1836 = vmatpush1.bf16.msra.mxu0 0
  %1837 = vmatprep.subr.bf16.mxu0 0
  %1838 = vmatpush1.bf16.msra.mxu0 0
  %1839 = vmatprep.subr.bf16.mxu0 0
  %1840 = vmatpush1.bf16.msra.mxu0 0
  %1841 = vmatprep.subr.bf16.mxu0 0
  %1842 = vmatpush1.bf16.msra.mxu0 0
  %1843 = vmatprep.subr.bf16.mxu0 0
  %1844 = vmatpush1.bf16.msra.mxu0 0
  %1845 = vmatprep.subr.bf16.mxu0 0
  %1846 = vmatpush1.bf16.msra.mxu0 0
  %1847 = vmatprep.subr.bf16.mxu0 0
  %1848 = vmatpush1.bf16.msra.mxu0 0
  %1849 = vmatprep.subr.bf16.mxu0 0
  %1850 = vmatpush1.bf16.msra.mxu0 0
  %1851 = vmatprep.subr.bf16.mxu0 0
  %1852 = vmatpush1.bf16.msra.mxu0 0
  %1853 = vmatprep.mubr.bf16.mxu0 0
  %1854 = vmatmul.mubr.bf16.gmra.mrb[0].mxu0 %v1819
  %v1855 = vpop.f32.mrb[0].mxu0
  %v1856 = vadd.f32 %v786, %v1855
  %v1857 = vpop.f32.mrb[0].mxu0
  %v1858 = vpop.f32.mrb[0].mxu0
  %v1859 = vpop.f32.mrb[0].mxu0
  %1860 = vdwg.mxu0
  %v1861 = vtanh.pop %v1856
  %v1862 = vpack.c.bf16 %v1861, %v1861
  %v1864 = vsel %vm878, %v1862, 0
  %1866 = vmatprep.subr.bf16.mxu0 0
  %1867 = vmatpush1.bf16.msra.mxu0 %v870
  %1868 = vmatprep.subr.bf16.mxu0 0
  %1869 = vmatpush1.bf16.msra.mxu0 %v871
  %1870 = vmatprep.subr.bf16.mxu0 0
  %1871 = vmatpush1.bf16.msra.mxu0 %v872
  %1872 = vmatprep.subr.bf16.mxu0 0
  %1873 = vmatpush1.bf16.msra.mxu0 %v873
  %1874 = vmatprep.subr.bf16.mxu0 0
  %1875 = vmatpush1.bf16.msra.mxu0 0
  %1876 = vmatprep.subr.bf16.mxu0 0
  %1877 = vmatpush1.bf16.msra.mxu0 0
  %1878 = vmatprep.subr.bf16.mxu0 0
  %1879 = vmatpush1.bf16.msra.mxu0 0
  %1880 = vmatprep.subr.bf16.mxu0 0
  %1881 = vmatpush1.bf16.msra.mxu0 0
  %1882 = vmatprep.subr.bf16.mxu0 0
  %1883 = vmatpush1.bf16.msra.mxu0 0
  %1884 = vmatprep.subr.bf16.mxu0 0
  %1885 = vmatpush1.bf16.msra.mxu0 0
  %1886 = vmatprep.subr.bf16.mxu0 0
  %1887 = vmatpush1.bf16.msra.mxu0 0
  %1888 = vmatprep.subr.bf16.mxu0 0
  %1889 = vmatpush1.bf16.msra.mxu0 0
  %1890 = vmatprep.subr.bf16.mxu0 0
  %1891 = vmatpush1.bf16.msra.mxu0 0
  %1892 = vmatprep.subr.bf16.mxu0 0
  %1893 = vmatpush1.bf16.msra.mxu0 0
  %1894 = vmatprep.subr.bf16.mxu0 0
  %1895 = vmatpush1.bf16.msra.mxu0 0
  %1896 = vmatprep.subr.bf16.mxu0 0
  %1897 = vmatpush1.bf16.msra.mxu0 0
  %1898 = vmatprep.mubr.bf16.mxu0 0
  %1899 = vmatmul.mubr.bf16.gmra.mrb[0].mxu0 %v1864
  %v1900 = vpop.f32.mrb[0].mxu0
  %v1901 = vadd.f32 %v852, %v1900
  %v1902 = vpop.f32.mrb[0].mxu0
  %v1903 = vpop.f32.mrb[0].mxu0
  %v1904 = vpop.f32.mrb[0].mxu0
  %1905 = vdwg.mxu0
  %v1906 = vmul.f32 %v1589, 0.32806653
  %1908 = vrot.lane.b32.xlu0 %v1906, 96
  %v1909 = vpop.permute.xlu0 %1908
  %v1911 = vadd.f32 %v1501, %v1909
  %v1912 = vmul.f32 %v1687, -1.2884215
  %1914 = vrot.lane.b32.xlu0 %v1912, 96
  %v1915 = vpop.permute.xlu0 %1914
  %v1917 = vadd.f32 %v1911, %v1915
  %v1918 = vmul.f32 %v1791, 1.0914326
  %1920 = vrot.lane.b32.xlu0 %v1918, 96
  %v1921 = vpop.permute.xlu0 %1920
  %v1923 = vadd.f32 %v1917, %v1921
  %v1924 = vmul.f32 %v1901, -0.032312147
  %1926 = vrot.lane.b32.xlu0 %v1924, 96
  %v1927 = vpop.permute.xlu0 %1926
  %v1929 = vadd.f32 %v1923, %v1927
  %v1930 = vpack.c.bf16 %v1929, %v1929
  %1932 = vrot.lane.b32.xlu0 %v1930, 32
  %v1933 = vpop.permute.xlu0 %1932
  %v1935 = vsel %vm172, %v1933, 0
  %1937 = vmatprep.subr.bf16.mxu0 0
  %1938 = vmatpush1.bf16.msra.mxu0 %v799
  %1939 = vmatprep.subr.bf16.mxu0 0
  %1940 = vmatpush1.bf16.msra.mxu0 %v800
  %1941 = vmatprep.subr.bf16.mxu0 0
  %1942 = vmatpush1.bf16.msra.mxu0 0
  %1943 = vmatprep.subr.bf16.mxu0 0
  %1944 = vmatpush1.bf16.msra.mxu0 0
  %1945 = vmatprep.subr.bf16.mxu0 0
  %1946 = vmatpush1.bf16.msra.mxu0 0
  %1947 = vmatprep.subr.bf16.mxu0 0
  %1948 = vmatpush1.bf16.msra.mxu0 0
  %1949 = vmatprep.subr.bf16.mxu0 0
  %1950 = vmatpush1.bf16.msra.mxu0 0
  %1951 = vmatprep.subr.bf16.mxu0 0
  %1952 = vmatpush1.bf16.msra.mxu0 0
  %1953 = vmatprep.subr.bf16.mxu0 0
  %1954 = vmatpush1.bf16.msra.mxu0 0
  %1955 = vmatprep.subr.bf16.mxu0 0
  %1956 = vmatpush1.bf16.msra.mxu0 0
  %1957 = vmatprep.subr.bf16.mxu0 0
  %1958 = vmatpush1.bf16.msra.mxu0 0
  %1959 = vmatprep.subr.bf16.mxu0 0
  %1960 = vmatpush1.bf16.msra.mxu0 0
  %1961 = vmatprep.subr.bf16.mxu0 0
  %1962 = vmatpush1.bf16.msra.mxu0 0
  %1963 = vmatprep.subr.bf16.mxu0 0
  %1964 = vmatpush1.bf16.msra.mxu0 0
  %1965 = vmatprep.subr.bf16.mxu0 0
  %1966 = vmatpush1.bf16.msra.mxu0 0
  %1967 = vmatprep.subr.bf16.mxu0 0
  %1968 = vmatpush1.bf16.msra.mxu0 0
  %1969 = vmatprep.mubr.bf16.mxu0 0
  %1970 = vmatmul.mubr.bf16.gmra.mrb[0].mxu0 %v1935
  %v1971 = vpop.f32.mrb[0].mxu0
  %v1972 = vadd.f32 %v786, %v1971
  %v1973 = vpop.f32.mrb[0].mxu0
  %v1974 = vpop.f32.mrb[0].mxu0
  %v1975 = vpop.f32.mrb[0].mxu0
  %1976 = vdwg.mxu0
  %v1977 = vtanh.pop %v1972
  %v1978 = vpack.c.bf16 %v1977, %v1977
  %v1980 = vsel %vm878, %v1978, 0
  %1982 = vmatprep.subr.bf16.mxu0 0
  %1983 = vmatpush1.bf16.msra.mxu0 %v870
  %1984 = vmatprep.subr.bf16.mxu0 0
  %1985 = vmatpush1.bf16.msra.mxu0 %v871
  %1986 = vmatprep.subr.bf16.mxu0 0
  %1987 = vmatpush1.bf16.msra.mxu0 %v872
  %1988 = vmatprep.subr.bf16.mxu0 0
  %1989 = vmatpush1.bf16.msra.mxu0 %v873
  %1990 = vmatprep.subr.bf16.mxu0 0
  %1991 = vmatpush1.bf16.msra.mxu0 0
  %1992 = vmatprep.subr.bf16.mxu0 0
  %1993 = vmatpush1.bf16.msra.mxu0 0
  %1994 = vmatprep.subr.bf16.mxu0 0
  %1995 = vmatpush1.bf16.msra.mxu0 0
  %1996 = vmatprep.subr.bf16.mxu0 0
  %1997 = vmatpush1.bf16.msra.mxu0 0
  %1998 = vmatprep.subr.bf16.mxu0 0
  %1999 = vmatpush1.bf16.msra.mxu0 0
  %2000 = vmatprep.subr.bf16.mxu0 0
  %2001 = vmatpush1.bf16.msra.mxu0 0
  %2002 = vmatprep.subr.bf16.mxu0 0
  %2003 = vmatpush1.bf16.msra.mxu0 0
  %2004 = vmatprep.subr.bf16.mxu0 0
  %2005 = vmatpush1.bf16.msra.mxu0 0
  %2006 = vmatprep.subr.bf16.mxu0 0
  %2007 = vmatpush1.bf16.msra.mxu0 0
  %2008 = vmatprep.subr.bf16.mxu0 0
  %2009 = vmatpush1.bf16.msra.mxu0 0
  %2010 = vmatprep.subr.bf16.mxu0 0
  %2011 = vmatpush1.bf16.msra.mxu0 0
  %2012 = vmatprep.subr.bf16.mxu0 0
  %2013 = vmatpush1.bf16.msra.mxu0 0
  %2014 = vmatprep.mubr.bf16.mxu0 0
  %2015 = vmatmul.mubr.bf16.gmra.mrb[0].mxu0 %v1980
  %v2016 = vpop.f32.mrb[0].mxu0
  %v2017 = vadd.f32 %v852, %v2016
  %v2018 = vpop.f32.mrb[0].mxu0
  %v2019 = vpop.f32.mrb[0].mxu0
  %v2020 = vpop.f32.mrb[0].mxu0
  %2021 = vdwg.mxu0
  %v2022 = vmul.f32 %v1589, 0.3162528
  %2024 = vrot.lane.b32.xlu0 %v2022, 96
  %v2025 = vpop.permute.xlu0 %2024
  %v2027 = vadd.f32 %v1501, %v2025
  %v2028 = vmul.f32 %v1687, -1.1952862
  %2030 = vrot.lane.b32.xlu0 %v2028, 96
  %v2031 = vpop.permute.xlu0 %2030
  %v2033 = vadd.f32 %v2027, %v2031
  %v2034 = vmul.f32 %v1791, 0.9896025
  %2036 = vrot.lane.b32.xlu0 %v2034, 96
  %v2037 = vpop.permute.xlu0 %2036
  %v2039 = vadd.f32 %v2033, %v2037
  %v2040 = vmul.f32 %v1901, 0.030934343
  %2042 = vrot.lane.b32.xlu0 %v2040, 96
  %v2043 = vpop.permute.xlu0 %2042
  %v2045 = vadd.f32 %v2039, %v2043
  %v2046 = vmul.f32 %v2017, -0.030392367
  %2048 = vrot.lane.b32.xlu0 %v2046, 96
  %v2049 = vpop.permute.xlu0 %2048
  %v2051 = vadd.f32 %v2045, %v2049
  %v2052 = vpack.c.bf16 %v2051, %v2051
  %2054 = vrot.lane.b32.xlu0 %v2052, 32
  %v2055 = vpop.permute.xlu0 %2054
  %v2057 = vsel %vm172, %v2055, 0
  %2059 = vmatprep.subr.bf16.mxu0 0
  %2060 = vmatpush1.bf16.msra.mxu0 %v799
  %2061 = vmatprep.subr.bf16.mxu0 0
  %2062 = vmatpush1.bf16.msra.mxu0 %v800
  %2063 = vmatprep.subr.bf16.mxu0 0
  %2064 = vmatpush1.bf16.msra.mxu0 0
  %2065 = vmatprep.subr.bf16.mxu0 0
  %2066 = vmatpush1.bf16.msra.mxu0 0
  %2067 = vmatprep.subr.bf16.mxu0 0
  %2068 = vmatpush1.bf16.msra.mxu0 0
  %2069 = vmatprep.subr.bf16.mxu0 0
  %2070 = vmatpush1.bf16.msra.mxu0 0
  %2071 = vmatprep.subr.bf16.mxu0 0
  %2072 = vmatpush1.bf16.msra.mxu0 0
  %2073 = vmatprep.subr.bf16.mxu0 0
  %2074 = vmatpush1.bf16.msra.mxu0 0
  %2075 = vmatprep.subr.bf16.mxu0 0
  %2076 = vmatpush1.bf16.msra.mxu0 0
  %2077 = vmatprep.subr.bf16.mxu0 0
  %2078 = vmatpush1.bf16.msra.mxu0 0
  %2079 = vmatprep.subr.bf16.mxu0 0
  %2080 = vmatpush1.bf16.msra.mxu0 0
  %2081 = vmatprep.subr.bf16.mxu0 0
  %2082 = vmatpush1.bf16.msra.mxu0 0
  %2083 = vmatprep.subr.bf16.mxu0 0
  %2084 = vmatpush1.bf16.msra.mxu0 0
  %2085 = vmatprep.subr.bf16.mxu0 0
  %2086 = vmatpush1.bf16.msra.mxu0 0
  %2087 = vmatprep.subr.bf16.mxu0 0
  %2088 = vmatpush1.bf16.msra.mxu0 0
  %2089 = vmatprep.subr.bf16.mxu0 0
  %2090 = vmatpush1.bf16.msra.mxu0 0
  %2091 = vmatprep.mubr.bf16.mxu0 0
  %2092 = vmatmul.mubr.bf16.gmra.mrb[0].mxu0 %v2057
  %v2093 = vpop.f32.mrb[0].mxu0
  %v2094 = vadd.f32 %v786, %v2093
  %v2095 = vpop.f32.mrb[0].mxu0
  %v2096 = vpop.f32.mrb[0].mxu0
  %v2097 = vpop.f32.mrb[0].mxu0
  %2098 = vdwg.mxu0
  %v2099 = vtanh.pop %v2094
  %v2100 = vpack.c.bf16 %v2099, %v2099
  %v2102 = vsel %vm878, %v2100, 0
  %2104 = vmatprep.subr.bf16.mxu0 0
  %2105 = vmatpush1.bf16.msra.mxu0 %v870
  %2106 = vmatprep.subr.bf16.mxu0 0
  %2107 = vmatpush1.bf16.msra.mxu0 %v871
  %2108 = vmatprep.subr.bf16.mxu0 0
  %2109 = vmatpush1.bf16.msra.mxu0 %v872
  %2110 = vmatprep.subr.bf16.mxu0 0
  %2111 = vmatpush1.bf16.msra.mxu0 %v873
  %2112 = vmatprep.subr.bf16.mxu0 0
  %2113 = vmatpush1.bf16.msra.mxu0 0
  %2114 = vmatprep.subr.bf16.mxu0 0
  %2115 = vmatpush1.bf16.msra.mxu0 0
  %2116 = vmatprep.subr.bf16.mxu0 0
  %2117 = vmatpush1.bf16.msra.mxu0 0
  %2118 = vmatprep.subr.bf16.mxu0 0
  %2119 = vmatpush1.bf16.msra.mxu0 0
  %2120 = vmatprep.subr.bf16.mxu0 0
  %2121 = vmatpush1.bf16.msra.mxu0 0
  %2122 = vmatprep.subr.bf16.mxu0 0
  %2123 = vmatpush1.bf16.msra.mxu0 0
  %2124 = vmatprep.subr.bf16.mxu0 0
  %2125 = vmatpush1.bf16.msra.mxu0 0
  %2126 = vmatprep.subr.bf16.mxu0 0
  %2127 = vmatpush1.bf16.msra.mxu0 0
  %2128 = vmatprep.subr.bf16.mxu0 0
  %2129 = vmatpush1.bf16.msra.mxu0 0
  %2130 = vmatprep.subr.bf16.mxu0 0
  %2131 = vmatpush1.bf16.msra.mxu0 0
  %2132 = vmatprep.subr.bf16.mxu0 0
  %2133 = vmatpush1.bf16.msra.mxu0 0
  %2134 = vmatprep.subr.bf16.mxu0 0
  %2135 = vmatpush1.bf16.msra.mxu0 0
  %2136 = vmatprep.mubr.bf16.mxu0 0
  %2137 = vmatmul.mubr.bf16.gmra.mrb[0].mxu0 %v2102
  %v2138 = vpop.f32.mrb[0].mxu0
  %v2139 = vadd.f32 %v852, %v2138
  %v2140 = vpop.f32.mrb[0].mxu0
  %v2141 = vpop.f32.mrb[0].mxu0
  %v2142 = vpop.f32.mrb[0].mxu0
  %2143 = vdwg.mxu0
  %v2144 = vmul.f32 %v1589, 0.010127314
  %2146 = vrot.lane.b32.xlu0 %v2144, 96
  %v2147 = vpop.permute.xlu0 %2146
  %v2149 = vadd.f32 %v1501, %v2147
  %v2150 = vmul.f32 %v1791, 0.049915146
  %2152 = vrot.lane.b32.xlu0 %v2150, 96
  %v2153 = vpop.permute.xlu0 %2152
  %v2155 = vadd.f32 %v2149, %v2153
  %v2156 = vmul.f32 %v1901, 0.07233796
  %2158 = vrot.lane.b32.xlu0 %v2156, 96
  %v2159 = vpop.permute.xlu0 %2158
  %v2161 = vadd.f32 %v2155, %v2159
  %v2162 = vmul.f32 %v2017, -0.035819575
  %2164 = vrot.lane.b32.xlu0 %v2162, 96
  %v2165 = vpop.permute.xlu0 %2164
  %v2167 = vadd.f32 %v2161, %v2165
  %v2168 = vmul.f32 %v2139, 0.014550265
  %2170 = vrot.lane.b32.xlu0 %v2168, 96
  %v2171 = vpop.permute.xlu0 %2170
  %v2173 = vadd.f32 %v2167, %v2171
  %v2174 = vpack.c.bf16 %v2173, %v2173
  %2176 = vrot.lane.b32.xlu0 %v2174, 32
  %v2177 = vpop.permute.xlu0 %2176
  %v2179 = vsel %vm172, %v2177, 0
  %2181 = vmatprep.subr.bf16.mxu0 0
  %2182 = vmatpush1.bf16.msra.mxu0 %v799
  %2183 = vmatprep.subr.bf16.mxu0 0
  %2184 = vmatpush1.bf16.msra.mxu0 %v800
  %2185 = vmatprep.subr.bf16.mxu0 0
  %2186 = vmatpush1.bf16.msra.mxu0 0
  %2187 = vmatprep.subr.bf16.mxu0 0
  %2188 = vmatpush1.bf16.msra.mxu0 0
  %2189 = vmatprep.subr.bf16.mxu0 0
  %2190 = vmatpush1.bf16.msra.mxu0 0
  %2191 = vmatprep.subr.bf16.mxu0 0
  %2192 = vmatpush1.bf16.msra.mxu0 0
  %2193 = vmatprep.subr.bf16.mxu0 0
  %2194 = vmatpush1.bf16.msra.mxu0 0
  %2195 = vmatprep.subr.bf16.mxu0 0
  %2196 = vmatpush1.bf16.msra.mxu0 0
  %2197 = vmatprep.subr.bf16.mxu0 0
  %2198 = vmatpush1.bf16.msra.mxu0 0
  %2199 = vmatprep.subr.bf16.mxu0 0
  %2200 = vmatpush1.bf16.msra.mxu0 0
  %2201 = vmatprep.subr.bf16.mxu0 0
  %2202 = vmatpush1.bf16.msra.mxu0 0
  %2203 = vmatprep.subr.bf16.mxu0 0
  %2204 = vmatpush1.bf16.msra.mxu0 0
  %2205 = vmatprep.subr.bf16.mxu0 0
  %2206 = vmatpush1.bf16.msra.mxu0 0
  %2207 = vmatprep.subr.bf16.mxu0 0
  %2208 = vmatpush1.bf16.msra.mxu0 0
  %2209 = vmatprep.subr.bf16.mxu0 0
  %2210 = vmatpush1.bf16.msra.mxu0 0
  %2211 = vmatprep.subr.bf16.mxu0 0
  %2212 = vmatpush1.bf16.msra.mxu0 0
  %2213 = vmatprep.mubr.bf16.mxu0 0
  %2214 = vmatmul.mubr.bf16.gmra.mrb[0].mxu0 %v2179
  %v2215 = vpop.f32.mrb[0].mxu0
  %v2216 = vadd.f32 %v786, %v2215
  %v2217 = vpop.f32.mrb[0].mxu0
  %v2218 = vpop.f32.mrb[0].mxu0
  %v2219 = vpop.f32.mrb[0].mxu0
  %2220 = vdwg.mxu0
  %v2221 = vtanh.pop %v2216
  %v2222 = vpack.c.bf16 %v2221, %v2221
  %v2224 = vsel %vm878, %v2222, 0
  %2226 = vmatprep.subr.bf16.mxu0 0
  %2227 = vmatpush1.bf16.msra.mxu0 %v870
  %2228 = vmatprep.subr.bf16.mxu0 0
  %2229 = vmatpush1.bf16.msra.mxu0 %v871
  %2230 = vmatprep.subr.bf16.mxu0 0
  %2231 = vmatpush1.bf16.msra.mxu0 %v872
  %2232 = vmatprep.subr.bf16.mxu0 0
  %2233 = vmatpush1.bf16.msra.mxu0 %v873
  %2234 = vmatprep.subr.bf16.mxu0 0
  %2235 = vmatpush1.bf16.msra.mxu0 0
  %2236 = vmatprep.subr.bf16.mxu0 0
  %2237 = vmatpush1.bf16.msra.mxu0 0
  %2238 = vmatprep.subr.bf16.mxu0 0
  %2239 = vmatpush1.bf16.msra.mxu0 0
  %2240 = vmatprep.subr.bf16.mxu0 0
  %2241 = vmatpush1.bf16.msra.mxu0 0
  %2242 = vmatprep.subr.bf16.mxu0 0
  %2243 = vmatpush1.bf16.msra.mxu0 0
  %2244 = vmatprep.subr.bf16.mxu0 0
  %2245 = vmatpush1.bf16.msra.mxu0 0
  %2246 = vmatprep.subr.bf16.mxu0 0
  %2247 = vmatpush1.bf16.msra.mxu0 0
  %2248 = vmatprep.subr.bf16.mxu0 0
  %2249 = vmatpush1.bf16.msra.mxu0 0
  %2250 = vmatprep.subr.bf16.mxu0 0
  %2251 = vmatpush1.bf16.msra.mxu0 0
  %2252 = vmatprep.subr.bf16.mxu0 0
  %2253 = vmatpush1.bf16.msra.mxu0 0
  %2254 = vmatprep.subr.bf16.mxu0 0
  %2255 = vmatpush1.bf16.msra.mxu0 0
  %2256 = vmatprep.subr.bf16.mxu0 0
  %2257 = vmatpush1.bf16.msra.mxu0 0
  %2258 = vmatprep.mubr.bf16.mxu0 0
  %2259 = vmatmul.mubr.bf16.gmra.mrb[0].mxu0 %v2224
  %v2260 = vpop.f32.mrb[0].mxu0
  %v2261 = vadd.f32 %v852, %v2260
  %v2262 = vpop.f32.mrb[0].mxu0
  %v2263 = vpop.f32.mrb[0].mxu0
  %v2264 = vpop.f32.mrb[0].mxu0
  %2265 = vdwg.mxu0
  %v2266 = vmul.f32 %v2261, 0.022222223
  %2268 = vrot.lane.b32.xlu0 %v2266, 96
  %v2269 = vpop.permute.xlu0 %2268
  %v2271 = vadd.f32 %v2173, %v2269
  %v2272 = vpack.c.bf16 %v2271, %v2271
  %2274 = vrot.lane.b32.xlu0 %v2272, 32
  %v2275 = vpop.permute.xlu0 %2274
  %v2277 = vsel %vm172, %v2275, 0
  %2279 = vmatprep.subr.bf16.mxu0 0
  %2280 = vmatpush1.bf16.msra.mxu0 %v799
  %2281 = vmatprep.subr.bf16.mxu0 0
  %2282 = vmatpush1.bf16.msra.mxu0 %v800
  %2283 = vmatprep.subr.bf16.mxu0 0
  %2284 = vmatpush1.bf16.msra.mxu0 0
  %2285 = vmatprep.subr.bf16.mxu0 0
  %2286 = vmatpush1.bf16.msra.mxu0 0
  %2287 = vmatprep.subr.bf16.mxu0 0
  %2288 = vmatpush1.bf16.msra.mxu0 0
  %2289 = vmatprep.subr.bf16.mxu0 0
  %2290 = vmatpush1.bf16.msra.mxu0 0
  %2291 = vmatprep.subr.bf16.mxu0 0
  %2292 = vmatpush1.bf16.msra.mxu0 0
  %2293 = vmatprep.subr.bf16.mxu0 0
  %2294 = vmatpush1.bf16.msra.mxu0 0
  %2295 = vmatprep.subr.bf16.mxu0 0
  %2296 = vmatpush1.bf16.msra.mxu0 0
  %2297 = vmatprep.subr.bf16.mxu0 0
  %2298 = vmatpush1.bf16.msra.mxu0 0
  %2299 = vmatprep.subr.bf16.mxu0 0
  %2300 = vmatpush1.bf16.msra.mxu0 0
  %2301 = vmatprep.subr.bf16.mxu0 0
  %2302 = vmatpush1.bf16.msra.mxu0 0
  %2303 = vmatprep.subr.bf16.mxu0 0
  %2304 = vmatpush1.bf16.msra.mxu0 0
  %2305 = vmatprep.subr.bf16.mxu0 0
  %2306 = vmatpush1.bf16.msra.mxu0 0
  %2307 = vmatprep.subr.bf16.mxu0 0
  %2308 = vmatpush1.bf16.msra.mxu0 0
  %2309 = vmatprep.subr.bf16.mxu0 0
  %2310 = vmatpush1.bf16.msra.mxu0 0
  %2311 = vmatprep.mubr.bf16.mxu0 0
  %2312 = vmatmul.mubr.bf16.gmra.mrb[0].mxu0 %v2277
  %v2313 = vpop.f32.mrb[0].mxu0
  %v2314 = vadd.f32 %v786, %v2313
  %v2315 = vpop.f32.mrb[0].mxu0
  %v2316 = vpop.f32.mrb[0].mxu0
  %v2317 = vpop.f32.mrb[0].mxu0
  %2318 = vdwg.mxu0
  %v2319 = vtanh.pop %v2314
  %v2320 = vpack.c.bf16 %v2319, %v2319
  %v2322 = vsel %vm878, %v2320, 0
  %2324 = vmatprep.subr.bf16.mxu0 0
  %2325 = vmatpush1.bf16.msra.mxu0 %v870
  %2326 = vmatprep.subr.bf16.mxu0 0
  %2327 = vmatpush1.bf16.msra.mxu0 %v871
  %2328 = vmatprep.subr.bf16.mxu0 0
  %2329 = vmatpush1.bf16.msra.mxu0 %v872
  %2330 = vmatprep.subr.bf16.mxu0 0
  %2331 = vmatpush1.bf16.msra.mxu0 %v873
  %2332 = vmatprep.subr.bf16.mxu0 0
  %2333 = vmatpush1.bf16.msra.mxu0 0
  %2334 = vmatprep.subr.bf16.mxu0 0
  %2335 = vmatpush1.bf16.msra.mxu0 0
  %2336 = vmatprep.subr.bf16.mxu0 0
  %2337 = vmatpush1.bf16.msra.mxu0 0
  %2338 = vmatprep.subr.bf16.mxu0 0
  %2339 = vmatpush1.bf16.msra.mxu0 0
  %2340 = vmatprep.subr.bf16.mxu0 0
  %2341 = vmatpush1.bf16.msra.mxu0 0
  %2342 = vmatprep.subr.bf16.mxu0 0
  %2343 = vmatpush1.bf16.msra.mxu0 0
  %2344 = vmatprep.subr.bf16.mxu0 0
  %2345 = vmatpush1.bf16.msra.mxu0 0
  %2346 = vmatprep.subr.bf16.mxu0 0
  %2347 = vmatpush1.bf16.msra.mxu0 0
  %2348 = vmatprep.subr.bf16.mxu0 0
  %2349 = vmatpush1.bf16.msra.mxu0 0
  %2350 = vmatprep.subr.bf16.mxu0 0
  %2351 = vmatpush1.bf16.msra.mxu0 0
  %2352 = vmatprep.subr.bf16.mxu0 0
  %2353 = vmatpush1.bf16.msra.mxu0 0
  %2354 = vmatprep.subr.bf16.mxu0 0
  %2355 = vmatpush1.bf16.msra.mxu0 0
  %2356 = vmatprep.mubr.bf16.mxu0 0
  %2357 = vmatmul.mubr.bf16.gmra.mrb[0].mxu0 %v2322
  %v2358 = vpop.f32.mrb[0].mxu0
  %v2359 = vadd.f32 %v852, %v2358
  %v2360 = vpop.f32.mrb[0].mxu0
  %v2361 = vpop.f32.mrb[0].mxu0
  %v2362 = vpop.f32.mrb[0].mxu0
  %2363 = vdwg.mxu0
  %v2364 = vmul.f32 %v2261, 0.008333334
  %2366 = vrot.lane.b32.xlu0 %v2364, 96
  %v2367 = vpop.permute.xlu0 %2366
  %v2369 = vadd.f32 %v2173, %v2367
  %v2370 = vmul.f32 %v2359, 0.025
  %2372 = vrot.lane.b32.xlu0 %v2370, 96
  %v2373 = vpop.permute.xlu0 %2372
  %v2375 = vadd.f32 %v2369, %v2373
  %v2376 = vpack.c.bf16 %v2375, %v2375
  %2378 = vrot.lane.b32.xlu0 %v2376, 32
  %v2379 = vpop.permute.xlu0 %2378
  %v2381 = vsel %vm172, %v2379, 0
  %2383 = vmatprep.subr.bf16.mxu0 0
  %2384 = vmatpush1.bf16.msra.mxu0 %v799
  %2385 = vmatprep.subr.bf16.mxu0 0
  %2386 = vmatpush1.bf16.msra.mxu0 %v800
  %2387 = vmatprep.subr.bf16.mxu0 0
  %2388 = vmatpush1.bf16.msra.mxu0 0
  %2389 = vmatprep.subr.bf16.mxu0 0
  %2390 = vmatpush1.bf16.msra.mxu0 0
  %2391 = vmatprep.subr.bf16.mxu0 0
  %2392 = vmatpush1.bf16.msra.mxu0 0
  %2393 = vmatprep.subr.bf16.mxu0 0
  %2394 = vmatpush1.bf16.msra.mxu0 0
  %2395 = vmatprep.subr.bf16.mxu0 0
  %2396 = vmatpush1.bf16.msra.mxu0 0
  %2397 = vmatprep.subr.bf16.mxu0 0
  %2398 = vmatpush1.bf16.msra.mxu0 0
  %2399 = vmatprep.subr.bf16.mxu0 0
  %2400 = vmatpush1.bf16.msra.mxu0 0
  %2401 = vmatprep.subr.bf16.mxu0 0
  %2402 = vmatpush1.bf16.msra.mxu0 0
  %2403 = vmatprep.subr.bf16.mxu0 0
  %2404 = vmatpush1.bf16.msra.mxu0 0
  %2405 = vmatprep.subr.bf16.mxu0 0
  %2406 = vmatpush1.bf16.msra.mxu0 0
  %2407 = vmatprep.subr.bf16.mxu0 0
  %2408 = vmatpush1.bf16.msra.mxu0 0
  %2409 = vmatprep.subr.bf16.mxu0 0
  %2410 = vmatpush1.bf16.msra.mxu0 0
  %2411 = vmatprep.subr.bf16.mxu0 0
  %2412 = vmatpush1.bf16.msra.mxu0 0
  %2413 = vmatprep.subr.bf16.mxu0 0
  %2414 = vmatpush1.bf16.msra.mxu0 0
  %2415 = vmatprep.mubr.bf16.mxu0 0
  %2416 = vmatmul.mubr.bf16.gmra.mrb[0].mxu0 %v2381
  %v2417 = vpop.f32.mrb[0].mxu0
  %v2418 = vadd.f32 %v786, %v2417
  %v2419 = vpop.f32.mrb[0].mxu0
  %v2420 = vpop.f32.mrb[0].mxu0
  %v2421 = vpop.f32.mrb[0].mxu0
  %2422 = vdwg.mxu0
  %v2423 = vtanh.pop %v2418
  %v2424 = vpack.c.bf16 %v2423, %v2423
  %v2426 = vsel %vm878, %v2424, 0
  %2428 = vmatprep.subr.bf16.mxu0 0
  %2429 = vmatpush1.bf16.msra.mxu0 %v870
  %2430 = vmatprep.subr.bf16.mxu0 0
  %2431 = vmatpush1.bf16.msra.mxu0 %v871
  %2432 = vmatprep.subr.bf16.mxu0 0
  %2433 = vmatpush1.bf16.msra.mxu0 %v872
  %2434 = vmatprep.subr.bf16.mxu0 0
  %2435 = vmatpush1.bf16.msra.mxu0 %v873
  %2436 = vmatprep.subr.bf16.mxu0 0
  %2437 = vmatpush1.bf16.msra.mxu0 0
  %2438 = vmatprep.subr.bf16.mxu0 0
  %2439 = vmatpush1.bf16.msra.mxu0 0
  %2440 = vmatprep.subr.bf16.mxu0 0
  %2441 = vmatpush1.bf16.msra.mxu0 0
  %2442 = vmatprep.subr.bf16.mxu0 0
  %2443 = vmatpush1.bf16.msra.mxu0 0
  %2444 = vmatprep.subr.bf16.mxu0 0
  %2445 = vmatpush1.bf16.msra.mxu0 0
  %2446 = vmatprep.subr.bf16.mxu0 0
  %2447 = vmatpush1.bf16.msra.mxu0 0
  %2448 = vmatprep.subr.bf16.mxu0 0
  %2449 = vmatpush1.bf16.msra.mxu0 0
  %2450 = vmatprep.subr.bf16.mxu0 0
  %2451 = vmatpush1.bf16.msra.mxu0 0
  %2452 = vmatprep.subr.bf16.mxu0 0
  %2453 = vmatpush1.bf16.msra.mxu0 0
  %2454 = vmatprep.subr.bf16.mxu0 0
  %2455 = vmatpush1.bf16.msra.mxu0 0
  %2456 = vmatprep.subr.bf16.mxu0 0
  %2457 = vmatpush1.bf16.msra.mxu0 0
  %2458 = vmatprep.subr.bf16.mxu0 0
  %2459 = vmatpush1.bf16.msra.mxu0 0
  %2460 = vmatprep.mubr.bf16.mxu0 0
  %2461 = vmatmul.mubr.bf16.gmra.mrb[0].mxu0 %v2426
  %v2462 = vpop.f32.mrb[0].mxu0
  %v2463 = vadd.f32 %v852, %v2462
  %v2464 = vpop.f32.mrb[0].mxu0
  %v2465 = vpop.f32.mrb[0].mxu0
  %v2466 = vpop.f32.mrb[0].mxu0
  %2467 = vdwg.mxu0
  %v2468 = vmul.f32 %v2261, 0.108641975
  %2470 = vrot.lane.b32.xlu0 %v2468, 96
  %v2471 = vpop.permute.xlu0 %2470
  %v2473 = vadd.f32 %v2173, %v2471
  %v2474 = vmul.f32 %v2359, -0.4148148
  %2476 = vrot.lane.b32.xlu0 %v2474, 96
  %v2477 = vpop.permute.xlu0 %2476
  %v2479 = vadd.f32 %v2473, %v2477
  %v2480 = vmul.f32 %v2463, 0.39506173
  %2482 = vrot.lane.b32.xlu0 %v2480, 96
  %v2483 = vpop.permute.xlu0 %2482
  %v2485 = vadd.f32 %v2479, %v2483
  %v2486 = vpack.c.bf16 %v2485, %v2485
  %2488 = vrot.lane.b32.xlu0 %v2486, 32
  %v2489 = vpop.permute.xlu0 %2488
  %v2491 = vsel %vm172, %v2489, 0
  %2493 = vmatprep.subr.bf16.mxu0 0
  %2494 = vmatpush1.bf16.msra.mxu0 %v799
  %2495 = vmatprep.subr.bf16.mxu0 0
  %2496 = vmatpush1.bf16.msra.mxu0 %v800
  %2497 = vmatprep.subr.bf16.mxu0 0
  %2498 = vmatpush1.bf16.msra.mxu0 0
  %2499 = vmatprep.subr.bf16.mxu0 0
  %2500 = vmatpush1.bf16.msra.mxu0 0
  %2501 = vmatprep.subr.bf16.mxu0 0
  %2502 = vmatpush1.bf16.msra.mxu0 0
  %2503 = vmatprep.subr.bf16.mxu0 0
  %2504 = vmatpush1.bf16.msra.mxu0 0
  %2505 = vmatprep.subr.bf16.mxu0 0
  %2506 = vmatpush1.bf16.msra.mxu0 0
  %2507 = vmatprep.subr.bf16.mxu0 0
  %2508 = vmatpush1.bf16.msra.mxu0 0
  %2509 = vmatprep.subr.bf16.mxu0 0
  %2510 = vmatpush1.bf16.msra.mxu0 0
  %2511 = vmatprep.subr.bf16.mxu0 0
  %2512 = vmatpush1.bf16.msra.mxu0 0
  %2513 = vmatprep.subr.bf16.mxu0 0
  %2514 = vmatpush1.bf16.msra.mxu0 0
  %2515 = vmatprep.subr.bf16.mxu0 0
  %2516 = vmatpush1.bf16.msra.mxu0 0
  %2517 = vmatprep.subr.bf16.mxu0 0
  %2518 = vmatpush1.bf16.msra.mxu0 0
  %2519 = vmatprep.subr.bf16.mxu0 0
  %2520 = vmatpush1.bf16.msra.mxu0 0
  %2521 = vmatprep.subr.bf16.mxu0 0
  %2522 = vmatpush1.bf16.msra.mxu0 0
  %2523 = vmatprep.subr.bf16.mxu0 0
  %2524 = vmatpush1.bf16.msra.mxu0 0
  %2525 = vmatprep.mubr.bf16.mxu0 0
  %2526 = vmatmul.mubr.bf16.gmra.mrb[0].mxu0 %v2491
  %v2527 = vpop.f32.mrb[0].mxu0
  %v2528 = vadd.f32 %v786, %v2527
  %v2529 = vpop.f32.mrb[0].mxu0
  %v2530 = vpop.f32.mrb[0].mxu0
  %v2531 = vpop.f32.mrb[0].mxu0
  %2532 = vdwg.mxu0
  %v2533 = vtanh.pop %v2528
  %v2534 = vpack.c.bf16 %v2533, %v2533
  %v2536 = vsel %vm878, %v2534, 0
  %2538 = vmatprep.subr.bf16.mxu0 0
  %2539 = vmatpush1.bf16.msra.mxu0 %v870
  %2540 = vmatprep.subr.bf16.mxu0 0
  %2541 = vmatpush1.bf16.msra.mxu0 %v871
  %2542 = vmatprep.subr.bf16.mxu0 0
  %2543 = vmatpush1.bf16.msra.mxu0 %v872
  %2544 = vmatprep.subr.bf16.mxu0 0
  %2545 = vmatpush1.bf16.msra.mxu0 %v873
  %2546 = vmatprep.subr.bf16.mxu0 0
  %2547 = vmatpush1.bf16.msra.mxu0 0
  %2548 = vmatprep.subr.bf16.mxu0 0
  %2549 = vmatpush1.bf16.msra.mxu0 0
  %2550 = vmatprep.subr.bf16.mxu0 0
  %2551 = vmatpush1.bf16.msra.mxu0 0
  %2552 = vmatprep.subr.bf16.mxu0 0
  %2553 = vmatpush1.bf16.msra.mxu0 0
  %2554 = vmatprep.subr.bf16.mxu0 0
  %2555 = vmatpush1.bf16.msra.mxu0 0
  %2556 = vmatprep.subr.bf16.mxu0 0
  %2557 = vmatpush1.bf16.msra.mxu0 0
  %2558 = vmatprep.subr.bf16.mxu0 0
  %2559 = vmatpush1.bf16.msra.mxu0 0
  %2560 = vmatprep.subr.bf16.mxu0 0
  %2561 = vmatpush1.bf16.msra.mxu0 0
  %2562 = vmatprep.subr.bf16.mxu0 0
  %2563 = vmatpush1.bf16.msra.mxu0 0
  %2564 = vmatprep.subr.bf16.mxu0 0
  %2565 = vmatpush1.bf16.msra.mxu0 0
  %2566 = vmatprep.subr.bf16.mxu0 0
  %2567 = vmatpush1.bf16.msra.mxu0 0
  %2568 = vmatprep.subr.bf16.mxu0 0
  %2569 = vmatpush1.bf16.msra.mxu0 0
  %2570 = vmatprep.mubr.bf16.mxu0 0
  %2571 = vmatmul.mubr.bf16.gmra.mrb[0].mxu0 %v2536
  %v2572 = vpop.f32.mrb[0].mxu0
  %v2573 = vadd.f32 %v852, %v2572
  %v2574 = vpop.f32.mrb[0].mxu0
  %v2575 = vpop.f32.mrb[0].mxu0
  %v2576 = vpop.f32.mrb[0].mxu0
  %2577 = vdwg.mxu0
  %v2578 = vmul.f32 %v2261, 0.32806653
  %2580 = vrot.lane.b32.xlu0 %v2578, 96
  %v2581 = vpop.permute.xlu0 %2580
  %v2583 = vadd.f32 %v2173, %v2581
  %v2584 = vmul.f32 %v2359, -1.2884215
  %2586 = vrot.lane.b32.xlu0 %v2584, 96
  %v2587 = vpop.permute.xlu0 %2586
  %v2589 = vadd.f32 %v2583, %v2587
  %v2590 = vmul.f32 %v2463, 1.0914326
  %2592 = vrot.lane.b32.xlu0 %v2590, 96
  %v2593 = vpop.permute.xlu0 %2592
  %v2595 = vadd.f32 %v2589, %v2593
  %v2596 = vmul.f32 %v2573, -0.032312147
  %2598 = vrot.lane.b32.xlu0 %v2596, 96
  %v2599 = vpop.permute.xlu0 %2598
  %v2601 = vadd.f32 %v2595, %v2599
  %v2602 = vpack.c.bf16 %v2601, %v2601
  %2604 = vrot.lane.b32.xlu0 %v2602, 32
  %v2605 = vpop.permute.xlu0 %2604
  %v2607 = vsel %vm172, %v2605, 0
  %2609 = vmatprep.subr.bf16.mxu0 0
  %2610 = vmatpush1.bf16.msra.mxu0 %v799
  %2611 = vmatprep.subr.bf16.mxu0 0
  %2612 = vmatpush1.bf16.msra.mxu0 %v800
  %2613 = vmatprep.subr.bf16.mxu0 0
  %2614 = vmatpush1.bf16.msra.mxu0 0
  %2615 = vmatprep.subr.bf16.mxu0 0
  %2616 = vmatpush1.bf16.msra.mxu0 0
  %2617 = vmatprep.subr.bf16.mxu0 0
  %2618 = vmatpush1.bf16.msra.mxu0 0
  %2619 = vmatprep.subr.bf16.mxu0 0
  %2620 = vmatpush1.bf16.msra.mxu0 0
  %2621 = vmatprep.subr.bf16.mxu0 0
  %2622 = vmatpush1.bf16.msra.mxu0 0
  %2623 = vmatprep.subr.bf16.mxu0 0
  %2624 = vmatpush1.bf16.msra.mxu0 0
  %2625 = vmatprep.subr.bf16.mxu0 0
  %2626 = vmatpush1.bf16.msra.mxu0 0
  %2627 = vmatprep.subr.bf16.mxu0 0
  %2628 = vmatpush1.bf16.msra.mxu0 0
  %2629 = vmatprep.subr.bf16.mxu0 0
  %2630 = vmatpush1.bf16.msra.mxu0 0
  %2631 = vmatprep.subr.bf16.mxu0 0
  %2632 = vmatpush1.bf16.msra.mxu0 0
  %2633 = vmatprep.subr.bf16.mxu0 0
  %2634 = vmatpush1.bf16.msra.mxu0 0
  %2635 = vmatprep.subr.bf16.mxu0 0
  %2636 = vmatpush1.bf16.msra.mxu0 0
  %2637 = vmatprep.subr.bf16.mxu0 0
  %2638 = vmatpush1.bf16.msra.mxu0 0
  %2639 = vmatprep.subr.bf16.mxu0 0
  %2640 = vmatpush1.bf16.msra.mxu0 0
  %2641 = vmatprep.mubr.bf16.mxu0 0
  %2642 = vmatmul.mubr.bf16.gmra.mrb[0].mxu0 %v2607
  %v2643 = vpop.f32.mrb[0].mxu0
  %v2644 = vadd.f32 %v786, %v2643
  %v2645 = vpop.f32.mrb[0].mxu0
  %v2646 = vpop.f32.mrb[0].mxu0
  %v2647 = vpop.f32.mrb[0].mxu0
  %2648 = vdwg.mxu0
  %v2649 = vtanh.pop %v2644
  %v2650 = vpack.c.bf16 %v2649, %v2649
  %v2652 = vsel %vm878, %v2650, 0
  %2654 = vmatprep.subr.bf16.mxu0 0
  %2655 = vmatpush1.bf16.msra.mxu0 %v870
  %2656 = vmatprep.subr.bf16.mxu0 0
  %2657 = vmatpush1.bf16.msra.mxu0 %v871
  %2658 = vmatprep.subr.bf16.mxu0 0
  %2659 = vmatpush1.bf16.msra.mxu0 %v872
  %2660 = vmatprep.subr.bf16.mxu0 0
  %2661 = vmatpush1.bf16.msra.mxu0 %v873
  %2662 = vmatprep.subr.bf16.mxu0 0
  %2663 = vmatpush1.bf16.msra.mxu0 0
  %2664 = vmatprep.subr.bf16.mxu0 0
  %2665 = vmatpush1.bf16.msra.mxu0 0
  %2666 = vmatprep.subr.bf16.mxu0 0
  %2667 = vmatpush1.bf16.msra.mxu0 0
  %2668 = vmatprep.subr.bf16.mxu0 0
  %2669 = vmatpush1.bf16.msra.mxu0 0
  %2670 = vmatprep.subr.bf16.mxu0 0
  %2671 = vmatpush1.bf16.msra.mxu0 0
  %2672 = vmatprep.subr.bf16.mxu0 0
  %2673 = vmatpush1.bf16.msra.mxu0 0
  %2674 = vmatprep.subr.bf16.mxu0 0
  %2675 = vmatpush1.bf16.msra.mxu0 0
  %2676 = vmatprep.subr.bf16.mxu0 0
  %2677 = vmatpush1.bf16.msra.mxu0 0
  %2678 = vmatprep.subr.bf16.mxu0 0
  %2679 = vmatpush1.bf16.msra.mxu0 0
  %2680 = vmatprep.subr.bf16.mxu0 0
  %2681 = vmatpush1.bf16.msra.mxu0 0
  %2682 = vmatprep.subr.bf16.mxu0 0
  %2683 = vmatpush1.bf16.msra.mxu0 0
  %2684 = vmatprep.subr.bf16.mxu0 0
  %2685 = vmatpush1.bf16.msra.mxu0 0
  %2686 = vmatprep.mubr.bf16.mxu0 0
  %2687 = vmatmul.mubr.bf16.gmra.mrb[0].mxu0 %v2652
  %v2688 = vpop.f32.mrb[0].mxu0
  %v2689 = vadd.f32 %v852, %v2688
  %v2690 = vpop.f32.mrb[0].mxu0
  %v2691 = vpop.f32.mrb[0].mxu0
  %v2692 = vpop.f32.mrb[0].mxu0
  %2693 = vdwg.mxu0
  %v2694 = vmul.f32 %v2261, 0.3162528
  %2696 = vrot.lane.b32.xlu0 %v2694, 96
  %v2697 = vpop.permute.xlu0 %2696
  %v2699 = vadd.f32 %v2173, %v2697
  %v2700 = vmul.f32 %v2359, -1.1952862
  %2702 = vrot.lane.b32.xlu0 %v2700, 96
  %v2703 = vpop.permute.xlu0 %2702
  %v2705 = vadd.f32 %v2699, %v2703
  %v2706 = vmul.f32 %v2463, 0.9896025
  %2708 = vrot.lane.b32.xlu0 %v2706, 96
  %v2709 = vpop.permute.xlu0 %2708
  %v2711 = vadd.f32 %v2705, %v2709
  %v2712 = vmul.f32 %v2573, 0.030934343
  %2714 = vrot.lane.b32.xlu0 %v2712, 96
  %v2715 = vpop.permute.xlu0 %2714
  %v2717 = vadd.f32 %v2711, %v2715
  %v2718 = vmul.f32 %v2689, -0.030392367
  %2720 = vrot.lane.b32.xlu0 %v2718, 96
  %v2721 = vpop.permute.xlu0 %2720
  %v2723 = vadd.f32 %v2717, %v2721
  %v2724 = vpack.c.bf16 %v2723, %v2723
  %2726 = vrot.lane.b32.xlu0 %v2724, 32
  %v2727 = vpop.permute.xlu0 %2726
  %v2729 = vsel %vm172, %v2727, 0
  %2731 = vmatprep.subr.bf16.mxu0 0
  %2732 = vmatpush1.bf16.msra.mxu0 %v799
  %2733 = vmatprep.subr.bf16.mxu0 0
  %2734 = vmatpush1.bf16.msra.mxu0 %v800
  %2735 = vmatprep.subr.bf16.mxu0 0
  %2736 = vmatpush1.bf16.msra.mxu0 0
  %2737 = vmatprep.subr.bf16.mxu0 0
  %2738 = vmatpush1.bf16.msra.mxu0 0
  %2739 = vmatprep.subr.bf16.mxu0 0
  %2740 = vmatpush1.bf16.msra.mxu0 0
  %2741 = vmatprep.subr.bf16.mxu0 0
  %2742 = vmatpush1.bf16.msra.mxu0 0
  %2743 = vmatprep.subr.bf16.mxu0 0
  %2744 = vmatpush1.bf16.msra.mxu0 0
  %2745 = vmatprep.subr.bf16.mxu0 0
  %2746 = vmatpush1.bf16.msra.mxu0 0
  %2747 = vmatprep.subr.bf16.mxu0 0
  %2748 = vmatpush1.bf16.msra.mxu0 0
  %2749 = vmatprep.subr.bf16.mxu0 0
  %2750 = vmatpush1.bf16.msra.mxu0 0
  %2751 = vmatprep.subr.bf16.mxu0 0
  %2752 = vmatpush1.bf16.msra.mxu0 0
  %2753 = vmatprep.subr.bf16.mxu0 0
  %2754 = vmatpush1.bf16.msra.mxu0 0
  %2755 = vmatprep.subr.bf16.mxu0 0
  %2756 = vmatpush1.bf16.msra.mxu0 0
  %2757 = vmatprep.subr.bf16.mxu0 0
  %2758 = vmatpush1.bf16.msra.mxu0 0
  %2759 = vmatprep.subr.bf16.mxu0 0
  %2760 = vmatpush1.bf16.msra.mxu0 0
  %2761 = vmatprep.subr.bf16.mxu0 0
  %2762 = vmatpush1.bf16.msra.mxu0 0
  %2763 = vmatprep.mubr.bf16.mxu0 0
  %2764 = vmatmul.mubr.bf16.gmra.mrb[0].mxu0 %v2729
  %v2765 = vpop.f32.mrb[0].mxu0
  %v2766 = vadd.f32 %v786, %v2765
  %v2767 = vpop.f32.mrb[0].mxu0
  %v2768 = vpop.f32.mrb[0].mxu0
  %v2769 = vpop.f32.mrb[0].mxu0
  %2770 = vdwg.mxu0
  %v2771 = vtanh.pop %v2766
  %v2772 = vpack.c.bf16 %v2771, %v2771
  %v2774 = vsel %vm878, %v2772, 0
  %2776 = vmatprep.subr.bf16.mxu0 0
  %2777 = vmatpush1.bf16.msra.mxu0 %v870
  %2778 = vmatprep.subr.bf16.mxu0 0
  %2779 = vmatpush1.bf16.msra.mxu0 %v871
  %2780 = vmatprep.subr.bf16.mxu0 0
  %2781 = vmatpush1.bf16.msra.mxu0 %v872
  %2782 = vmatprep.subr.bf16.mxu0 0
  %2783 = vmatpush1.bf16.msra.mxu0 %v873
  %2784 = vmatprep.subr.bf16.mxu0 0
  %2785 = vmatpush1.bf16.msra.mxu0 0
  %2786 = vmatprep.subr.bf16.mxu0 0
  %2787 = vmatpush1.bf16.msra.mxu0 0
  %2788 = vmatprep.subr.bf16.mxu0 0
  %2789 = vmatpush1.bf16.msra.mxu0 0
  %2790 = vmatprep.subr.bf16.mxu0 0
  %2791 = vmatpush1.bf16.msra.mxu0 0
  %2792 = vmatprep.subr.bf16.mxu0 0
  %2793 = vmatpush1.bf16.msra.mxu0 0
  %2794 = vmatprep.subr.bf16.mxu0 0
  %2795 = vmatpush1.bf16.msra.mxu0 0
  %2796 = vmatprep.subr.bf16.mxu0 0
  %2797 = vmatpush1.bf16.msra.mxu0 0
  %2798 = vmatprep.subr.bf16.mxu0 0
  %2799 = vmatpush1.bf16.msra.mxu0 0
  %2800 = vmatprep.subr.bf16.mxu0 0
  %2801 = vmatpush1.bf16.msra.mxu0 0
  %2802 = vmatprep.subr.bf16.mxu0 0
  %2803 = vmatpush1.bf16.msra.mxu0 0
  %2804 = vmatprep.subr.bf16.mxu0 0
  %2805 = vmatpush1.bf16.msra.mxu0 0
  %2806 = vmatprep.subr.bf16.mxu0 0
  %2807 = vmatpush1.bf16.msra.mxu0 0
  %2808 = vmatprep.mubr.bf16.mxu0 0
  %2809 = vmatmul.mubr.bf16.gmra.mrb[0].mxu0 %v2774
  %v2810 = vpop.f32.mrb[0].mxu0
  %v2811 = vadd.f32 %v852, %v2810
  %v2812 = vpop.f32.mrb[0].mxu0
  %v2813 = vpop.f32.mrb[0].mxu0
  %v2814 = vpop.f32.mrb[0].mxu0
  %2815 = vdwg.mxu0
  %v2816 = vmul.f32 %v2261, 0.010127314
  %2818 = vrot.lane.b32.xlu0 %v2816, 96
  %v2819 = vpop.permute.xlu0 %2818
  %v2821 = vadd.f32 %v2173, %v2819
  %v2822 = vmul.f32 %v2463, 0.049915146
  %2824 = vrot.lane.b32.xlu0 %v2822, 96
  %v2825 = vpop.permute.xlu0 %2824
  %v2827 = vadd.f32 %v2821, %v2825
  %v2828 = vmul.f32 %v2573, 0.07233796
  %2830 = vrot.lane.b32.xlu0 %v2828, 96
  %v2831 = vpop.permute.xlu0 %2830
  %v2833 = vadd.f32 %v2827, %v2831
  %v2834 = vmul.f32 %v2689, -0.035819575
  %2836 = vrot.lane.b32.xlu0 %v2834, 96
  %v2837 = vpop.permute.xlu0 %2836
  %v2839 = vadd.f32 %v2833, %v2837
  %v2840 = vmul.f32 %v2811, 0.014550265
  %2842 = vrot.lane.b32.xlu0 %v2840, 96
  %v2843 = vpop.permute.xlu0 %2842
  %v2845 = vadd.f32 %v2839, %v2843
  %v2846 = vpack.c.bf16 %v2845, %v2845
  %2848 = vrot.lane.b32.xlu0 %v2846, 32
  %v2849 = vpop.permute.xlu0 %2848
  %v2851 = vsel %vm172, %v2849, 0
  %2853 = vmatprep.subr.bf16.mxu0 0
  %2854 = vmatpush1.bf16.msra.mxu0 %v799
  %2855 = vmatprep.subr.bf16.mxu0 0
  %2856 = vmatpush1.bf16.msra.mxu0 %v800
  %2857 = vmatprep.subr.bf16.mxu0 0
  %2858 = vmatpush1.bf16.msra.mxu0 0
  %2859 = vmatprep.subr.bf16.mxu0 0
  %2860 = vmatpush1.bf16.msra.mxu0 0
  %2861 = vmatprep.subr.bf16.mxu0 0
  %2862 = vmatpush1.bf16.msra.mxu0 0
  %2863 = vmatprep.subr.bf16.mxu0 0
  %2864 = vmatpush1.bf16.msra.mxu0 0
  %2865 = vmatprep.subr.bf16.mxu0 0
  %2866 = vmatpush1.bf16.msra.mxu0 0
  %2867 = vmatprep.subr.bf16.mxu0 0
  %2868 = vmatpush1.bf16.msra.mxu0 0
  %2869 = vmatprep.subr.bf16.mxu0 0
  %2870 = vmatpush1.bf16.msra.mxu0 0
  %2871 = vmatprep.subr.bf16.mxu0 0
  %2872 = vmatpush1.bf16.msra.mxu0 0
  %2873 = vmatprep.subr.bf16.mxu0 0
  %2874 = vmatpush1.bf16.msra.mxu0 0
  %2875 = vmatprep.subr.bf16.mxu0 0
  %2876 = vmatpush1.bf16.msra.mxu0 0
  %2877 = vmatprep.subr.bf16.mxu0 0
  %2878 = vmatpush1.bf16.msra.mxu0 0
  %2879 = vmatprep.subr.bf16.mxu0 0
  %2880 = vmatpush1.bf16.msra.mxu0 0
  %2881 = vmatprep.subr.bf16.mxu0 0
  %2882 = vmatpush1.bf16.msra.mxu0 0
  %2883 = vmatprep.subr.bf16.mxu0 0
  %2884 = vmatpush1.bf16.msra.mxu0 0
  %2885 = vmatprep.mubr.bf16.mxu0 0
  %2886 = vmatmul.mubr.bf16.gmra.mrb[0].mxu0 %v2851
  %v2887 = vpop.f32.mrb[0].mxu0
  %v2888 = vadd.f32 %v786, %v2887
  %v2889 = vpop.f32.mrb[0].mxu0
  %v2890 = vpop.f32.mrb[0].mxu0
  %v2891 = vpop.f32.mrb[0].mxu0
  %2892 = vdwg.mxu0
  %v2893 = vtanh.pop %v2888
  %v2894 = vpack.c.bf16 %v2893, %v2893
  %v2896 = vsel %vm878, %v2894, 0
  %2898 = vmatprep.subr.bf16.mxu0 0
  %2899 = vmatpush1.bf16.msra.mxu0 %v870
  %2900 = vmatprep.subr.bf16.mxu0 0
  %2901 = vmatpush1.bf16.msra.mxu0 %v871
  %2902 = vmatprep.subr.bf16.mxu0 0
  %2903 = vmatpush1.bf16.msra.mxu0 %v872
  %2904 = vmatprep.subr.bf16.mxu0 0
  %2905 = vmatpush1.bf16.msra.mxu0 %v873
  %2906 = vmatprep.subr.bf16.mxu0 0
  %2907 = vmatpush1.bf16.msra.mxu0 0
  %2908 = vmatprep.subr.bf16.mxu0 0
  %2909 = vmatpush1.bf16.msra.mxu0 0
  %2910 = vmatprep.subr.bf16.mxu0 0
  %2911 = vmatpush1.bf16.msra.mxu0 0
  %2912 = vmatprep.subr.bf16.mxu0 0
  %2913 = vmatpush1.bf16.msra.mxu0 0
  %2914 = vmatprep.subr.bf16.mxu0 0
  %2915 = vmatpush1.bf16.msra.mxu0 0
  %2916 = vmatprep.subr.bf16.mxu0 0
  %2917 = vmatpush1.bf16.msra.mxu0 0
  %2918 = vmatprep.subr.bf16.mxu0 0
  %2919 = vmatpush1.bf16.msra.mxu0 0
  %2920 = vmatprep.subr.bf16.mxu0 0
  %2921 = vmatpush1.bf16.msra.mxu0 0
  %2922 = vmatprep.subr.bf16.mxu0 0
  %2923 = vmatpush1.bf16.msra.mxu0 0
  %2924 = vmatprep.subr.bf16.mxu0 0
  %2925 = vmatpush1.bf16.msra.mxu0 0
  %2926 = vmatprep.subr.bf16.mxu0 0
  %2927 = vmatpush1.bf16.msra.mxu0 0
  %2928 = vmatprep.subr.bf16.mxu0 0
  %2929 = vmatpush1.bf16.msra.mxu0 0
  %2930 = vmatprep.mubr.bf16.mxu0 0
  %2931 = vmatmul.mubr.bf16.gmra.mrb[0].mxu0 %v2896
  %v2932 = vpop.f32.mrb[0].mxu0
  %v2933 = vadd.f32 %v852, %v2932
  %v2934 = vpop.f32.mrb[0].mxu0
  %v2935 = vpop.f32.mrb[0].mxu0
  %v2936 = vpop.f32.mrb[0].mxu0
  %2937 = vdwg.mxu0
  %v2938 = vmul.f32 %v2933, 0.022222223
  %2940 = vrot.lane.b32.xlu0 %v2938, 96
  %v2941 = vpop.permute.xlu0 %2940
  %v2943 = vadd.f32 %v2845, %v2941
  %v2944 = vpack.c.bf16 %v2943, %v2943
  %2946 = vrot.lane.b32.xlu0 %v2944, 32
  %v2947 = vpop.permute.xlu0 %2946
  %v2949 = vsel %vm172, %v2947, 0
  %2951 = vmatprep.subr.bf16.mxu0 0
  %2952 = vmatpush1.bf16.msra.mxu0 %v799
  %2953 = vmatprep.subr.bf16.mxu0 0
  %2954 = vmatpush1.bf16.msra.mxu0 %v800
  %2955 = vmatprep.subr.bf16.mxu0 0
  %2956 = vmatpush1.bf16.msra.mxu0 0
  %2957 = vmatprep.subr.bf16.mxu0 0
  %2958 = vmatpush1.bf16.msra.mxu0 0
  %2959 = vmatprep.subr.bf16.mxu0 0
  %2960 = vmatpush1.bf16.msra.mxu0 0
  %2961 = vmatprep.subr.bf16.mxu0 0
  %2962 = vmatpush1.bf16.msra.mxu0 0
  %2963 = vmatprep.subr.bf16.mxu0 0
  %2964 = vmatpush1.bf16.msra.mxu0 0
  %2965 = vmatprep.subr.bf16.mxu0 0
  %2966 = vmatpush1.bf16.msra.mxu0 0
  %2967 = vmatprep.subr.bf16.mxu0 0
  %2968 = vmatpush1.bf16.msra.mxu0 0
  %2969 = vmatprep.subr.bf16.mxu0 0
  %2970 = vmatpush1.bf16.msra.mxu0 0
  %2971 = vmatprep.subr.bf16.mxu0 0
  %2972 = vmatpush1.bf16.msra.mxu0 0
  %2973 = vmatprep.subr.bf16.mxu0 0
  %2974 = vmatpush1.bf16.msra.mxu0 0
  %2975 = vmatprep.subr.bf16.mxu0 0
  %2976 = vmatpush1.bf16.msra.mxu0 0
  %2977 = vmatprep.subr.bf16.mxu0 0
  %2978 = vmatpush1.bf16.msra.mxu0 0
  %2979 = vmatprep.subr.bf16.mxu0 0
  %2980 = vmatpush1.bf16.msra.mxu0 0
  %2981 = vmatprep.subr.bf16.mxu0 0
  %2982 = vmatpush1.bf16.msra.mxu0 0
  %2983 = vmatprep.mubr.bf16.mxu0 0
  %2984 = vmatmul.mubr.bf16.gmra.mrb[0].mxu0 %v2949
  %v2985 = vpop.f32.mrb[0].mxu0
  %v2986 = vadd.f32 %v786, %v2985
  %v2987 = vpop.f32.mrb[0].mxu0
  %v2988 = vpop.f32.mrb[0].mxu0
  %v2989 = vpop.f32.mrb[0].mxu0
  %2990 = vdwg.mxu0
  %v2991 = vtanh.pop %v2986
  %v2992 = vpack.c.bf16 %v2991, %v2991
  %v2994 = vsel %vm878, %v2992, 0
  %2996 = vmatprep.subr.bf16.mxu0 0
  %2997 = vmatpush1.bf16.msra.mxu0 %v870
  %2998 = vmatprep.subr.bf16.mxu0 0
  %2999 = vmatpush1.bf16.msra.mxu0 %v871
  %3000 = vmatprep.subr.bf16.mxu0 0
  %3001 = vmatpush1.bf16.msra.mxu0 %v872
  %3002 = vmatprep.subr.bf16.mxu0 0
  %3003 = vmatpush1.bf16.msra.mxu0 %v873
  %3004 = vmatprep.subr.bf16.mxu0 0
  %3005 = vmatpush1.bf16.msra.mxu0 0
  %3006 = vmatprep.subr.bf16.mxu0 0
  %3007 = vmatpush1.bf16.msra.mxu0 0
  %3008 = vmatprep.subr.bf16.mxu0 0
  %3009 = vmatpush1.bf16.msra.mxu0 0
  %3010 = vmatprep.subr.bf16.mxu0 0
  %3011 = vmatpush1.bf16.msra.mxu0 0
  %3012 = vmatprep.subr.bf16.mxu0 0
  %3013 = vmatpush1.bf16.msra.mxu0 0
  %3014 = vmatprep.subr.bf16.mxu0 0
  %3015 = vmatpush1.bf16.msra.mxu0 0
  %3016 = vmatprep.subr.bf16.mxu0 0
  %3017 = vmatpush1.bf16.msra.mxu0 0
  %3018 = vmatprep.subr.bf16.mxu0 0
  %3019 = vmatpush1.bf16.msra.mxu0 0
  %3020 = vmatprep.subr.bf16.mxu0 0
  %3021 = vmatpush1.bf16.msra.mxu0 0
  %3022 = vmatprep.subr.bf16.mxu0 0
  %3023 = vmatpush1.bf16.msra.mxu0 0
  %3024 = vmatprep.subr.bf16.mxu0 0
  %3025 = vmatpush1.bf16.msra.mxu0 0
  %3026 = vmatprep.subr.bf16.mxu0 0
  %3027 = vmatpush1.bf16.msra.mxu0 0
  %3028 = vmatprep.mubr.bf16.mxu0 0
  %3029 = vmatmul.mubr.bf16.gmra.mrb[0].mxu0 %v2994
  %v3030 = vpop.f32.mrb[0].mxu0
  %v3031 = vadd.f32 %v852, %v3030
  %v3032 = vpop.f32.mrb[0].mxu0
  %v3033 = vpop.f32.mrb[0].mxu0
  %v3034 = vpop.f32.mrb[0].mxu0
  %3035 = vdwg.mxu0
  %v3036 = vmul.f32 %v2933, 0.008333334
  %3038 = vrot.lane.b32.xlu0 %v3036, 96
  %v3039 = vpop.permute.xlu0 %3038
  %v3041 = vadd.f32 %v2845, %v3039
  %v3042 = vmul.f32 %v3031, 0.025
  %3044 = vrot.lane.b32.xlu0 %v3042, 96
  %v3045 = vpop.permute.xlu0 %3044
  %v3047 = vadd.f32 %v3041, %v3045
  %v3048 = vpack.c.bf16 %v3047, %v3047
  %3050 = vrot.lane.b32.xlu0 %v3048, 32
  %v3051 = vpop.permute.xlu0 %3050
  %v3053 = vsel %vm172, %v3051, 0
  %3055 = vmatprep.subr.bf16.mxu0 0
  %3056 = vmatpush1.bf16.msra.mxu0 %v799
  %3057 = vmatprep.subr.bf16.mxu0 0
  %3058 = vmatpush1.bf16.msra.mxu0 %v800
  %3059 = vmatprep.subr.bf16.mxu0 0
  %3060 = vmatpush1.bf16.msra.mxu0 0
  %3061 = vmatprep.subr.bf16.mxu0 0
  %3062 = vmatpush1.bf16.msra.mxu0 0
  %3063 = vmatprep.subr.bf16.mxu0 0
  %3064 = vmatpush1.bf16.msra.mxu0 0
  %3065 = vmatprep.subr.bf16.mxu0 0
  %3066 = vmatpush1.bf16.msra.mxu0 0
  %3067 = vmatprep.subr.bf16.mxu0 0
  %3068 = vmatpush1.bf16.msra.mxu0 0
  %3069 = vmatprep.subr.bf16.mxu0 0
  %3070 = vmatpush1.bf16.msra.mxu0 0
  %3071 = vmatprep.subr.bf16.mxu0 0
  %3072 = vmatpush1.bf16.msra.mxu0 0
  %3073 = vmatprep.subr.bf16.mxu0 0
  %3074 = vmatpush1.bf16.msra.mxu0 0
  %3075 = vmatprep.subr.bf16.mxu0 0
  %3076 = vmatpush1.bf16.msra.mxu0 0
  %3077 = vmatprep.subr.bf16.mxu0 0
  %3078 = vmatpush1.bf16.msra.mxu0 0
  %3079 = vmatprep.subr.bf16.mxu0 0
  %3080 = vmatpush1.bf16.msra.mxu0 0
  %3081 = vmatprep.subr.bf16.mxu0 0
  %3082 = vmatpush1.bf16.msra.mxu0 0
  %3083 = vmatprep.subr.bf16.mxu0 0
  %3084 = vmatpush1.bf16.msra.mxu0 0
  %3085 = vmatprep.subr.bf16.mxu0 0
  %3086 = vmatpush1.bf16.msra.mxu0 0
  %3087 = vmatprep.mubr.bf16.mxu0 0
  %3088 = vmatmul.mubr.bf16.gmra.mrb[0].mxu0 %v3053
  %v3089 = vpop.f32.mrb[0].mxu0
  %v3090 = vadd.f32 %v786, %v3089
  %v3091 = vpop.f32.mrb[0].mxu0
  %v3092 = vpop.f32.mrb[0].mxu0
  %v3093 = vpop.f32.mrb[0].mxu0
  %3094 = vdwg.mxu0
  %v3095 = vtanh.pop %v3090
  %v3096 = vpack.c.bf16 %v3095, %v3095
  %v3098 = vsel %vm878, %v3096, 0
  %3100 = vmatprep.subr.bf16.mxu0 0
  %3101 = vmatpush1.bf16.msra.mxu0 %v870
  %3102 = vmatprep.subr.bf16.mxu0 0
  %3103 = vmatpush1.bf16.msra.mxu0 %v871
  %3104 = vmatprep.subr.bf16.mxu0 0
  %3105 = vmatpush1.bf16.msra.mxu0 %v872
  %3106 = vmatprep.subr.bf16.mxu0 0
  %3107 = vmatpush1.bf16.msra.mxu0 %v873
  %3108 = vmatprep.subr.bf16.mxu0 0
  %3109 = vmatpush1.bf16.msra.mxu0 0
  %3110 = vmatprep.subr.bf16.mxu0 0
  %3111 = vmatpush1.bf16.msra.mxu0 0
  %3112 = vmatprep.subr.bf16.mxu0 0
  %3113 = vmatpush1.bf16.msra.mxu0 0
  %3114 = vmatprep.subr.bf16.mxu0 0
  %3115 = vmatpush1.bf16.msra.mxu0 0
  %3116 = vmatprep.subr.bf16.mxu0 0
  %3117 = vmatpush1.bf16.msra.mxu0 0
  %3118 = vmatprep.subr.bf16.mxu0 0
  %3119 = vmatpush1.bf16.msra.mxu0 0
  %3120 = vmatprep.subr.bf16.mxu0 0
  %3121 = vmatpush1.bf16.msra.mxu0 0
  %3122 = vmatprep.subr.bf16.mxu0 0
  %3123 = vmatpush1.bf16.msra.mxu0 0
  %3124 = vmatprep.subr.bf16.mxu0 0
  %3125 = vmatpush1.bf16.msra.mxu0 0
  %3126 = vmatprep.subr.bf16.mxu0 0
  %3127 = vmatpush1.bf16.msra.mxu0 0
  %3128 = vmatprep.subr.bf16.mxu0 0
  %3129 = vmatpush1.bf16.msra.mxu0 0
  %3130 = vmatprep.subr.bf16.mxu0 0
  %3131 = vmatpush1.bf16.msra.mxu0 0
  %3132 = vmatprep.mubr.bf16.mxu0 0
  %3133 = vmatmul.mubr.bf16.gmra.mrb[0].mxu0 %v3098
  %v3134 = vpop.f32.mrb[0].mxu0
  %v3135 = vadd.f32 %v852, %v3134
  %v3136 = vpop.f32.mrb[0].mxu0
  %v3137 = vpop.f32.mrb[0].mxu0
  %v3138 = vpop.f32.mrb[0].mxu0
  %3139 = vdwg.mxu0
  %v3140 = vmul.f32 %v2933, 0.108641975
  %3142 = vrot.lane.b32.xlu0 %v3140, 96
  %v3143 = vpop.permute.xlu0 %3142
  %v3145 = vadd.f32 %v2845, %v3143
  %v3146 = vmul.f32 %v3031, -0.4148148
  %3148 = vrot.lane.b32.xlu0 %v3146, 96
  %v3149 = vpop.permute.xlu0 %3148
  %v3151 = vadd.f32 %v3145, %v3149
  %v3152 = vmul.f32 %v3135, 0.39506173
  %3154 = vrot.lane.b32.xlu0 %v3152, 96
  %v3155 = vpop.permute.xlu0 %3154
  %v3157 = vadd.f32 %v3151, %v3155
  %v3158 = vpack.c.bf16 %v3157, %v3157
  %3160 = vrot.lane.b32.xlu0 %v3158, 32
  %v3161 = vpop.permute.xlu0 %3160
  %v3163 = vsel %vm172, %v3161, 0
  %3165 = vmatprep.subr.bf16.mxu0 0
  %3166 = vmatpush1.bf16.msra.mxu0 %v799
  %3167 = vmatprep.subr.bf16.mxu0 0
  %3168 = vmatpush1.bf16.msra.mxu0 %v800
  %3169 = vmatprep.subr.bf16.mxu0 0
  %3170 = vmatpush1.bf16.msra.mxu0 0
  %3171 = vmatprep.subr.bf16.mxu0 0
  %3172 = vmatpush1.bf16.msra.mxu0 0
  %3173 = vmatprep.subr.bf16.mxu0 0
  %3174 = vmatpush1.bf16.msra.mxu0 0
  %3175 = vmatprep.subr.bf16.mxu0 0
  %3176 = vmatpush1.bf16.msra.mxu0 0
  %3177 = vmatprep.subr.bf16.mxu0 0
  %3178 = vmatpush1.bf16.msra.mxu0 0
  %3179 = vmatprep.subr.bf16.mxu0 0
  %3180 = vmatpush1.bf16.msra.mxu0 0
  %3181 = vmatprep.subr.bf16.mxu0 0
  %3182 = vmatpush1.bf16.msra.mxu0 0
  %3183 = vmatprep.subr.bf16.mxu0 0
  %3184 = vmatpush1.bf16.msra.mxu0 0
  %3185 = vmatprep.subr.bf16.mxu0 0
  %3186 = vmatpush1.bf16.msra.mxu0 0
  %3187 = vmatprep.subr.bf16.mxu0 0
  %3188 = vmatpush1.bf16.msra.mxu0 0
  %3189 = vmatprep.subr.bf16.mxu0 0
  %3190 = vmatpush1.bf16.msra.mxu0 0
  %3191 = vmatprep.subr.bf16.mxu0 0
  %3192 = vmatpush1.bf16.msra.mxu0 0
  %3193 = vmatprep.subr.bf16.mxu0 0
  %3194 = vmatpush1.bf16.msra.mxu0 0
  %3195 = vmatprep.subr.bf16.mxu0 0
  %3196 = vmatpush1.bf16.msra.mxu0 0
  %3197 = vmatprep.mubr.bf16.mxu0 0
  %3198 = vmatmul.mubr.bf16.gmra.mrb[0].mxu0 %v3163
  %v3199 = vpop.f32.mrb[0].mxu0
  %v3200 = vadd.f32 %v786, %v3199
  %v3201 = vpop.f32.mrb[0].mxu0
  %v3202 = vpop.f32.mrb[0].mxu0
  %v3203 = vpop.f32.mrb[0].mxu0
  %3204 = vdwg.mxu0
  %v3205 = vtanh.pop %v3200
  %v3206 = vpack.c.bf16 %v3205, %v3205
  %v3208 = vsel %vm878, %v3206, 0
  %3210 = vmatprep.subr.bf16.mxu0 0
  %3211 = vmatpush1.bf16.msra.mxu0 %v870
  %3212 = vmatprep.subr.bf16.mxu0 0
  %3213 = vmatpush1.bf16.msra.mxu0 %v871
  %3214 = vmatprep.subr.bf16.mxu0 0
  %3215 = vmatpush1.bf16.msra.mxu0 %v872
  %3216 = vmatprep.subr.bf16.mxu0 0
  %3217 = vmatpush1.bf16.msra.mxu0 %v873
  %3218 = vmatprep.subr.bf16.mxu0 0
  %3219 = vmatpush1.bf16.msra.mxu0 0
  %3220 = vmatprep.subr.bf16.mxu0 0
  %3221 = vmatpush1.bf16.msra.mxu0 0
  %3222 = vmatprep.subr.bf16.mxu0 0
  %3223 = vmatpush1.bf16.msra.mxu0 0
  %3224 = vmatprep.subr.bf16.mxu0 0
  %3225 = vmatpush1.bf16.msra.mxu0 0
  %3226 = vmatprep.subr.bf16.mxu0 0
  %3227 = vmatpush1.bf16.msra.mxu0 0
  %3228 = vmatprep.subr.bf16.mxu0 0
  %3229 = vmatpush1.bf16.msra.mxu0 0
  %3230 = vmatprep.subr.bf16.mxu0 0
  %3231 = vmatpush1.bf16.msra.mxu0 0
  %3232 = vmatprep.subr.bf16.mxu0 0
  %3233 = vmatpush1.bf16.msra.mxu0 0
  %3234 = vmatprep.subr.bf16.mxu0 0
  %3235 = vmatpush1.bf16.msra.mxu0 0
  %3236 = vmatprep.subr.bf16.mxu0 0
  %3237 = vmatpush1.bf16.msra.mxu0 0
  %3238 = vmatprep.subr.bf16.mxu0 0
  %3239 = vmatpush1.bf16.msra.mxu0 0
  %3240 = vmatprep.subr.bf16.mxu0 0
  %3241 = vmatpush1.bf16.msra.mxu0 0
  %3242 = vmatprep.mubr.bf16.mxu0 0
  %3243 = vmatmul.mubr.bf16.gmra.mrb[0].mxu0 %v3208
  %v3244 = vpop.f32.mrb[0].mxu0
  %v3245 = vadd.f32 %v852, %v3244
  %v3246 = vpop.f32.mrb[0].mxu0
  %v3247 = vpop.f32.mrb[0].mxu0
  %v3248 = vpop.f32.mrb[0].mxu0
  %3249 = vdwg.mxu0
  %v3250 = vmul.f32 %v2933, 0.32806653
  %3252 = vrot.lane.b32.xlu0 %v3250, 96
  %v3253 = vpop.permute.xlu0 %3252
  %v3255 = vadd.f32 %v2845, %v3253
  %v3256 = vmul.f32 %v3031, -1.2884215
  %3258 = vrot.lane.b32.xlu0 %v3256, 96
  %v3259 = vpop.permute.xlu0 %3258
  %v3261 = vadd.f32 %v3255, %v3259
  %v3262 = vmul.f32 %v3135, 1.0914326
  %3264 = vrot.lane.b32.xlu0 %v3262, 96
  %v3265 = vpop.permute.xlu0 %3264
  %v3267 = vadd.f32 %v3261, %v3265
  %v3268 = vmul.f32 %v3245, -0.032312147
  %3270 = vrot.lane.b32.xlu0 %v3268, 96
  %v3271 = vpop.permute.xlu0 %3270
  %v3273 = vadd.f32 %v3267, %v3271
  %v3274 = vpack.c.bf16 %v3273, %v3273
  %3276 = vrot.lane.b32.xlu0 %v3274, 32
  %v3277 = vpop.permute.xlu0 %3276
  %v3279 = vsel %vm172, %v3277, 0
  %3281 = vmatprep.subr.bf16.mxu0 0
  %3282 = vmatpush1.bf16.msra.mxu0 %v799
  %3283 = vmatprep.subr.bf16.mxu0 0
  %3284 = vmatpush1.bf16.msra.mxu0 %v800
  %3285 = vmatprep.subr.bf16.mxu0 0
  %3286 = vmatpush1.bf16.msra.mxu0 0
  %3287 = vmatprep.subr.bf16.mxu0 0
  %3288 = vmatpush1.bf16.msra.mxu0 0
  %3289 = vmatprep.subr.bf16.mxu0 0
  %3290 = vmatpush1.bf16.msra.mxu0 0
  %3291 = vmatprep.subr.bf16.mxu0 0
  %3292 = vmatpush1.bf16.msra.mxu0 0
  %3293 = vmatprep.subr.bf16.mxu0 0
  %3294 = vmatpush1.bf16.msra.mxu0 0
  %3295 = vmatprep.subr.bf16.mxu0 0
  %3296 = vmatpush1.bf16.msra.mxu0 0
  %3297 = vmatprep.subr.bf16.mxu0 0
  %3298 = vmatpush1.bf16.msra.mxu0 0
  %3299 = vmatprep.subr.bf16.mxu0 0
  %3300 = vmatpush1.bf16.msra.mxu0 0
  %3301 = vmatprep.subr.bf16.mxu0 0
  %3302 = vmatpush1.bf16.msra.mxu0 0
  %3303 = vmatprep.subr.bf16.mxu0 0
  %3304 = vmatpush1.bf16.msra.mxu0 0
  %3305 = vmatprep.subr.bf16.mxu0 0
  %3306 = vmatpush1.bf16.msra.mxu0 0
  %3307 = vmatprep.subr.bf16.mxu0 0
  %3308 = vmatpush1.bf16.msra.mxu0 0
  %3309 = vmatprep.subr.bf16.mxu0 0
  %3310 = vmatpush1.bf16.msra.mxu0 0
  %3311 = vmatprep.subr.bf16.mxu0 0
  %3312 = vmatpush1.bf16.msra.mxu0 0
  %3313 = vmatprep.mubr.bf16.mxu0 0
  %3314 = vmatmul.mubr.bf16.gmra.mrb[0].mxu0 %v3279
  %v3315 = vpop.f32.mrb[0].mxu0
  %v3316 = vadd.f32 %v786, %v3315
  %v3317 = vpop.f32.mrb[0].mxu0
  %v3318 = vpop.f32.mrb[0].mxu0
  %v3319 = vpop.f32.mrb[0].mxu0
  %3320 = vdwg.mxu0
  %v3321 = vtanh.pop %v3316
  %v3322 = vpack.c.bf16 %v3321, %v3321
  %v3324 = vsel %vm878, %v3322, 0
  %3326 = vmatprep.subr.bf16.mxu0 0
  %3327 = vmatpush1.bf16.msra.mxu0 %v870
  %3328 = vmatprep.subr.bf16.mxu0 0
  %3329 = vmatpush1.bf16.msra.mxu0 %v871
  %3330 = vmatprep.subr.bf16.mxu0 0
  %3331 = vmatpush1.bf16.msra.mxu0 %v872
  %3332 = vmatprep.subr.bf16.mxu0 0
  %3333 = vmatpush1.bf16.msra.mxu0 %v873
  %3334 = vmatprep.subr.bf16.mxu0 0
  %3335 = vmatpush1.bf16.msra.mxu0 0
  %3336 = vmatprep.subr.bf16.mxu0 0
  %3337 = vmatpush1.bf16.msra.mxu0 0
  %3338 = vmatprep.subr.bf16.mxu0 0
  %3339 = vmatpush1.bf16.msra.mxu0 0
  %3340 = vmatprep.subr.bf16.mxu0 0
  %3341 = vmatpush1.bf16.msra.mxu0 0
  %3342 = vmatprep.subr.bf16.mxu0 0
  %3343 = vmatpush1.bf16.msra.mxu0 0
  %3344 = vmatprep.subr.bf16.mxu0 0
  %3345 = vmatpush1.bf16.msra.mxu0 0
  %3346 = vmatprep.subr.bf16.mxu0 0
  %3347 = vmatpush1.bf16.msra.mxu0 0
  %3348 = vmatprep.subr.bf16.mxu0 0
  %3349 = vmatpush1.bf16.msra.mxu0 0
  %3350 = vmatprep.subr.bf16.mxu0 0
  %3351 = vmatpush1.bf16.msra.mxu0 0
  %3352 = vmatprep.subr.bf16.mxu0 0
  %3353 = vmatpush1.bf16.msra.mxu0 0
  %3354 = vmatprep.subr.bf16.mxu0 0
  %3355 = vmatpush1.bf16.msra.mxu0 0
  %3356 = vmatprep.subr.bf16.mxu0 0
  %3357 = vmatpush1.bf16.msra.mxu0 0
  %3358 = vmatprep.mubr.bf16.mxu0 0
  %3359 = vmatmul.mubr.bf16.gmra.mrb[0].mxu0 %v3324
  %v3360 = vpop.f32.mrb[0].mxu0
  %v3361 = vadd.f32 %v852, %v3360
  %v3362 = vpop.f32.mrb[0].mxu0
  %v3363 = vpop.f32.mrb[0].mxu0
  %v3364 = vpop.f32.mrb[0].mxu0
  %3365 = vdwg.mxu0
  %v3366 = vmul.f32 %v2933, 0.3162528
  %3368 = vrot.lane.b32.xlu0 %v3366, 96
  %v3369 = vpop.permute.xlu0 %3368
  %v3371 = vadd.f32 %v2845, %v3369
  %v3372 = vmul.f32 %v3031, -1.1952862
  %3374 = vrot.lane.b32.xlu0 %v3372, 96
  %v3375 = vpop.permute.xlu0 %3374
  %v3377 = vadd.f32 %v3371, %v3375
  %v3378 = vmul.f32 %v3135, 0.9896025
  %3380 = vrot.lane.b32.xlu0 %v3378, 96
  %v3381 = vpop.permute.xlu0 %3380
  %v3383 = vadd.f32 %v3377, %v3381
  %v3384 = vmul.f32 %v3245, 0.030934343
  %3386 = vrot.lane.b32.xlu0 %v3384, 96
  %v3387 = vpop.permute.xlu0 %3386
  %v3389 = vadd.f32 %v3383, %v3387
  %v3390 = vmul.f32 %v3361, -0.030392367
  %3392 = vrot.lane.b32.xlu0 %v3390, 96
  %v3393 = vpop.permute.xlu0 %3392
  %v3395 = vadd.f32 %v3389, %v3393
  %v3396 = vpack.c.bf16 %v3395, %v3395
  %3398 = vrot.lane.b32.xlu0 %v3396, 32
  %v3399 = vpop.permute.xlu0 %3398
  %v3401 = vsel %vm172, %v3399, 0
  %3403 = vmatprep.subr.bf16.mxu0 0
  %3404 = vmatpush1.bf16.msra.mxu0 %v799
  %3405 = vmatprep.subr.bf16.mxu0 0
  %3406 = vmatpush1.bf16.msra.mxu0 %v800
  %3407 = vmatprep.subr.bf16.mxu0 0
  %3408 = vmatpush1.bf16.msra.mxu0 0
  %3409 = vmatprep.subr.bf16.mxu0 0
  %3410 = vmatpush1.bf16.msra.mxu0 0
  %3411 = vmatprep.subr.bf16.mxu0 0
  %3412 = vmatpush1.bf16.msra.mxu0 0
  %3413 = vmatprep.subr.bf16.mxu0 0
  %3414 = vmatpush1.bf16.msra.mxu0 0
  %3415 = vmatprep.subr.bf16.mxu0 0
  %3416 = vmatpush1.bf16.msra.mxu0 0
  %3417 = vmatprep.subr.bf16.mxu0 0
  %3418 = vmatpush1.bf16.msra.mxu0 0
  %3419 = vmatprep.subr.bf16.mxu0 0
  %3420 = vmatpush1.bf16.msra.mxu0 0
  %3421 = vmatprep.subr.bf16.mxu0 0
  %3422 = vmatpush1.bf16.msra.mxu0 0
  %3423 = vmatprep.subr.bf16.mxu0 0
  %3424 = vmatpush1.bf16.msra.mxu0 0
  %3425 = vmatprep.subr.bf16.mxu0 0
  %3426 = vmatpush1.bf16.msra.mxu0 0
  %3427 = vmatprep.subr.bf16.mxu0 0
  %3428 = vmatpush1.bf16.msra.mxu0 0
  %3429 = vmatprep.subr.bf16.mxu0 0
  %3430 = vmatpush1.bf16.msra.mxu0 0
  %3431 = vmatprep.subr.bf16.mxu0 0
  %3432 = vmatpush1.bf16.msra.mxu0 0
  %3433 = vmatprep.subr.bf16.mxu0 0
  %3434 = vmatpush1.bf16.msra.mxu0 0
  %3435 = vmatprep.mubr.bf16.mxu0 0
  %3436 = vmatmul.mubr.bf16.gmra.mrb[0].mxu0 %v3401
  %v3437 = vpop.f32.mrb[0].mxu0
  %v3438 = vadd.f32 %v786, %v3437
  %v3439 = vpop.f32.mrb[0].mxu0
  %v3440 = vpop.f32.mrb[0].mxu0
  %v3441 = vpop.f32.mrb[0].mxu0
  %3442 = vdwg.mxu0
  %v3443 = vtanh.pop %v3438
  %v3444 = vpack.c.bf16 %v3443, %v3443
  %v3446 = vsel %vm878, %v3444, 0
  %3448 = vmatprep.subr.bf16.mxu0 0
  %3449 = vmatpush1.bf16.msra.mxu0 %v870
  %3450 = vmatprep.subr.bf16.mxu0 0
  %3451 = vmatpush1.bf16.msra.mxu0 %v871
  %3452 = vmatprep.subr.bf16.mxu0 0
  %3453 = vmatpush1.bf16.msra.mxu0 %v872
  %3454 = vmatprep.subr.bf16.mxu0 0
  %3455 = vmatpush1.bf16.msra.mxu0 %v873
  %3456 = vmatprep.subr.bf16.mxu0 0
  %3457 = vmatpush1.bf16.msra.mxu0 0
  %3458 = vmatprep.subr.bf16.mxu0 0
  %3459 = vmatpush1.bf16.msra.mxu0 0
  %3460 = vmatprep.subr.bf16.mxu0 0
  %3461 = vmatpush1.bf16.msra.mxu0 0
  %3462 = vmatprep.subr.bf16.mxu0 0
  %3463 = vmatpush1.bf16.msra.mxu0 0
  %3464 = vmatprep.subr.bf16.mxu0 0
  %3465 = vmatpush1.bf16.msra.mxu0 0
  %3466 = vmatprep.subr.bf16.mxu0 0
  %3467 = vmatpush1.bf16.msra.mxu0 0
  %3468 = vmatprep.subr.bf16.mxu0 0
  %3469 = vmatpush1.bf16.msra.mxu0 0
  %3470 = vmatprep.subr.bf16.mxu0 0
  %3471 = vmatpush1.bf16.msra.mxu0 0
  %3472 = vmatprep.subr.bf16.mxu0 0
  %3473 = vmatpush1.bf16.msra.mxu0 0
  %3474 = vmatprep.subr.bf16.mxu0 0
  %3475 = vmatpush1.bf16.msra.mxu0 0
  %3476 = vmatprep.subr.bf16.mxu0 0
  %3477 = vmatpush1.bf16.msra.mxu0 0
  %3478 = vmatprep.subr.bf16.mxu0 0
  %3479 = vmatpush1.bf16.msra.mxu0 0
  %3480 = vmatprep.mubr.bf16.mxu0 0
  %3481 = vmatmul.mubr.bf16.gmra.mrb[0].mxu0 %v3446
  %v3482 = vpop.f32.mrb[0].mxu0
  %v3483 = vadd.f32 %v852, %v3482
  %v3484 = vpop.f32.mrb[0].mxu0
  %v3485 = vpop.f32.mrb[0].mxu0
  %v3486 = vpop.f32.mrb[0].mxu0
  %3487 = vdwg.mxu0
  %v3488 = vmul.f32 %v2933, 0.010127314
  %3490 = vrot.lane.b32.xlu0 %v3488, 96
  %v3491 = vpop.permute.xlu0 %3490
  %v3493 = vadd.f32 %v2845, %v3491
  %v3494 = vmul.f32 %v3135, 0.049915146
  %3496 = vrot.lane.b32.xlu0 %v3494, 96
  %v3497 = vpop.permute.xlu0 %3496
  %v3499 = vadd.f32 %v3493, %v3497
  %v3500 = vmul.f32 %v3245, 0.07233796
  %3502 = vrot.lane.b32.xlu0 %v3500, 96
  %v3503 = vpop.permute.xlu0 %3502
  %v3505 = vadd.f32 %v3499, %v3503
  %v3506 = vmul.f32 %v3361, -0.035819575
  %3508 = vrot.lane.b32.xlu0 %v3506, 96
  %v3509 = vpop.permute.xlu0 %3508
  %v3511 = vadd.f32 %v3505, %v3509
  %v3512 = vmul.f32 %v3483, 0.014550265
  %3514 = vrot.lane.b32.xlu0 %v3512, 96
  %v3515 = vpop.permute.xlu0 %3514
  %v3517 = vadd.f32 %v3511, %v3515
  %v3518 = vpack.c.bf16 %v3517, %v3517
  %3520 = vrot.lane.b32.xlu0 %v3518, 32
  %v3521 = vpop.permute.xlu0 %3520
  %v3523 = vsel %vm172, %v3521, 0
  %3525 = vmatprep.subr.bf16.mxu0 0
  %3526 = vmatpush1.bf16.msra.mxu0 %v799
  %3527 = vmatprep.subr.bf16.mxu0 0
  %3528 = vmatpush1.bf16.msra.mxu0 %v800
  %3529 = vmatprep.subr.bf16.mxu0 0
  %3530 = vmatpush1.bf16.msra.mxu0 0
  %3531 = vmatprep.subr.bf16.mxu0 0
  %3532 = vmatpush1.bf16.msra.mxu0 0
  %3533 = vmatprep.subr.bf16.mxu0 0
  %3534 = vmatpush1.bf16.msra.mxu0 0
  %3535 = vmatprep.subr.bf16.mxu0 0
  %3536 = vmatpush1.bf16.msra.mxu0 0
  %3537 = vmatprep.subr.bf16.mxu0 0
  %3538 = vmatpush1.bf16.msra.mxu0 0
  %3539 = vmatprep.subr.bf16.mxu0 0
  %3540 = vmatpush1.bf16.msra.mxu0 0
  %3541 = vmatprep.subr.bf16.mxu0 0
  %3542 = vmatpush1.bf16.msra.mxu0 0
  %3543 = vmatprep.subr.bf16.mxu0 0
  %3544 = vmatpush1.bf16.msra.mxu0 0
  %3545 = vmatprep.subr.bf16.mxu0 0
  %3546 = vmatpush1.bf16.msra.mxu0 0
  %3547 = vmatprep.subr.bf16.mxu0 0
  %3548 = vmatpush1.bf16.msra.mxu0 0
  %3549 = vmatprep.subr.bf16.mxu0 0
  %3550 = vmatpush1.bf16.msra.mxu0 0
  %3551 = vmatprep.subr.bf16.mxu0 0
  %3552 = vmatpush1.bf16.msra.mxu0 0
  %3553 = vmatprep.subr.bf16.mxu0 0
  %3554 = vmatpush1.bf16.msra.mxu0 0
  %3555 = vmatprep.subr.bf16.mxu0 0
  %3556 = vmatpush1.bf16.msra.mxu0 0
  %3557 = vmatprep.mubr.bf16.mxu0 0
  %3558 = vmatmul.mubr.bf16.gmra.mrb[0].mxu0 %v3523
  %v3559 = vpop.f32.mrb[0].mxu0
  %v3560 = vadd.f32 %v786, %v3559
  %v3561 = vpop.f32.mrb[0].mxu0
  %v3562 = vpop.f32.mrb[0].mxu0
  %v3563 = vpop.f32.mrb[0].mxu0
  %3564 = vdwg.mxu0
  %v3565 = vtanh.pop %v3560
  %v3566 = vpack.c.bf16 %v3565, %v3565
  %v3568 = vsel %vm878, %v3566, 0
  %3570 = vmatprep.subr.bf16.mxu0 0
  %3571 = vmatpush1.bf16.msra.mxu0 %v870
  %3572 = vmatprep.subr.bf16.mxu0 0
  %3573 = vmatpush1.bf16.msra.mxu0 %v871
  %3574 = vmatprep.subr.bf16.mxu0 0
  %3575 = vmatpush1.bf16.msra.mxu0 %v872
  %3576 = vmatprep.subr.bf16.mxu0 0
  %3577 = vmatpush1.bf16.msra.mxu0 %v873
  %3578 = vmatprep.subr.bf16.mxu0 0
  %3579 = vmatpush1.bf16.msra.mxu0 0
  %3580 = vmatprep.subr.bf16.mxu0 0
  %3581 = vmatpush1.bf16.msra.mxu0 0
  %3582 = vmatprep.subr.bf16.mxu0 0
  %3583 = vmatpush1.bf16.msra.mxu0 0
  %3584 = vmatprep.subr.bf16.mxu0 0
  %3585 = vmatpush1.bf16.msra.mxu0 0
  %3586 = vmatprep.subr.bf16.mxu0 0
  %3587 = vmatpush1.bf16.msra.mxu0 0
  %3588 = vmatprep.subr.bf16.mxu0 0
  %3589 = vmatpush1.bf16.msra.mxu0 0
  %3590 = vmatprep.subr.bf16.mxu0 0
  %3591 = vmatpush1.bf16.msra.mxu0 0
  %3592 = vmatprep.subr.bf16.mxu0 0
  %3593 = vmatpush1.bf16.msra.mxu0 0
  %3594 = vmatprep.subr.bf16.mxu0 0
  %3595 = vmatpush1.bf16.msra.mxu0 0
  %3596 = vmatprep.subr.bf16.mxu0 0
  %3597 = vmatpush1.bf16.msra.mxu0 0
  %3598 = vmatprep.subr.bf16.mxu0 0
  %3599 = vmatpush1.bf16.msra.mxu0 0
  %3600 = vmatprep.subr.bf16.mxu0 0
  %3601 = vmatpush1.bf16.msra.mxu0 0
  %3602 = vmatprep.mubr.bf16.mxu0 0
  %3603 = vmatmul.mubr.bf16.gmra.mrb[0].mxu0 %v3568
  %v3604 = vpop.f32.mrb[0].mxu0
  %v3605 = vadd.f32 %v852, %v3604
  %v3606 = vpop.f32.mrb[0].mxu0
  %v3607 = vpop.f32.mrb[0].mxu0
  %v3608 = vpop.f32.mrb[0].mxu0
  %3609 = vdwg.mxu0
  %v3610 = vmul.f32 %v3605, 0.022222223
  %3612 = vrot.lane.b32.xlu0 %v3610, 96
  %v3613 = vpop.permute.xlu0 %3612
  %v3615 = vadd.f32 %v3517, %v3613
  %v3616 = vpack.c.bf16 %v3615, %v3615
  %3618 = vrot.lane.b32.xlu0 %v3616, 32
  %v3619 = vpop.permute.xlu0 %3618
  %v3621 = vsel %vm172, %v3619, 0
  %3623 = vmatprep.subr.bf16.mxu0 0
  %3624 = vmatpush1.bf16.msra.mxu0 %v799
  %3625 = vmatprep.subr.bf16.mxu0 0
  %3626 = vmatpush1.bf16.msra.mxu0 %v800
  %3627 = vmatprep.subr.bf16.mxu0 0
  %3628 = vmatpush1.bf16.msra.mxu0 0
  %3629 = vmatprep.subr.bf16.mxu0 0
  %3630 = vmatpush1.bf16.msra.mxu0 0
  %3631 = vmatprep.subr.bf16.mxu0 0
  %3632 = vmatpush1.bf16.msra.mxu0 0
  %3633 = vmatprep.subr.bf16.mxu0 0
  %3634 = vmatpush1.bf16.msra.mxu0 0
  %3635 = vmatprep.subr.bf16.mxu0 0
  %3636 = vmatpush1.bf16.msra.mxu0 0
  %3637 = vmatprep.subr.bf16.mxu0 0
  %3638 = vmatpush1.bf16.msra.mxu0 0
  %3639 = vmatprep.subr.bf16.mxu0 0
  %3640 = vmatpush1.bf16.msra.mxu0 0
  %3641 = vmatprep.subr.bf16.mxu0 0
  %3642 = vmatpush1.bf16.msra.mxu0 0
  %3643 = vmatprep.subr.bf16.mxu0 0
  %3644 = vmatpush1.bf16.msra.mxu0 0
  %3645 = vmatprep.subr.bf16.mxu0 0
  %3646 = vmatpush1.bf16.msra.mxu0 0
  %3647 = vmatprep.subr.bf16.mxu0 0
  %3648 = vmatpush1.bf16.msra.mxu0 0
  %3649 = vmatprep.subr.bf16.mxu0 0
  %3650 = vmatpush1.bf16.msra.mxu0 0
  %3651 = vmatprep.subr.bf16.mxu0 0
  %3652 = vmatpush1.bf16.msra.mxu0 0
  %3653 = vmatprep.subr.bf16.mxu0 0
  %3654 = vmatpush1.bf16.msra.mxu0 0
  %3655 = vmatprep.mubr.bf16.mxu0 0
  %3656 = vmatmul.mubr.bf16.gmra.mrb[0].mxu0 %v3621
  %v3657 = vpop.f32.mrb[0].mxu0
  %v3658 = vadd.f32 %v786, %v3657
  %v3659 = vpop.f32.mrb[0].mxu0
  %v3660 = vpop.f32.mrb[0].mxu0
  %v3661 = vpop.f32.mrb[0].mxu0
  %3662 = vdwg.mxu0
  %v3663 = vtanh.pop %v3658
  %v3664 = vpack.c.bf16 %v3663, %v3663
  %v3666 = vsel %vm878, %v3664, 0
  %3668 = vmatprep.subr.bf16.mxu0 0
  %3669 = vmatpush1.bf16.msra.mxu0 %v870
  %3670 = vmatprep.subr.bf16.mxu0 0
  %3671 = vmatpush1.bf16.msra.mxu0 %v871
  %3672 = vmatprep.subr.bf16.mxu0 0
  %3673 = vmatpush1.bf16.msra.mxu0 %v872
  %3674 = vmatprep.subr.bf16.mxu0 0
  %3675 = vmatpush1.bf16.msra.mxu0 %v873
  %3676 = vmatprep.subr.bf16.mxu0 0
  %3677 = vmatpush1.bf16.msra.mxu0 0
  %3678 = vmatprep.subr.bf16.mxu0 0
  %3679 = vmatpush1.bf16.msra.mxu0 0
  %3680 = vmatprep.subr.bf16.mxu0 0
  %3681 = vmatpush1.bf16.msra.mxu0 0
  %3682 = vmatprep.subr.bf16.mxu0 0
  %3683 = vmatpush1.bf16.msra.mxu0 0
  %3684 = vmatprep.subr.bf16.mxu0 0
  %3685 = vmatpush1.bf16.msra.mxu0 0
  %3686 = vmatprep.subr.bf16.mxu0 0
  %3687 = vmatpush1.bf16.msra.mxu0 0
  %3688 = vmatprep.subr.bf16.mxu0 0
  %3689 = vmatpush1.bf16.msra.mxu0 0
  %3690 = vmatprep.subr.bf16.mxu0 0
  %3691 = vmatpush1.bf16.msra.mxu0 0
  %3692 = vmatprep.subr.bf16.mxu0 0
  %3693 = vmatpush1.bf16.msra.mxu0 0
  %3694 = vmatprep.subr.bf16.mxu0 0
  %3695 = vmatpush1.bf16.msra.mxu0 0
  %3696 = vmatprep.subr.bf16.mxu0 0
  %3697 = vmatpush1.bf16.msra.mxu0 0
  %3698 = vmatprep.subr.bf16.mxu0 0
  %3699 = vmatpush1.bf16.msra.mxu0 0
  %3700 = vmatprep.mubr.bf16.mxu0 0
  %3701 = vmatmul.mubr.bf16.gmra.mrb[0].mxu0 %v3666
  %v3702 = vpop.f32.mrb[0].mxu0
  %v3703 = vadd.f32 %v852, %v3702
  %v3704 = vpop.f32.mrb[0].mxu0
  %v3705 = vpop.f32.mrb[0].mxu0
  %v3706 = vpop.f32.mrb[0].mxu0
  %3707 = vdwg.mxu0
  %v3708 = vmul.f32 %v3605, 0.008333334
  %3710 = vrot.lane.b32.xlu0 %v3708, 96
  %v3711 = vpop.permute.xlu0 %3710
  %v3713 = vadd.f32 %v3517, %v3711
  %v3714 = vmul.f32 %v3703, 0.025
  %3716 = vrot.lane.b32.xlu0 %v3714, 96
  %v3717 = vpop.permute.xlu0 %3716
  %v3719 = vadd.f32 %v3713, %v3717
  %v3720 = vpack.c.bf16 %v3719, %v3719
  %3722 = vrot.lane.b32.xlu0 %v3720, 32
  %v3723 = vpop.permute.xlu0 %3722
  %v3725 = vsel %vm172, %v3723, 0
  %3727 = vmatprep.subr.bf16.mxu0 0
  %3728 = vmatpush1.bf16.msra.mxu0 %v799
  %3729 = vmatprep.subr.bf16.mxu0 0
  %3730 = vmatpush1.bf16.msra.mxu0 %v800
  %3731 = vmatprep.subr.bf16.mxu0 0
  %3732 = vmatpush1.bf16.msra.mxu0 0
  %3733 = vmatprep.subr.bf16.mxu0 0
  %3734 = vmatpush1.bf16.msra.mxu0 0
  %3735 = vmatprep.subr.bf16.mxu0 0
  %3736 = vmatpush1.bf16.msra.mxu0 0
  %3737 = vmatprep.subr.bf16.mxu0 0
  %3738 = vmatpush1.bf16.msra.mxu0 0
  %3739 = vmatprep.subr.bf16.mxu0 0
  %3740 = vmatpush1.bf16.msra.mxu0 0
  %3741 = vmatprep.subr.bf16.mxu0 0
  %3742 = vmatpush1.bf16.msra.mxu0 0
  %3743 = vmatprep.subr.bf16.mxu0 0
  %3744 = vmatpush1.bf16.msra.mxu0 0
  %3745 = vmatprep.subr.bf16.mxu0 0
  %3746 = vmatpush1.bf16.msra.mxu0 0
  %3747 = vmatprep.subr.bf16.mxu0 0
  %3748 = vmatpush1.bf16.msra.mxu0 0
  %3749 = vmatprep.subr.bf16.mxu0 0
  %3750 = vmatpush1.bf16.msra.mxu0 0
  %3751 = vmatprep.subr.bf16.mxu0 0
  %3752 = vmatpush1.bf16.msra.mxu0 0
  %3753 = vmatprep.subr.bf16.mxu0 0
  %3754 = vmatpush1.bf16.msra.mxu0 0
  %3755 = vmatprep.subr.bf16.mxu0 0
  %3756 = vmatpush1.bf16.msra.mxu0 0
  %3757 = vmatprep.subr.bf16.mxu0 0
  %3758 = vmatpush1.bf16.msra.mxu0 0
  %3759 = vmatprep.mubr.bf16.mxu0 0
  %3760 = vmatmul.mubr.bf16.gmra.mrb[0].mxu0 %v3725
  %v3761 = vpop.f32.mrb[0].mxu0
  %v3762 = vadd.f32 %v786, %v3761
  %v3763 = vpop.f32.mrb[0].mxu0
  %v3764 = vpop.f32.mrb[0].mxu0
  %v3765 = vpop.f32.mrb[0].mxu0
  %3766 = vdwg.mxu0
  %v3767 = vtanh.pop %v3762
  %v3768 = vpack.c.bf16 %v3767, %v3767
  %v3770 = vsel %vm878, %v3768, 0
  %3772 = vmatprep.subr.bf16.mxu0 0
  %3773 = vmatpush1.bf16.msra.mxu0 %v870
  %3774 = vmatprep.subr.bf16.mxu0 0
  %3775 = vmatpush1.bf16.msra.mxu0 %v871
  %3776 = vmatprep.subr.bf16.mxu0 0
  %3777 = vmatpush1.bf16.msra.mxu0 %v872
  %3778 = vmatprep.subr.bf16.mxu0 0
  %3779 = vmatpush1.bf16.msra.mxu0 %v873
  %3780 = vmatprep.subr.bf16.mxu0 0
  %3781 = vmatpush1.bf16.msra.mxu0 0
  %3782 = vmatprep.subr.bf16.mxu0 0
  %3783 = vmatpush1.bf16.msra.mxu0 0
  %3784 = vmatprep.subr.bf16.mxu0 0
  %3785 = vmatpush1.bf16.msra.mxu0 0
  %3786 = vmatprep.subr.bf16.mxu0 0
  %3787 = vmatpush1.bf16.msra.mxu0 0
  %3788 = vmatprep.subr.bf16.mxu0 0
  %3789 = vmatpush1.bf16.msra.mxu0 0
  %3790 = vmatprep.subr.bf16.mxu0 0
  %3791 = vmatpush1.bf16.msra.mxu0 0
  %3792 = vmatprep.subr.bf16.mxu0 0
  %3793 = vmatpush1.bf16.msra.mxu0 0
  %3794 = vmatprep.subr.bf16.mxu0 0
  %3795 = vmatpush1.bf16.msra.mxu0 0
  %3796 = vmatprep.subr.bf16.mxu0 0
  %3797 = vmatpush1.bf16.msra.mxu0 0
  %3798 = vmatprep.subr.bf16.mxu0 0
  %3799 = vmatpush1.bf16.msra.mxu0 0
  %3800 = vmatprep.subr.bf16.mxu0 0
  %3801 = vmatpush1.bf16.msra.mxu0 0
  %3802 = vmatprep.subr.bf16.mxu0 0
  %3803 = vmatpush1.bf16.msra.mxu0 0
  %3804 = vmatprep.mubr.bf16.mxu0 0
  %3805 = vmatmul.mubr.bf16.gmra.mrb[0].mxu0 %v3770
  %v3806 = vpop.f32.mrb[0].mxu0
  %v3807 = vadd.f32 %v852, %v3806
  %v3808 = vpop.f32.mrb[0].mxu0
  %v3809 = vpop.f32.mrb[0].mxu0
  %v3810 = vpop.f32.mrb[0].mxu0
  %3811 = vdwg.mxu0
  %v3812 = vmul.f32 %v3605, 0.108641975
  %3814 = vrot.lane.b32.xlu0 %v3812, 96
  %v3815 = vpop.permute.xlu0 %3814
  %v3817 = vadd.f32 %v3517, %v3815
  %v3818 = vmul.f32 %v3703, -0.4148148
  %3820 = vrot.lane.b32.xlu0 %v3818, 96
  %v3821 = vpop.permute.xlu0 %3820
  %v3823 = vadd.f32 %v3817, %v3821
  %v3824 = vmul.f32 %v3807, 0.39506173
  %3826 = vrot.lane.b32.xlu0 %v3824, 96
  %v3827 = vpop.permute.xlu0 %3826
  %v3829 = vadd.f32 %v3823, %v3827
  %v3830 = vpack.c.bf16 %v3829, %v3829
  %3832 = vrot.lane.b32.xlu0 %v3830, 32
  %v3833 = vpop.permute.xlu0 %3832
  %v3835 = vsel %vm172, %v3833, 0
  %3837 = vmatprep.subr.bf16.mxu0 0
  %3838 = vmatpush1.bf16.msra.mxu0 %v799
  %3839 = vmatprep.subr.bf16.mxu0 0
  %3840 = vmatpush1.bf16.msra.mxu0 %v800
  %3841 = vmatprep.subr.bf16.mxu0 0
  %3842 = vmatpush1.bf16.msra.mxu0 0
  %3843 = vmatprep.subr.bf16.mxu0 0
  %3844 = vmatpush1.bf16.msra.mxu0 0
  %3845 = vmatprep.subr.bf16.mxu0 0
  %3846 = vmatpush1.bf16.msra.mxu0 0
  %3847 = vmatprep.subr.bf16.mxu0 0
  %3848 = vmatpush1.bf16.msra.mxu0 0
  %3849 = vmatprep.subr.bf16.mxu0 0
  %3850 = vmatpush1.bf16.msra.mxu0 0
  %3851 = vmatprep.subr.bf16.mxu0 0
  %3852 = vmatpush1.bf16.msra.mxu0 0
  %3853 = vmatprep.subr.bf16.mxu0 0
  %3854 = vmatpush1.bf16.msra.mxu0 0
  %3855 = vmatprep.subr.bf16.mxu0 0
  %3856 = vmatpush1.bf16.msra.mxu0 0
  %3857 = vmatprep.subr.bf16.mxu0 0
  %3858 = vmatpush1.bf16.msra.mxu0 0
  %3859 = vmatprep.subr.bf16.mxu0 0
  %3860 = vmatpush1.bf16.msra.mxu0 0
  %3861 = vmatprep.subr.bf16.mxu0 0
  %3862 = vmatpush1.bf16.msra.mxu0 0
  %3863 = vmatprep.subr.bf16.mxu0 0
  %3864 = vmatpush1.bf16.msra.mxu0 0
  %3865 = vmatprep.subr.bf16.mxu0 0
  %3866 = vmatpush1.bf16.msra.mxu0 0
  %3867 = vmatprep.subr.bf16.mxu0 0
  %3868 = vmatpush1.bf16.msra.mxu0 0
  %3869 = vmatprep.mubr.bf16.mxu0 0
  %3870 = vmatmul.mubr.bf16.gmra.mrb[0].mxu0 %v3835
  %v3871 = vpop.f32.mrb[0].mxu0
  %v3872 = vadd.f32 %v786, %v3871
  %v3873 = vpop.f32.mrb[0].mxu0
  %v3874 = vpop.f32.mrb[0].mxu0
  %v3875 = vpop.f32.mrb[0].mxu0
  %3876 = vdwg.mxu0
  %v3877 = vtanh.pop %v3872
  %v3878 = vpack.c.bf16 %v3877, %v3877
  %v3880 = vsel %vm878, %v3878, 0
  %3882 = vmatprep.subr.bf16.mxu0 0
  %3883 = vmatpush1.bf16.msra.mxu0 %v870
  %3884 = vmatprep.subr.bf16.mxu0 0
  %3885 = vmatpush1.bf16.msra.mxu0 %v871
  %3886 = vmatprep.subr.bf16.mxu0 0
  %3887 = vmatpush1.bf16.msra.mxu0 %v872
  %3888 = vmatprep.subr.bf16.mxu0 0
  %3889 = vmatpush1.bf16.msra.mxu0 %v873
  %3890 = vmatprep.subr.bf16.mxu0 0
  %3891 = vmatpush1.bf16.msra.mxu0 0
  %3892 = vmatprep.subr.bf16.mxu0 0
  %3893 = vmatpush1.bf16.msra.mxu0 0
  %3894 = vmatprep.subr.bf16.mxu0 0
  %3895 = vmatpush1.bf16.msra.mxu0 0
  %3896 = vmatprep.subr.bf16.mxu0 0
  %3897 = vmatpush1.bf16.msra.mxu0 0
  %3898 = vmatprep.subr.bf16.mxu0 0
  %3899 = vmatpush1.bf16.msra.mxu0 0
  %3900 = vmatprep.subr.bf16.mxu0 0
  %3901 = vmatpush1.bf16.msra.mxu0 0
  %3902 = vmatprep.subr.bf16.mxu0 0
  %3903 = vmatpush1.bf16.msra.mxu0 0
  %3904 = vmatprep.subr.bf16.mxu0 0
  %3905 = vmatpush1.bf16.msra.mxu0 0
  %3906 = vmatprep.subr.bf16.mxu0 0
  %3907 = vmatpush1.bf16.msra.mxu0 0
  %3908 = vmatprep.subr.bf16.mxu0 0
  %3909 = vmatpush1.bf16.msra.mxu0 0
  %3910 = vmatprep.subr.bf16.mxu0 0
  %3911 = vmatpush1.bf16.msra.mxu0 0
  %3912 = vmatprep.subr.bf16.mxu0 0
  %3913 = vmatpush1.bf16.msra.mxu0 0
  %3914 = vmatprep.mubr.bf16.mxu0 0
  %3915 = vmatmul.mubr.bf16.gmra.mrb[0].mxu0 %v3880
  %v3916 = vpop.f32.mrb[0].mxu0
  %v3917 = vadd.f32 %v852, %v3916
  %v3918 = vpop.f32.mrb[0].mxu0
  %v3919 = vpop.f32.mrb[0].mxu0
  %v3920 = vpop.f32.mrb[0].mxu0
  %3921 = vdwg.mxu0
  %v3922 = vmul.f32 %v3605, 0.32806653
  %3924 = vrot.lane.b32.xlu0 %v3922, 96
  %v3925 = vpop.permute.xlu0 %3924
  %v3927 = vadd.f32 %v3517, %v3925
  %v3928 = vmul.f32 %v3703, -1.2884215
  %3930 = vrot.lane.b32.xlu0 %v3928, 96
  %v3931 = vpop.permute.xlu0 %3930
  %v3933 = vadd.f32 %v3927, %v3931
  %v3934 = vmul.f32 %v3807, 1.0914326
  %3936 = vrot.lane.b32.xlu0 %v3934, 96
  %v3937 = vpop.permute.xlu0 %3936
  %v3939 = vadd.f32 %v3933, %v3937
  %v3940 = vmul.f32 %v3917, -0.032312147
  %3942 = vrot.lane.b32.xlu0 %v3940, 96
  %v3943 = vpop.permute.xlu0 %3942
  %v3945 = vadd.f32 %v3939, %v3943
  %v3946 = vpack.c.bf16 %v3945, %v3945
  %3948 = vrot.lane.b32.xlu0 %v3946, 32
  %v3949 = vpop.permute.xlu0 %3948
  %v3951 = vsel %vm172, %v3949, 0
  %3953 = vmatprep.subr.bf16.mxu0 0
  %3954 = vmatpush1.bf16.msra.mxu0 %v799
  %3955 = vmatprep.subr.bf16.mxu0 0
  %3956 = vmatpush1.bf16.msra.mxu0 %v800
  %3957 = vmatprep.subr.bf16.mxu0 0
  %3958 = vmatpush1.bf16.msra.mxu0 0
  %3959 = vmatprep.subr.bf16.mxu0 0
  %3960 = vmatpush1.bf16.msra.mxu0 0
  %3961 = vmatprep.subr.bf16.mxu0 0
  %3962 = vmatpush1.bf16.msra.mxu0 0
  %3963 = vmatprep.subr.bf16.mxu0 0
  %3964 = vmatpush1.bf16.msra.mxu0 0
  %3965 = vmatprep.subr.bf16.mxu0 0
  %3966 = vmatpush1.bf16.msra.mxu0 0
  %3967 = vmatprep.subr.bf16.mxu0 0
  %3968 = vmatpush1.bf16.msra.mxu0 0
  %3969 = vmatprep.subr.bf16.mxu0 0
  %3970 = vmatpush1.bf16.msra.mxu0 0
  %3971 = vmatprep.subr.bf16.mxu0 0
  %3972 = vmatpush1.bf16.msra.mxu0 0
  %3973 = vmatprep.subr.bf16.mxu0 0
  %3974 = vmatpush1.bf16.msra.mxu0 0
  %3975 = vmatprep.subr.bf16.mxu0 0
  %3976 = vmatpush1.bf16.msra.mxu0 0
  %3977 = vmatprep.subr.bf16.mxu0 0
  %3978 = vmatpush1.bf16.msra.mxu0 0
  %3979 = vmatprep.subr.bf16.mxu0 0
  %3980 = vmatpush1.bf16.msra.mxu0 0
  %3981 = vmatprep.subr.bf16.mxu0 0
  %3982 = vmatpush1.bf16.msra.mxu0 0
  %3983 = vmatprep.subr.bf16.mxu0 0
  %3984 = vmatpush1.bf16.msra.mxu0 0
  %3985 = vmatprep.mubr.bf16.mxu0 0
  %3986 = vmatmul.mubr.bf16.gmra.mrb[0].mxu0 %v3951
  %v3987 = vpop.f32.mrb[0].mxu0
  %v3988 = vadd.f32 %v786, %v3987
  %v3989 = vpop.f32.mrb[0].mxu0
  %v3990 = vpop.f32.mrb[0].mxu0
  %v3991 = vpop.f32.mrb[0].mxu0
  %3992 = vdwg.mxu0
  %v3993 = vtanh.pop %v3988
  %v3994 = vpack.c.bf16 %v3993, %v3993
  %v3996 = vsel %vm878, %v3994, 0
  %3998 = vmatprep.subr.bf16.mxu0 0
  %3999 = vmatpush1.bf16.msra.mxu0 %v870
  %4000 = vmatprep.subr.bf16.mxu0 0
  %4001 = vmatpush1.bf16.msra.mxu0 %v871
  %4002 = vmatprep.subr.bf16.mxu0 0
  %4003 = vmatpush1.bf16.msra.mxu0 %v872
  %4004 = vmatprep.subr.bf16.mxu0 0
  %4005 = vmatpush1.bf16.msra.mxu0 %v873
  %4006 = vmatprep.subr.bf16.mxu0 0
  %4007 = vmatpush1.bf16.msra.mxu0 0
  %4008 = vmatprep.subr.bf16.mxu0 0
  %4009 = vmatpush1.bf16.msra.mxu0 0
  %4010 = vmatprep.subr.bf16.mxu0 0
  %4011 = vmatpush1.bf16.msra.mxu0 0
  %4012 = vmatprep.subr.bf16.mxu0 0
  %4013 = vmatpush1.bf16.msra.mxu0 0
  %4014 = vmatprep.subr.bf16.mxu0 0
  %4015 = vmatpush1.bf16.msra.mxu0 0
  %4016 = vmatprep.subr.bf16.mxu0 0
  %4017 = vmatpush1.bf16.msra.mxu0 0
  %4018 = vmatprep.subr.bf16.mxu0 0
  %4019 = vmatpush1.bf16.msra.mxu0 0
  %4020 = vmatprep.subr.bf16.mxu0 0
  %4021 = vmatpush1.bf16.msra.mxu0 0
  %4022 = vmatprep.subr.bf16.mxu0 0
  %4023 = vmatpush1.bf16.msra.mxu0 0
  %4024 = vmatprep.subr.bf16.mxu0 0
  %4025 = vmatpush1.bf16.msra.mxu0 0
  %4026 = vmatprep.subr.bf16.mxu0 0
  %4027 = vmatpush1.bf16.msra.mxu0 0
  %4028 = vmatprep.subr.bf16.mxu0 0
  %4029 = vmatpush1.bf16.msra.mxu0 0
  %4030 = vmatprep.mubr.bf16.mxu0 0
  %4031 = vmatmul.mubr.bf16.gmra.mrb[0].mxu0 %v3996
  %v4032 = vpop.f32.mrb[0].mxu0
  %v4033 = vadd.f32 %v852, %v4032
  %v4034 = vpop.f32.mrb[0].mxu0
  %v4035 = vpop.f32.mrb[0].mxu0
  %v4036 = vpop.f32.mrb[0].mxu0
  %4037 = vdwg.mxu0
  %v4038 = vmul.f32 %v3605, 0.3162528
  %4040 = vrot.lane.b32.xlu0 %v4038, 96
  %v4041 = vpop.permute.xlu0 %4040
  %v4043 = vadd.f32 %v3517, %v4041
  %v4044 = vmul.f32 %v3703, -1.1952862
  %4046 = vrot.lane.b32.xlu0 %v4044, 96
  %v4047 = vpop.permute.xlu0 %4046
  %v4049 = vadd.f32 %v4043, %v4047
  %v4050 = vmul.f32 %v3807, 0.9896025
  %4052 = vrot.lane.b32.xlu0 %v4050, 96
  %v4053 = vpop.permute.xlu0 %4052
  %v4055 = vadd.f32 %v4049, %v4053
  %v4056 = vmul.f32 %v3917, 0.030934343
  %4058 = vrot.lane.b32.xlu0 %v4056, 96
  %v4059 = vpop.permute.xlu0 %4058
  %v4061 = vadd.f32 %v4055, %v4059
  %v4062 = vmul.f32 %v4033, -0.030392367
  %4064 = vrot.lane.b32.xlu0 %v4062, 96
  %v4065 = vpop.permute.xlu0 %4064
  %v4067 = vadd.f32 %v4061, %v4065
  %v4068 = vpack.c.bf16 %v4067, %v4067
  %4070 = vrot.lane.b32.xlu0 %v4068, 32
  %v4071 = vpop.permute.xlu0 %4070
  %v4073 = vsel %vm172, %v4071, 0
  %4075 = vmatprep.subr.bf16.mxu0 0
  %4076 = vmatpush1.bf16.msra.mxu0 %v799
  %4077 = vmatprep.subr.bf16.mxu0 0
  %4078 = vmatpush1.bf16.msra.mxu0 %v800
  %4079 = vmatprep.subr.bf16.mxu0 0
  %4080 = vmatpush1.bf16.msra.mxu0 0
  %4081 = vmatprep.subr.bf16.mxu0 0
  %4082 = vmatpush1.bf16.msra.mxu0 0
  %4083 = vmatprep.subr.bf16.mxu0 0
  %4084 = vmatpush1.bf16.msra.mxu0 0
  %4085 = vmatprep.subr.bf16.mxu0 0
  %4086 = vmatpush1.bf16.msra.mxu0 0
  %4087 = vmatprep.subr.bf16.mxu0 0
  %4088 = vmatpush1.bf16.msra.mxu0 0
  %4089 = vmatprep.subr.bf16.mxu0 0
  %4090 = vmatpush1.bf16.msra.mxu0 0
  %4091 = vmatprep.subr.bf16.mxu0 0
  %4092 = vmatpush1.bf16.msra.mxu0 0
  %4093 = vmatprep.subr.bf16.mxu0 0
  %4094 = vmatpush1.bf16.msra.mxu0 0
  %4095 = vmatprep.subr.bf16.mxu0 0
  %4096 = vmatpush1.bf16.msra.mxu0 0
  %4097 = vmatprep.subr.bf16.mxu0 0
  %4098 = vmatpush1.bf16.msra.mxu0 0
  %4099 = vmatprep.subr.bf16.mxu0 0
  %4100 = vmatpush1.bf16.msra.mxu0 0
  %4101 = vmatprep.subr.bf16.mxu0 0
  %4102 = vmatpush1.bf16.msra.mxu0 0
  %4103 = vmatprep.subr.bf16.mxu0 0
  %4104 = vmatpush1.bf16.msra.mxu0 0
  %4105 = vmatprep.subr.bf16.mxu0 0
  %4106 = vmatpush1.bf16.msra.mxu0 0
  %4107 = vmatprep.mubr.bf16.mxu0 0
  %4108 = vmatmul.mubr.bf16.gmra.mrb[0].mxu0 %v4073
  %v4109 = vpop.f32.mrb[0].mxu0
  %v4110 = vadd.f32 %v786, %v4109
  %v4111 = vpop.f32.mrb[0].mxu0
  %v4112 = vpop.f32.mrb[0].mxu0
  %v4113 = vpop.f32.mrb[0].mxu0
  %4114 = vdwg.mxu0
  %v4115 = vtanh.pop %v4110
  %v4116 = vpack.c.bf16 %v4115, %v4115
  %v4118 = vsel %vm878, %v4116, 0
  %4120 = vmatprep.subr.bf16.mxu0 0
  %4121 = vmatpush1.bf16.msra.mxu0 %v870
  %4122 = vmatprep.subr.bf16.mxu0 0
  %4123 = vmatpush1.bf16.msra.mxu0 %v871
  %4124 = vmatprep.subr.bf16.mxu0 0
  %4125 = vmatpush1.bf16.msra.mxu0 %v872
  %4126 = vmatprep.subr.bf16.mxu0 0
  %4127 = vmatpush1.bf16.msra.mxu0 %v873
  %4128 = vmatprep.subr.bf16.mxu0 0
  %4129 = vmatpush1.bf16.msra.mxu0 0
  %4130 = vmatprep.subr.bf16.mxu0 0
  %4131 = vmatpush1.bf16.msra.mxu0 0
  %4132 = vmatprep.subr.bf16.mxu0 0
  %4133 = vmatpush1.bf16.msra.mxu0 0
  %4134 = vmatprep.subr.bf16.mxu0 0
  %4135 = vmatpush1.bf16.msra.mxu0 0
  %4136 = vmatprep.subr.bf16.mxu0 0
  %4137 = vmatpush1.bf16.msra.mxu0 0
  %4138 = vmatprep.subr.bf16.mxu0 0
  %4139 = vmatpush1.bf16.msra.mxu0 0
  %4140 = vmatprep.subr.bf16.mxu0 0
  %4141 = vmatpush1.bf16.msra.mxu0 0
  %4142 = vmatprep.subr.bf16.mxu0 0
  %4143 = vmatpush1.bf16.msra.mxu0 0
  %4144 = vmatprep.subr.bf16.mxu0 0
  %4145 = vmatpush1.bf16.msra.mxu0 0
  %4146 = vmatprep.subr.bf16.mxu0 0
  %4147 = vmatpush1.bf16.msra.mxu0 0
  %4148 = vmatprep.subr.bf16.mxu0 0
  %4149 = vmatpush1.bf16.msra.mxu0 0
  %4150 = vmatprep.subr.bf16.mxu0 0
  %4151 = vmatpush1.bf16.msra.mxu0 0
  %4152 = vmatprep.mubr.bf16.mxu0 0
  %4153 = vmatmul.mubr.bf16.gmra.mrb[0].mxu0 %v4118
  %v4154 = vpop.f32.mrb[0].mxu0
  %v4155 = vadd.f32 %v852, %v4154
  %v4156 = vpop.f32.mrb[0].mxu0
  %v4157 = vpop.f32.mrb[0].mxu0
  %v4158 = vpop.f32.mrb[0].mxu0
  %4159 = vdwg.mxu0
  %v4160 = vmul.f32 %v3605, 0.010127314
  %4162 = vrot.lane.b32.xlu0 %v4160, 96
  %v4163 = vpop.permute.xlu0 %4162
  %v4165 = vadd.f32 %v3517, %v4163
  %v4166 = vmul.f32 %v3807, 0.049915146
  %4168 = vrot.lane.b32.xlu0 %v4166, 96
  %v4169 = vpop.permute.xlu0 %4168
  %v4171 = vadd.f32 %v4165, %v4169
  %v4172 = vmul.f32 %v3917, 0.07233796
  %4174 = vrot.lane.b32.xlu0 %v4172, 96
  %v4175 = vpop.permute.xlu0 %4174
  %v4177 = vadd.f32 %v4171, %v4175
  %v4178 = vmul.f32 %v4033, -0.035819575
  %4180 = vrot.lane.b32.xlu0 %v4178, 96
  %v4181 = vpop.permute.xlu0 %4180
  %v4183 = vadd.f32 %v4177, %v4181
  %v4184 = vmul.f32 %v4155, 0.014550265
  %4186 = vrot.lane.b32.xlu0 %v4184, 96
  %v4187 = vpop.permute.xlu0 %4186
  %v4189 = vadd.f32 %v4183, %v4187
  %v4190 = vpack.c.bf16 %v4189, %v4189
  %4192 = vrot.lane.b32.xlu0 %v4190, 32
  %v4193 = vpop.permute.xlu0 %4192
  %v4195 = vsel %vm172, %v4193, 0
  %4197 = vmatprep.subr.bf16.mxu0 0
  %4198 = vmatpush1.bf16.msra.mxu0 %v799
  %4199 = vmatprep.subr.bf16.mxu0 0
  %4200 = vmatpush1.bf16.msra.mxu0 %v800
  %4201 = vmatprep.subr.bf16.mxu0 0
  %4202 = vmatpush1.bf16.msra.mxu0 0
  %4203 = vmatprep.subr.bf16.mxu0 0
  %4204 = vmatpush1.bf16.msra.mxu0 0
  %4205 = vmatprep.subr.bf16.mxu0 0
  %4206 = vmatpush1.bf16.msra.mxu0 0
  %4207 = vmatprep.subr.bf16.mxu0 0
  %4208 = vmatpush1.bf16.msra.mxu0 0
  %4209 = vmatprep.subr.bf16.mxu0 0
  %4210 = vmatpush1.bf16.msra.mxu0 0
  %4211 = vmatprep.subr.bf16.mxu0 0
  %4212 = vmatpush1.bf16.msra.mxu0 0
  %4213 = vmatprep.subr.bf16.mxu0 0
  %4214 = vmatpush1.bf16.msra.mxu0 0
  %4215 = vmatprep.subr.bf16.mxu0 0
  %4216 = vmatpush1.bf16.msra.mxu0 0
  %4217 = vmatprep.subr.bf16.mxu0 0
  %4218 = vmatpush1.bf16.msra.mxu0 0
  %4219 = vmatprep.subr.bf16.mxu0 0
  %4220 = vmatpush1.bf16.msra.mxu0 0
  %4221 = vmatprep.subr.bf16.mxu0 0
  %4222 = vmatpush1.bf16.msra.mxu0 0
  %4223 = vmatprep.subr.bf16.mxu0 0
  %4224 = vmatpush1.bf16.msra.mxu0 0
  %4225 = vmatprep.subr.bf16.mxu0 0
  %4226 = vmatpush1.bf16.msra.mxu0 0
  %4227 = vmatprep.subr.bf16.mxu0 0
  %4228 = vmatpush1.bf16.msra.mxu0 0
  %4229 = vmatprep.mubr.bf16.mxu0 0
  %4230 = vmatmul.mubr.bf16.gmra.mrb[0].mxu0 %v4195
  %v4231 = vpop.f32.mrb[0].mxu0
  %v4232 = vadd.f32 %v786, %v4231
  %v4233 = vpop.f32.mrb[0].mxu0
  %v4234 = vpop.f32.mrb[0].mxu0
  %v4235 = vpop.f32.mrb[0].mxu0
  %4236 = vdwg.mxu0
  %v4237 = vtanh.pop %v4232
  %v4238 = vpack.c.bf16 %v4237, %v4237
  %v4240 = vsel %vm878, %v4238, 0
  %4242 = vmatprep.subr.bf16.mxu0 0
  %4243 = vmatpush1.bf16.msra.mxu0 %v870
  %4244 = vmatprep.subr.bf16.mxu0 0
  %4245 = vmatpush1.bf16.msra.mxu0 %v871
  %4246 = vmatprep.subr.bf16.mxu0 0
  %4247 = vmatpush1.bf16.msra.mxu0 %v872
  %4248 = vmatprep.subr.bf16.mxu0 0
  %4249 = vmatpush1.bf16.msra.mxu0 %v873
  %4250 = vmatprep.subr.bf16.mxu0 0
  %4251 = vmatpush1.bf16.msra.mxu0 0
  %4252 = vmatprep.subr.bf16.mxu0 0
  %4253 = vmatpush1.bf16.msra.mxu0 0
  %4254 = vmatprep.subr.bf16.mxu0 0
  %4255 = vmatpush1.bf16.msra.mxu0 0
  %4256 = vmatprep.subr.bf16.mxu0 0
  %4257 = vmatpush1.bf16.msra.mxu0 0
  %4258 = vmatprep.subr.bf16.mxu0 0
  %4259 = vmatpush1.bf16.msra.mxu0 0
  %4260 = vmatprep.subr.bf16.mxu0 0
  %4261 = vmatpush1.bf16.msra.mxu0 0
  %4262 = vmatprep.subr.bf16.mxu0 0
  %4263 = vmatpush1.bf16.msra.mxu0 0
  %4264 = vmatprep.subr.bf16.mxu0 0
  %4265 = vmatpush1.bf16.msra.mxu0 0
  %4266 = vmatprep.subr.bf16.mxu0 0
  %4267 = vmatpush1.bf16.msra.mxu0 0
  %4268 = vmatprep.subr.bf16.mxu0 0
  %4269 = vmatpush1.bf16.msra.mxu0 0
  %4270 = vmatprep.subr.bf16.mxu0 0
  %4271 = vmatpush1.bf16.msra.mxu0 0
  %4272 = vmatprep.subr.bf16.mxu0 0
  %4273 = vmatpush1.bf16.msra.mxu0 0
  %4274 = vmatprep.mubr.bf16.mxu0 0
  %4275 = vmatmul.mubr.bf16.gmra.mrb[0].mxu0 %v4240
  %v4276 = vpop.f32.mrb[0].mxu0
  %v4277 = vadd.f32 %v852, %v4276
  %v4278 = vpop.f32.mrb[0].mxu0
  %v4279 = vpop.f32.mrb[0].mxu0
  %v4280 = vpop.f32.mrb[0].mxu0
  %4281 = vdwg.mxu0
  %v4282 = vmul.f32 %v4277, 0.022222223
  %4284 = vrot.lane.b32.xlu0 %v4282, 96
  %v4285 = vpop.permute.xlu0 %4284
  %v4287 = vadd.f32 %v4189, %v4285
  %v4288 = vpack.c.bf16 %v4287, %v4287
  %4290 = vrot.lane.b32.xlu0 %v4288, 32
  %v4291 = vpop.permute.xlu0 %4290
  %v4293 = vsel %vm172, %v4291, 0
  %4295 = vmatprep.subr.bf16.mxu0 0
  %4296 = vmatpush1.bf16.msra.mxu0 %v799
  %4297 = vmatprep.subr.bf16.mxu0 0
  %4298 = vmatpush1.bf16.msra.mxu0 %v800
  %4299 = vmatprep.subr.bf16.mxu0 0
  %4300 = vmatpush1.bf16.msra.mxu0 0
  %4301 = vmatprep.subr.bf16.mxu0 0
  %4302 = vmatpush1.bf16.msra.mxu0 0
  %4303 = vmatprep.subr.bf16.mxu0 0
  %4304 = vmatpush1.bf16.msra.mxu0 0
  %4305 = vmatprep.subr.bf16.mxu0 0
  %4306 = vmatpush1.bf16.msra.mxu0 0
  %4307 = vmatprep.subr.bf16.mxu0 0
  %4308 = vmatpush1.bf16.msra.mxu0 0
  %4309 = vmatprep.subr.bf16.mxu0 0
  %4310 = vmatpush1.bf16.msra.mxu0 0
  %4311 = vmatprep.subr.bf16.mxu0 0
  %4312 = vmatpush1.bf16.msra.mxu0 0
  %4313 = vmatprep.subr.bf16.mxu0 0
  %4314 = vmatpush1.bf16.msra.mxu0 0
  %4315 = vmatprep.subr.bf16.mxu0 0
  %4316 = vmatpush1.bf16.msra.mxu0 0
  %4317 = vmatprep.subr.bf16.mxu0 0
  %4318 = vmatpush1.bf16.msra.mxu0 0
  %4319 = vmatprep.subr.bf16.mxu0 0
  %4320 = vmatpush1.bf16.msra.mxu0 0
  %4321 = vmatprep.subr.bf16.mxu0 0
  %4322 = vmatpush1.bf16.msra.mxu0 0
  %4323 = vmatprep.subr.bf16.mxu0 0
  %4324 = vmatpush1.bf16.msra.mxu0 0
  %4325 = vmatprep.subr.bf16.mxu0 0
  %4326 = vmatpush1.bf16.msra.mxu0 0
  %4327 = vmatprep.mubr.bf16.mxu0 0
  %4328 = vmatmul.mubr.bf16.gmra.mrb[0].mxu0 %v4293
  %v4329 = vpop.f32.mrb[0].mxu0
  %v4330 = vadd.f32 %v786, %v4329
  %v4331 = vpop.f32.mrb[0].mxu0
  %v4332 = vpop.f32.mrb[0].mxu0
  %v4333 = vpop.f32.mrb[0].mxu0
  %4334 = vdwg.mxu0
  %v4335 = vtanh.pop %v4330
  %v4336 = vpack.c.bf16 %v4335, %v4335
  %v4338 = vsel %vm878, %v4336, 0
  %4340 = vmatprep.subr.bf16.mxu0 0
  %4341 = vmatpush1.bf16.msra.mxu0 %v870
  %4342 = vmatprep.subr.bf16.mxu0 0
  %4343 = vmatpush1.bf16.msra.mxu0 %v871
  %4344 = vmatprep.subr.bf16.mxu0 0
  %4345 = vmatpush1.bf16.msra.mxu0 %v872
  %4346 = vmatprep.subr.bf16.mxu0 0
  %4347 = vmatpush1.bf16.msra.mxu0 %v873
  %4348 = vmatprep.subr.bf16.mxu0 0
  %4349 = vmatpush1.bf16.msra.mxu0 0
  %4350 = vmatprep.subr.bf16.mxu0 0
  %4351 = vmatpush1.bf16.msra.mxu0 0
  %4352 = vmatprep.subr.bf16.mxu0 0
  %4353 = vmatpush1.bf16.msra.mxu0 0
  %4354 = vmatprep.subr.bf16.mxu0 0
  %4355 = vmatpush1.bf16.msra.mxu0 0
  %4356 = vmatprep.subr.bf16.mxu0 0
  %4357 = vmatpush1.bf16.msra.mxu0 0
  %4358 = vmatprep.subr.bf16.mxu0 0
  %4359 = vmatpush1.bf16.msra.mxu0 0
  %4360 = vmatprep.subr.bf16.mxu0 0
  %4361 = vmatpush1.bf16.msra.mxu0 0
  %4362 = vmatprep.subr.bf16.mxu0 0
  %4363 = vmatpush1.bf16.msra.mxu0 0
  %4364 = vmatprep.subr.bf16.mxu0 0
  %4365 = vmatpush1.bf16.msra.mxu0 0
  %4366 = vmatprep.subr.bf16.mxu0 0
  %4367 = vmatpush1.bf16.msra.mxu0 0
  %4368 = vmatprep.subr.bf16.mxu0 0
  %4369 = vmatpush1.bf16.msra.mxu0 0
  %4370 = vmatprep.subr.bf16.mxu0 0
  %4371 = vmatpush1.bf16.msra.mxu0 0
  %4372 = vmatprep.mubr.bf16.mxu0 0
  %4373 = vmatmul.mubr.bf16.gmra.mrb[0].mxu0 %v4338
  %v4374 = vpop.f32.mrb[0].mxu0
  %v4375 = vadd.f32 %v852, %v4374
  %v4376 = vpop.f32.mrb[0].mxu0
  %v4377 = vpop.f32.mrb[0].mxu0
  %v4378 = vpop.f32.mrb[0].mxu0
  %4379 = vdwg.mxu0
  %v4380 = vmul.f32 %v4277, 0.008333334
  %4382 = vrot.lane.b32.xlu0 %v4380, 96
  %v4383 = vpop.permute.xlu0 %4382
  %v4385 = vadd.f32 %v4189, %v4383
  %v4386 = vmul.f32 %v4375, 0.025
  %4388 = vrot.lane.b32.xlu0 %v4386, 96
  %v4389 = vpop.permute.xlu0 %4388
  %v4391 = vadd.f32 %v4385, %v4389
  %v4392 = vpack.c.bf16 %v4391, %v4391
  %4394 = vrot.lane.b32.xlu0 %v4392, 32
  %v4395 = vpop.permute.xlu0 %4394
  %v4397 = vsel %vm172, %v4395, 0
  %4399 = vmatprep.subr.bf16.mxu0 0
  %4400 = vmatpush1.bf16.msra.mxu0 %v799
  %4401 = vmatprep.subr.bf16.mxu0 0
  %4402 = vmatpush1.bf16.msra.mxu0 %v800
  %4403 = vmatprep.subr.bf16.mxu0 0
  %4404 = vmatpush1.bf16.msra.mxu0 0
  %4405 = vmatprep.subr.bf16.mxu0 0
  %4406 = vmatpush1.bf16.msra.mxu0 0
  %4407 = vmatprep.subr.bf16.mxu0 0
  %4408 = vmatpush1.bf16.msra.mxu0 0
  %4409 = vmatprep.subr.bf16.mxu0 0
  %4410 = vmatpush1.bf16.msra.mxu0 0
  %4411 = vmatprep.subr.bf16.mxu0 0
  %4412 = vmatpush1.bf16.msra.mxu0 0
  %4413 = vmatprep.subr.bf16.mxu0 0
  %4414 = vmatpush1.bf16.msra.mxu0 0
  %4415 = vmatprep.subr.bf16.mxu0 0
  %4416 = vmatpush1.bf16.msra.mxu0 0
  %4417 = vmatprep.subr.bf16.mxu0 0
  %4418 = vmatpush1.bf16.msra.mxu0 0
  %4419 = vmatprep.subr.bf16.mxu0 0
  %4420 = vmatpush1.bf16.msra.mxu0 0
  %4421 = vmatprep.subr.bf16.mxu0 0
  %4422 = vmatpush1.bf16.msra.mxu0 0
  %4423 = vmatprep.subr.bf16.mxu0 0
  %4424 = vmatpush1.bf16.msra.mxu0 0
  %4425 = vmatprep.subr.bf16.mxu0 0
  %4426 = vmatpush1.bf16.msra.mxu0 0
  %4427 = vmatprep.subr.bf16.mxu0 0
  %4428 = vmatpush1.bf16.msra.mxu0 0
  %4429 = vmatprep.subr.bf16.mxu0 0
  %4430 = vmatpush1.bf16.msra.mxu0 0
  %4431 = vmatprep.mubr.bf16.mxu0 0
  %4432 = vmatmul.mubr.bf16.gmra.mrb[0].mxu0 %v4397
  %v4433 = vpop.f32.mrb[0].mxu0
  %v4434 = vadd.f32 %v786, %v4433
  %v4435 = vpop.f32.mrb[0].mxu0
  %v4436 = vpop.f32.mrb[0].mxu0
  %v4437 = vpop.f32.mrb[0].mxu0
  %4438 = vdwg.mxu0
  %v4439 = vtanh.pop %v4434
  %v4440 = vpack.c.bf16 %v4439, %v4439
  %v4442 = vsel %vm878, %v4440, 0
  %4444 = vmatprep.subr.bf16.mxu0 0
  %4445 = vmatpush1.bf16.msra.mxu0 %v870
  %4446 = vmatprep.subr.bf16.mxu0 0
  %4447 = vmatpush1.bf16.msra.mxu0 %v871
  %4448 = vmatprep.subr.bf16.mxu0 0
  %4449 = vmatpush1.bf16.msra.mxu0 %v872
  %4450 = vmatprep.subr.bf16.mxu0 0
  %4451 = vmatpush1.bf16.msra.mxu0 %v873
  %4452 = vmatprep.subr.bf16.mxu0 0
  %4453 = vmatpush1.bf16.msra.mxu0 0
  %4454 = vmatprep.subr.bf16.mxu0 0
  %4455 = vmatpush1.bf16.msra.mxu0 0
  %4456 = vmatprep.subr.bf16.mxu0 0
  %4457 = vmatpush1.bf16.msra.mxu0 0
  %4458 = vmatprep.subr.bf16.mxu0 0
  %4459 = vmatpush1.bf16.msra.mxu0 0
  %4460 = vmatprep.subr.bf16.mxu0 0
  %4461 = vmatpush1.bf16.msra.mxu0 0
  %4462 = vmatprep.subr.bf16.mxu0 0
  %4463 = vmatpush1.bf16.msra.mxu0 0
  %4464 = vmatprep.subr.bf16.mxu0 0
  %4465 = vmatpush1.bf16.msra.mxu0 0
  %4466 = vmatprep.subr.bf16.mxu0 0
  %4467 = vmatpush1.bf16.msra.mxu0 0
  %4468 = vmatprep.subr.bf16.mxu0 0
  %4469 = vmatpush1.bf16.msra.mxu0 0
  %4470 = vmatprep.subr.bf16.mxu0 0
  %4471 = vmatpush1.bf16.msra.mxu0 0
  %4472 = vmatprep.subr.bf16.mxu0 0
  %4473 = vmatpush1.bf16.msra.mxu0 0
  %4474 = vmatprep.subr.bf16.mxu0 0
  %4475 = vmatpush1.bf16.msra.mxu0 0
  %4476 = vmatprep.mubr.bf16.mxu0 0
  %4477 = vmatmul.mubr.bf16.gmra.mrb[0].mxu0 %v4442
  %v4478 = vpop.f32.mrb[0].mxu0
  %v4479 = vadd.f32 %v852, %v4478
  %v4480 = vpop.f32.mrb[0].mxu0
  %v4481 = vpop.f32.mrb[0].mxu0
  %v4482 = vpop.f32.mrb[0].mxu0
  %4483 = vdwg.mxu0
  %v4484 = vmul.f32 %v4277, 0.108641975
  %4486 = vrot.lane.b32.xlu0 %v4484, 96
  %v4487 = vpop.permute.xlu0 %4486
  %v4489 = vadd.f32 %v4189, %v4487
  %v4490 = vmul.f32 %v4375, -0.4148148
  %4492 = vrot.lane.b32.xlu0 %v4490, 96
  %v4493 = vpop.permute.xlu0 %4492
  %v4495 = vadd.f32 %v4489, %v4493
  %v4496 = vmul.f32 %v4479, 0.39506173
  %4498 = vrot.lane.b32.xlu0 %v4496, 96
  %v4499 = vpop.permute.xlu0 %4498
  %v4501 = vadd.f32 %v4495, %v4499
  %v4502 = vpack.c.bf16 %v4501, %v4501
  %4504 = vrot.lane.b32.xlu0 %v4502, 32
  %v4505 = vpop.permute.xlu0 %4504
  %v4507 = vsel %vm172, %v4505, 0
  %4509 = vmatprep.subr.bf16.mxu0 0
  %4510 = vmatpush1.bf16.msra.mxu0 %v799
  %4511 = vmatprep.subr.bf16.mxu0 0
  %4512 = vmatpush1.bf16.msra.mxu0 %v800
  %4513 = vmatprep.subr.bf16.mxu0 0
  %4514 = vmatpush1.bf16.msra.mxu0 0
  %4515 = vmatprep.subr.bf16.mxu0 0
  %4516 = vmatpush1.bf16.msra.mxu0 0
  %4517 = vmatprep.subr.bf16.mxu0 0
  %4518 = vmatpush1.bf16.msra.mxu0 0
  %4519 = vmatprep.subr.bf16.mxu0 0
  %4520 = vmatpush1.bf16.msra.mxu0 0
  %4521 = vmatprep.subr.bf16.mxu0 0
  %4522 = vmatpush1.bf16.msra.mxu0 0
  %4523 = vmatprep.subr.bf16.mxu0 0
  %4524 = vmatpush1.bf16.msra.mxu0 0
  %4525 = vmatprep.subr.bf16.mxu0 0
  %4526 = vmatpush1.bf16.msra.mxu0 0
  %4527 = vmatprep.subr.bf16.mxu0 0
  %4528 = vmatpush1.bf16.msra.mxu0 0
  %4529 = vmatprep.subr.bf16.mxu0 0
  %4530 = vmatpush1.bf16.msra.mxu0 0
  %4531 = vmatprep.subr.bf16.mxu0 0
  %4532 = vmatpush1.bf16.msra.mxu0 0
  %4533 = vmatprep.subr.bf16.mxu0 0
  %4534 = vmatpush1.bf16.msra.mxu0 0
  %4535 = vmatprep.subr.bf16.mxu0 0
  %4536 = vmatpush1.bf16.msra.mxu0 0
  %4537 = vmatprep.subr.bf16.mxu0 0
  %4538 = vmatpush1.bf16.msra.mxu0 0
  %4539 = vmatprep.subr.bf16.mxu0 0
  %4540 = vmatpush1.bf16.msra.mxu0 0
  %4541 = vmatprep.mubr.bf16.mxu0 0
  %4542 = vmatmul.mubr.bf16.gmra.mrb[0].mxu0 %v4507
  %v4543 = vpop.f32.mrb[0].mxu0
  %v4544 = vadd.f32 %v786, %v4543
  %v4545 = vpop.f32.mrb[0].mxu0
  %v4546 = vpop.f32.mrb[0].mxu0
  %v4547 = vpop.f32.mrb[0].mxu0
  %4548 = vdwg.mxu0
  %v4549 = vtanh.pop %v4544
  %v4550 = vpack.c.bf16 %v4549, %v4549
  %v4552 = vsel %vm878, %v4550, 0
  %4554 = vmatprep.subr.bf16.mxu0 0
  %4555 = vmatpush1.bf16.msra.mxu0 %v870
  %4556 = vmatprep.subr.bf16.mxu0 0
  %4557 = vmatpush1.bf16.msra.mxu0 %v871
  %4558 = vmatprep.subr.bf16.mxu0 0
  %4559 = vmatpush1.bf16.msra.mxu0 %v872
  %4560 = vmatprep.subr.bf16.mxu0 0
  %4561 = vmatpush1.bf16.msra.mxu0 %v873
  %4562 = vmatprep.subr.bf16.mxu0 0
  %4563 = vmatpush1.bf16.msra.mxu0 0
  %4564 = vmatprep.subr.bf16.mxu0 0
  %4565 = vmatpush1.bf16.msra.mxu0 0
  %4566 = vmatprep.subr.bf16.mxu0 0
  %4567 = vmatpush1.bf16.msra.mxu0 0
  %4568 = vmatprep.subr.bf16.mxu0 0
  %4569 = vmatpush1.bf16.msra.mxu0 0
  %4570 = vmatprep.subr.bf16.mxu0 0
  %4571 = vmatpush1.bf16.msra.mxu0 0
  %4572 = vmatprep.subr.bf16.mxu0 0
  %4573 = vmatpush1.bf16.msra.mxu0 0
  %4574 = vmatprep.subr.bf16.mxu0 0
  %4575 = vmatpush1.bf16.msra.mxu0 0
  %4576 = vmatprep.subr.bf16.mxu0 0
  %4577 = vmatpush1.bf16.msra.mxu0 0
  %4578 = vmatprep.subr.bf16.mxu0 0
  %4579 = vmatpush1.bf16.msra.mxu0 0
  %4580 = vmatprep.subr.bf16.mxu0 0
  %4581 = vmatpush1.bf16.msra.mxu0 0
  %4582 = vmatprep.subr.bf16.mxu0 0
  %4583 = vmatpush1.bf16.msra.mxu0 0
  %4584 = vmatprep.subr.bf16.mxu0 0
  %4585 = vmatpush1.bf16.msra.mxu0 0
  %4586 = vmatprep.mubr.bf16.mxu0 0
  %4587 = vmatmul.mubr.bf16.gmra.mrb[0].mxu0 %v4552
  %v4588 = vpop.f32.mrb[0].mxu0
  %v4589 = vadd.f32 %v852, %v4588
  %v4590 = vpop.f32.mrb[0].mxu0
  %v4591 = vpop.f32.mrb[0].mxu0
  %v4592 = vpop.f32.mrb[0].mxu0
  %4593 = vdwg.mxu0
  %v4594 = vmul.f32 %v4277, 0.32806653
  %4596 = vrot.lane.b32.xlu0 %v4594, 96
  %v4597 = vpop.permute.xlu0 %4596
  %v4599 = vadd.f32 %v4189, %v4597
  %v4600 = vmul.f32 %v4375, -1.2884215
  %4602 = vrot.lane.b32.xlu0 %v4600, 96
  %v4603 = vpop.permute.xlu0 %4602
  %v4605 = vadd.f32 %v4599, %v4603
  %v4606 = vmul.f32 %v4479, 1.0914326
  %4608 = vrot.lane.b32.xlu0 %v4606, 96
  %v4609 = vpop.permute.xlu0 %4608
  %v4611 = vadd.f32 %v4605, %v4609
  %v4612 = vmul.f32 %v4589, -0.032312147
  %4614 = vrot.lane.b32.xlu0 %v4612, 96
  %v4615 = vpop.permute.xlu0 %4614
  %v4617 = vadd.f32 %v4611, %v4615
  %v4618 = vpack.c.bf16 %v4617, %v4617
  %4620 = vrot.lane.b32.xlu0 %v4618, 32
  %v4621 = vpop.permute.xlu0 %4620
  %v4623 = vsel %vm172, %v4621, 0
  %4625 = vmatprep.subr.bf16.mxu0 0
  %4626 = vmatpush1.bf16.msra.mxu0 %v799
  %4627 = vmatprep.subr.bf16.mxu0 0
  %4628 = vmatpush1.bf16.msra.mxu0 %v800
  %4629 = vmatprep.subr.bf16.mxu0 0
  %4630 = vmatpush1.bf16.msra.mxu0 0
  %4631 = vmatprep.subr.bf16.mxu0 0
  %4632 = vmatpush1.bf16.msra.mxu0 0
  %4633 = vmatprep.subr.bf16.mxu0 0
  %4634 = vmatpush1.bf16.msra.mxu0 0
  %4635 = vmatprep.subr.bf16.mxu0 0
  %4636 = vmatpush1.bf16.msra.mxu0 0
  %4637 = vmatprep.subr.bf16.mxu0 0
  %4638 = vmatpush1.bf16.msra.mxu0 0
  %4639 = vmatprep.subr.bf16.mxu0 0
  %4640 = vmatpush1.bf16.msra.mxu0 0
  %4641 = vmatprep.subr.bf16.mxu0 0
  %4642 = vmatpush1.bf16.msra.mxu0 0
  %4643 = vmatprep.subr.bf16.mxu0 0
  %4644 = vmatpush1.bf16.msra.mxu0 0
  %4645 = vmatprep.subr.bf16.mxu0 0
  %4646 = vmatpush1.bf16.msra.mxu0 0
  %4647 = vmatprep.subr.bf16.mxu0 0
  %4648 = vmatpush1.bf16.msra.mxu0 0
  %4649 = vmatprep.subr.bf16.mxu0 0
  %4650 = vmatpush1.bf16.msra.mxu0 0
  %4651 = vmatprep.subr.bf16.mxu0 0
  %4652 = vmatpush1.bf16.msra.mxu0 0
  %4653 = vmatprep.subr.bf16.mxu0 0
  %4654 = vmatpush1.bf16.msra.mxu0 0
  %4655 = vmatprep.subr.bf16.mxu0 0
  %4656 = vmatpush1.bf16.msra.mxu0 0
  %4657 = vmatprep.mubr.bf16.mxu0 0
  %4658 = vmatmul.mubr.bf16.gmra.mrb[0].mxu0 %v4623
  %v4659 = vpop.f32.mrb[0].mxu0
  %v4660 = vadd.f32 %v786, %v4659
  %v4661 = vpop.f32.mrb[0].mxu0
  %v4662 = vpop.f32.mrb[0].mxu0
  %v4663 = vpop.f32.mrb[0].mxu0
  %4664 = vdwg.mxu0
  %v4665 = vtanh.pop %v4660
  %v4666 = vpack.c.bf16 %v4665, %v4665
  %v4668 = vsel %vm878, %v4666, 0
  %4670 = vmatprep.subr.bf16.mxu0 0
  %4671 = vmatpush1.bf16.msra.mxu0 %v870
  %4672 = vmatprep.subr.bf16.mxu0 0
  %4673 = vmatpush1.bf16.msra.mxu0 %v871
  %4674 = vmatprep.subr.bf16.mxu0 0
  %4675 = vmatpush1.bf16.msra.mxu0 %v872
  %4676 = vmatprep.subr.bf16.mxu0 0
  %4677 = vmatpush1.bf16.msra.mxu0 %v873
  %4678 = vmatprep.subr.bf16.mxu0 0
  %4679 = vmatpush1.bf16.msra.mxu0 0
  %4680 = vmatprep.subr.bf16.mxu0 0
  %4681 = vmatpush1.bf16.msra.mxu0 0
  %4682 = vmatprep.subr.bf16.mxu0 0
  %4683 = vmatpush1.bf16.msra.mxu0 0
  %4684 = vmatprep.subr.bf16.mxu0 0
  %4685 = vmatpush1.bf16.msra.mxu0 0
  %4686 = vmatprep.subr.bf16.mxu0 0
  %4687 = vmatpush1.bf16.msra.mxu0 0
  %4688 = vmatprep.subr.bf16.mxu0 0
  %4689 = vmatpush1.bf16.msra.mxu0 0
  %4690 = vmatprep.subr.bf16.mxu0 0
  %4691 = vmatpush1.bf16.msra.mxu0 0
  %4692 = vmatprep.subr.bf16.mxu0 0
  %4693 = vmatpush1.bf16.msra.mxu0 0
  %4694 = vmatprep.subr.bf16.mxu0 0
  %4695 = vmatpush1.bf16.msra.mxu0 0
  %4696 = vmatprep.subr.bf16.mxu0 0
  %4697 = vmatpush1.bf16.msra.mxu0 0
  %4698 = vmatprep.subr.bf16.mxu0 0
  %4699 = vmatpush1.bf16.msra.mxu0 0
  %4700 = vmatprep.subr.bf16.mxu0 0
  %4701 = vmatpush1.bf16.msra.mxu0 0
  %4702 = vmatprep.mubr.bf16.mxu0 0
  %4703 = vmatmul.mubr.bf16.gmra.mrb[0].mxu0 %v4668
  %v4704 = vpop.f32.mrb[0].mxu0
  %v4705 = vadd.f32 %v852, %v4704
  %v4706 = vpop.f32.mrb[0].mxu0
  %v4707 = vpop.f32.mrb[0].mxu0
  %v4708 = vpop.f32.mrb[0].mxu0
  %4709 = vdwg.mxu0
  %v4710 = vmul.f32 %v4277, 0.3162528
  %4712 = vrot.lane.b32.xlu0 %v4710, 96
  %v4713 = vpop.permute.xlu0 %4712
  %v4715 = vadd.f32 %v4189, %v4713
  %v4716 = vmul.f32 %v4375, -1.1952862
  %4718 = vrot.lane.b32.xlu0 %v4716, 96
  %v4719 = vpop.permute.xlu0 %4718
  %v4721 = vadd.f32 %v4715, %v4719
  %v4722 = vmul.f32 %v4479, 0.9896025
  %4724 = vrot.lane.b32.xlu0 %v4722, 96
  %v4725 = vpop.permute.xlu0 %4724
  %v4727 = vadd.f32 %v4721, %v4725
  %v4728 = vmul.f32 %v4589, 0.030934343
  %4730 = vrot.lane.b32.xlu0 %v4728, 96
  %v4731 = vpop.permute.xlu0 %4730
  %v4733 = vadd.f32 %v4727, %v4731
  %v4734 = vmul.f32 %v4705, -0.030392367
  %4736 = vrot.lane.b32.xlu0 %v4734, 96
  %v4737 = vpop.permute.xlu0 %4736
  %v4739 = vadd.f32 %v4733, %v4737
  %v4740 = vpack.c.bf16 %v4739, %v4739
  %4742 = vrot.lane.b32.xlu0 %v4740, 32
  %v4743 = vpop.permute.xlu0 %4742
  %v4745 = vsel %vm172, %v4743, 0
  %4747 = vmatprep.subr.bf16.mxu0 0
  %4748 = vmatpush1.bf16.msra.mxu0 %v799
  %4749 = vmatprep.subr.bf16.mxu0 0
  %4750 = vmatpush1.bf16.msra.mxu0 %v800
  %4751 = vmatprep.subr.bf16.mxu0 0
  %4752 = vmatpush1.bf16.msra.mxu0 0
  %4753 = vmatprep.subr.bf16.mxu0 0
  %4754 = vmatpush1.bf16.msra.mxu0 0
  %4755 = vmatprep.subr.bf16.mxu0 0
  %4756 = vmatpush1.bf16.msra.mxu0 0
  %4757 = vmatprep.subr.bf16.mxu0 0
  %4758 = vmatpush1.bf16.msra.mxu0 0
  %4759 = vmatprep.subr.bf16.mxu0 0
  %4760 = vmatpush1.bf16.msra.mxu0 0
  %4761 = vmatprep.subr.bf16.mxu0 0
  %4762 = vmatpush1.bf16.msra.mxu0 0
  %4763 = vmatprep.subr.bf16.mxu0 0
  %4764 = vmatpush1.bf16.msra.mxu0 0
  %4765 = vmatprep.subr.bf16.mxu0 0
  %4766 = vmatpush1.bf16.msra.mxu0 0
  %4767 = vmatprep.subr.bf16.mxu0 0
  %4768 = vmatpush1.bf16.msra.mxu0 0
  %4769 = vmatprep.subr.bf16.mxu0 0
  %4770 = vmatpush1.bf16.msra.mxu0 0
  %4771 = vmatprep.subr.bf16.mxu0 0
  %4772 = vmatpush1.bf16.msra.mxu0 0
  %4773 = vmatprep.subr.bf16.mxu0 0
  %4774 = vmatpush1.bf16.msra.mxu0 0
  %4775 = vmatprep.subr.bf16.mxu0 0
  %4776 = vmatpush1.bf16.msra.mxu0 0
  %4777 = vmatprep.subr.bf16.mxu0 0
  %4778 = vmatpush1.bf16.msra.mxu0 0
  %4779 = vmatprep.mubr.bf16.mxu0 0
  %4780 = vmatmul.mubr.bf16.gmra.mrb[0].mxu0 %v4745
  %v4781 = vpop.f32.mrb[0].mxu0
  %v4782 = vadd.f32 %v786, %v4781
  %v4783 = vpop.f32.mrb[0].mxu0
  %v4784 = vpop.f32.mrb[0].mxu0
  %v4785 = vpop.f32.mrb[0].mxu0
  %4786 = vdwg.mxu0
  %v4787 = vtanh.pop %v4782
  %v4788 = vpack.c.bf16 %v4787, %v4787
  %v4790 = vsel %vm878, %v4788, 0
  %4792 = vmatprep.subr.bf16.mxu0 0
  %4793 = vmatpush1.bf16.msra.mxu0 %v870
  %4794 = vmatprep.subr.bf16.mxu0 0
  %4795 = vmatpush1.bf16.msra.mxu0 %v871
  %4796 = vmatprep.subr.bf16.mxu0 0
  %4797 = vmatpush1.bf16.msra.mxu0 %v872
  %4798 = vmatprep.subr.bf16.mxu0 0
  %4799 = vmatpush1.bf16.msra.mxu0 %v873
  %4800 = vmatprep.subr.bf16.mxu0 0
  %4801 = vmatpush1.bf16.msra.mxu0 0
  %4802 = vmatprep.subr.bf16.mxu0 0
  %4803 = vmatpush1.bf16.msra.mxu0 0
  %4804 = vmatprep.subr.bf16.mxu0 0
  %4805 = vmatpush1.bf16.msra.mxu0 0
  %4806 = vmatprep.subr.bf16.mxu0 0
  %4807 = vmatpush1.bf16.msra.mxu0 0
  %4808 = vmatprep.subr.bf16.mxu0 0
  %4809 = vmatpush1.bf16.msra.mxu0 0
  %4810 = vmatprep.subr.bf16.mxu0 0
  %4811 = vmatpush1.bf16.msra.mxu0 0
  %4812 = vmatprep.subr.bf16.mxu0 0
  %4813 = vmatpush1.bf16.msra.mxu0 0
  %4814 = vmatprep.subr.bf16.mxu0 0
  %4815 = vmatpush1.bf16.msra.mxu0 0
  %4816 = vmatprep.subr.bf16.mxu0 0
  %4817 = vmatpush1.bf16.msra.mxu0 0
  %4818 = vmatprep.subr.bf16.mxu0 0
  %4819 = vmatpush1.bf16.msra.mxu0 0
  %4820 = vmatprep.subr.bf16.mxu0 0
  %4821 = vmatpush1.bf16.msra.mxu0 0
  %4822 = vmatprep.subr.bf16.mxu0 0
  %4823 = vmatpush1.bf16.msra.mxu0 0
  %4824 = vmatprep.mubr.bf16.mxu0 0
  %4825 = vmatmul.mubr.bf16.gmra.mrb[0].mxu0 %v4790
  %v4826 = vpop.f32.mrb[0].mxu0
  %v4827 = vadd.f32 %v852, %v4826
  %v4828 = vpop.f32.mrb[0].mxu0
  %v4829 = vpop.f32.mrb[0].mxu0
  %v4830 = vpop.f32.mrb[0].mxu0
  %4831 = vdwg.mxu0
  %v4832 = vmul.f32 %v4277, 0.010127314
  %4834 = vrot.lane.b32.xlu0 %v4832, 96
  %v4835 = vpop.permute.xlu0 %4834
  %v4837 = vadd.f32 %v4189, %v4835
  %v4838 = vmul.f32 %v4479, 0.049915146
  %4840 = vrot.lane.b32.xlu0 %v4838, 96
  %v4841 = vpop.permute.xlu0 %4840
  %v4843 = vadd.f32 %v4837, %v4841
  %v4844 = vmul.f32 %v4589, 0.07233796
  %4846 = vrot.lane.b32.xlu0 %v4844, 96
  %v4847 = vpop.permute.xlu0 %4846
  %v4849 = vadd.f32 %v4843, %v4847
  %v4850 = vmul.f32 %v4705, -0.035819575
  %4852 = vrot.lane.b32.xlu0 %v4850, 96
  %v4853 = vpop.permute.xlu0 %4852
  %v4855 = vadd.f32 %v4849, %v4853
  %v4856 = vmul.f32 %v4827, 0.014550265
  %4858 = vrot.lane.b32.xlu0 %v4856, 96
  %v4859 = vpop.permute.xlu0 %4858
  %v4861 = vadd.f32 %v4855, %v4859
  %v4862 = vpack.c.bf16 %v4861, %v4861
  %4864 = vrot.lane.b32.xlu0 %v4862, 32
  %v4865 = vpop.permute.xlu0 %4864
  %v4867 = vsel %vm172, %v4865, 0
  %4869 = vmatprep.subr.bf16.mxu0 0
  %4870 = vmatpush1.bf16.msra.mxu0 %v799
  %4871 = vmatprep.subr.bf16.mxu0 0
  %4872 = vmatpush1.bf16.msra.mxu0 %v800
  %4873 = vmatprep.subr.bf16.mxu0 0
  %4874 = vmatpush1.bf16.msra.mxu0 0
  %4875 = vmatprep.subr.bf16.mxu0 0
  %4876 = vmatpush1.bf16.msra.mxu0 0
  %4877 = vmatprep.subr.bf16.mxu0 0
  %4878 = vmatpush1.bf16.msra.mxu0 0
  %4879 = vmatprep.subr.bf16.mxu0 0
  %4880 = vmatpush1.bf16.msra.mxu0 0
  %4881 = vmatprep.subr.bf16.mxu0 0
  %4882 = vmatpush1.bf16.msra.mxu0 0
  %4883 = vmatprep.subr.bf16.mxu0 0
  %4884 = vmatpush1.bf16.msra.mxu0 0
  %4885 = vmatprep.subr.bf16.mxu0 0
  %4886 = vmatpush1.bf16.msra.mxu0 0
  %4887 = vmatprep.subr.bf16.mxu0 0
  %4888 = vmatpush1.bf16.msra.mxu0 0
  %4889 = vmatprep.subr.bf16.mxu0 0
  %4890 = vmatpush1.bf16.msra.mxu0 0
  %4891 = vmatprep.subr.bf16.mxu0 0
  %4892 = vmatpush1.bf16.msra.mxu0 0
  %4893 = vmatprep.subr.bf16.mxu0 0
  %4894 = vmatpush1.bf16.msra.mxu0 0
  %4895 = vmatprep.subr.bf16.mxu0 0
  %4896 = vmatpush1.bf16.msra.mxu0 0
  %4897 = vmatprep.subr.bf16.mxu0 0
  %4898 = vmatpush1.bf16.msra.mxu0 0
  %4899 = vmatprep.subr.bf16.mxu0 0
  %4900 = vmatpush1.bf16.msra.mxu0 0
  %4901 = vmatprep.mubr.bf16.mxu0 0
  %4902 = vmatmul.mubr.bf16.gmra.mrb[0].mxu0 %v4867
  %v4903 = vpop.f32.mrb[0].mxu0
  %v4904 = vadd.f32 %v786, %v4903
  %v4905 = vpop.f32.mrb[0].mxu0
  %v4906 = vpop.f32.mrb[0].mxu0
  %v4907 = vpop.f32.mrb[0].mxu0
  %4908 = vdwg.mxu0
  %v4909 = vtanh.pop %v4904
  %v4910 = vpack.c.bf16 %v4909, %v4909
  %v4912 = vsel %vm878, %v4910, 0
  %4914 = vmatprep.subr.bf16.mxu0 0
  %4915 = vmatpush1.bf16.msra.mxu0 %v870
  %4916 = vmatprep.subr.bf16.mxu0 0
  %4917 = vmatpush1.bf16.msra.mxu0 %v871
  %4918 = vmatprep.subr.bf16.mxu0 0
  %4919 = vmatpush1.bf16.msra.mxu0 %v872
  %4920 = vmatprep.subr.bf16.mxu0 0
  %4921 = vmatpush1.bf16.msra.mxu0 %v873
  %4922 = vmatprep.subr.bf16.mxu0 0
  %4923 = vmatpush1.bf16.msra.mxu0 0
  %4924 = vmatprep.subr.bf16.mxu0 0
  %4925 = vmatpush1.bf16.msra.mxu0 0
  %4926 = vmatprep.subr.bf16.mxu0 0
  %4927 = vmatpush1.bf16.msra.mxu0 0
  %4928 = vmatprep.subr.bf16.mxu0 0
  %4929 = vmatpush1.bf16.msra.mxu0 0
  %4930 = vmatprep.subr.bf16.mxu0 0
  %4931 = vmatpush1.bf16.msra.mxu0 0
  %4932 = vmatprep.subr.bf16.mxu0 0
  %4933 = vmatpush1.bf16.msra.mxu0 0
  %4934 = vmatprep.subr.bf16.mxu0 0
  %4935 = vmatpush1.bf16.msra.mxu0 0
  %4936 = vmatprep.subr.bf16.mxu0 0
  %4937 = vmatpush1.bf16.msra.mxu0 0
  %4938 = vmatprep.subr.bf16.mxu0 0
  %4939 = vmatpush1.bf16.msra.mxu0 0
  %4940 = vmatprep.subr.bf16.mxu0 0
  %4941 = vmatpush1.bf16.msra.mxu0 0
  %4942 = vmatprep.subr.bf16.mxu0 0
  %4943 = vmatpush1.bf16.msra.mxu0 0
  %4944 = vmatprep.subr.bf16.mxu0 0
  %4945 = vmatpush1.bf16.msra.mxu0 0
  %4946 = vmatprep.mubr.bf16.mxu0 0
  %4947 = vmatmul.mubr.bf16.gmra.mrb[0].mxu0 %v4912
  %v4948 = vpop.f32.mrb[0].mxu0
  %v4949 = vadd.f32 %v852, %v4948
  %v4950 = vpop.f32.mrb[0].mxu0
  %v4951 = vpop.f32.mrb[0].mxu0
  %v4952 = vpop.f32.mrb[0].mxu0
  %4953 = vdwg.mxu0
  %v4954 = vmul.f32 %v4949, 0.022222223
  %4956 = vrot.lane.b32.xlu0 %v4954, 96
  %v4957 = vpop.permute.xlu0 %4956
  %v4959 = vadd.f32 %v4861, %v4957
  %v4960 = vpack.c.bf16 %v4959, %v4959
  %4962 = vrot.lane.b32.xlu0 %v4960, 32
  %v4963 = vpop.permute.xlu0 %4962
  %v4965 = vsel %vm172, %v4963, 0
  %4967 = vmatprep.subr.bf16.mxu0 0
  %4968 = vmatpush1.bf16.msra.mxu0 %v799
  %4969 = vmatprep.subr.bf16.mxu0 0
  %4970 = vmatpush1.bf16.msra.mxu0 %v800
  %4971 = vmatprep.subr.bf16.mxu0 0
  %4972 = vmatpush1.bf16.msra.mxu0 0
  %4973 = vmatprep.subr.bf16.mxu0 0
  %4974 = vmatpush1.bf16.msra.mxu0 0
  %4975 = vmatprep.subr.bf16.mxu0 0
  %4976 = vmatpush1.bf16.msra.mxu0 0
  %4977 = vmatprep.subr.bf16.mxu0 0
  %4978 = vmatpush1.bf16.msra.mxu0 0
  %4979 = vmatprep.subr.bf16.mxu0 0
  %4980 = vmatpush1.bf16.msra.mxu0 0
  %4981 = vmatprep.subr.bf16.mxu0 0
  %4982 = vmatpush1.bf16.msra.mxu0 0
  %4983 = vmatprep.subr.bf16.mxu0 0
  %4984 = vmatpush1.bf16.msra.mxu0 0
  %4985 = vmatprep.subr.bf16.mxu0 0
  %4986 = vmatpush1.bf16.msra.mxu0 0
  %4987 = vmatprep.subr.bf16.mxu0 0
  %4988 = vmatpush1.bf16.msra.mxu0 0
  %4989 = vmatprep.subr.bf16.mxu0 0
  %4990 = vmatpush1.bf16.msra.mxu0 0
  %4991 = vmatprep.subr.bf16.mxu0 0
  %4992 = vmatpush1.bf16.msra.mxu0 0
  %4993 = vmatprep.subr.bf16.mxu0 0
  %4994 = vmatpush1.bf16.msra.mxu0 0
  %4995 = vmatprep.subr.bf16.mxu0 0
  %4996 = vmatpush1.bf16.msra.mxu0 0
  %4997 = vmatprep.subr.bf16.mxu0 0
  %4998 = vmatpush1.bf16.msra.mxu0 0
  %4999 = vmatprep.mubr.bf16.mxu0 0
  %5000 = vmatmul.mubr.bf16.gmra.mrb[0].mxu0 %v4965
  %v5001 = vpop.f32.mrb[0].mxu0
  %v5002 = vadd.f32 %v786, %v5001
  %v5003 = vpop.f32.mrb[0].mxu0
  %v5004 = vpop.f32.mrb[0].mxu0
  %v5005 = vpop.f32.mrb[0].mxu0
  %5006 = vdwg.mxu0
  %v5007 = vtanh.pop %v5002
  %v5008 = vpack.c.bf16 %v5007, %v5007
  %v5010 = vsel %vm878, %v5008, 0
  %5012 = vmatprep.subr.bf16.mxu0 0
  %5013 = vmatpush1.bf16.msra.mxu0 %v870
  %5014 = vmatprep.subr.bf16.mxu0 0
  %5015 = vmatpush1.bf16.msra.mxu0 %v871
  %5016 = vmatprep.subr.bf16.mxu0 0
  %5017 = vmatpush1.bf16.msra.mxu0 %v872
  %5018 = vmatprep.subr.bf16.mxu0 0
  %5019 = vmatpush1.bf16.msra.mxu0 %v873
  %5020 = vmatprep.subr.bf16.mxu0 0
  %5021 = vmatpush1.bf16.msra.mxu0 0
  %5022 = vmatprep.subr.bf16.mxu0 0
  %5023 = vmatpush1.bf16.msra.mxu0 0
  %5024 = vmatprep.subr.bf16.mxu0 0
  %5025 = vmatpush1.bf16.msra.mxu0 0
  %5026 = vmatprep.subr.bf16.mxu0 0
  %5027 = vmatpush1.bf16.msra.mxu0 0
  %5028 = vmatprep.subr.bf16.mxu0 0
  %5029 = vmatpush1.bf16.msra.mxu0 0
  %5030 = vmatprep.subr.bf16.mxu0 0
  %5031 = vmatpush1.bf16.msra.mxu0 0
  %5032 = vmatprep.subr.bf16.mxu0 0
  %5033 = vmatpush1.bf16.msra.mxu0 0
  %5034 = vmatprep.subr.bf16.mxu0 0
  %5035 = vmatpush1.bf16.msra.mxu0 0
  %5036 = vmatprep.subr.bf16.mxu0 0
  %5037 = vmatpush1.bf16.msra.mxu0 0
  %5038 = vmatprep.subr.bf16.mxu0 0
  %5039 = vmatpush1.bf16.msra.mxu0 0
  %5040 = vmatprep.subr.bf16.mxu0 0
  %5041 = vmatpush1.bf16.msra.mxu0 0
  %5042 = vmatprep.subr.bf16.mxu0 0
  %5043 = vmatpush1.bf16.msra.mxu0 0
  %5044 = vmatprep.mubr.bf16.mxu0 0
  %5045 = vmatmul.mubr.bf16.gmra.mrb[0].mxu0 %v5010
  %v5046 = vpop.f32.mrb[0].mxu0
  %v5047 = vadd.f32 %v852, %v5046
  %v5048 = vpop.f32.mrb[0].mxu0
  %v5049 = vpop.f32.mrb[0].mxu0
  %v5050 = vpop.f32.mrb[0].mxu0
  %5051 = vdwg.mxu0
  %v5052 = vmul.f32 %v4949, 0.008333334
  %5054 = vrot.lane.b32.xlu0 %v5052, 96
  %v5055 = vpop.permute.xlu0 %5054
  %v5057 = vadd.f32 %v4861, %v5055
  %v5058 = vmul.f32 %v5047, 0.025
  %5060 = vrot.lane.b32.xlu0 %v5058, 96
  %v5061 = vpop.permute.xlu0 %5060
  %v5063 = vadd.f32 %v5057, %v5061
  %v5064 = vpack.c.bf16 %v5063, %v5063
  %5066 = vrot.lane.b32.xlu0 %v5064, 32
  %v5067 = vpop.permute.xlu0 %5066
  %v5069 = vsel %vm172, %v5067, 0
  %5071 = vmatprep.subr.bf16.mxu0 0
  %5072 = vmatpush1.bf16.msra.mxu0 %v799
  %5073 = vmatprep.subr.bf16.mxu0 0
  %5074 = vmatpush1.bf16.msra.mxu0 %v800
  %5075 = vmatprep.subr.bf16.mxu0 0
  %5076 = vmatpush1.bf16.msra.mxu0 0
  %5077 = vmatprep.subr.bf16.mxu0 0
  %5078 = vmatpush1.bf16.msra.mxu0 0
  %5079 = vmatprep.subr.bf16.mxu0 0
  %5080 = vmatpush1.bf16.msra.mxu0 0
  %5081 = vmatprep.subr.bf16.mxu0 0
  %5082 = vmatpush1.bf16.msra.mxu0 0
  %5083 = vmatprep.subr.bf16.mxu0 0
  %5084 = vmatpush1.bf16.msra.mxu0 0
  %5085 = vmatprep.subr.bf16.mxu0 0
  %5086 = vmatpush1.bf16.msra.mxu0 0
  %5087 = vmatprep.subr.bf16.mxu0 0
  %5088 = vmatpush1.bf16.msra.mxu0 0
  %5089 = vmatprep.subr.bf16.mxu0 0
  %5090 = vmatpush1.bf16.msra.mxu0 0
  %5091 = vmatprep.subr.bf16.mxu0 0
  %5092 = vmatpush1.bf16.msra.mxu0 0
  %5093 = vmatprep.subr.bf16.mxu0 0
  %5094 = vmatpush1.bf16.msra.mxu0 0
  %5095 = vmatprep.subr.bf16.mxu0 0
  %5096 = vmatpush1.bf16.msra.mxu0 0
  %5097 = vmatprep.subr.bf16.mxu0 0
  %5098 = vmatpush1.bf16.msra.mxu0 0
  %5099 = vmatprep.subr.bf16.mxu0 0
  %5100 = vmatpush1.bf16.msra.mxu0 0
  %5101 = vmatprep.subr.bf16.mxu0 0
  %5102 = vmatpush1.bf16.msra.mxu0 0
  %5103 = vmatprep.mubr.bf16.mxu0 0
  %5104 = vmatmul.mubr.bf16.gmra.mrb[0].mxu0 %v5069
  %v5105 = vpop.f32.mrb[0].mxu0
  %v5106 = vadd.f32 %v786, %v5105
  %v5107 = vpop.f32.mrb[0].mxu0
  %v5108 = vpop.f32.mrb[0].mxu0
  %v5109 = vpop.f32.mrb[0].mxu0
  %5110 = vdwg.mxu0
  %v5111 = vtanh.pop %v5106
  %v5112 = vpack.c.bf16 %v5111, %v5111
  %v5114 = vsel %vm878, %v5112, 0
  %5116 = vmatprep.subr.bf16.mxu0 0
  %5117 = vmatpush1.bf16.msra.mxu0 %v870
  %5118 = vmatprep.subr.bf16.mxu0 0
  %5119 = vmatpush1.bf16.msra.mxu0 %v871
  %5120 = vmatprep.subr.bf16.mxu0 0
  %5121 = vmatpush1.bf16.msra.mxu0 %v872
  %5122 = vmatprep.subr.bf16.mxu0 0
  %5123 = vmatpush1.bf16.msra.mxu0 %v873
  %5124 = vmatprep.subr.bf16.mxu0 0
  %5125 = vmatpush1.bf16.msra.mxu0 0
  %5126 = vmatprep.subr.bf16.mxu0 0
  %5127 = vmatpush1.bf16.msra.mxu0 0
  %5128 = vmatprep.subr.bf16.mxu0 0
  %5129 = vmatpush1.bf16.msra.mxu0 0
  %5130 = vmatprep.subr.bf16.mxu0 0
  %5131 = vmatpush1.bf16.msra.mxu0 0
  %5132 = vmatprep.subr.bf16.mxu0 0
  %5133 = vmatpush1.bf16.msra.mxu0 0
  %5134 = vmatprep.subr.bf16.mxu0 0
  %5135 = vmatpush1.bf16.msra.mxu0 0
  %5136 = vmatprep.subr.bf16.mxu0 0
  %5137 = vmatpush1.bf16.msra.mxu0 0
  %5138 = vmatprep.subr.bf16.mxu0 0
  %5139 = vmatpush1.bf16.msra.mxu0 0
  %5140 = vmatprep.subr.bf16.mxu0 0
  %5141 = vmatpush1.bf16.msra.mxu0 0
  %5142 = vmatprep.subr.bf16.mxu0 0
  %5143 = vmatpush1.bf16.msra.mxu0 0
  %5144 = vmatprep.subr.bf16.mxu0 0
  %5145 = vmatpush1.bf16.msra.mxu0 0
  %5146 = vmatprep.subr.bf16.mxu0 0
  %5147 = vmatpush1.bf16.msra.mxu0 0
  %5148 = vmatprep.mubr.bf16.mxu0 0
  %5149 = vmatmul.mubr.bf16.gmra.mrb[0].mxu0 %v5114
  %v5150 = vpop.f32.mrb[0].mxu0
  %v5151 = vadd.f32 %v852, %v5150
  %v5152 = vpop.f32.mrb[0].mxu0
  %v5153 = vpop.f32.mrb[0].mxu0
  %v5154 = vpop.f32.mrb[0].mxu0
  %5155 = vdwg.mxu0
  %v5156 = vmul.f32 %v4949, 0.108641975
  %5158 = vrot.lane.b32.xlu0 %v5156, 96
  %v5159 = vpop.permute.xlu0 %5158
  %v5161 = vadd.f32 %v4861, %v5159
  %v5162 = vmul.f32 %v5047, -0.4148148
  %5164 = vrot.lane.b32.xlu0 %v5162, 96
  %v5165 = vpop.permute.xlu0 %5164
  %v5167 = vadd.f32 %v5161, %v5165
  %v5168 = vmul.f32 %v5151, 0.39506173
  %5170 = vrot.lane.b32.xlu0 %v5168, 96
  %v5171 = vpop.permute.xlu0 %5170
  %v5173 = vadd.f32 %v5167, %v5171
  %v5174 = vpack.c.bf16 %v5173, %v5173
  %5176 = vrot.lane.b32.xlu0 %v5174, 32
  %v5177 = vpop.permute.xlu0 %5176
  %v5179 = vsel %vm172, %v5177, 0
  %5181 = vmatprep.subr.bf16.mxu0 0
  %5182 = vmatpush1.bf16.msra.mxu0 %v799
  %5183 = vmatprep.subr.bf16.mxu0 0
  %5184 = vmatpush1.bf16.msra.mxu0 %v800
  %5185 = vmatprep.subr.bf16.mxu0 0
  %5186 = vmatpush1.bf16.msra.mxu0 0
  %5187 = vmatprep.subr.bf16.mxu0 0
  %5188 = vmatpush1.bf16.msra.mxu0 0
  %5189 = vmatprep.subr.bf16.mxu0 0
  %5190 = vmatpush1.bf16.msra.mxu0 0
  %5191 = vmatprep.subr.bf16.mxu0 0
  %5192 = vmatpush1.bf16.msra.mxu0 0
  %5193 = vmatprep.subr.bf16.mxu0 0
  %5194 = vmatpush1.bf16.msra.mxu0 0
  %5195 = vmatprep.subr.bf16.mxu0 0
  %5196 = vmatpush1.bf16.msra.mxu0 0
  %5197 = vmatprep.subr.bf16.mxu0 0
  %5198 = vmatpush1.bf16.msra.mxu0 0
  %5199 = vmatprep.subr.bf16.mxu0 0
  %5200 = vmatpush1.bf16.msra.mxu0 0
  %5201 = vmatprep.subr.bf16.mxu0 0
  %5202 = vmatpush1.bf16.msra.mxu0 0
  %5203 = vmatprep.subr.bf16.mxu0 0
  %5204 = vmatpush1.bf16.msra.mxu0 0
  %5205 = vmatprep.subr.bf16.mxu0 0
  %5206 = vmatpush1.bf16.msra.mxu0 0
  %5207 = vmatprep.subr.bf16.mxu0 0
  %5208 = vmatpush1.bf16.msra.mxu0 0
  %5209 = vmatprep.subr.bf16.mxu0 0
  %5210 = vmatpush1.bf16.msra.mxu0 0
  %5211 = vmatprep.subr.bf16.mxu0 0
  %5212 = vmatpush1.bf16.msra.mxu0 0
  %5213 = vmatprep.mubr.bf16.mxu0 0
  %5214 = vmatmul.mubr.bf16.gmra.mrb[0].mxu0 %v5179
  %v5215 = vpop.f32.mrb[0].mxu0
  %v5216 = vadd.f32 %v786, %v5215
  %v5217 = vpop.f32.mrb[0].mxu0
  %v5218 = vpop.f32.mrb[0].mxu0
  %v5219 = vpop.f32.mrb[0].mxu0
  %5220 = vdwg.mxu0
  %v5221 = vtanh.pop %v5216
  %v5222 = vpack.c.bf16 %v5221, %v5221
  %v5224 = vsel %vm878, %v5222, 0
  %5226 = vmatprep.subr.bf16.mxu0 0
  %5227 = vmatpush1.bf16.msra.mxu0 %v870
  %5228 = vmatprep.subr.bf16.mxu0 0
  %5229 = vmatpush1.bf16.msra.mxu0 %v871
  %5230 = vmatprep.subr.bf16.mxu0 0
  %5231 = vmatpush1.bf16.msra.mxu0 %v872
  %5232 = vmatprep.subr.bf16.mxu0 0
  %5233 = vmatpush1.bf16.msra.mxu0 %v873
  %5234 = vmatprep.subr.bf16.mxu0 0
  %5235 = vmatpush1.bf16.msra.mxu0 0
  %5236 = vmatprep.subr.bf16.mxu0 0
  %5237 = vmatpush1.bf16.msra.mxu0 0
  %5238 = vmatprep.subr.bf16.mxu0 0
  %5239 = vmatpush1.bf16.msra.mxu0 0
  %5240 = vmatprep.subr.bf16.mxu0 0
  %5241 = vmatpush1.bf16.msra.mxu0 0
  %5242 = vmatprep.subr.bf16.mxu0 0
  %5243 = vmatpush1.bf16.msra.mxu0 0
  %5244 = vmatprep.subr.bf16.mxu0 0
  %5245 = vmatpush1.bf16.msra.mxu0 0
  %5246 = vmatprep.subr.bf16.mxu0 0
  %5247 = vmatpush1.bf16.msra.mxu0 0
  %5248 = vmatprep.subr.bf16.mxu0 0
  %5249 = vmatpush1.bf16.msra.mxu0 0
  %5250 = vmatprep.subr.bf16.mxu0 0
  %5251 = vmatpush1.bf16.msra.mxu0 0
  %5252 = vmatprep.subr.bf16.mxu0 0
  %5253 = vmatpush1.bf16.msra.mxu0 0
  %5254 = vmatprep.subr.bf16.mxu0 0
  %5255 = vmatpush1.bf16.msra.mxu0 0
  %5256 = vmatprep.subr.bf16.mxu0 0
  %5257 = vmatpush1.bf16.msra.mxu0 0
  %5258 = vmatprep.mubr.bf16.mxu0 0
  %5259 = vmatmul.mubr.bf16.gmra.mrb[0].mxu0 %v5224
  %v5260 = vpop.f32.mrb[0].mxu0
  %v5261 = vadd.f32 %v852, %v5260
  %v5262 = vpop.f32.mrb[0].mxu0
  %v5263 = vpop.f32.mrb[0].mxu0
  %v5264 = vpop.f32.mrb[0].mxu0
  %5265 = vdwg.mxu0
  %v5266 = vmul.f32 %v4949, 0.32806653
  %5268 = vrot.lane.b32.xlu0 %v5266, 96
  %v5269 = vpop.permute.xlu0 %5268
  %v5271 = vadd.f32 %v4861, %v5269
  %v5272 = vmul.f32 %v5047, -1.2884215
  %5274 = vrot.lane.b32.xlu0 %v5272, 96
  %v5275 = vpop.permute.xlu0 %5274
  %v5277 = vadd.f32 %v5271, %v5275
  %v5278 = vmul.f32 %v5151, 1.0914326
  %5280 = vrot.lane.b32.xlu0 %v5278, 96
  %v5281 = vpop.permute.xlu0 %5280
  %v5283 = vadd.f32 %v5277, %v5281
  %v5284 = vmul.f32 %v5261, -0.032312147
  %5286 = vrot.lane.b32.xlu0 %v5284, 96
  %v5287 = vpop.permute.xlu0 %5286
  %v5289 = vadd.f32 %v5283, %v5287
  %v5290 = vpack.c.bf16 %v5289, %v5289
  %5292 = vrot.lane.b32.xlu0 %v5290, 32
  %v5293 = vpop.permute.xlu0 %5292
  %v5295 = vsel %vm172, %v5293, 0
  %5297 = vmatprep.subr.bf16.mxu0 0
  %5298 = vmatpush1.bf16.msra.mxu0 %v799
  %5299 = vmatprep.subr.bf16.mxu0 0
  %5300 = vmatpush1.bf16.msra.mxu0 %v800
  %5301 = vmatprep.subr.bf16.mxu0 0
  %5302 = vmatpush1.bf16.msra.mxu0 0
  %5303 = vmatprep.subr.bf16.mxu0 0
  %5304 = vmatpush1.bf16.msra.mxu0 0
  %5305 = vmatprep.subr.bf16.mxu0 0
  %5306 = vmatpush1.bf16.msra.mxu0 0
  %5307 = vmatprep.subr.bf16.mxu0 0
  %5308 = vmatpush1.bf16.msra.mxu0 0
  %5309 = vmatprep.subr.bf16.mxu0 0
  %5310 = vmatpush1.bf16.msra.mxu0 0
  %5311 = vmatprep.subr.bf16.mxu0 0
  %5312 = vmatpush1.bf16.msra.mxu0 0
  %5313 = vmatprep.subr.bf16.mxu0 0
  %5314 = vmatpush1.bf16.msra.mxu0 0
  %5315 = vmatprep.subr.bf16.mxu0 0
  %5316 = vmatpush1.bf16.msra.mxu0 0
  %5317 = vmatprep.subr.bf16.mxu0 0
  %5318 = vmatpush1.bf16.msra.mxu0 0
  %5319 = vmatprep.subr.bf16.mxu0 0
  %5320 = vmatpush1.bf16.msra.mxu0 0
  %5321 = vmatprep.subr.bf16.mxu0 0
  %5322 = vmatpush1.bf16.msra.mxu0 0
  %5323 = vmatprep.subr.bf16.mxu0 0
  %5324 = vmatpush1.bf16.msra.mxu0 0
  %5325 = vmatprep.subr.bf16.mxu0 0
  %5326 = vmatpush1.bf16.msra.mxu0 0
  %5327 = vmatprep.subr.bf16.mxu0 0
  %5328 = vmatpush1.bf16.msra.mxu0 0
  %5329 = vmatprep.mubr.bf16.mxu0 0
  %5330 = vmatmul.mubr.bf16.gmra.mrb[0].mxu0 %v5295
  %v5331 = vpop.f32.mrb[0].mxu0
  %v5332 = vadd.f32 %v786, %v5331
  %v5333 = vpop.f32.mrb[0].mxu0
  %v5334 = vpop.f32.mrb[0].mxu0
  %v5335 = vpop.f32.mrb[0].mxu0
  %5336 = vdwg.mxu0
  %v5337 = vtanh.pop %v5332
  %v5338 = vpack.c.bf16 %v5337, %v5337
  %v5340 = vsel %vm878, %v5338, 0
  %5342 = vmatprep.subr.bf16.mxu0 0
  %5343 = vmatpush1.bf16.msra.mxu0 %v870
  %5344 = vmatprep.subr.bf16.mxu0 0
  %5345 = vmatpush1.bf16.msra.mxu0 %v871
  %5346 = vmatprep.subr.bf16.mxu0 0
  %5347 = vmatpush1.bf16.msra.mxu0 %v872
  %5348 = vmatprep.subr.bf16.mxu0 0
  %5349 = vmatpush1.bf16.msra.mxu0 %v873
  %5350 = vmatprep.subr.bf16.mxu0 0
  %5351 = vmatpush1.bf16.msra.mxu0 0
  %5352 = vmatprep.subr.bf16.mxu0 0
  %5353 = vmatpush1.bf16.msra.mxu0 0
  %5354 = vmatprep.subr.bf16.mxu0 0
  %5355 = vmatpush1.bf16.msra.mxu0 0
  %5356 = vmatprep.subr.bf16.mxu0 0
  %5357 = vmatpush1.bf16.msra.mxu0 0
  %5358 = vmatprep.subr.bf16.mxu0 0
  %5359 = vmatpush1.bf16.msra.mxu0 0
  %5360 = vmatprep.subr.bf16.mxu0 0
  %5361 = vmatpush1.bf16.msra.mxu0 0
  %5362 = vmatprep.subr.bf16.mxu0 0
  %5363 = vmatpush1.bf16.msra.mxu0 0
  %5364 = vmatprep.subr.bf16.mxu0 0
  %5365 = vmatpush1.bf16.msra.mxu0 0
  %5366 = vmatprep.subr.bf16.mxu0 0
  %5367 = vmatpush1.bf16.msra.mxu0 0
  %5368 = vmatprep.subr.bf16.mxu0 0
  %5369 = vmatpush1.bf16.msra.mxu0 0
  %5370 = vmatprep.subr.bf16.mxu0 0
  %5371 = vmatpush1.bf16.msra.mxu0 0
  %5372 = vmatprep.subr.bf16.mxu0 0
  %5373 = vmatpush1.bf16.msra.mxu0 0
  %5374 = vmatprep.mubr.bf16.mxu0 0
  %5375 = vmatmul.mubr.bf16.gmra.mrb[0].mxu0 %v5340
  %v5376 = vpop.f32.mrb[0].mxu0
  %v5377 = vadd.f32 %v852, %v5376
  %v5378 = vpop.f32.mrb[0].mxu0
  %v5379 = vpop.f32.mrb[0].mxu0
  %v5380 = vpop.f32.mrb[0].mxu0
  %5381 = vdwg.mxu0
  %v5382 = vmul.f32 %v4949, 0.3162528
  %5384 = vrot.lane.b32.xlu0 %v5382, 96
  %v5385 = vpop.permute.xlu0 %5384
  %v5387 = vadd.f32 %v4861, %v5385
  %v5388 = vmul.f32 %v5047, -1.1952862
  %5390 = vrot.lane.b32.xlu0 %v5388, 96
  %v5391 = vpop.permute.xlu0 %5390
  %v5393 = vadd.f32 %v5387, %v5391
  %v5394 = vmul.f32 %v5151, 0.9896025
  %5396 = vrot.lane.b32.xlu0 %v5394, 96
  %v5397 = vpop.permute.xlu0 %5396
  %v5399 = vadd.f32 %v5393, %v5397
  %v5400 = vmul.f32 %v5261, 0.030934343
  %5402 = vrot.lane.b32.xlu0 %v5400, 96
  %v5403 = vpop.permute.xlu0 %5402
  %v5405 = vadd.f32 %v5399, %v5403
  %v5406 = vmul.f32 %v5377, -0.030392367
  %5408 = vrot.lane.b32.xlu0 %v5406, 96
  %v5409 = vpop.permute.xlu0 %5408
  %v5411 = vadd.f32 %v5405, %v5409
  %v5412 = vpack.c.bf16 %v5411, %v5411
  %5414 = vrot.lane.b32.xlu0 %v5412, 32
  %v5415 = vpop.permute.xlu0 %5414
  %v5417 = vsel %vm172, %v5415, 0
  %5419 = vmatprep.subr.bf16.mxu0 0
  %5420 = vmatpush1.bf16.msra.mxu0 %v799
  %5421 = vmatprep.subr.bf16.mxu0 0
  %5422 = vmatpush1.bf16.msra.mxu0 %v800
  %5423 = vmatprep.subr.bf16.mxu0 0
  %5424 = vmatpush1.bf16.msra.mxu0 0
  %5425 = vmatprep.subr.bf16.mxu0 0
  %5426 = vmatpush1.bf16.msra.mxu0 0
  %5427 = vmatprep.subr.bf16.mxu0 0
  %5428 = vmatpush1.bf16.msra.mxu0 0
  %5429 = vmatprep.subr.bf16.mxu0 0
  %5430 = vmatpush1.bf16.msra.mxu0 0
  %5431 = vmatprep.subr.bf16.mxu0 0
  %5432 = vmatpush1.bf16.msra.mxu0 0
  %5433 = vmatprep.subr.bf16.mxu0 0
  %5434 = vmatpush1.bf16.msra.mxu0 0
  %5435 = vmatprep.subr.bf16.mxu0 0
  %5436 = vmatpush1.bf16.msra.mxu0 0
  %5437 = vmatprep.subr.bf16.mxu0 0
  %5438 = vmatpush1.bf16.msra.mxu0 0
  %5439 = vmatprep.subr.bf16.mxu0 0
  %5440 = vmatpush1.bf16.msra.mxu0 0
  %5441 = vmatprep.subr.bf16.mxu0 0
  %5442 = vmatpush1.bf16.msra.mxu0 0
  %5443 = vmatprep.subr.bf16.mxu0 0
  %5444 = vmatpush1.bf16.msra.mxu0 0
  %5445 = vmatprep.subr.bf16.mxu0 0
  %5446 = vmatpush1.bf16.msra.mxu0 0
  %5447 = vmatprep.subr.bf16.mxu0 0
  %5448 = vmatpush1.bf16.msra.mxu0 0
  %5449 = vmatprep.subr.bf16.mxu0 0
  %5450 = vmatpush1.bf16.msra.mxu0 0
  %5451 = vmatprep.mubr.bf16.mxu0 0
  %5452 = vmatmul.mubr.bf16.gmra.mrb[0].mxu0 %v5417
  %v5453 = vpop.f32.mrb[0].mxu0
  %v5454 = vadd.f32 %v786, %v5453
  %v5455 = vpop.f32.mrb[0].mxu0
  %v5456 = vpop.f32.mrb[0].mxu0
  %v5457 = vpop.f32.mrb[0].mxu0
  %5458 = vdwg.mxu0
  %v5459 = vtanh.pop %v5454
  %v5460 = vpack.c.bf16 %v5459, %v5459
  %v5462 = vsel %vm878, %v5460, 0
  %5464 = vmatprep.subr.bf16.mxu0 0
  %5465 = vmatpush1.bf16.msra.mxu0 %v870
  %5466 = vmatprep.subr.bf16.mxu0 0
  %5467 = vmatpush1.bf16.msra.mxu0 %v871
  %5468 = vmatprep.subr.bf16.mxu0 0
  %5469 = vmatpush1.bf16.msra.mxu0 %v872
  %5470 = vmatprep.subr.bf16.mxu0 0
  %5471 = vmatpush1.bf16.msra.mxu0 %v873
  %5472 = vmatprep.subr.bf16.mxu0 0
  %5473 = vmatpush1.bf16.msra.mxu0 0
  %5474 = vmatprep.subr.bf16.mxu0 0
  %5475 = vmatpush1.bf16.msra.mxu0 0
  %5476 = vmatprep.subr.bf16.mxu0 0
  %5477 = vmatpush1.bf16.msra.mxu0 0
  %5478 = vmatprep.subr.bf16.mxu0 0
  %5479 = vmatpush1.bf16.msra.mxu0 0
  %5480 = vmatprep.subr.bf16.mxu0 0
  %5481 = vmatpush1.bf16.msra.mxu0 0
  %5482 = vmatprep.subr.bf16.mxu0 0
  %5483 = vmatpush1.bf16.msra.mxu0 0
  %5484 = vmatprep.subr.bf16.mxu0 0
  %5485 = vmatpush1.bf16.msra.mxu0 0
  %5486 = vmatprep.subr.bf16.mxu0 0
  %5487 = vmatpush1.bf16.msra.mxu0 0
  %5488 = vmatprep.subr.bf16.mxu0 0
  %5489 = vmatpush1.bf16.msra.mxu0 0
  %5490 = vmatprep.subr.bf16.mxu0 0
  %5491 = vmatpush1.bf16.msra.mxu0 0
  %5492 = vmatprep.subr.bf16.mxu0 0
  %5493 = vmatpush1.bf16.msra.mxu0 0
  %5494 = vmatprep.subr.bf16.mxu0 0
  %5495 = vmatpush1.bf16.msra.mxu0 0
  %5496 = vmatprep.mubr.bf16.mxu0 0
  %5497 = vmatmul.mubr.bf16.gmra.mrb[0].mxu0 %v5462
  %v5498 = vpop.f32.mrb[0].mxu0
  %v5499 = vadd.f32 %v852, %v5498
  %v5500 = vpop.f32.mrb[0].mxu0
  %v5501 = vpop.f32.mrb[0].mxu0
  %v5502 = vpop.f32.mrb[0].mxu0
  %5503 = vdwg.mxu0
  %v5504 = vmul.f32 %v4949, 0.010127314
  %5506 = vrot.lane.b32.xlu0 %v5504, 96
  %v5507 = vpop.permute.xlu0 %5506
  %v5509 = vadd.f32 %v4861, %v5507
  %v5510 = vmul.f32 %v5151, 0.049915146
  %5512 = vrot.lane.b32.xlu0 %v5510, 96
  %v5513 = vpop.permute.xlu0 %5512
  %v5515 = vadd.f32 %v5509, %v5513
  %v5516 = vmul.f32 %v5261, 0.07233796
  %5518 = vrot.lane.b32.xlu0 %v5516, 96
  %v5519 = vpop.permute.xlu0 %5518
  %v5521 = vadd.f32 %v5515, %v5519
  %v5522 = vmul.f32 %v5377, -0.035819575
  %5524 = vrot.lane.b32.xlu0 %v5522, 96
  %v5525 = vpop.permute.xlu0 %5524
  %v5527 = vadd.f32 %v5521, %v5525
  %v5528 = vmul.f32 %v5499, 0.014550265
  %5530 = vrot.lane.b32.xlu0 %v5528, 96
  %v5531 = vpop.permute.xlu0 %5530
  %v5533 = vadd.f32 %v5527, %v5531
  %v5534 = vpack.c.bf16 %v5533, %v5533
  %5536 = vrot.lane.b32.xlu0 %v5534, 32
  %v5537 = vpop.permute.xlu0 %5536
  %v5539 = vsel %vm172, %v5537, 0
  %5541 = vmatprep.subr.bf16.mxu0 0
  %5542 = vmatpush1.bf16.msra.mxu0 %v799
  %5543 = vmatprep.subr.bf16.mxu0 0
  %5544 = vmatpush1.bf16.msra.mxu0 %v800
  %5545 = vmatprep.subr.bf16.mxu0 0
  %5546 = vmatpush1.bf16.msra.mxu0 0
  %5547 = vmatprep.subr.bf16.mxu0 0
  %5548 = vmatpush1.bf16.msra.mxu0 0
  %5549 = vmatprep.subr.bf16.mxu0 0
  %5550 = vmatpush1.bf16.msra.mxu0 0
  %5551 = vmatprep.subr.bf16.mxu0 0
  %5552 = vmatpush1.bf16.msra.mxu0 0
  %5553 = vmatprep.subr.bf16.mxu0 0
  %5554 = vmatpush1.bf16.msra.mxu0 0
  %5555 = vmatprep.subr.bf16.mxu0 0
  %5556 = vmatpush1.bf16.msra.mxu0 0
  %5557 = vmatprep.subr.bf16.mxu0 0
  %5558 = vmatpush1.bf16.msra.mxu0 0
  %5559 = vmatprep.subr.bf16.mxu0 0
  %5560 = vmatpush1.bf16.msra.mxu0 0
  %5561 = vmatprep.subr.bf16.mxu0 0
  %5562 = vmatpush1.bf16.msra.mxu0 0
  %5563 = vmatprep.subr.bf16.mxu0 0
  %5564 = vmatpush1.bf16.msra.mxu0 0
  %5565 = vmatprep.subr.bf16.mxu0 0
  %5566 = vmatpush1.bf16.msra.mxu0 0
  %5567 = vmatprep.subr.bf16.mxu0 0
  %5568 = vmatpush1.bf16.msra.mxu0 0
  %5569 = vmatprep.subr.bf16.mxu0 0
  %5570 = vmatpush1.bf16.msra.mxu0 0
  %5571 = vmatprep.subr.bf16.mxu0 0
  %5572 = vmatpush1.bf16.msra.mxu0 0
  %5573 = vmatprep.mubr.bf16.mxu0 0
  %5574 = vmatmul.mubr.bf16.gmra.mrb[0].mxu0 %v5539
  %v5575 = vpop.f32.mrb[0].mxu0
  %v5576 = vadd.f32 %v786, %v5575
  %v5577 = vpop.f32.mrb[0].mxu0
  %v5578 = vpop.f32.mrb[0].mxu0
  %v5579 = vpop.f32.mrb[0].mxu0
  %5580 = vdwg.mxu0
  %v5581 = vtanh.pop %v5576
  %v5582 = vpack.c.bf16 %v5581, %v5581
  %v5584 = vsel %vm878, %v5582, 0
  %5586 = vmatprep.subr.bf16.mxu0 0
  %5587 = vmatpush1.bf16.msra.mxu0 %v870
  %5588 = vmatprep.subr.bf16.mxu0 0
  %5589 = vmatpush1.bf16.msra.mxu0 %v871
  %5590 = vmatprep.subr.bf16.mxu0 0
  %5591 = vmatpush1.bf16.msra.mxu0 %v872
  %5592 = vmatprep.subr.bf16.mxu0 0
  %5593 = vmatpush1.bf16.msra.mxu0 %v873
  %5594 = vmatprep.subr.bf16.mxu0 0
  %5595 = vmatpush1.bf16.msra.mxu0 0
  %5596 = vmatprep.subr.bf16.mxu0 0
  %5597 = vmatpush1.bf16.msra.mxu0 0
  %5598 = vmatprep.subr.bf16.mxu0 0
  %5599 = vmatpush1.bf16.msra.mxu0 0
  %5600 = vmatprep.subr.bf16.mxu0 0
  %5601 = vmatpush1.bf16.msra.mxu0 0
  %5602 = vmatprep.subr.bf16.mxu0 0
  %5603 = vmatpush1.bf16.msra.mxu0 0
  %5604 = vmatprep.subr.bf16.mxu0 0
  %5605 = vmatpush1.bf16.msra.mxu0 0
  %5606 = vmatprep.subr.bf16.mxu0 0
  %5607 = vmatpush1.bf16.msra.mxu0 0
  %5608 = vmatprep.subr.bf16.mxu0 0
  %5609 = vmatpush1.bf16.msra.mxu0 0
  %5610 = vmatprep.subr.bf16.mxu0 0
  %5611 = vmatpush1.bf16.msra.mxu0 0
  %5612 = vmatprep.subr.bf16.mxu0 0
  %5613 = vmatpush1.bf16.msra.mxu0 0
  %5614 = vmatprep.subr.bf16.mxu0 0
  %5615 = vmatpush1.bf16.msra.mxu0 0
  %5616 = vmatprep.subr.bf16.mxu0 0
  %5617 = vmatpush1.bf16.msra.mxu0 0
  %5618 = vmatprep.mubr.bf16.mxu0 0
  %5619 = vmatmul.mubr.bf16.gmra.mrb[0].mxu0 %v5584
  %v5620 = vpop.f32.mrb[0].mxu0
  %v5621 = vadd.f32 %v852, %v5620
  %v5622 = vpop.f32.mrb[0].mxu0
  %v5623 = vpop.f32.mrb[0].mxu0
  %v5624 = vpop.f32.mrb[0].mxu0
  %5625 = vdwg.mxu0
  %v5626 = vmul.f32 %v5621, 0.022222223
  %5628 = vrot.lane.b32.xlu0 %v5626, 96
  %v5629 = vpop.permute.xlu0 %5628
  %v5631 = vadd.f32 %v5533, %v5629
  %v5632 = vpack.c.bf16 %v5631, %v5631
  %5634 = vrot.lane.b32.xlu0 %v5632, 32
  %v5635 = vpop.permute.xlu0 %5634
  %v5637 = vsel %vm172, %v5635, 0
  %5639 = vmatprep.subr.bf16.mxu0 0
  %5640 = vmatpush1.bf16.msra.mxu0 %v799
  %5641 = vmatprep.subr.bf16.mxu0 0
  %5642 = vmatpush1.bf16.msra.mxu0 %v800
  %5643 = vmatprep.subr.bf16.mxu0 0
  %5644 = vmatpush1.bf16.msra.mxu0 0
  %5645 = vmatprep.subr.bf16.mxu0 0
  %5646 = vmatpush1.bf16.msra.mxu0 0
  %5647 = vmatprep.subr.bf16.mxu0 0
  %5648 = vmatpush1.bf16.msra.mxu0 0
  %5649 = vmatprep.subr.bf16.mxu0 0
  %5650 = vmatpush1.bf16.msra.mxu0 0
  %5651 = vmatprep.subr.bf16.mxu0 0
  %5652 = vmatpush1.bf16.msra.mxu0 0
  %5653 = vmatprep.subr.bf16.mxu0 0
  %5654 = vmatpush1.bf16.msra.mxu0 0
  %5655 = vmatprep.subr.bf16.mxu0 0
  %5656 = vmatpush1.bf16.msra.mxu0 0
  %5657 = vmatprep.subr.bf16.mxu0 0
  %5658 = vmatpush1.bf16.msra.mxu0 0
  %5659 = vmatprep.subr.bf16.mxu0 0
  %5660 = vmatpush1.bf16.msra.mxu0 0
  %5661 = vmatprep.subr.bf16.mxu0 0
  %5662 = vmatpush1.bf16.msra.mxu0 0
  %5663 = vmatprep.subr.bf16.mxu0 0
  %5664 = vmatpush1.bf16.msra.mxu0 0
  %5665 = vmatprep.subr.bf16.mxu0 0
  %5666 = vmatpush1.bf16.msra.mxu0 0
  %5667 = vmatprep.subr.bf16.mxu0 0
  %5668 = vmatpush1.bf16.msra.mxu0 0
  %5669 = vmatprep.subr.bf16.mxu0 0
  %5670 = vmatpush1.bf16.msra.mxu0 0
  %5671 = vmatprep.mubr.bf16.mxu0 0
  %5672 = vmatmul.mubr.bf16.gmra.mrb[0].mxu0 %v5637
  %v5673 = vpop.f32.mrb[0].mxu0
  %v5674 = vadd.f32 %v786, %v5673
  %v5675 = vpop.f32.mrb[0].mxu0
  %v5676 = vpop.f32.mrb[0].mxu0
  %v5677 = vpop.f32.mrb[0].mxu0
  %5678 = vdwg.mxu0
  %v5679 = vtanh.pop %v5674
  %v5680 = vpack.c.bf16 %v5679, %v5679
  %v5682 = vsel %vm878, %v5680, 0
  %5684 = vmatprep.subr.bf16.mxu0 0
  %5685 = vmatpush1.bf16.msra.mxu0 %v870
  %5686 = vmatprep.subr.bf16.mxu0 0
  %5687 = vmatpush1.bf16.msra.mxu0 %v871
  %5688 = vmatprep.subr.bf16.mxu0 0
  %5689 = vmatpush1.bf16.msra.mxu0 %v872
  %5690 = vmatprep.subr.bf16.mxu0 0
  %5691 = vmatpush1.bf16.msra.mxu0 %v873
  %5692 = vmatprep.subr.bf16.mxu0 0
  %5693 = vmatpush1.bf16.msra.mxu0 0
  %5694 = vmatprep.subr.bf16.mxu0 0
  %5695 = vmatpush1.bf16.msra.mxu0 0
  %5696 = vmatprep.subr.bf16.mxu0 0
  %5697 = vmatpush1.bf16.msra.mxu0 0
  %5698 = vmatprep.subr.bf16.mxu0 0
  %5699 = vmatpush1.bf16.msra.mxu0 0
  %5700 = vmatprep.subr.bf16.mxu0 0
  %5701 = vmatpush1.bf16.msra.mxu0 0
  %5702 = vmatprep.subr.bf16.mxu0 0
  %5703 = vmatpush1.bf16.msra.mxu0 0
  %5704 = vmatprep.subr.bf16.mxu0 0
  %5705 = vmatpush1.bf16.msra.mxu0 0
  %5706 = vmatprep.subr.bf16.mxu0 0
  %5707 = vmatpush1.bf16.msra.mxu0 0
  %5708 = vmatprep.subr.bf16.mxu0 0
  %5709 = vmatpush1.bf16.msra.mxu0 0
  %5710 = vmatprep.subr.bf16.mxu0 0
  %5711 = vmatpush1.bf16.msra.mxu0 0
  %5712 = vmatprep.subr.bf16.mxu0 0
  %5713 = vmatpush1.bf16.msra.mxu0 0
  %5714 = vmatprep.subr.bf16.mxu0 0
  %5715 = vmatpush1.bf16.msra.mxu0 0
  %5716 = vmatprep.mubr.bf16.mxu0 0
  %5717 = vmatmul.mubr.bf16.gmra.mrb[0].mxu0 %v5682
  %v5718 = vpop.f32.mrb[0].mxu0
  %v5719 = vadd.f32 %v852, %v5718
  %v5720 = vpop.f32.mrb[0].mxu0
  %v5721 = vpop.f32.mrb[0].mxu0
  %v5722 = vpop.f32.mrb[0].mxu0
  %5723 = vdwg.mxu0
  %v5724 = vmul.f32 %v5621, 0.008333334
  %5726 = vrot.lane.b32.xlu0 %v5724, 96
  %v5727 = vpop.permute.xlu0 %5726
  %v5729 = vadd.f32 %v5533, %v5727
  %v5730 = vmul.f32 %v5719, 0.025
  %5732 = vrot.lane.b32.xlu0 %v5730, 96
  %v5733 = vpop.permute.xlu0 %5732
  %v5735 = vadd.f32 %v5729, %v5733
  %v5736 = vpack.c.bf16 %v5735, %v5735
  %5738 = vrot.lane.b32.xlu0 %v5736, 32
  %v5739 = vpop.permute.xlu0 %5738
  %v5741 = vsel %vm172, %v5739, 0
  %5743 = vmatprep.subr.bf16.mxu0 0
  %5744 = vmatpush1.bf16.msra.mxu0 %v799
  %5745 = vmatprep.subr.bf16.mxu0 0
  %5746 = vmatpush1.bf16.msra.mxu0 %v800
  %5747 = vmatprep.subr.bf16.mxu0 0
  %5748 = vmatpush1.bf16.msra.mxu0 0
  %5749 = vmatprep.subr.bf16.mxu0 0
  %5750 = vmatpush1.bf16.msra.mxu0 0
  %5751 = vmatprep.subr.bf16.mxu0 0
  %5752 = vmatpush1.bf16.msra.mxu0 0
  %5753 = vmatprep.subr.bf16.mxu0 0
  %5754 = vmatpush1.bf16.msra.mxu0 0
  %5755 = vmatprep.subr.bf16.mxu0 0
  %5756 = vmatpush1.bf16.msra.mxu0 0
  %5757 = vmatprep.subr.bf16.mxu0 0
  %5758 = vmatpush1.bf16.msra.mxu0 0
  %5759 = vmatprep.subr.bf16.mxu0 0
  %5760 = vmatpush1.bf16.msra.mxu0 0
  %5761 = vmatprep.subr.bf16.mxu0 0
  %5762 = vmatpush1.bf16.msra.mxu0 0
  %5763 = vmatprep.subr.bf16.mxu0 0
  %5764 = vmatpush1.bf16.msra.mxu0 0
  %5765 = vmatprep.subr.bf16.mxu0 0
  %5766 = vmatpush1.bf16.msra.mxu0 0
  %5767 = vmatprep.subr.bf16.mxu0 0
  %5768 = vmatpush1.bf16.msra.mxu0 0
  %5769 = vmatprep.subr.bf16.mxu0 0
  %5770 = vmatpush1.bf16.msra.mxu0 0
  %5771 = vmatprep.subr.bf16.mxu0 0
  %5772 = vmatpush1.bf16.msra.mxu0 0
  %5773 = vmatprep.subr.bf16.mxu0 0
  %5774 = vmatpush1.bf16.msra.mxu0 0
  %5775 = vmatprep.mubr.bf16.mxu0 0
  %5776 = vmatmul.mubr.bf16.gmra.mrb[0].mxu0 %v5741
  %v5777 = vpop.f32.mrb[0].mxu0
  %v5778 = vadd.f32 %v786, %v5777
  %v5779 = vpop.f32.mrb[0].mxu0
  %v5780 = vpop.f32.mrb[0].mxu0
  %v5781 = vpop.f32.mrb[0].mxu0
  %5782 = vdwg.mxu0
  %v5783 = vtanh.pop %v5778
  %v5784 = vpack.c.bf16 %v5783, %v5783
  %v5786 = vsel %vm878, %v5784, 0
  %5788 = vmatprep.subr.bf16.mxu0 0
  %5789 = vmatpush1.bf16.msra.mxu0 %v870
  %5790 = vmatprep.subr.bf16.mxu0 0
  %5791 = vmatpush1.bf16.msra.mxu0 %v871
  %5792 = vmatprep.subr.bf16.mxu0 0
  %5793 = vmatpush1.bf16.msra.mxu0 %v872
  %5794 = vmatprep.subr.bf16.mxu0 0
  %5795 = vmatpush1.bf16.msra.mxu0 %v873
  %5796 = vmatprep.subr.bf16.mxu0 0
  %5797 = vmatpush1.bf16.msra.mxu0 0
  %5798 = vmatprep.subr.bf16.mxu0 0
  %5799 = vmatpush1.bf16.msra.mxu0 0
  %5800 = vmatprep.subr.bf16.mxu0 0
  %5801 = vmatpush1.bf16.msra.mxu0 0
  %5802 = vmatprep.subr.bf16.mxu0 0
  %5803 = vmatpush1.bf16.msra.mxu0 0
  %5804 = vmatprep.subr.bf16.mxu0 0
  %5805 = vmatpush1.bf16.msra.mxu0 0
  %5806 = vmatprep.subr.bf16.mxu0 0
  %5807 = vmatpush1.bf16.msra.mxu0 0
  %5808 = vmatprep.subr.bf16.mxu0 0
  %5809 = vmatpush1.bf16.msra.mxu0 0
  %5810 = vmatprep.subr.bf16.mxu0 0
  %5811 = vmatpush1.bf16.msra.mxu0 0
  %5812 = vmatprep.subr.bf16.mxu0 0
  %5813 = vmatpush1.bf16.msra.mxu0 0
  %5814 = vmatprep.subr.bf16.mxu0 0
  %5815 = vmatpush1.bf16.msra.mxu0 0
  %5816 = vmatprep.subr.bf16.mxu0 0
  %5817 = vmatpush1.bf16.msra.mxu0 0
  %5818 = vmatprep.subr.bf16.mxu0 0
  %5819 = vmatpush1.bf16.msra.mxu0 0
  %5820 = vmatprep.mubr.bf16.mxu0 0
  %5821 = vmatmul.mubr.bf16.gmra.mrb[0].mxu0 %v5786
  %v5822 = vpop.f32.mrb[0].mxu0
  %v5823 = vadd.f32 %v852, %v5822
  %v5824 = vpop.f32.mrb[0].mxu0
  %v5825 = vpop.f32.mrb[0].mxu0
  %v5826 = vpop.f32.mrb[0].mxu0
  %5827 = vdwg.mxu0
  %v5828 = vmul.f32 %v5621, 0.108641975
  %5830 = vrot.lane.b32.xlu0 %v5828, 96
  %v5831 = vpop.permute.xlu0 %5830
  %v5833 = vadd.f32 %v5533, %v5831
  %v5834 = vmul.f32 %v5719, -0.4148148
  %5836 = vrot.lane.b32.xlu0 %v5834, 96
  %v5837 = vpop.permute.xlu0 %5836
  %v5839 = vadd.f32 %v5833, %v5837
  %v5840 = vmul.f32 %v5823, 0.39506173
  %5842 = vrot.lane.b32.xlu0 %v5840, 96
  %v5843 = vpop.permute.xlu0 %5842
  %v5845 = vadd.f32 %v5839, %v5843
  %v5846 = vpack.c.bf16 %v5845, %v5845
  %5848 = vrot.lane.b32.xlu0 %v5846, 32
  %v5849 = vpop.permute.xlu0 %5848
  %v5851 = vsel %vm172, %v5849, 0
  %5853 = vmatprep.subr.bf16.mxu0 0
  %5854 = vmatpush1.bf16.msra.mxu0 %v799
  %5855 = vmatprep.subr.bf16.mxu0 0
  %5856 = vmatpush1.bf16.msra.mxu0 %v800
  %5857 = vmatprep.subr.bf16.mxu0 0
  %5858 = vmatpush1.bf16.msra.mxu0 0
  %5859 = vmatprep.subr.bf16.mxu0 0
  %5860 = vmatpush1.bf16.msra.mxu0 0
  %5861 = vmatprep.subr.bf16.mxu0 0
  %5862 = vmatpush1.bf16.msra.mxu0 0
  %5863 = vmatprep.subr.bf16.mxu0 0
  %5864 = vmatpush1.bf16.msra.mxu0 0
  %5865 = vmatprep.subr.bf16.mxu0 0
  %5866 = vmatpush1.bf16.msra.mxu0 0
  %5867 = vmatprep.subr.bf16.mxu0 0
  %5868 = vmatpush1.bf16.msra.mxu0 0
  %5869 = vmatprep.subr.bf16.mxu0 0
  %5870 = vmatpush1.bf16.msra.mxu0 0
  %5871 = vmatprep.subr.bf16.mxu0 0
  %5872 = vmatpush1.bf16.msra.mxu0 0
  %5873 = vmatprep.subr.bf16.mxu0 0
  %5874 = vmatpush1.bf16.msra.mxu0 0
  %5875 = vmatprep.subr.bf16.mxu0 0
  %5876 = vmatpush1.bf16.msra.mxu0 0
  %5877 = vmatprep.subr.bf16.mxu0 0
  %5878 = vmatpush1.bf16.msra.mxu0 0
  %5879 = vmatprep.subr.bf16.mxu0 0
  %5880 = vmatpush1.bf16.msra.mxu0 0
  %5881 = vmatprep.subr.bf16.mxu0 0
  %5882 = vmatpush1.bf16.msra.mxu0 0
  %5883 = vmatprep.subr.bf16.mxu0 0
  %5884 = vmatpush1.bf16.msra.mxu0 0
  %5885 = vmatprep.mubr.bf16.mxu0 0
  %5886 = vmatmul.mubr.bf16.gmra.mrb[0].mxu0 %v5851
  %v5887 = vpop.f32.mrb[0].mxu0
  %v5888 = vadd.f32 %v786, %v5887
  %v5889 = vpop.f32.mrb[0].mxu0
  %v5890 = vpop.f32.mrb[0].mxu0
  %v5891 = vpop.f32.mrb[0].mxu0
  %5892 = vdwg.mxu0
  %v5893 = vtanh.pop %v5888
  %v5894 = vpack.c.bf16 %v5893, %v5893
  %v5896 = vsel %vm878, %v5894, 0
  %5898 = vmatprep.subr.bf16.mxu0 0
  %5899 = vmatpush1.bf16.msra.mxu0 %v870
  %5900 = vmatprep.subr.bf16.mxu0 0
  %5901 = vmatpush1.bf16.msra.mxu0 %v871
  %5902 = vmatprep.subr.bf16.mxu0 0
  %5903 = vmatpush1.bf16.msra.mxu0 %v872
  %5904 = vmatprep.subr.bf16.mxu0 0
  %5905 = vmatpush1.bf16.msra.mxu0 %v873
  %5906 = vmatprep.subr.bf16.mxu0 0
  %5907 = vmatpush1.bf16.msra.mxu0 0
  %5908 = vmatprep.subr.bf16.mxu0 0
  %5909 = vmatpush1.bf16.msra.mxu0 0
  %5910 = vmatprep.subr.bf16.mxu0 0
  %5911 = vmatpush1.bf16.msra.mxu0 0
  %5912 = vmatprep.subr.bf16.mxu0 0
  %5913 = vmatpush1.bf16.msra.mxu0 0
  %5914 = vmatprep.subr.bf16.mxu0 0
  %5915 = vmatpush1.bf16.msra.mxu0 0
  %5916 = vmatprep.subr.bf16.mxu0 0
  %5917 = vmatpush1.bf16.msra.mxu0 0
  %5918 = vmatprep.subr.bf16.mxu0 0
  %5919 = vmatpush1.bf16.msra.mxu0 0
  %5920 = vmatprep.subr.bf16.mxu0 0
  %5921 = vmatpush1.bf16.msra.mxu0 0
  %5922 = vmatprep.subr.bf16.mxu0 0
  %5923 = vmatpush1.bf16.msra.mxu0 0
  %5924 = vmatprep.subr.bf16.mxu0 0
  %5925 = vmatpush1.bf16.msra.mxu0 0
  %5926 = vmatprep.subr.bf16.mxu0 0
  %5927 = vmatpush1.bf16.msra.mxu0 0
  %5928 = vmatprep.subr.bf16.mxu0 0
  %5929 = vmatpush1.bf16.msra.mxu0 0
  %5930 = vmatprep.mubr.bf16.mxu0 0
  %5931 = vmatmul.mubr.bf16.gmra.mrb[0].mxu0 %v5896
  %v5932 = vpop.f32.mrb[0].mxu0
  %v5933 = vadd.f32 %v852, %v5932
  %v5934 = vpop.f32.mrb[0].mxu0
  %v5935 = vpop.f32.mrb[0].mxu0
  %v5936 = vpop.f32.mrb[0].mxu0
  %5937 = vdwg.mxu0
  %v5938 = vmul.f32 %v5621, 0.32806653
  %5940 = vrot.lane.b32.xlu0 %v5938, 96
  %v5941 = vpop.permute.xlu0 %5940
  %v5943 = vadd.f32 %v5533, %v5941
  %v5944 = vmul.f32 %v5719, -1.2884215
  %5946 = vrot.lane.b32.xlu0 %v5944, 96
  %v5947 = vpop.permute.xlu0 %5946
  %v5949 = vadd.f32 %v5943, %v5947
  %v5950 = vmul.f32 %v5823, 1.0914326
  %5952 = vrot.lane.b32.xlu0 %v5950, 96
  %v5953 = vpop.permute.xlu0 %5952
  %v5955 = vadd.f32 %v5949, %v5953
  %v5956 = vmul.f32 %v5933, -0.032312147
  %5958 = vrot.lane.b32.xlu0 %v5956, 96
  %v5959 = vpop.permute.xlu0 %5958
  %v5961 = vadd.f32 %v5955, %v5959
  %v5962 = vpack.c.bf16 %v5961, %v5961
  %5964 = vrot.lane.b32.xlu0 %v5962, 32
  %v5965 = vpop.permute.xlu0 %5964
  %v5967 = vsel %vm172, %v5965, 0
  %5969 = vmatprep.subr.bf16.mxu0 0
  %5970 = vmatpush1.bf16.msra.mxu0 %v799
  %5971 = vmatprep.subr.bf16.mxu0 0
  %5972 = vmatpush1.bf16.msra.mxu0 %v800
  %5973 = vmatprep.subr.bf16.mxu0 0
  %5974 = vmatpush1.bf16.msra.mxu0 0
  %5975 = vmatprep.subr.bf16.mxu0 0
  %5976 = vmatpush1.bf16.msra.mxu0 0
  %5977 = vmatprep.subr.bf16.mxu0 0
  %5978 = vmatpush1.bf16.msra.mxu0 0
  %5979 = vmatprep.subr.bf16.mxu0 0
  %5980 = vmatpush1.bf16.msra.mxu0 0
  %5981 = vmatprep.subr.bf16.mxu0 0
  %5982 = vmatpush1.bf16.msra.mxu0 0
  %5983 = vmatprep.subr.bf16.mxu0 0
  %5984 = vmatpush1.bf16.msra.mxu0 0
  %5985 = vmatprep.subr.bf16.mxu0 0
  %5986 = vmatpush1.bf16.msra.mxu0 0
  %5987 = vmatprep.subr.bf16.mxu0 0
  %5988 = vmatpush1.bf16.msra.mxu0 0
  %5989 = vmatprep.subr.bf16.mxu0 0
  %5990 = vmatpush1.bf16.msra.mxu0 0
  %5991 = vmatprep.subr.bf16.mxu0 0
  %5992 = vmatpush1.bf16.msra.mxu0 0
  %5993 = vmatprep.subr.bf16.mxu0 0
  %5994 = vmatpush1.bf16.msra.mxu0 0
  %5995 = vmatprep.subr.bf16.mxu0 0
  %5996 = vmatpush1.bf16.msra.mxu0 0
  %5997 = vmatprep.subr.bf16.mxu0 0
  %5998 = vmatpush1.bf16.msra.mxu0 0
  %5999 = vmatprep.subr.bf16.mxu0 0
  %6000 = vmatpush1.bf16.msra.mxu0 0
  %6001 = vmatprep.mubr.bf16.mxu0 0
  %6002 = vmatmul.mubr.bf16.gmra.mrb[0].mxu0 %v5967
  %v6003 = vpop.f32.mrb[0].mxu0
  %v6004 = vadd.f32 %v786, %v6003
  %v6005 = vpop.f32.mrb[0].mxu0
  %v6006 = vpop.f32.mrb[0].mxu0
  %v6007 = vpop.f32.mrb[0].mxu0
  %6008 = vdwg.mxu0
  %v6009 = vtanh.pop %v6004
  %v6010 = vpack.c.bf16 %v6009, %v6009
  %v6012 = vsel %vm878, %v6010, 0
  %6014 = vmatprep.subr.bf16.mxu0 0
  %6015 = vmatpush1.bf16.msra.mxu0 %v870
  %6016 = vmatprep.subr.bf16.mxu0 0
  %6017 = vmatpush1.bf16.msra.mxu0 %v871
  %6018 = vmatprep.subr.bf16.mxu0 0
  %6019 = vmatpush1.bf16.msra.mxu0 %v872
  %6020 = vmatprep.subr.bf16.mxu0 0
  %6021 = vmatpush1.bf16.msra.mxu0 %v873
  %6022 = vmatprep.subr.bf16.mxu0 0
  %6023 = vmatpush1.bf16.msra.mxu0 0
  %6024 = vmatprep.subr.bf16.mxu0 0
  %6025 = vmatpush1.bf16.msra.mxu0 0
  %6026 = vmatprep.subr.bf16.mxu0 0
  %6027 = vmatpush1.bf16.msra.mxu0 0
  %6028 = vmatprep.subr.bf16.mxu0 0
  %6029 = vmatpush1.bf16.msra.mxu0 0
  %6030 = vmatprep.subr.bf16.mxu0 0
  %6031 = vmatpush1.bf16.msra.mxu0 0
  %6032 = vmatprep.subr.bf16.mxu0 0
  %6033 = vmatpush1.bf16.msra.mxu0 0
  %6034 = vmatprep.subr.bf16.mxu0 0
  %6035 = vmatpush1.bf16.msra.mxu0 0
  %6036 = vmatprep.subr.bf16.mxu0 0
  %6037 = vmatpush1.bf16.msra.mxu0 0
  %6038 = vmatprep.subr.bf16.mxu0 0
  %6039 = vmatpush1.bf16.msra.mxu0 0
  %6040 = vmatprep.subr.bf16.mxu0 0
  %6041 = vmatpush1.bf16.msra.mxu0 0
  %6042 = vmatprep.subr.bf16.mxu0 0
  %6043 = vmatpush1.bf16.msra.mxu0 0
  %6044 = vmatprep.subr.bf16.mxu0 0
  %6045 = vmatpush1.bf16.msra.mxu0 0
  %6046 = vmatprep.mubr.bf16.mxu0 0
  %6047 = vmatmul.mubr.bf16.gmra.mrb[0].mxu0 %v6012
  %v6048 = vpop.f32.mrb[0].mxu0
  %v6049 = vadd.f32 %v852, %v6048
  %v6050 = vpop.f32.mrb[0].mxu0
  %v6051 = vpop.f32.mrb[0].mxu0
  %v6052 = vpop.f32.mrb[0].mxu0
  %6053 = vdwg.mxu0
  %v6054 = vmul.f32 %v5621, 0.3162528
  %6056 = vrot.lane.b32.xlu0 %v6054, 96
  %v6057 = vpop.permute.xlu0 %6056
  %v6059 = vadd.f32 %v5533, %v6057
  %v6060 = vmul.f32 %v5719, -1.1952862
  %6062 = vrot.lane.b32.xlu0 %v6060, 96
  %v6063 = vpop.permute.xlu0 %6062
  %v6065 = vadd.f32 %v6059, %v6063
  %v6066 = vmul.f32 %v5823, 0.9896025
  %6068 = vrot.lane.b32.xlu0 %v6066, 96
  %v6069 = vpop.permute.xlu0 %6068
  %v6071 = vadd.f32 %v6065, %v6069
  %v6072 = vmul.f32 %v5933, 0.030934343
  %6074 = vrot.lane.b32.xlu0 %v6072, 96
  %v6075 = vpop.permute.xlu0 %6074
  %v6077 = vadd.f32 %v6071, %v6075
  %v6078 = vmul.f32 %v6049, -0.030392367
  %6080 = vrot.lane.b32.xlu0 %v6078, 96
  %v6081 = vpop.permute.xlu0 %6080
  %v6083 = vadd.f32 %v6077, %v6081
  %v6084 = vpack.c.bf16 %v6083, %v6083
  %6086 = vrot.lane.b32.xlu0 %v6084, 32
  %v6087 = vpop.permute.xlu0 %6086
  %v6089 = vsel %vm172, %v6087, 0
  %6091 = vmatprep.subr.bf16.mxu0 0
  %6092 = vmatpush1.bf16.msra.mxu0 %v799
  %6093 = vmatprep.subr.bf16.mxu0 0
  %6094 = vmatpush1.bf16.msra.mxu0 %v800
  %6095 = vmatprep.subr.bf16.mxu0 0
  %6096 = vmatpush1.bf16.msra.mxu0 0
  %6097 = vmatprep.subr.bf16.mxu0 0
  %6098 = vmatpush1.bf16.msra.mxu0 0
  %6099 = vmatprep.subr.bf16.mxu0 0
  %6100 = vmatpush1.bf16.msra.mxu0 0
  %6101 = vmatprep.subr.bf16.mxu0 0
  %6102 = vmatpush1.bf16.msra.mxu0 0
  %6103 = vmatprep.subr.bf16.mxu0 0
  %6104 = vmatpush1.bf16.msra.mxu0 0
  %6105 = vmatprep.subr.bf16.mxu0 0
  %6106 = vmatpush1.bf16.msra.mxu0 0
  %6107 = vmatprep.subr.bf16.mxu0 0
  %6108 = vmatpush1.bf16.msra.mxu0 0
  %6109 = vmatprep.subr.bf16.mxu0 0
  %6110 = vmatpush1.bf16.msra.mxu0 0
  %6111 = vmatprep.subr.bf16.mxu0 0
  %6112 = vmatpush1.bf16.msra.mxu0 0
  %6113 = vmatprep.subr.bf16.mxu0 0
  %6114 = vmatpush1.bf16.msra.mxu0 0
  %6115 = vmatprep.subr.bf16.mxu0 0
  %6116 = vmatpush1.bf16.msra.mxu0 0
  %6117 = vmatprep.subr.bf16.mxu0 0
  %6118 = vmatpush1.bf16.msra.mxu0 0
  %6119 = vmatprep.subr.bf16.mxu0 0
  %6120 = vmatpush1.bf16.msra.mxu0 0
  %6121 = vmatprep.subr.bf16.mxu0 0
  %6122 = vmatpush1.bf16.msra.mxu0 0
  %6123 = vmatprep.mubr.bf16.mxu0 0
  %6124 = vmatmul.mubr.bf16.gmra.mrb[0].mxu0 %v6089
  %v6125 = vpop.f32.mrb[0].mxu0
  %v6126 = vadd.f32 %v786, %v6125
  %v6127 = vpop.f32.mrb[0].mxu0
  %v6128 = vpop.f32.mrb[0].mxu0
  %v6129 = vpop.f32.mrb[0].mxu0
  %6130 = vdwg.mxu0
  %v6131 = vtanh.pop %v6126
  %v6132 = vpack.c.bf16 %v6131, %v6131
  %v6134 = vsel %vm878, %v6132, 0
  %6136 = vmatprep.subr.bf16.mxu0 0
  %6137 = vmatpush1.bf16.msra.mxu0 %v870
  %6138 = vmatprep.subr.bf16.mxu0 0
  %6139 = vmatpush1.bf16.msra.mxu0 %v871
  %6140 = vmatprep.subr.bf16.mxu0 0
  %6141 = vmatpush1.bf16.msra.mxu0 %v872
  %6142 = vmatprep.subr.bf16.mxu0 0
  %6143 = vmatpush1.bf16.msra.mxu0 %v873
  %6144 = vmatprep.subr.bf16.mxu0 0
  %6145 = vmatpush1.bf16.msra.mxu0 0
  %6146 = vmatprep.subr.bf16.mxu0 0
  %6147 = vmatpush1.bf16.msra.mxu0 0
  %6148 = vmatprep.subr.bf16.mxu0 0
  %6149 = vmatpush1.bf16.msra.mxu0 0
  %6150 = vmatprep.subr.bf16.mxu0 0
  %6151 = vmatpush1.bf16.msra.mxu0 0
  %6152 = vmatprep.subr.bf16.mxu0 0
  %6153 = vmatpush1.bf16.msra.mxu0 0
  %6154 = vmatprep.subr.bf16.mxu0 0
  %6155 = vmatpush1.bf16.msra.mxu0 0
  %6156 = vmatprep.subr.bf16.mxu0 0
  %6157 = vmatpush1.bf16.msra.mxu0 0
  %6158 = vmatprep.subr.bf16.mxu0 0
  %6159 = vmatpush1.bf16.msra.mxu0 0
  %6160 = vmatprep.subr.bf16.mxu0 0
  %6161 = vmatpush1.bf16.msra.mxu0 0
  %6162 = vmatprep.subr.bf16.mxu0 0
  %6163 = vmatpush1.bf16.msra.mxu0 0
  %6164 = vmatprep.subr.bf16.mxu0 0
  %6165 = vmatpush1.bf16.msra.mxu0 0
  %6166 = vmatprep.subr.bf16.mxu0 0
  %6167 = vmatpush1.bf16.msra.mxu0 0
  %6168 = vmatprep.mubr.bf16.mxu0 0
  %6169 = vmatmul.mubr.bf16.gmra.mrb[0].mxu0 %v6134
  %v6170 = vpop.f32.mrb[0].mxu0
  %v6171 = vadd.f32 %v852, %v6170
  %v6172 = vpop.f32.mrb[0].mxu0
  %v6173 = vpop.f32.mrb[0].mxu0
  %v6174 = vpop.f32.mrb[0].mxu0
  %6175 = vdwg.mxu0
  %v6176 = vmul.f32 %v5621, 0.010127314
  %6178 = vrot.lane.b32.xlu0 %v6176, 96
  %v6179 = vpop.permute.xlu0 %6178
  %v6181 = vadd.f32 %v5533, %v6179
  %v6182 = vmul.f32 %v5823, 0.049915146
  %6184 = vrot.lane.b32.xlu0 %v6182, 96
  %v6185 = vpop.permute.xlu0 %6184
  %v6187 = vadd.f32 %v6181, %v6185
  %v6188 = vmul.f32 %v5933, 0.07233796
  %6190 = vrot.lane.b32.xlu0 %v6188, 96
  %v6191 = vpop.permute.xlu0 %6190
  %v6193 = vadd.f32 %v6187, %v6191
  %v6194 = vmul.f32 %v6049, -0.035819575
  %6196 = vrot.lane.b32.xlu0 %v6194, 96
  %v6197 = vpop.permute.xlu0 %6196
  %v6199 = vadd.f32 %v6193, %v6197
  %v6200 = vmul.f32 %v6171, 0.014550265
  %6202 = vrot.lane.b32.xlu0 %v6200, 96
  %v6203 = vpop.permute.xlu0 %6202
  %v6205 = vadd.f32 %v6199, %v6203
  %v6206 = vpack.c.bf16 %v6205, %v6205
  %6208 = vrot.lane.b32.xlu0 %v6206, 32
  %v6209 = vpop.permute.xlu0 %6208
  %v6211 = vsel %vm172, %v6209, 0
  %6213 = vmatprep.subr.bf16.mxu0 0
  %6214 = vmatpush1.bf16.msra.mxu0 %v799
  %6215 = vmatprep.subr.bf16.mxu0 0
  %6216 = vmatpush1.bf16.msra.mxu0 %v800
  %6217 = vmatprep.subr.bf16.mxu0 0
  %6218 = vmatpush1.bf16.msra.mxu0 0
  %6219 = vmatprep.subr.bf16.mxu0 0
  %6220 = vmatpush1.bf16.msra.mxu0 0
  %6221 = vmatprep.subr.bf16.mxu0 0
  %6222 = vmatpush1.bf16.msra.mxu0 0
  %6223 = vmatprep.subr.bf16.mxu0 0
  %6224 = vmatpush1.bf16.msra.mxu0 0
  %6225 = vmatprep.subr.bf16.mxu0 0
  %6226 = vmatpush1.bf16.msra.mxu0 0
  %6227 = vmatprep.subr.bf16.mxu0 0
  %6228 = vmatpush1.bf16.msra.mxu0 0
  %6229 = vmatprep.subr.bf16.mxu0 0
  %6230 = vmatpush1.bf16.msra.mxu0 0
  %6231 = vmatprep.subr.bf16.mxu0 0
  %6232 = vmatpush1.bf16.msra.mxu0 0
  %6233 = vmatprep.subr.bf16.mxu0 0
  %6234 = vmatpush1.bf16.msra.mxu0 0
  %6235 = vmatprep.subr.bf16.mxu0 0
  %6236 = vmatpush1.bf16.msra.mxu0 0
  %6237 = vmatprep.subr.bf16.mxu0 0
  %6238 = vmatpush1.bf16.msra.mxu0 0
  %6239 = vmatprep.subr.bf16.mxu0 0
  %6240 = vmatpush1.bf16.msra.mxu0 0
  %6241 = vmatprep.subr.bf16.mxu0 0
  %6242 = vmatpush1.bf16.msra.mxu0 0
  %6243 = vmatprep.subr.bf16.mxu0 0
  %6244 = vmatpush1.bf16.msra.mxu0 0
  %6245 = vmatprep.mubr.bf16.mxu0 0
  %6246 = vmatmul.mubr.bf16.gmra.mrb[0].mxu0 %v6211
  %v6247 = vpop.f32.mrb[0].mxu0
  %v6248 = vadd.f32 %v786, %v6247
  %v6249 = vpop.f32.mrb[0].mxu0
  %v6250 = vpop.f32.mrb[0].mxu0
  %v6251 = vpop.f32.mrb[0].mxu0
  %6252 = vdwg.mxu0
  %v6253 = vtanh.pop %v6248
  %v6254 = vpack.c.bf16 %v6253, %v6253
  %v6256 = vsel %vm878, %v6254, 0
  %6258 = vmatprep.subr.bf16.mxu0 0
  %6259 = vmatpush1.bf16.msra.mxu0 %v870
  %6260 = vmatprep.subr.bf16.mxu0 0
  %6261 = vmatpush1.bf16.msra.mxu0 %v871
  %6262 = vmatprep.subr.bf16.mxu0 0
  %6263 = vmatpush1.bf16.msra.mxu0 %v872
  %6264 = vmatprep.subr.bf16.mxu0 0
  %6265 = vmatpush1.bf16.msra.mxu0 %v873
  %6266 = vmatprep.subr.bf16.mxu0 0
  %6267 = vmatpush1.bf16.msra.mxu0 0
  %6268 = vmatprep.subr.bf16.mxu0 0
  %6269 = vmatpush1.bf16.msra.mxu0 0
  %6270 = vmatprep.subr.bf16.mxu0 0
  %6271 = vmatpush1.bf16.msra.mxu0 0
  %6272 = vmatprep.subr.bf16.mxu0 0
  %6273 = vmatpush1.bf16.msra.mxu0 0
  %6274 = vmatprep.subr.bf16.mxu0 0
  %6275 = vmatpush1.bf16.msra.mxu0 0
  %6276 = vmatprep.subr.bf16.mxu0 0
  %6277 = vmatpush1.bf16.msra.mxu0 0
  %6278 = vmatprep.subr.bf16.mxu0 0
  %6279 = vmatpush1.bf16.msra.mxu0 0
  %6280 = vmatprep.subr.bf16.mxu0 0
  %6281 = vmatpush1.bf16.msra.mxu0 0
  %6282 = vmatprep.subr.bf16.mxu0 0
  %6283 = vmatpush1.bf16.msra.mxu0 0
  %6284 = vmatprep.subr.bf16.mxu0 0
  %6285 = vmatpush1.bf16.msra.mxu0 0
  %6286 = vmatprep.subr.bf16.mxu0 0
  %6287 = vmatpush1.bf16.msra.mxu0 0
  %6288 = vmatprep.subr.bf16.mxu0 0
  %6289 = vmatpush1.bf16.msra.mxu0 0
  %6290 = vmatprep.mubr.bf16.mxu0 0
  %6291 = vmatmul.mubr.bf16.gmra.mrb[0].mxu0 %v6256
  %v6292 = vpop.f32.mrb[0].mxu0
  %v6293 = vadd.f32 %v852, %v6292
  %v6294 = vpop.f32.mrb[0].mxu0
  %v6295 = vpop.f32.mrb[0].mxu0
  %v6296 = vpop.f32.mrb[0].mxu0
  %6297 = vdwg.mxu0
  %v6298 = vmul.f32 %v6293, 0.022222223
  %6300 = vrot.lane.b32.xlu0 %v6298, 96
  %v6301 = vpop.permute.xlu0 %6300
  %v6303 = vadd.f32 %v6205, %v6301
  %v6304 = vpack.c.bf16 %v6303, %v6303
  %6306 = vrot.lane.b32.xlu0 %v6304, 32
  %v6307 = vpop.permute.xlu0 %6306
  %v6309 = vsel %vm172, %v6307, 0
  %6311 = vmatprep.subr.bf16.mxu0 0
  %6312 = vmatpush1.bf16.msra.mxu0 %v799
  %6313 = vmatprep.subr.bf16.mxu0 0
  %6314 = vmatpush1.bf16.msra.mxu0 %v800
  %6315 = vmatprep.subr.bf16.mxu0 0
  %6316 = vmatpush1.bf16.msra.mxu0 0
  %6317 = vmatprep.subr.bf16.mxu0 0
  %6318 = vmatpush1.bf16.msra.mxu0 0
  %6319 = vmatprep.subr.bf16.mxu0 0
  %6320 = vmatpush1.bf16.msra.mxu0 0
  %6321 = vmatprep.subr.bf16.mxu0 0
  %6322 = vmatpush1.bf16.msra.mxu0 0
  %6323 = vmatprep.subr.bf16.mxu0 0
  %6324 = vmatpush1.bf16.msra.mxu0 0
  %6325 = vmatprep.subr.bf16.mxu0 0
  %6326 = vmatpush1.bf16.msra.mxu0 0
  %6327 = vmatprep.subr.bf16.mxu0 0
  %6328 = vmatpush1.bf16.msra.mxu0 0
  %6329 = vmatprep.subr.bf16.mxu0 0
  %6330 = vmatpush1.bf16.msra.mxu0 0
  %6331 = vmatprep.subr.bf16.mxu0 0
  %6332 = vmatpush1.bf16.msra.mxu0 0
  %6333 = vmatprep.subr.bf16.mxu0 0
  %6334 = vmatpush1.bf16.msra.mxu0 0
  %6335 = vmatprep.subr.bf16.mxu0 0
  %6336 = vmatpush1.bf16.msra.mxu0 0
  %6337 = vmatprep.subr.bf16.mxu0 0
  %6338 = vmatpush1.bf16.msra.mxu0 0
  %6339 = vmatprep.subr.bf16.mxu0 0
  %6340 = vmatpush1.bf16.msra.mxu0 0
  %6341 = vmatprep.subr.bf16.mxu0 0
  %6342 = vmatpush1.bf16.msra.mxu0 0
  %6343 = vmatprep.mubr.bf16.mxu0 0
  %6344 = vmatmul.mubr.bf16.gmra.mrb[0].mxu0 %v6309
  %v6345 = vpop.f32.mrb[0].mxu0
  %v6346 = vadd.f32 %v786, %v6345
  %v6347 = vpop.f32.mrb[0].mxu0
  %v6348 = vpop.f32.mrb[0].mxu0
  %v6349 = vpop.f32.mrb[0].mxu0
  %6350 = vdwg.mxu0
  %v6351 = vtanh.pop %v6346
  %v6352 = vpack.c.bf16 %v6351, %v6351
  %v6354 = vsel %vm878, %v6352, 0
  %6356 = vmatprep.subr.bf16.mxu0 0
  %6357 = vmatpush1.bf16.msra.mxu0 %v870
  %6358 = vmatprep.subr.bf16.mxu0 0
  %6359 = vmatpush1.bf16.msra.mxu0 %v871
  %6360 = vmatprep.subr.bf16.mxu0 0
  %6361 = vmatpush1.bf16.msra.mxu0 %v872
  %6362 = vmatprep.subr.bf16.mxu0 0
  %6363 = vmatpush1.bf16.msra.mxu0 %v873
  %6364 = vmatprep.subr.bf16.mxu0 0
  %6365 = vmatpush1.bf16.msra.mxu0 0
  %6366 = vmatprep.subr.bf16.mxu0 0
  %6367 = vmatpush1.bf16.msra.mxu0 0
  %6368 = vmatprep.subr.bf16.mxu0 0
  %6369 = vmatpush1.bf16.msra.mxu0 0
  %6370 = vmatprep.subr.bf16.mxu0 0
  %6371 = vmatpush1.bf16.msra.mxu0 0
  %6372 = vmatprep.subr.bf16.mxu0 0
  %6373 = vmatpush1.bf16.msra.mxu0 0
  %6374 = vmatprep.subr.bf16.mxu0 0
  %6375 = vmatpush1.bf16.msra.mxu0 0
  %6376 = vmatprep.subr.bf16.mxu0 0
  %6377 = vmatpush1.bf16.msra.mxu0 0
  %6378 = vmatprep.subr.bf16.mxu0 0
  %6379 = vmatpush1.bf16.msra.mxu0 0
  %6380 = vmatprep.subr.bf16.mxu0 0
  %6381 = vmatpush1.bf16.msra.mxu0 0
  %6382 = vmatprep.subr.bf16.mxu0 0
  %6383 = vmatpush1.bf16.msra.mxu0 0
  %6384 = vmatprep.subr.bf16.mxu0 0
  %6385 = vmatpush1.bf16.msra.mxu0 0
  %6386 = vmatprep.subr.bf16.mxu0 0
  %6387 = vmatpush1.bf16.msra.mxu0 0
  %6388 = vmatprep.mubr.bf16.mxu0 0
  %6389 = vmatmul.mubr.bf16.gmra.mrb[0].mxu0 %v6354
  %v6390 = vpop.f32.mrb[0].mxu0
  %v6391 = vadd.f32 %v852, %v6390
  %v6392 = vpop.f32.mrb[0].mxu0
  %v6393 = vpop.f32.mrb[0].mxu0
  %v6394 = vpop.f32.mrb[0].mxu0
  %6395 = vdwg.mxu0
  %v6396 = vmul.f32 %v6293, 0.008333334
  %6398 = vrot.lane.b32.xlu0 %v6396, 96
  %v6399 = vpop.permute.xlu0 %6398
  %v6401 = vadd.f32 %v6205, %v6399
  %v6402 = vmul.f32 %v6391, 0.025
  %6404 = vrot.lane.b32.xlu0 %v6402, 96
  %v6405 = vpop.permute.xlu0 %6404
  %v6407 = vadd.f32 %v6401, %v6405
  %v6408 = vpack.c.bf16 %v6407, %v6407
  %6410 = vrot.lane.b32.xlu0 %v6408, 32
  %v6411 = vpop.permute.xlu0 %6410
  %v6413 = vsel %vm172, %v6411, 0
  %6415 = vmatprep.subr.bf16.mxu0 0
  %6416 = vmatpush1.bf16.msra.mxu0 %v799
  %6417 = vmatprep.subr.bf16.mxu0 0
  %6418 = vmatpush1.bf16.msra.mxu0 %v800
  %6419 = vmatprep.subr.bf16.mxu0 0
  %6420 = vmatpush1.bf16.msra.mxu0 0
  %6421 = vmatprep.subr.bf16.mxu0 0
  %6422 = vmatpush1.bf16.msra.mxu0 0
  %6423 = vmatprep.subr.bf16.mxu0 0
  %6424 = vmatpush1.bf16.msra.mxu0 0
  %6425 = vmatprep.subr.bf16.mxu0 0
  %6426 = vmatpush1.bf16.msra.mxu0 0
  %6427 = vmatprep.subr.bf16.mxu0 0
  %6428 = vmatpush1.bf16.msra.mxu0 0
  %6429 = vmatprep.subr.bf16.mxu0 0
  %6430 = vmatpush1.bf16.msra.mxu0 0
  %6431 = vmatprep.subr.bf16.mxu0 0
  %6432 = vmatpush1.bf16.msra.mxu0 0
  %6433 = vmatprep.subr.bf16.mxu0 0
  %6434 = vmatpush1.bf16.msra.mxu0 0
  %6435 = vmatprep.subr.bf16.mxu0 0
  %6436 = vmatpush1.bf16.msra.mxu0 0
  %6437 = vmatprep.subr.bf16.mxu0 0
  %6438 = vmatpush1.bf16.msra.mxu0 0
  %6439 = vmatprep.subr.bf16.mxu0 0
  %6440 = vmatpush1.bf16.msra.mxu0 0
  %6441 = vmatprep.subr.bf16.mxu0 0
  %6442 = vmatpush1.bf16.msra.mxu0 0
  %6443 = vmatprep.subr.bf16.mxu0 0
  %6444 = vmatpush1.bf16.msra.mxu0 0
  %6445 = vmatprep.subr.bf16.mxu0 0
  %6446 = vmatpush1.bf16.msra.mxu0 0
  %6447 = vmatprep.mubr.bf16.mxu0 0
  %6448 = vmatmul.mubr.bf16.gmra.mrb[0].mxu0 %v6413
  %v6449 = vpop.f32.mrb[0].mxu0
  %v6450 = vadd.f32 %v786, %v6449
  %v6451 = vpop.f32.mrb[0].mxu0
  %v6452 = vpop.f32.mrb[0].mxu0
  %v6453 = vpop.f32.mrb[0].mxu0
  %6454 = vdwg.mxu0
  %v6455 = vtanh.pop %v6450
  %v6456 = vpack.c.bf16 %v6455, %v6455
  %v6458 = vsel %vm878, %v6456, 0
  %6460 = vmatprep.subr.bf16.mxu0 0
  %6461 = vmatpush1.bf16.msra.mxu0 %v870
  %6462 = vmatprep.subr.bf16.mxu0 0
  %6463 = vmatpush1.bf16.msra.mxu0 %v871
  %6464 = vmatprep.subr.bf16.mxu0 0
  %6465 = vmatpush1.bf16.msra.mxu0 %v872
  %6466 = vmatprep.subr.bf16.mxu0 0
  %6467 = vmatpush1.bf16.msra.mxu0 %v873
  %6468 = vmatprep.subr.bf16.mxu0 0
  %6469 = vmatpush1.bf16.msra.mxu0 0
  %6470 = vmatprep.subr.bf16.mxu0 0
  %6471 = vmatpush1.bf16.msra.mxu0 0
  %6472 = vmatprep.subr.bf16.mxu0 0
  %6473 = vmatpush1.bf16.msra.mxu0 0
  %6474 = vmatprep.subr.bf16.mxu0 0
  %6475 = vmatpush1.bf16.msra.mxu0 0
  %6476 = vmatprep.subr.bf16.mxu0 0
  %6477 = vmatpush1.bf16.msra.mxu0 0
  %6478 = vmatprep.subr.bf16.mxu0 0
  %6479 = vmatpush1.bf16.msra.mxu0 0
  %6480 = vmatprep.subr.bf16.mxu0 0
  %6481 = vmatpush1.bf16.msra.mxu0 0
  %6482 = vmatprep.subr.bf16.mxu0 0
  %6483 = vmatpush1.bf16.msra.mxu0 0
  %6484 = vmatprep.subr.bf16.mxu0 0
  %6485 = vmatpush1.bf16.msra.mxu0 0
  %6486 = vmatprep.subr.bf16.mxu0 0
  %6487 = vmatpush1.bf16.msra.mxu0 0
  %6488 = vmatprep.subr.bf16.mxu0 0
  %6489 = vmatpush1.bf16.msra.mxu0 0
  %6490 = vmatprep.subr.bf16.mxu0 0
  %6491 = vmatpush1.bf16.msra.mxu0 0
  %6492 = vmatprep.mubr.bf16.mxu0 0
  %6493 = vmatmul.mubr.bf16.gmra.mrb[0].mxu0 %v6458
  %v6494 = vpop.f32.mrb[0].mxu0
  %v6495 = vadd.f32 %v852, %v6494
  %v6496 = vpop.f32.mrb[0].mxu0
  %v6497 = vpop.f32.mrb[0].mxu0
  %v6498 = vpop.f32.mrb[0].mxu0
  %6499 = vdwg.mxu0
  %v6500 = vmul.f32 %v6293, 0.108641975
  %6502 = vrot.lane.b32.xlu0 %v6500, 96
  %v6503 = vpop.permute.xlu0 %6502
  %v6505 = vadd.f32 %v6205, %v6503
  %v6506 = vmul.f32 %v6391, -0.4148148
  %6508 = vrot.lane.b32.xlu0 %v6506, 96
  %v6509 = vpop.permute.xlu0 %6508
  %v6511 = vadd.f32 %v6505, %v6509
  %v6512 = vmul.f32 %v6495, 0.39506173
  %6514 = vrot.lane.b32.xlu0 %v6512, 96
  %v6515 = vpop.permute.xlu0 %6514
  %v6517 = vadd.f32 %v6511, %v6515
  %v6518 = vpack.c.bf16 %v6517, %v6517
  %6520 = vrot.lane.b32.xlu0 %v6518, 32
  %v6521 = vpop.permute.xlu0 %6520
  %v6523 = vsel %vm172, %v6521, 0
  %6525 = vmatprep.subr.bf16.mxu0 0
  %6526 = vmatpush1.bf16.msra.mxu0 %v799
  %6527 = vmatprep.subr.bf16.mxu0 0
  %6528 = vmatpush1.bf16.msra.mxu0 %v800
  %6529 = vmatprep.subr.bf16.mxu0 0
  %6530 = vmatpush1.bf16.msra.mxu0 0
  %6531 = vmatprep.subr.bf16.mxu0 0
  %6532 = vmatpush1.bf16.msra.mxu0 0
  %6533 = vmatprep.subr.bf16.mxu0 0
  %6534 = vmatpush1.bf16.msra.mxu0 0
  %6535 = vmatprep.subr.bf16.mxu0 0
  %6536 = vmatpush1.bf16.msra.mxu0 0
  %6537 = vmatprep.subr.bf16.mxu0 0
  %6538 = vmatpush1.bf16.msra.mxu0 0
  %6539 = vmatprep.subr.bf16.mxu0 0
  %6540 = vmatpush1.bf16.msra.mxu0 0
  %6541 = vmatprep.subr.bf16.mxu0 0
  %6542 = vmatpush1.bf16.msra.mxu0 0
  %6543 = vmatprep.subr.bf16.mxu0 0
  %6544 = vmatpush1.bf16.msra.mxu0 0
  %6545 = vmatprep.subr.bf16.mxu0 0
  %6546 = vmatpush1.bf16.msra.mxu0 0
  %6547 = vmatprep.subr.bf16.mxu0 0
  %6548 = vmatpush1.bf16.msra.mxu0 0
  %6549 = vmatprep.subr.bf16.mxu0 0
  %6550 = vmatpush1.bf16.msra.mxu0 0
  %6551 = vmatprep.subr.bf16.mxu0 0
  %6552 = vmatpush1.bf16.msra.mxu0 0
  %6553 = vmatprep.subr.bf16.mxu0 0
  %6554 = vmatpush1.bf16.msra.mxu0 0
  %6555 = vmatprep.subr.bf16.mxu0 0
  %6556 = vmatpush1.bf16.msra.mxu0 0
  %6557 = vmatprep.mubr.bf16.mxu0 0
  %6558 = vmatmul.mubr.bf16.gmra.mrb[0].mxu0 %v6523
  %v6559 = vpop.f32.mrb[0].mxu0
  %v6560 = vadd.f32 %v786, %v6559
  %v6561 = vpop.f32.mrb[0].mxu0
  %v6562 = vpop.f32.mrb[0].mxu0
  %v6563 = vpop.f32.mrb[0].mxu0
  %6564 = vdwg.mxu0
  %v6565 = vtanh.pop %v6560
  %v6566 = vpack.c.bf16 %v6565, %v6565
  %v6568 = vsel %vm878, %v6566, 0
  %6570 = vmatprep.subr.bf16.mxu0 0
  %6571 = vmatpush1.bf16.msra.mxu0 %v870
  %6572 = vmatprep.subr.bf16.mxu0 0
  %6573 = vmatpush1.bf16.msra.mxu0 %v871
  %6574 = vmatprep.subr.bf16.mxu0 0
  %6575 = vmatpush1.bf16.msra.mxu0 %v872
  %6576 = vmatprep.subr.bf16.mxu0 0
  %6577 = vmatpush1.bf16.msra.mxu0 %v873
  %6578 = vmatprep.subr.bf16.mxu0 0
  %6579 = vmatpush1.bf16.msra.mxu0 0
  %6580 = vmatprep.subr.bf16.mxu0 0
  %6581 = vmatpush1.bf16.msra.mxu0 0
  %6582 = vmatprep.subr.bf16.mxu0 0
  %6583 = vmatpush1.bf16.msra.mxu0 0
  %6584 = vmatprep.subr.bf16.mxu0 0
  %6585 = vmatpush1.bf16.msra.mxu0 0
  %6586 = vmatprep.subr.bf16.mxu0 0
  %6587 = vmatpush1.bf16.msra.mxu0 0
  %6588 = vmatprep.subr.bf16.mxu0 0
  %6589 = vmatpush1.bf16.msra.mxu0 0
  %6590 = vmatprep.subr.bf16.mxu0 0
  %6591 = vmatpush1.bf16.msra.mxu0 0
  %6592 = vmatprep.subr.bf16.mxu0 0
  %6593 = vmatpush1.bf16.msra.mxu0 0
  %6594 = vmatprep.subr.bf16.mxu0 0
  %6595 = vmatpush1.bf16.msra.mxu0 0
  %6596 = vmatprep.subr.bf16.mxu0 0
  %6597 = vmatpush1.bf16.msra.mxu0 0
  %6598 = vmatprep.subr.bf16.mxu0 0
  %6599 = vmatpush1.bf16.msra.mxu0 0
  %6600 = vmatprep.subr.bf16.mxu0 0
  %6601 = vmatpush1.bf16.msra.mxu0 0
  %6602 = vmatprep.mubr.bf16.mxu0 0
  %6603 = vmatmul.mubr.bf16.gmra.mrb[0].mxu0 %v6568
  %v6604 = vpop.f32.mrb[0].mxu0
  %v6605 = vadd.f32 %v852, %v6604
  %v6606 = vpop.f32.mrb[0].mxu0
  %v6607 = vpop.f32.mrb[0].mxu0
  %v6608 = vpop.f32.mrb[0].mxu0
  %6609 = vdwg.mxu0
  %v6610 = vmul.f32 %v6293, 0.32806653
  %6612 = vrot.lane.b32.xlu0 %v6610, 96
  %v6613 = vpop.permute.xlu0 %6612
  %v6615 = vadd.f32 %v6205, %v6613
  %v6616 = vmul.f32 %v6391, -1.2884215
  %6618 = vrot.lane.b32.xlu0 %v6616, 96
  %v6619 = vpop.permute.xlu0 %6618
  %v6621 = vadd.f32 %v6615, %v6619
  %v6622 = vmul.f32 %v6495, 1.0914326
  %6624 = vrot.lane.b32.xlu0 %v6622, 96
  %v6625 = vpop.permute.xlu0 %6624
  %v6627 = vadd.f32 %v6621, %v6625
  %v6628 = vmul.f32 %v6605, -0.032312147
  %6630 = vrot.lane.b32.xlu0 %v6628, 96
  %v6631 = vpop.permute.xlu0 %6630
  %v6633 = vadd.f32 %v6627, %v6631
  %v6634 = vpack.c.bf16 %v6633, %v6633
  %6636 = vrot.lane.b32.xlu0 %v6634, 32
  %v6637 = vpop.permute.xlu0 %6636
  %v6639 = vsel %vm172, %v6637, 0
  %6641 = vmatprep.subr.bf16.mxu0 0
  %6642 = vmatpush1.bf16.msra.mxu0 %v799
  %6643 = vmatprep.subr.bf16.mxu0 0
  %6644 = vmatpush1.bf16.msra.mxu0 %v800
  %6645 = vmatprep.subr.bf16.mxu0 0
  %6646 = vmatpush1.bf16.msra.mxu0 0
  %6647 = vmatprep.subr.bf16.mxu0 0
  %6648 = vmatpush1.bf16.msra.mxu0 0
  %6649 = vmatprep.subr.bf16.mxu0 0
  %6650 = vmatpush1.bf16.msra.mxu0 0
  %6651 = vmatprep.subr.bf16.mxu0 0
  %6652 = vmatpush1.bf16.msra.mxu0 0
  %6653 = vmatprep.subr.bf16.mxu0 0
  %6654 = vmatpush1.bf16.msra.mxu0 0
  %6655 = vmatprep.subr.bf16.mxu0 0
  %6656 = vmatpush1.bf16.msra.mxu0 0
  %6657 = vmatprep.subr.bf16.mxu0 0
  %6658 = vmatpush1.bf16.msra.mxu0 0
  %6659 = vmatprep.subr.bf16.mxu0 0
  %6660 = vmatpush1.bf16.msra.mxu0 0
  %6661 = vmatprep.subr.bf16.mxu0 0
  %6662 = vmatpush1.bf16.msra.mxu0 0
  %6663 = vmatprep.subr.bf16.mxu0 0
  %6664 = vmatpush1.bf16.msra.mxu0 0
  %6665 = vmatprep.subr.bf16.mxu0 0
  %6666 = vmatpush1.bf16.msra.mxu0 0
  %6667 = vmatprep.subr.bf16.mxu0 0
  %6668 = vmatpush1.bf16.msra.mxu0 0
  %6669 = vmatprep.subr.bf16.mxu0 0
  %6670 = vmatpush1.bf16.msra.mxu0 0
  %6671 = vmatprep.subr.bf16.mxu0 0
  %6672 = vmatpush1.bf16.msra.mxu0 0
  %6673 = vmatprep.mubr.bf16.mxu0 0
  %6674 = vmatmul.mubr.bf16.gmra.mrb[0].mxu0 %v6639
  %v6675 = vpop.f32.mrb[0].mxu0
  %v6676 = vadd.f32 %v786, %v6675
  %v6677 = vpop.f32.mrb[0].mxu0
  %v6678 = vpop.f32.mrb[0].mxu0
  %v6679 = vpop.f32.mrb[0].mxu0
  %6680 = vdwg.mxu0
  %v6681 = vtanh.pop %v6676
  %v6682 = vpack.c.bf16 %v6681, %v6681
  %v6684 = vsel %vm878, %v6682, 0
  %6686 = vmatprep.subr.bf16.mxu0 0
  %6687 = vmatpush1.bf16.msra.mxu0 %v870
  %6688 = vmatprep.subr.bf16.mxu0 0
  %6689 = vmatpush1.bf16.msra.mxu0 %v871
  %6690 = vmatprep.subr.bf16.mxu0 0
  %6691 = vmatpush1.bf16.msra.mxu0 %v872
  %6692 = vmatprep.subr.bf16.mxu0 0
  %6693 = vmatpush1.bf16.msra.mxu0 %v873
  %6694 = vmatprep.subr.bf16.mxu0 0
  %6695 = vmatpush1.bf16.msra.mxu0 0
  %6696 = vmatprep.subr.bf16.mxu0 0
  %6697 = vmatpush1.bf16.msra.mxu0 0
  %6698 = vmatprep.subr.bf16.mxu0 0
  %6699 = vmatpush1.bf16.msra.mxu0 0
  %6700 = vmatprep.subr.bf16.mxu0 0
  %6701 = vmatpush1.bf16.msra.mxu0 0
  %6702 = vmatprep.subr.bf16.mxu0 0
  %6703 = vmatpush1.bf16.msra.mxu0 0
  %6704 = vmatprep.subr.bf16.mxu0 0
  %6705 = vmatpush1.bf16.msra.mxu0 0
  %6706 = vmatprep.subr.bf16.mxu0 0
  %6707 = vmatpush1.bf16.msra.mxu0 0
  %6708 = vmatprep.subr.bf16.mxu0 0
  %6709 = vmatpush1.bf16.msra.mxu0 0
  %6710 = vmatprep.subr.bf16.mxu0 0
  %6711 = vmatpush1.bf16.msra.mxu0 0
  %6712 = vmatprep.subr.bf16.mxu0 0
  %6713 = vmatpush1.bf16.msra.mxu0 0
  %6714 = vmatprep.subr.bf16.mxu0 0
  %6715 = vmatpush1.bf16.msra.mxu0 0
  %6716 = vmatprep.subr.bf16.mxu0 0
  %6717 = vmatpush1.bf16.msra.mxu0 0
  %6718 = vmatprep.mubr.bf16.mxu0 0
  %6719 = vmatmul.mubr.bf16.gmra.mrb[0].mxu0 %v6684
  %v6720 = vpop.f32.mrb[0].mxu0
  %v6721 = vadd.f32 %v852, %v6720
  %v6722 = vpop.f32.mrb[0].mxu0
  %v6723 = vpop.f32.mrb[0].mxu0
  %v6724 = vpop.f32.mrb[0].mxu0
  %6725 = vdwg.mxu0
  %v6726 = vmul.f32 %v6293, 0.3162528
  %6728 = vrot.lane.b32.xlu0 %v6726, 96
  %v6729 = vpop.permute.xlu0 %6728
  %v6731 = vadd.f32 %v6205, %v6729
  %v6732 = vmul.f32 %v6391, -1.1952862
  %6734 = vrot.lane.b32.xlu0 %v6732, 96
  %v6735 = vpop.permute.xlu0 %6734
  %v6737 = vadd.f32 %v6731, %v6735
  %v6738 = vmul.f32 %v6495, 0.9896025
  %6740 = vrot.lane.b32.xlu0 %v6738, 96
  %v6741 = vpop.permute.xlu0 %6740
  %v6743 = vadd.f32 %v6737, %v6741
  %v6744 = vmul.f32 %v6605, 0.030934343
  %6746 = vrot.lane.b32.xlu0 %v6744, 96
  %v6747 = vpop.permute.xlu0 %6746
  %v6749 = vadd.f32 %v6743, %v6747
  %v6750 = vmul.f32 %v6721, -0.030392367
  %6752 = vrot.lane.b32.xlu0 %v6750, 96
  %v6753 = vpop.permute.xlu0 %6752
  %v6755 = vadd.f32 %v6749, %v6753
  %v6756 = vpack.c.bf16 %v6755, %v6755
  %6758 = vrot.lane.b32.xlu0 %v6756, 32
  %v6759 = vpop.permute.xlu0 %6758
  %v6761 = vsel %vm172, %v6759, 0
  %6763 = vmatprep.subr.bf16.mxu0 0
  %6764 = vmatpush1.bf16.msra.mxu0 %v799
  %6765 = vmatprep.subr.bf16.mxu0 0
  %6766 = vmatpush1.bf16.msra.mxu0 %v800
  %6767 = vmatprep.subr.bf16.mxu0 0
  %6768 = vmatpush1.bf16.msra.mxu0 0
  %6769 = vmatprep.subr.bf16.mxu0 0
  %6770 = vmatpush1.bf16.msra.mxu0 0
  %6771 = vmatprep.subr.bf16.mxu0 0
  %6772 = vmatpush1.bf16.msra.mxu0 0
  %6773 = vmatprep.subr.bf16.mxu0 0
  %6774 = vmatpush1.bf16.msra.mxu0 0
  %6775 = vmatprep.subr.bf16.mxu0 0
  %6776 = vmatpush1.bf16.msra.mxu0 0
  %6777 = vmatprep.subr.bf16.mxu0 0
  %6778 = vmatpush1.bf16.msra.mxu0 0
  %6779 = vmatprep.subr.bf16.mxu0 0
  %6780 = vmatpush1.bf16.msra.mxu0 0
  %6781 = vmatprep.subr.bf16.mxu0 0
  %6782 = vmatpush1.bf16.msra.mxu0 0
  %6783 = vmatprep.subr.bf16.mxu0 0
  %6784 = vmatpush1.bf16.msra.mxu0 0
  %6785 = vmatprep.subr.bf16.mxu0 0
  %6786 = vmatpush1.bf16.msra.mxu0 0
  %6787 = vmatprep.subr.bf16.mxu0 0
  %6788 = vmatpush1.bf16.msra.mxu0 0
  %6789 = vmatprep.subr.bf16.mxu0 0
  %6790 = vmatpush1.bf16.msra.mxu0 0
  %6791 = vmatprep.subr.bf16.mxu0 0
  %6792 = vmatpush1.bf16.msra.mxu0 0
  %6793 = vmatprep.subr.bf16.mxu0 0
  %6794 = vmatpush1.bf16.msra.mxu0 0
  %6795 = vmatprep.mubr.bf16.mxu0 0
  %6796 = vmatmul.mubr.bf16.gmra.mrb[0].mxu0 %v6761
  %v6797 = vpop.f32.mrb[0].mxu0
  %v6798 = vadd.f32 %v786, %v6797
  %v6799 = vpop.f32.mrb[0].mxu0
  %v6800 = vpop.f32.mrb[0].mxu0
  %v6801 = vpop.f32.mrb[0].mxu0
  %6802 = vdwg.mxu0
  %v6803 = vtanh.pop %v6798
  %v6804 = vpack.c.bf16 %v6803, %v6803
  %v6806 = vsel %vm878, %v6804, 0
  %6808 = vmatprep.subr.bf16.mxu0 0
  %6809 = vmatpush1.bf16.msra.mxu0 %v870
  %6810 = vmatprep.subr.bf16.mxu0 0
  %6811 = vmatpush1.bf16.msra.mxu0 %v871
  %6812 = vmatprep.subr.bf16.mxu0 0
  %6813 = vmatpush1.bf16.msra.mxu0 %v872
  %6814 = vmatprep.subr.bf16.mxu0 0
  %6815 = vmatpush1.bf16.msra.mxu0 %v873
  %6816 = vmatprep.subr.bf16.mxu0 0
  %6817 = vmatpush1.bf16.msra.mxu0 0
  %6818 = vmatprep.subr.bf16.mxu0 0
  %6819 = vmatpush1.bf16.msra.mxu0 0
  %6820 = vmatprep.subr.bf16.mxu0 0
  %6821 = vmatpush1.bf16.msra.mxu0 0
  %6822 = vmatprep.subr.bf16.mxu0 0
  %6823 = vmatpush1.bf16.msra.mxu0 0
  %6824 = vmatprep.subr.bf16.mxu0 0
  %6825 = vmatpush1.bf16.msra.mxu0 0
  %6826 = vmatprep.subr.bf16.mxu0 0
  %6827 = vmatpush1.bf16.msra.mxu0 0
  %6828 = vmatprep.subr.bf16.mxu0 0
  %6829 = vmatpush1.bf16.msra.mxu0 0
  %6830 = vmatprep.subr.bf16.mxu0 0
  %6831 = vmatpush1.bf16.msra.mxu0 0
  %6832 = vmatprep.subr.bf16.mxu0 0
  %6833 = vmatpush1.bf16.msra.mxu0 0
  %6834 = vmatprep.subr.bf16.mxu0 0
  %6835 = vmatpush1.bf16.msra.mxu0 0
  %6836 = vmatprep.subr.bf16.mxu0 0
  %6837 = vmatpush1.bf16.msra.mxu0 0
  %6838 = vmatprep.subr.bf16.mxu0 0
  %6839 = vmatpush1.bf16.msra.mxu0 0
  %6840 = vmatprep.mubr.bf16.mxu0 0
  %6841 = vmatmul.mubr.bf16.gmra.mrb[0].mxu0 %v6806
  %v6842 = vpop.f32.mrb[0].mxu0
  %v6843 = vadd.f32 %v852, %v6842
  %v6844 = vpop.f32.mrb[0].mxu0
  %v6845 = vpop.f32.mrb[0].mxu0
  %v6846 = vpop.f32.mrb[0].mxu0
  %6847 = vdwg.mxu0
  %v6848 = vmul.f32 %v6293, 0.010127314
  %6850 = vrot.lane.b32.xlu0 %v6848, 96
  %v6851 = vpop.permute.xlu0 %6850
  %v6853 = vadd.f32 %v6205, %v6851
  %v6854 = vmul.f32 %v6495, 0.049915146
  %6856 = vrot.lane.b32.xlu0 %v6854, 96
  %v6857 = vpop.permute.xlu0 %6856
  %v6859 = vadd.f32 %v6853, %v6857
  %v6860 = vmul.f32 %v6605, 0.07233796
  %6862 = vrot.lane.b32.xlu0 %v6860, 96
  %v6863 = vpop.permute.xlu0 %6862
  %v6865 = vadd.f32 %v6859, %v6863
  %v6866 = vmul.f32 %v6721, -0.035819575
  %6868 = vrot.lane.b32.xlu0 %v6866, 96
  %v6869 = vpop.permute.xlu0 %6868
  %v6871 = vadd.f32 %v6865, %v6869
  %v6872 = vmul.f32 %v6843, 0.014550265
  %6874 = vrot.lane.b32.xlu0 %v6872, 96
  %v6875 = vpop.permute.xlu0 %6874
  %v6877 = vadd.f32 %v6871, %v6875
  %v6878 = vld [vmem:[%s8] sm:$0x1]
  %v6879 = vld [vmem:[#allocation3] sm:$0x1]
  %v6881 = vlaneseq
  %v6882 = vshrl.u32 %v6881, 7
  %v6883 = vsub.s32 0, %v6882
  %v6884 = vrot.slane %v6878, %v6883
  %6885 = vrot.lane.b32.xlu0 %v6884, 96
  %v6886 = vpop.permute.xlu0 %6885
  %v6888 = vmul.f32 %v6877, %v6886
  %6890 = vrot.lane.b32.xlu0 %v6888, 32
  %v6891 = vpop.permute.xlu0 %6890
  %vm6893 = vcmask 254976
  %v6894 = vsel %vm6893, %v6891, 0.0
  %6895 = vadd.xlane.f32.xlu0 %v6894
  %v6896 = vpop.xlane.xlu0 %6895
  %v6898 = vlaneseq
  %v6899 = vshrl.u32 %v6898, 7
  %v6900 = vsub.s32 0, %v6899
  %v6901 = vrot.slane %v6879, %v6900
  %v6903 = vadd.f32 %v6896, %v6901
  %vm6904 = vcmask 1024
  %6905 = vst.msk [vmem:[%s10] sm:$0x3] %vm6904, %v6903
  // Predicated region
  $region42: #{lstm_ode_forward.1} parent=0 // pred_check
    _
  $region43: #{lstm_ode_forward.1} parent=0 // pred_check_branch
    %6907 = sbr.rel (0) target = $region45
  $region44: #{lstm_ode_forward.1} parent=0 // pred_region
    _
  $region45: #{lstm_ode_forward.1} parent=0 // pred_fallthru
    _
  // Predicated region
  $region46: #{lstm_ode_forward.1} parent=0 // pred_check
    _
  $region47: #{lstm_ode_forward.1} parent=0 // pred_check_branch
    %6909 = sbr.rel (0) target = $region49
  $region48: #{lstm_ode_forward.1} parent=0 // pred_region
    _
  $region49: #{lstm_ode_forward.1} parent=0 // pred_fallthru
    _

</llo_original>
